<compile_context>
chip_gen: v7x
topology: tpu7x:2x2x1
jax: 0.10.0
libtpu: 0.0.40
codegen_flags: <defaults>
</compile_context>

<pallas_src>
import functools

import jax
import jax.numpy as jnp
import numpy as np
from jax import lax
from jax.experimental import pallas as pl
from jax.experimental.pallas import tpu as pltpu

EPS = 1e-6  # matches RMSNorm(dim, eps=1e-06) in the PyTorch module


def _rmsnorm(x, w):
    # RMSNorm: x * rsqrt(mean(x^2, -1) + eps) * w   (all f32)
    ms = jnp.mean(x * x, axis=-1, keepdims=True)
    return x * lax.rsqrt(ms + EPS) * w


def _prelu(x, a):
    # PReLU: max(0,x) + a*min(0,x), per-feature slope a
    return jnp.where(x >= 0, x, a * x)


def reg_gru_kernel(
    x_ref,      # (1, S*TB, D)   time-major rows within the batch tile (row = t*TB + b)
    fc_w_ref,   # (D, H2)
    gru_w_ref,  # (L, 2, H2, 3H2)  [0]=fused input weights, [1]=fused hidden weights; gates [r|z|n]
    gru_b_ref,  # (L, 4H2)         [b_ir+b_hr | b_iz+b_hz | b_in | b_hn]
    reg_w_ref,  # (H2, D)
    vec_h_ref,  # (3, H2)          [fc_b ; rms1_w ; prelu1_a]
    vec_d_ref,  # (3, D)           [reg_b ; rms2_w ; prelu2_a]
    out_ref,    # (1, S*TB, D)
    *,
    seq_len,
    batch_tile,
):
    S = seq_len
    TB = batch_tile
    L = gru_w_ref.shape[0]
    H2 = gru_w_ref.shape[2]
    H6 = 3 * H2

    x = x_ref[0]  # (S*TB, D) f32, time-major

    fc_b = vec_h_ref[0:1, :]
    rms1_w = vec_h_ref[1:2, :]
    prelu1 = vec_h_ref[2:3, :]
    reg_b = vec_d_ref[0:1, :]
    rms2_w = vec_d_ref[1:2, :]
    prelu2 = vec_d_ref[2:3, :]

    # ---- fc: Linear -> RMSNorm -> PReLU, one batched (S*TB,D)@(D,H2) matmul ----
    m = jnp.dot(x, fc_w_ref[...], preferred_element_type=jnp.float32) + fc_b
    m = _prelu(_rmsnorm(m, rms1_w), prelu1)

    # ---- multi-layer GRU: layer-outer / time-inner, batch-amortized ----
    seq = m  # (S*TB, H2): time-major input sequence to the current layer
    for l in range(L):
        wi = gru_w_ref[l, 0, :, :]          # (H2, 3H2)
        wh = gru_w_ref[l, 1, :, :]          # (H2, 3H2)
        bi = gru_b_ref[l:l + 1, 0:H6]       # (1, 3H2)  folded [b_ir+b_hr | b_iz+b_hz | b_in]
        bhn = gru_b_ref[l:l + 1, H6:H6 + H2]  # (1, H2)  b_hn stays inside r*(W_hn h + b_hn)

        # All input-gate projections for the whole sequence & batch tile: one MXU matmul.
        ig = jnp.dot(seq, wi, preferred_element_type=jnp.float32) + bi  # (S*TB, 3H2)

        h = jnp.zeros((TB, H2), jnp.float32)
        outs = []
        # S is tiny -> full static unroll. For long sequences use
        # lax.fori_loop(..., unroll=k) with ig staged in VMEM scratch.
        for t in range(S):
            it = ig[t * TB:(t + 1) * TB, :]                           # (TB, 3H2) off-chain slice
            hg = jnp.dot(h, wh, preferred_element_type=jnp.float32)   # (TB, 3H2) serial-chain matmul
            # ONE sigmoid over the fused [r|z] block (2 EUP pushes per step total).
            rz = jax.nn.sigmoid(it[:, :2 * H2] + hg[:, :2 * H2])
            r = rz[:, :H2]
            z = rz[:, H2:]
            n = jnp.tanh(it[:, 2 * H2:] + r * (hg[:, 2 * H2:] + bhn))
            h = n + z * (h - n)                                       # == (1-z)*n + z*h
            outs.append(h)
        seq = jnp.concatenate(outs, axis=0)  # (S*TB, H2) time-major output of this layer

    # ---- sigmoid gating + reg head + residual ----
    att = jax.nn.sigmoid(seq) + jax.nn.sigmoid(m)
    p = m * att                                                        # (S*TB, H2)
    y = jnp.dot(p, reg_w_ref[...], preferred_element_type=jnp.float32) + reg_b
    y = _prelu(_rmsnorm(y, rms2_w), prelu2)
    out_ref[0] = y + x


def reg_gru_forward(x, params, *, batch_tile=None):
    S, B, D = x.shape
    H2 = params["fc_w"].shape[1]
    L = params["gru_wi"].shape[0]
    H6 = 3 * H2

    # Default: 2 grid steps so v7x's two TensorCores split the batch.
    # On v5e/v6e (single TC), pass batch_tile=B for maximal row amortization.
    if batch_tile is None:
        batch_tile = B // 2 if (B >= 2 and B % 2 == 0) else B
    TB = batch_tile
    assert B % TB == 0, "batch must be divisible by batch_tile"
    G = B // TB

    # ---- wrapper-side gate fusion, bias folding, parameter packing (layout plumbing) ----
    wi = jnp.concatenate([params["gru_wi"][:, g] for g in range(3)], axis=-1)  # (L, H2, 3H2)
    wh = jnp.concatenate([params["gru_wh"][:, g] for g in range(3)], axis=-1)  # (L, H2, 3H2)
    gru_w = jnp.stack([wi, wh], axis=1)                                        # (L, 2, H2, 3H2)
    bi = jnp.concatenate(
        [
            params["gru_bi"][:, 0] + params["gru_bh"][:, 0],  # r: b_ir + b_hr
            params["gru_bi"][:, 1] + params["gru_bh"][:, 1],  # z: b_iz + b_hz
            params["gru_bi"][:, 2],                           # n: b_in only
        ],
        axis=-1,
    )  # (L, 1, 3H2)
    gru_b = jnp.concatenate([bi, params["gru_bh"][:, 2]], axis=-1)[:, 0, :]    # (L, 4H2)
    vec_h = jnp.concatenate(
        [params["fc_b"], params["rms1_w"], params["prelu1_a"]], axis=0)        # (3, H2)
    vec_d = jnp.concatenate(
        [params["reg_b"], params["rms2_w"], params["prelu2_a"]], axis=0)       # (3, D)

    # ---- time-major batch-tiled input layout: (G, S*TB, D), row = t*TB + b ----
    xg = x.reshape(S, G, TB, D).transpose(1, 0, 2, 3).reshape(G, S * TB, D)

    args = (xg, params["fc_w"], gru_w, gru_b, params["reg_w"], vec_h, vec_d)

    def full_spec(a):
        nd = a.ndim
        return pl.BlockSpec(a.shape, lambda g, _nd=nd: (0,) * _nd)

    in_specs = [pl.BlockSpec((1, S * TB, D), lambda g: (g, 0, 0))]
    in_specs += [full_spec(a) for a in args[1:]]
    out_specs = pl.BlockSpec((1, S * TB, D), lambda g: (g, 0, 0))

    flops = B * (2 * S * D * H2                    # fc matmul
                 + 2 * S * L * 2 * 3 * H2 * H2     # GRU input + hidden projections
                 + 2 * S * H2 * D)                 # reg matmul
    transcendentals = B * (S * L * 3 * H2 + 2 * S * H2 + 2 * S)
    bytes_accessed = sum(int(np.prod(a.shape)) * 4 for a in args) + S * B * D * 4

    kernel = functools.partial(reg_gru_kernel, seq_len=S, batch_tile=TB)
    outg = pl.pallas_call(
        kernel,
        out_shape=jax.ShapeDtypeStruct((G, S * TB, D), jnp.float32),
        grid_spec=pltpu.PrefetchScalarGridSpec(
            num_scalar_prefetch=0,
            grid=(G,),
            in_specs=in_specs,
            out_specs=out_specs,
        ),
        compiler_params=pltpu.CompilerParams(dimension_semantics=("parallel",)),
        cost_estimate=pl.CostEstimate(
            flops=flops, transcendentals=transcendentals, bytes_accessed=bytes_accessed
        ),
    )(*args)

    out = outg.reshape(G, S, TB, D).transpose(1, 0, 2, 3).reshape(S, B, D)
    return jnp.squeeze(out)  # matches x.squeeze() (no-op at these shapes)


def init_params(key, input_dim, hidden_dim, num_layers=8):
    # Deterministic synthetic parameters (shapes match the PyTorch module).
    # NOTE: when loading real torch checkpoints, honor the GRU weight_ih/weight_hh
    # gate order [r|z|n] and the (out,in)->(in,out) transpose here.
    assert input_dim == hidden_dim, "RegGRU forward only type-checks when input_dim == hidden_dim"
    H2 = hidden_dim // 2
    ks = jax.random.split(key, 6)

    def kaiming(k, fan_in, shape):  # kaiming_normal_ equivalent
        return jax.random.normal(k, shape, jnp.float32) * jnp.sqrt(2.0 / fan_in)

    bound = 1.0 / np.sqrt(H2)  # PyTorch GRU default init U(-1/sqrt(H), 1/sqrt(H))
    return dict(
        fc_w=kaiming(ks[0], input_dim, (input_dim, H2)),          # (in, out)
        fc_b=jnp.zeros((1, H2), jnp.float32),
        rms1_w=jnp.ones((1, H2), jnp.float32),
        prelu1_a=jnp.full((1, H2), 0.25, jnp.float32),
        gru_wi=jax.random.uniform(ks[1], (num_layers, 3, H2, H2), jnp.float32, -bound, bound),
        gru_wh=jax.random.uniform(ks[2], (num_layers, 3, H2, H2), jnp.float32, -bound, bound),
        gru_bi=jax.random.uniform(ks[3], (num_layers, 3, 1, H2), jnp.float32, -bound, bound),
        gru_bh=jax.random.uniform(ks[4], (num_layers, 3, 1, H2), jnp.float32, -bound, bound),
        reg_w=kaiming(ks[5], H2, (H2, hidden_dim)),
        reg_b=jnp.zeros((1, hidden_dim), jnp.float32),
        rms2_w=jnp.ones((1, hidden_dim), jnp.float32),
        prelu2_a=jnp.full((1, hidden_dim), 0.25, jnp.float32),
    )


def reference_forward(x, p):
    # Pure-JAX reference implementing the PyTorch forward exactly for (S, B, D)
    # input (time-outer, unfused gates — also validates the wrapper's gate packing).
    S, B, D = x.shape
    H2 = p["fc_w"].shape[1]
    L = p["gru_wi"].shape[0]
    m = _prelu(_rmsnorm(x @ p["fc_w"] + p["fc_b"], p["rms1_w"]), p["prelu1_a"])  # (S,B,H2)
    h = jnp.zeros((L, B, H2), jnp.float32)
    rs = []
    for t in range(S):
        inp = m[t]  # (B, H2)
        hs = []
        for l in range(L):
            hp = h[l]
            i_r = inp @ p["gru_wi"][l, 0] + p["gru_bi"][l, 0]
            i_z = inp @ p["gru_wi"][l, 1] + p["gru_bi"][l, 1]
            i_n = inp @ p["gru_wi"][l, 2] + p["gru_bi"][l, 2]
            h_r = hp @ p["gru_wh"][l, 0] + p["gru_bh"][l, 0]
            h_z = hp @ p["gru_wh"][l, 1] + p["gru_bh"][l, 1]
            h_n = hp @ p["gru_wh"][l, 2] + p["gru_bh"][l, 2]
            r = jax.nn.sigmoid(i_r + h_r)
            z = jax.nn.sigmoid(i_z + h_z)
            n = jnp.tanh(i_n + r * h_n)
            hn = (1.0 - z) * n + z * hp
            hs.append(hn)
            inp = hn
        h = jnp.stack(hs, axis=0)
        rs.append(inp)
    r = jnp.stack(rs, axis=0)  # (S, B, H2)
    pp = m * (jax.nn.sigmoid(r) + jax.nn.sigmoid(m))
    y = _prelu(_rmsnorm(pp @ p["reg_w"] + p["reg_b"], p["rms2_w"]), p["prelu2_a"])
    return jnp.squeeze(y + x)


if __name__ == "__main__":
    S, B, D = 8, 4, 32      # seq=8, batch=4, input_dim = hidden_dim = 32, GRU layers = 8
    key = jax.random.PRNGKey(0)
    kx, kp = jax.random.split(key)
    x = jax.random.normal(kx, (S, B, D), jnp.float32)
    params = init_params(kp, input_dim=D, hidden_dim=D, num_layers=8)

    out = jax.block_until_ready(reg_gru_forward(x, params))
    ref = jax.block_until_ready(reference_forward(x, params))

    assert out.shape == ref.shape
    np.testing.assert_allclose(np.asarray(out), np.asarray(ref), rtol=5e-3, atol=5e-3)
    print("KERNEL_OK")
</pallas_src>

<mosaic_0001>
module attributes {stable_mosaic.version = 11 : i64} {
  func.func @reg_gru_kernel(%arg0: i32, %arg1: memref<1x16x32xf32, #tpu.memory_space<vmem>>, %arg2: memref<32x16xf32, #tpu.memory_space<vmem>>, %arg3: memref<8x2x16x48xf32, #tpu.memory_space<vmem>>, %arg4: memref<8x64xf32, #tpu.memory_space<vmem>>, %arg5: memref<16x32xf32, #tpu.memory_space<vmem>>, %arg6: memref<3x16xf32, #tpu.memory_space<vmem>>, %arg7: memref<3x32xf32, #tpu.memory_space<vmem>>, %arg8: memref<1x16x32xf32, #tpu.memory_space<vmem>>) attributes {dimension_semantics = [#tpu.dimension_semantics<parallel>], iteration_bounds = array<i64: 2>, scalar_prefetch = 0 : i64, scratch_operands = 0 : i64, tpu.core_type = #tpu.core_type<tc>, window_params = [{transform_indices = @transform_0, window_bounds = array<i64: 1, 16, 32>}, {pipeline_mode = #tpu.pipeline_mode<synchronous>, transform_indices = @transform_1, window_bounds = array<i64: 32, 16>}, {pipeline_mode = #tpu.pipeline_mode<synchronous>, transform_indices = @transform_2, window_bounds = array<i64: 8, 2, 16, 48>}, {pipeline_mode = #tpu.pipeline_mode<synchronous>, transform_indices = @transform_3, window_bounds = array<i64: 8, 64>}, {pipeline_mode = #tpu.pipeline_mode<synchronous>, transform_indices = @transform_4, window_bounds = array<i64: 16, 32>}, {pipeline_mode = #tpu.pipeline_mode<synchronous>, transform_indices = @transform_5, window_bounds = array<i64: 3, 16>}, {pipeline_mode = #tpu.pipeline_mode<synchronous>, transform_indices = @transform_6, window_bounds = array<i64: 3, 32>}, {transform_indices = @transform_7, window_bounds = array<i64: 1, 16, 32>}]} {
    %c0 = arith.constant 0 : index
    %c0_0 = arith.constant 0 : index
    %c0_1 = arith.constant 0 : index
    %0 = vector.load %arg1[%c0, %c0_0, %c0_1] : memref<1x16x32xf32, #tpu.memory_space<vmem>>, vector<1x16x32xf32>
    %1 = vector.shape_cast %0 : vector<1x16x32xf32> to vector<16x32xf32>
    %c0_2 = arith.constant 0 : index
    %c0_3 = arith.constant 0 : index
    %2 = vector.load %arg6[%c0_2, %c0_3] : memref<3x16xf32, #tpu.memory_space<vmem>>, vector<1x16xf32>
    %c1 = arith.constant 1 : index
    %c0_4 = arith.constant 0 : index
    %3 = vector.load %arg6[%c1, %c0_4] : memref<3x16xf32, #tpu.memory_space<vmem>>, vector<1x16xf32>
    %c2 = arith.constant 2 : index
    %c0_5 = arith.constant 0 : index
    %4 = vector.load %arg6[%c2, %c0_5] : memref<3x16xf32, #tpu.memory_space<vmem>>, vector<1x16xf32>
    %c0_6 = arith.constant 0 : index
    %c0_7 = arith.constant 0 : index
    %5 = vector.load %arg7[%c0_6, %c0_7] : memref<3x32xf32, #tpu.memory_space<vmem>>, vector<1x32xf32>
    %c1_8 = arith.constant 1 : index
    %c0_9 = arith.constant 0 : index
    %6 = vector.load %arg7[%c1_8, %c0_9] : memref<3x32xf32, #tpu.memory_space<vmem>>, vector<1x32xf32>
    %c2_10 = arith.constant 2 : index
    %c0_11 = arith.constant 0 : index
    %7 = vector.load %arg7[%c2_10, %c0_11] : memref<3x32xf32, #tpu.memory_space<vmem>>, vector<1x32xf32>
    %c0_12 = arith.constant 0 : index
    %c0_13 = arith.constant 0 : index
    %8 = vector.load %arg2[%c0_12, %c0_13] : memref<32x16xf32, #tpu.memory_space<vmem>>, vector<32x16xf32>
    %cst = arith.constant dense<0.000000e+00> : vector<16x16xf32>
    %9 = tpu.matmul %1, %8, %cst {dimension_numbers = #tpu.dot_dimension_numbers<[1], [0], [0], [1], [0, 0, 1, 1], [], []>} : vector<16x32xf32>, vector<32x16xf32>, vector<16x16xf32> -> vector<16x16xf32>
    %10 = vector.broadcast %2 : vector<1x16xf32> to vector<16x16xf32>
    %11 = arith.addf %9, %10 : vector<16x16xf32>
    %12 = arith.mulf %11, %11 : vector<16x16xf32>
    %cst_14 = arith.constant dense<0.000000e+00> : vector<16xf32>
    %13 = vector.multi_reduction <add>, %12, %cst_14 [1] : vector<16x16xf32> to vector<16xf32>
    %14 = vector.shape_cast %13 : vector<16xf32> to vector<16x1xf32>
    %cst_15 = arith.constant 1.600000e+01 : f32
    %15 = vector.broadcast %cst_15 : f32 to vector<16x1xf32>
    %16 = arith.divf %14, %15 : vector<16x1xf32>
    %cst_16 = arith.constant 9.99999997E-7 : f32
    %17 = vector.broadcast %cst_16 : f32 to vector<16x1xf32>
    %18 = arith.addf %16, %17 : vector<16x1xf32>
    %19 = math.rsqrt %18 : vector<16x1xf32>
    %20 = vector.broadcast %19 : vector<16x1xf32> to vector<16x16xf32>
    %21 = arith.mulf %11, %20 : vector<16x16xf32>
    %22 = vector.broadcast %3 : vector<1x16xf32> to vector<16x16xf32>
    %23 = arith.mulf %21, %22 : vector<16x16xf32>
    %cst_17 = arith.constant 0.000000e+00 : f32
    %24 = vector.broadcast %cst_17 : f32 to vector<16x16xf32>
    %25 = arith.cmpf oge, %23, %24 : vector<16x16xf32>
    %26 = vector.broadcast %4 : vector<1x16xf32> to vector<16x16xf32>
    %27 = arith.mulf %26, %23 : vector<16x16xf32>
    %28 = arith.select %25, %23, %27 : vector<16x16xi1>, vector<16x16xf32>
    %c0_18 = arith.constant 0 : index
    %c0_19 = arith.constant 0 : index
    %c0_20 = arith.constant 0 : index
    %c0_21 = arith.constant 0 : index
    %29 = vector.load %arg3[%c0_18, %c0_19, %c0_20, %c0_21] : memref<8x2x16x48xf32, #tpu.memory_space<vmem>>, vector<1x1x16x48xf32>
    %30 = vector.shape_cast %29 : vector<1x1x16x48xf32> to vector<16x48xf32>
    %c0_22 = arith.constant 0 : index
    %c1_23 = arith.constant 1 : index
    %c0_24 = arith.constant 0 : index
    %c0_25 = arith.constant 0 : index
    %31 = vector.load %arg3[%c0_22, %c1_23, %c0_24, %c0_25] : memref<8x2x16x48xf32, #tpu.memory_space<vmem>>, vector<1x1x16x48xf32>
    %32 = vector.shape_cast %31 : vector<1x1x16x48xf32> to vector<16x48xf32>
    %c0_26 = arith.constant 0 : index
    %c0_27 = arith.constant 0 : index
    %33 = vector.load %arg4[%c0_26, %c0_27] : memref<8x64xf32, #tpu.memory_space<vmem>>, vector<1x48xf32>
    %c0_28 = arith.constant 0 : index
    %c48 = arith.constant 48 : index
    %34 = vector.load %arg4[%c0_28, %c48] : memref<8x64xf32, #tpu.memory_space<vmem>>, vector<1x16xf32>
    %cst_29 = arith.constant dense<0.000000e+00> : vector<16x48xf32>
    %35 = tpu.matmul %28, %30, %cst_29 {dimension_numbers = #tpu.dot_dimension_numbers<[1], [0], [0], [1], [0, 0, 1, 1], [], []>} : vector<16x16xf32>, vector<16x48xf32>, vector<16x48xf32> -> vector<16x48xf32>
    %36 = vector.broadcast %33 : vector<1x48xf32> to vector<16x48xf32>
    %37 = arith.addf %35, %36 : vector<16x48xf32>
    %cst_30 = arith.constant 0.000000e+00 : f32
    %38 = vector.broadcast %cst_30 : f32 to vector<2x16xf32>
    %39 = vector.extract_strided_slice %37 {offsets = [0, 0], sizes = [2, 48], strides = [1, 1]} : vector<16x48xf32> to vector<2x48xf32>
    %cst_31 = arith.constant dense<0.000000e+00> : vector<2x48xf32>
    %40 = tpu.matmul %38, %32, %cst_31 {dimension_numbers = #tpu.dot_dimension_numbers<[1], [0], [0], [1], [0, 0, 1, 1], [], []>} : vector<2x16xf32>, vector<16x48xf32>, vector<2x48xf32> -> vector<2x48xf32>
    %41 = vector.extract_strided_slice %39 {offsets = [0, 0], sizes = [2, 32], strides = [1, 1]} : vector<2x48xf32> to vector<2x32xf32>
    %42 = vector.extract_strided_slice %40 {offsets = [0, 0], sizes = [2, 32], strides = [1, 1]} : vector<2x48xf32> to vector<2x32xf32>
    %43 = arith.addf %41, %42 : vector<2x32xf32>
    %44 = arith.negf %43 : vector<2x32xf32>
    %45 = math.exp %44 : vector<2x32xf32>
    %cst_32 = arith.constant 1.000000e+00 : f32
    %46 = vector.broadcast %cst_32 : f32 to vector<2x32xf32>
    %47 = arith.addf %46, %45 : vector<2x32xf32>
    %48 = arith.divf %46, %47 : vector<2x32xf32>
    %49 = vector.extract_strided_slice %48 {offsets = [0, 0], sizes = [2, 16], strides = [1, 1]} : vector<2x32xf32> to vector<2x16xf32>
    %50 = vector.extract_strided_slice %48 {offsets = [0, 16], sizes = [2, 16], strides = [1, 1]} : vector<2x32xf32> to vector<2x16xf32>
    %51 = vector.extract_strided_slice %39 {offsets = [0, 32], sizes = [2, 16], strides = [1, 1]} : vector<2x48xf32> to vector<2x16xf32>
    %52 = vector.extract_strided_slice %40 {offsets = [0, 32], sizes = [2, 16], strides = [1, 1]} : vector<2x48xf32> to vector<2x16xf32>
    %53 = vector.broadcast %34 : vector<1x16xf32> to vector<2x16xf32>
    %54 = arith.addf %52, %53 : vector<2x16xf32>
    %55 = arith.mulf %49, %54 : vector<2x16xf32>
    %56 = arith.addf %51, %55 : vector<2x16xf32>
    %57 = math.tanh %56 : vector<2x16xf32>
    %58 = arith.subf %38, %57 : vector<2x16xf32>
    %59 = arith.mulf %50, %58 : vector<2x16xf32>
    %60 = arith.addf %57, %59 : vector<2x16xf32>
    %61 = vector.extract_strided_slice %37 {offsets = [2, 0], sizes = [2, 48], strides = [1, 1]} : vector<16x48xf32> to vector<2x48xf32>
    %cst_33 = arith.constant dense<0.000000e+00> : vector<2x48xf32>
    %62 = tpu.matmul %60, %32, %cst_33 {dimension_numbers = #tpu.dot_dimension_numbers<[1], [0], [0], [1], [0, 0, 1, 1], [], []>} : vector<2x16xf32>, vector<16x48xf32>, vector<2x48xf32> -> vector<2x48xf32>
    %63 = vector.extract_strided_slice %61 {offsets = [0, 0], sizes = [2, 32], strides = [1, 1]} : vector<2x48xf32> to vector<2x32xf32>
    %64 = vector.extract_strided_slice %62 {offsets = [0, 0], sizes = [2, 32], strides = [1, 1]} : vector<2x48xf32> to vector<2x32xf32>
    %65 = arith.addf %63, %64 : vector<2x32xf32>
    %66 = arith.negf %65 : vector<2x32xf32>
    %67 = math.exp %66 : vector<2x32xf32>
    %cst_34 = arith.constant 1.000000e+00 : f32
    %68 = vector.broadcast %cst_34 : f32 to vector<2x32xf32>
    %69 = arith.addf %68, %67 : vector<2x32xf32>
    %70 = arith.divf %68, %69 : vector<2x32xf32>
    %71 = vector.extract_strided_slice %70 {offsets = [0, 0], sizes = [2, 16], strides = [1, 1]} : vector<2x32xf32> to vector<2x16xf32>
    %72 = vector.extract_strided_slice %70 {offsets = [0, 16], sizes = [2, 16], strides = [1, 1]} : vector<2x32xf32> to vector<2x16xf32>
    %73 = vector.extract_strided_slice %61 {offsets = [0, 32], sizes = [2, 16], strides = [1, 1]} : vector<2x48xf32> to vector<2x16xf32>
    %74 = vector.extract_strided_slice %62 {offsets = [0, 32], sizes = [2, 16], strides = [1, 1]} : vector<2x48xf32> to vector<2x16xf32>
    %75 = vector.broadcast %34 : vector<1x16xf32> to vector<2x16xf32>
    %76 = arith.addf %74, %75 : vector<2x16xf32>
    %77 = arith.mulf %71, %76 : vector<2x16xf32>
    %78 = arith.addf %73, %77 : vector<2x16xf32>
    %79 = math.tanh %78 : vector<2x16xf32>
    %80 = arith.subf %60, %79 : vector<2x16xf32>
    %81 = arith.mulf %72, %80 : vector<2x16xf32>
    %82 = arith.addf %79, %81 : vector<2x16xf32>
    %83 = vector.extract_strided_slice %37 {offsets = [4, 0], sizes = [2, 48], strides = [1, 1]} : vector<16x48xf32> to vector<2x48xf32>
    %cst_35 = arith.constant dense<0.000000e+00> : vector<2x48xf32>
    %84 = tpu.matmul %82, %32, %cst_35 {dimension_numbers = #tpu.dot_dimension_numbers<[1], [0], [0], [1], [0, 0, 1, 1], [], []>} : vector<2x16xf32>, vector<16x48xf32>, vector<2x48xf32> -> vector<2x48xf32>
    %85 = vector.extract_strided_slice %83 {offsets = [0, 0], sizes = [2, 32], strides = [1, 1]} : vector<2x48xf32> to vector<2x32xf32>
    %86 = vector.extract_strided_slice %84 {offsets = [0, 0], sizes = [2, 32], strides = [1, 1]} : vector<2x48xf32> to vector<2x32xf32>
    %87 = arith.addf %85, %86 : vector<2x32xf32>
    %88 = arith.negf %87 : vector<2x32xf32>
    %89 = math.exp %88 : vector<2x32xf32>
    %cst_36 = arith.constant 1.000000e+00 : f32
    %90 = vector.broadcast %cst_36 : f32 to vector<2x32xf32>
    %91 = arith.addf %90, %89 : vector<2x32xf32>
    %92 = arith.divf %90, %91 : vector<2x32xf32>
    %93 = vector.extract_strided_slice %92 {offsets = [0, 0], sizes = [2, 16], strides = [1, 1]} : vector<2x32xf32> to vector<2x16xf32>
    %94 = vector.extract_strided_slice %92 {offsets = [0, 16], sizes = [2, 16], strides = [1, 1]} : vector<2x32xf32> to vector<2x16xf32>
    %95 = vector.extract_strided_slice %83 {offsets = [0, 32], sizes = [2, 16], strides = [1, 1]} : vector<2x48xf32> to vector<2x16xf32>
    %96 = vector.extract_strided_slice %84 {offsets = [0, 32], sizes = [2, 16], strides = [1, 1]} : vector<2x48xf32> to vector<2x16xf32>
    %97 = vector.broadcast %34 : vector<1x16xf32> to vector<2x16xf32>
    %98 = arith.addf %96, %97 : vector<2x16xf32>
    %99 = arith.mulf %93, %98 : vector<2x16xf32>
    %100 = arith.addf %95, %99 : vector<2x16xf32>
    %101 = math.tanh %100 : vector<2x16xf32>
    %102 = arith.subf %82, %101 : vector<2x16xf32>
    %103 = arith.mulf %94, %102 : vector<2x16xf32>
    %104 = arith.addf %101, %103 : vector<2x16xf32>
    %105 = vector.extract_strided_slice %37 {offsets = [6, 0], sizes = [2, 48], strides = [1, 1]} : vector<16x48xf32> to vector<2x48xf32>
    %cst_37 = arith.constant dense<0.000000e+00> : vector<2x48xf32>
    %106 = tpu.matmul %104, %32, %cst_37 {dimension_numbers = #tpu.dot_dimension_numbers<[1], [0], [0], [1], [0, 0, 1, 1], [], []>} : vector<2x16xf32>, vector<16x48xf32>, vector<2x48xf32> -> vector<2x48xf32>
    %107 = vector.extract_strided_slice %105 {offsets = [0, 0], sizes = [2, 32], strides = [1, 1]} : vector<2x48xf32> to vector<2x32xf32>
    %108 = vector.extract_strided_slice %106 {offsets = [0, 0], sizes = [2, 32], strides = [1, 1]} : vector<2x48xf32> to vector<2x32xf32>
    %109 = arith.addf %107, %108 : vector<2x32xf32>
    %110 = arith.negf %109 : vector<2x32xf32>
    %111 = math.exp %110 : vector<2x32xf32>
    %cst_38 = arith.constant 1.000000e+00 : f32
    %112 = vector.broadcast %cst_38 : f32 to vector<2x32xf32>
    %113 = arith.addf %112, %111 : vector<2x32xf32>
    %114 = arith.divf %112, %113 : vector<2x32xf32>
    %115 = vector.extract_strided_slice %114 {offsets = [0, 0], sizes = [2, 16], strides = [1, 1]} : vector<2x32xf32> to vector<2x16xf32>
    %116 = vector.extract_strided_slice %114 {offsets = [0, 16], sizes = [2, 16], strides = [1, 1]} : vector<2x32xf32> to vector<2x16xf32>
    %117 = vector.extract_strided_slice %105 {offsets = [0, 32], sizes = [2, 16], strides = [1, 1]} : vector<2x48xf32> to vector<2x16xf32>
    %118 = vector.extract_strided_slice %106 {offsets = [0, 32], sizes = [2, 16], strides = [1, 1]} : vector<2x48xf32> to vector<2x16xf32>
    %119 = vector.broadcast %34 : vector<1x16xf32> to vector<2x16xf32>
    %120 = arith.addf %118, %119 : vector<2x16xf32>
    %121 = arith.mulf %115, %120 : vector<2x16xf32>
    %122 = arith.addf %117, %121 : vector<2x16xf32>
    %123 = math.tanh %122 : vector<2x16xf32>
    %124 = arith.subf %104, %123 : vector<2x16xf32>
    %125 = arith.mulf %116, %124 : vector<2x16xf32>
    %126 = arith.addf %123, %125 : vector<2x16xf32>
    %127 = vector.extract_strided_slice %37 {offsets = [8, 0], sizes = [2, 48], strides = [1, 1]} : vector<16x48xf32> to vector<2x48xf32>
    %cst_39 = arith.constant dense<0.000000e+00> : vector<2x48xf32>
    %128 = tpu.matmul %126, %32, %cst_39 {dimension_numbers = #tpu.dot_dimension_numbers<[1], [0], [0], [1], [0, 0, 1, 1], [], []>} : vector<2x16xf32>, vector<16x48xf32>, vector<2x48xf32> -> vector<2x48xf32>
    %129 = vector.extract_strided_slice %127 {offsets = [0, 0], sizes = [2, 32], strides = [1, 1]} : vector<2x48xf32> to vector<2x32xf32>
    %130 = vector.extract_strided_slice %128 {offsets = [0, 0], sizes = [2, 32], strides = [1, 1]} : vector<2x48xf32> to vector<2x32xf32>
    %131 = arith.addf %129, %130 : vector<2x32xf32>
    %132 = arith.negf %131 : vector<2x32xf32>
    %133 = math.exp %132 : vector<2x32xf32>
    %cst_40 = arith.constant 1.000000e+00 : f32
    %134 = vector.broadcast %cst_40 : f32 to vector<2x32xf32>
    %135 = arith.addf %134, %133 : vector<2x32xf32>
    %136 = arith.divf %134, %135 : vector<2x32xf32>
    %137 = vector.extract_strided_slice %136 {offsets = [0, 0], sizes = [2, 16], strides = [1, 1]} : vector<2x32xf32> to vector<2x16xf32>
    %138 = vector.extract_strided_slice %136 {offsets = [0, 16], sizes = [2, 16], strides = [1, 1]} : vector<2x32xf32> to vector<2x16xf32>
    %139 = vector.extract_strided_slice %127 {offsets = [0, 32], sizes = [2, 16], strides = [1, 1]} : vector<2x48xf32> to vector<2x16xf32>
    %140 = vector.extract_strided_slice %128 {offsets = [0, 32], sizes = [2, 16], strides = [1, 1]} : vector<2x48xf32> to vector<2x16xf32>
    %141 = vector.broadcast %34 : vector<1x16xf32> to vector<2x16xf32>
    %142 = arith.addf %140, %141 : vector<2x16xf32>
    %143 = arith.mulf %137, %142 : vector<2x16xf32>
    %144 = arith.addf %139, %143 : vector<2x16xf32>
    %145 = math.tanh %144 : vector<2x16xf32>
    %146 = arith.subf %126, %145 : vector<2x16xf32>
    %147 = arith.mulf %138, %146 : vector<2x16xf32>
    %148 = arith.addf %145, %147 : vector<2x16xf32>
    %149 = vector.extract_strided_slice %37 {offsets = [10, 0], sizes = [2, 48], strides = [1, 1]} : vector<16x48xf32> to vector<2x48xf32>
    %cst_41 = arith.constant dense<0.000000e+00> : vector<2x48xf32>
    %150 = tpu.matmul %148, %32, %cst_41 {dimension_numbers = #tpu.dot_dimension_numbers<[1], [0], [0], [1], [0, 0, 1, 1], [], []>} : vector<2x16xf32>, vector<16x48xf32>, vector<2x48xf32> -> vector<2x48xf32>
    %151 = vector.extract_strided_slice %149 {offsets = [0, 0], sizes = [2, 32], strides = [1, 1]} : vector<2x48xf32> to vector<2x32xf32>
    %152 = vector.extract_strided_slice %150 {offsets = [0, 0], sizes = [2, 32], strides = [1, 1]} : vector<2x48xf32> to vector<2x32xf32>
    %153 = arith.addf %151, %152 : vector<2x32xf32>
    %154 = arith.negf %153 : vector<2x32xf32>
    %155 = math.exp %154 : vector<2x32xf32>
    %cst_42 = arith.constant 1.000000e+00 : f32
    %156 = vector.broadcast %cst_42 : f32 to vector<2x32xf32>
    %157 = arith.addf %156, %155 : vector<2x32xf32>
    %158 = arith.divf %156, %157 : vector<2x32xf32>
    %159 = vector.extract_strided_slice %158 {offsets = [0, 0], sizes = [2, 16], strides = [1, 1]} : vector<2x32xf32> to vector<2x16xf32>
    %160 = vector.extract_strided_slice %158 {offsets = [0, 16], sizes = [2, 16], strides = [1, 1]} : vector<2x32xf32> to vector<2x16xf32>
    %161 = vector.extract_strided_slice %149 {offsets = [0, 32], sizes = [2, 16], strides = [1, 1]} : vector<2x48xf32> to vector<2x16xf32>
    %162 = vector.extract_strided_slice %150 {offsets = [0, 32], sizes = [2, 16], strides = [1, 1]} : vector<2x48xf32> to vector<2x16xf32>
    %163 = vector.broadcast %34 : vector<1x16xf32> to vector<2x16xf32>
    %164 = arith.addf %162, %163 : vector<2x16xf32>
    %165 = arith.mulf %159, %164 : vector<2x16xf32>
    %166 = arith.addf %161, %165 : vector<2x16xf32>
    %167 = math.tanh %166 : vector<2x16xf32>
    %168 = arith.subf %148, %167 : vector<2x16xf32>
    %169 = arith.mulf %160, %168 : vector<2x16xf32>
    %170 = arith.addf %167, %169 : vector<2x16xf32>
    %171 = vector.extract_strided_slice %37 {offsets = [12, 0], sizes = [2, 48], strides = [1, 1]} : vector<16x48xf32> to vector<2x48xf32>
    %cst_43 = arith.constant dense<0.000000e+00> : vector<2x48xf32>
    %172 = tpu.matmul %170, %32, %cst_43 {dimension_numbers = #tpu.dot_dimension_numbers<[1], [0], [0], [1], [0, 0, 1, 1], [], []>} : vector<2x16xf32>, vector<16x48xf32>, vector<2x48xf32> -> vector<2x48xf32>
    %173 = vector.extract_strided_slice %171 {offsets = [0, 0], sizes = [2, 32], strides = [1, 1]} : vector<2x48xf32> to vector<2x32xf32>
    %174 = vector.extract_strided_slice %172 {offsets = [0, 0], sizes = [2, 32], strides = [1, 1]} : vector<2x48xf32> to vector<2x32xf32>
    %175 = arith.addf %173, %174 : vector<2x32xf32>
    %176 = arith.negf %175 : vector<2x32xf32>
    %177 = math.exp %176 : vector<2x32xf32>
    %cst_44 = arith.constant 1.000000e+00 : f32
    %178 = vector.broadcast %cst_44 : f32 to vector<2x32xf32>
    %179 = arith.addf %178, %177 : vector<2x32xf32>
    %180 = arith.divf %178, %179 : vector<2x32xf32>
    %181 = vector.extract_strided_slice %180 {offsets = [0, 0], sizes = [2, 16], strides = [1, 1]} : vector<2x32xf32> to vector<2x16xf32>
    %182 = vector.extract_strided_slice %180 {offsets = [0, 16], sizes = [2, 16], strides = [1, 1]} : vector<2x32xf32> to vector<2x16xf32>
    %183 = vector.extract_strided_slice %171 {offsets = [0, 32], sizes = [2, 16], strides = [1, 1]} : vector<2x48xf32> to vector<2x16xf32>
    %184 = vector.extract_strided_slice %172 {offsets = [0, 32], sizes = [2, 16], strides = [1, 1]} : vector<2x48xf32> to vector<2x16xf32>
    %185 = vector.broadcast %34 : vector<1x16xf32> to vector<2x16xf32>
    %186 = arith.addf %184, %185 : vector<2x16xf32>
    %187 = arith.mulf %181, %186 : vector<2x16xf32>
    %188 = arith.addf %183, %187 : vector<2x16xf32>
    %189 = math.tanh %188 : vector<2x16xf32>
    %190 = arith.subf %170, %189 : vector<2x16xf32>
    %191 = arith.mulf %182, %190 : vector<2x16xf32>
    %192 = arith.addf %189, %191 : vector<2x16xf32>
    %193 = vector.extract_strided_slice %37 {offsets = [14, 0], sizes = [2, 48], strides = [1, 1]} : vector<16x48xf32> to vector<2x48xf32>
    %cst_45 = arith.constant dense<0.000000e+00> : vector<2x48xf32>
    %194 = tpu.matmul %192, %32, %cst_45 {dimension_numbers = #tpu.dot_dimension_numbers<[1], [0], [0], [1], [0, 0, 1, 1], [], []>} : vector<2x16xf32>, vector<16x48xf32>, vector<2x48xf32> -> vector<2x48xf32>
    %195 = vector.extract_strided_slice %193 {offsets = [0, 0], sizes = [2, 32], strides = [1, 1]} : vector<2x48xf32> to vector<2x32xf32>
    %196 = vector.extract_strided_slice %194 {offsets = [0, 0], sizes = [2, 32], strides = [1, 1]} : vector<2x48xf32> to vector<2x32xf32>
    %197 = arith.addf %195, %196 : vector<2x32xf32>
    %198 = arith.negf %197 : vector<2x32xf32>
    %199 = math.exp %198 : vector<2x32xf32>
    %cst_46 = arith.constant 1.000000e+00 : f32
    %200 = vector.broadcast %cst_46 : f32 to vector<2x32xf32>
    %201 = arith.addf %200, %199 : vector<2x32xf32>
    %202 = arith.divf %200, %201 : vector<2x32xf32>
    %203 = vector.extract_strided_slice %202 {offsets = [0, 0], sizes = [2, 16], strides = [1, 1]} : vector<2x32xf32> to vector<2x16xf32>
    %204 = vector.extract_strided_slice %202 {offsets = [0, 16], sizes = [2, 16], strides = [1, 1]} : vector<2x32xf32> to vector<2x16xf32>
    %205 = vector.extract_strided_slice %193 {offsets = [0, 32], sizes = [2, 16], strides = [1, 1]} : vector<2x48xf32> to vector<2x16xf32>
    %206 = vector.extract_strided_slice %194 {offsets = [0, 32], sizes = [2, 16], strides = [1, 1]} : vector<2x48xf32> to vector<2x16xf32>
    %207 = vector.broadcast %34 : vector<1x16xf32> to vector<2x16xf32>
    %208 = arith.addf %206, %207 : vector<2x16xf32>
    %209 = arith.mulf %203, %208 : vector<2x16xf32>
    %210 = arith.addf %205, %209 : vector<2x16xf32>
    %211 = math.tanh %210 : vector<2x16xf32>
    %212 = arith.subf %192, %211 : vector<2x16xf32>
    %213 = arith.mulf %204, %212 : vector<2x16xf32>
    %214 = arith.addf %211, %213 : vector<2x16xf32>
    %215 = tpu.concatenate %60, %82, %104, %126, %148, %170, %192, %214 in 0 : vector<2x16xf32>, vector<2x16xf32>, vector<2x16xf32>, vector<2x16xf32>, vector<2x16xf32>, vector<2x16xf32>, vector<2x16xf32>, vector<2x16xf32> -> vector<16x16xf32>
    %c1_47 = arith.constant 1 : index
    %c0_48 = arith.constant 0 : index
    %c0_49 = arith.constant 0 : index
    %c0_50 = arith.constant 0 : index
    %216 = vector.load %arg3[%c1_47, %c0_48, %c0_49, %c0_50] : memref<8x2x16x48xf32, #tpu.memory_space<vmem>>, vector<1x1x16x48xf32>
    %217 = vector.shape_cast %216 : vector<1x1x16x48xf32> to vector<16x48xf32>
    %c1_51 = arith.constant 1 : index
    %c1_52 = arith.constant 1 : index
    %c0_53 = arith.constant 0 : index
    %c0_54 = arith.constant 0 : index
    %218 = vector.load %arg3[%c1_51, %c1_52, %c0_53, %c0_54] : memref<8x2x16x48xf32, #tpu.memory_space<vmem>>, vector<1x1x16x48xf32>
    %219 = vector.shape_cast %218 : vector<1x1x16x48xf32> to vector<16x48xf32>
    %c1_55 = arith.constant 1 : index
    %c0_56 = arith.constant 0 : index
    %220 = vector.load %arg4[%c1_55, %c0_56] : memref<8x64xf32, #tpu.memory_space<vmem>>, vector<1x48xf32>
    %c1_57 = arith.constant 1 : index
    %c48_58 = arith.constant 48 : index
    %221 = vector.load %arg4[%c1_57, %c48_58] : memref<8x64xf32, #tpu.memory_space<vmem>>, vector<1x16xf32>
    %cst_59 = arith.constant dense<0.000000e+00> : vector<16x48xf32>
    %222 = tpu.matmul %215, %217, %cst_59 {dimension_numbers = #tpu.dot_dimension_numbers<[1], [0], [0], [1], [0, 0, 1, 1], [], []>} : vector<16x16xf32>, vector<16x48xf32>, vector<16x48xf32> -> vector<16x48xf32>
    %223 = vector.broadcast %220 : vector<1x48xf32> to vector<16x48xf32>
    %224 = arith.addf %222, %223 : vector<16x48xf32>
    %cst_60 = arith.constant 0.000000e+00 : f32
    %225 = vector.broadcast %cst_60 : f32 to vector<2x16xf32>
    %226 = vector.extract_strided_slice %224 {offsets = [0, 0], sizes = [2, 48], strides = [1, 1]} : vector<16x48xf32> to vector<2x48xf32>
    %cst_61 = arith.constant dense<0.000000e+00> : vector<2x48xf32>
    %227 = tpu.matmul %225, %219, %cst_61 {dimension_numbers = #tpu.dot_dimension_numbers<[1], [0], [0], [1], [0, 0, 1, 1], [], []>} : vector<2x16xf32>, vector<16x48xf32>, vector<2x48xf32> -> vector<2x48xf32>
    %228 = vector.extract_strided_slice %226 {offsets = [0, 0], sizes = [2, 32], strides = [1, 1]} : vector<2x48xf32> to vector<2x32xf32>
    %229 = vector.extract_strided_slice %227 {offsets = [0, 0], sizes = [2, 32], strides = [1, 1]} : vector<2x48xf32> to vector<2x32xf32>
    %230 = arith.addf %228, %229 : vector<2x32xf32>
    %231 = arith.negf %230 : vector<2x32xf32>
    %232 = math.exp %231 : vector<2x32xf32>
    %cst_62 = arith.constant 1.000000e+00 : f32
    %233 = vector.broadcast %cst_62 : f32 to vector<2x32xf32>
    %234 = arith.addf %233, %232 : vector<2x32xf32>
    %235 = arith.divf %233, %234 : vector<2x32xf32>
    %236 = vector.extract_strided_slice %235 {offsets = [0, 0], sizes = [2, 16], strides = [1, 1]} : vector<2x32xf32> to vector<2x16xf32>
    %237 = vector.extract_strided_slice %235 {offsets = [0, 16], sizes = [2, 16], strides = [1, 1]} : vector<2x32xf32> to vector<2x16xf32>
    %238 = vector.extract_strided_slice %226 {offsets = [0, 32], sizes = [2, 16], strides = [1, 1]} : vector<2x48xf32> to vector<2x16xf32>
    %239 = vector.extract_strided_slice %227 {offsets = [0, 32], sizes = [2, 16], strides = [1, 1]} : vector<2x48xf32> to vector<2x16xf32>
    %240 = vector.broadcast %221 : vector<1x16xf32> to vector<2x16xf32>
    %241 = arith.addf %239, %240 : vector<2x16xf32>
    %242 = arith.mulf %236, %241 : vector<2x16xf32>
    %243 = arith.addf %238, %242 : vector<2x16xf32>
    %244 = math.tanh %243 : vector<2x16xf32>
    %245 = arith.subf %225, %244 : vector<2x16xf32>
    %246 = arith.mulf %237, %245 : vector<2x16xf32>
    %247 = arith.addf %244, %246 : vector<2x16xf32>
    %248 = vector.extract_strided_slice %224 {offsets = [2, 0], sizes = [2, 48], strides = [1, 1]} : vector<16x48xf32> to vector<2x48xf32>
    %cst_63 = arith.constant dense<0.000000e+00> : vector<2x48xf32>
    %249 = tpu.matmul %247, %219, %cst_63 {dimension_numbers = #tpu.dot_dimension_numbers<[1], [0], [0], [1], [0, 0, 1, 1], [], []>} : vector<2x16xf32>, vector<16x48xf32>, vector<2x48xf32> -> vector<2x48xf32>
    %250 = vector.extract_strided_slice %248 {offsets = [0, 0], sizes = [2, 32], strides = [1, 1]} : vector<2x48xf32> to vector<2x32xf32>
    %251 = vector.extract_strided_slice %249 {offsets = [0, 0], sizes = [2, 32], strides = [1, 1]} : vector<2x48xf32> to vector<2x32xf32>
    %252 = arith.addf %250, %251 : vector<2x32xf32>
    %253 = arith.negf %252 : vector<2x32xf32>
    %254 = math.exp %253 : vector<2x32xf32>
    %cst_64 = arith.constant 1.000000e+00 : f32
    %255 = vector.broadcast %cst_64 : f32 to vector<2x32xf32>
    %256 = arith.addf %255, %254 : vector<2x32xf32>
    %257 = arith.divf %255, %256 : vector<2x32xf32>
    %258 = vector.extract_strided_slice %257 {offsets = [0, 0], sizes = [2, 16], strides = [1, 1]} : vector<2x32xf32> to vector<2x16xf32>
    %259 = vector.extract_strided_slice %257 {offsets = [0, 16], sizes = [2, 16], strides = [1, 1]} : vector<2x32xf32> to vector<2x16xf32>
    %260 = vector.extract_strided_slice %248 {offsets = [0, 32], sizes = [2, 16], strides = [1, 1]} : vector<2x48xf32> to vector<2x16xf32>
    %261 = vector.extract_strided_slice %249 {offsets = [0, 32], sizes = [2, 16], strides = [1, 1]} : vector<2x48xf32> to vector<2x16xf32>
    %262 = vector.broadcast %221 : vector<1x16xf32> to vector<2x16xf32>
    %263 = arith.addf %261, %262 : vector<2x16xf32>
    %264 = arith.mulf %258, %263 : vector<2x16xf32>
    %265 = arith.addf %260, %264 : vector<2x16xf32>
    %266 = math.tanh %265 : vector<2x16xf32>
    %267 = arith.subf %247, %266 : vector<2x16xf32>
    %268 = arith.mulf %259, %267 : vector<2x16xf32>
    %269 = arith.addf %266, %268 : vector<2x16xf32>
    %270 = vector.extract_strided_slice %224 {offsets = [4, 0], sizes = [2, 48], strides = [1, 1]} : vector<16x48xf32> to vector<2x48xf32>
    %cst_65 = arith.constant dense<0.000000e+00> : vector<2x48xf32>
    %271 = tpu.matmul %269, %219, %cst_65 {dimension_numbers = #tpu.dot_dimension_numbers<[1], [0], [0], [1], [0, 0, 1, 1], [], []>} : vector<2x16xf32>, vector<16x48xf32>, vector<2x48xf32> -> vector<2x48xf32>
    %272 = vector.extract_strided_slice %270 {offsets = [0, 0], sizes = [2, 32], strides = [1, 1]} : vector<2x48xf32> to vector<2x32xf32>
    %273 = vector.extract_strided_slice %271 {offsets = [0, 0], sizes = [2, 32], strides = [1, 1]} : vector<2x48xf32> to vector<2x32xf32>
    %274 = arith.addf %272, %273 : vector<2x32xf32>
    %275 = arith.negf %274 : vector<2x32xf32>
    %276 = math.exp %275 : vector<2x32xf32>
    %cst_66 = arith.constant 1.000000e+00 : f32
    %277 = vector.broadcast %cst_66 : f32 to vector<2x32xf32>
    %278 = arith.addf %277, %276 : vector<2x32xf32>
    %279 = arith.divf %277, %278 : vector<2x32xf32>
    %280 = vector.extract_strided_slice %279 {offsets = [0, 0], sizes = [2, 16], strides = [1, 1]} : vector<2x32xf32> to vector<2x16xf32>
    %281 = vector.extract_strided_slice %279 {offsets = [0, 16], sizes = [2, 16], strides = [1, 1]} : vector<2x32xf32> to vector<2x16xf32>
    %282 = vector.extract_strided_slice %270 {offsets = [0, 32], sizes = [2, 16], strides = [1, 1]} : vector<2x48xf32> to vector<2x16xf32>
    %283 = vector.extract_strided_slice %271 {offsets = [0, 32], sizes = [2, 16], strides = [1, 1]} : vector<2x48xf32> to vector<2x16xf32>
    %284 = vector.broadcast %221 : vector<1x16xf32> to vector<2x16xf32>
    %285 = arith.addf %283, %284 : vector<2x16xf32>
    %286 = arith.mulf %280, %285 : vector<2x16xf32>
    %287 = arith.addf %282, %286 : vector<2x16xf32>
    %288 = math.tanh %287 : vector<2x16xf32>
    %289 = arith.subf %269, %288 : vector<2x16xf32>
    %290 = arith.mulf %281, %289 : vector<2x16xf32>
    %291 = arith.addf %288, %290 : vector<2x16xf32>
    %292 = vector.extract_strided_slice %224 {offsets = [6, 0], sizes = [2, 48], strides = [1, 1]} : vector<16x48xf32> to vector<2x48xf32>
    %cst_67 = arith.constant dense<0.000000e+00> : vector<2x48xf32>
    %293 = tpu.matmul %291, %219, %cst_67 {dimension_numbers = #tpu.dot_dimension_numbers<[1], [0], [0], [1], [0, 0, 1, 1], [], []>} : vector<2x16xf32>, vector<16x48xf32>, vector<2x48xf32> -> vector<2x48xf32>
    %294 = vector.extract_strided_slice %292 {offsets = [0, 0], sizes = [2, 32], strides = [1, 1]} : vector<2x48xf32> to vector<2x32xf32>
    %295 = vector.extract_strided_slice %293 {offsets = [0, 0], sizes = [2, 32], strides = [1, 1]} : vector<2x48xf32> to vector<2x32xf32>
    %296 = arith.addf %294, %295 : vector<2x32xf32>
    %297 = arith.negf %296 : vector<2x32xf32>
    %298 = math.exp %297 : vector<2x32xf32>
    %cst_68 = arith.constant 1.000000e+00 : f32
    %299 = vector.broadcast %cst_68 : f32 to vector<2x32xf32>
    %300 = arith.addf %299, %298 : vector<2x32xf32>
    %301 = arith.divf %299, %300 : vector<2x32xf32>
    %302 = vector.extract_strided_slice %301 {offsets = [0, 0], sizes = [2, 16], strides = [1, 1]} : vector<2x32xf32> to vector<2x16xf32>
    %303 = vector.extract_strided_slice %301 {offsets = [0, 16], sizes = [2, 16], strides = [1, 1]} : vector<2x32xf32> to vector<2x16xf32>
    %304 = vector.extract_strided_slice %292 {offsets = [0, 32], sizes = [2, 16], strides = [1, 1]} : vector<2x48xf32> to vector<2x16xf32>
    %305 = vector.extract_strided_slice %293 {offsets = [0, 32], sizes = [2, 16], strides = [1, 1]} : vector<2x48xf32> to vector<2x16xf32>
    %306 = vector.broadcast %221 : vector<1x16xf32> to vector<2x16xf32>
    %307 = arith.addf %305, %306 : vector<2x16xf32>
    %308 = arith.mulf %302, %307 : vector<2x16xf32>
    %309 = arith.addf %304, %308 : vector<2x16xf32>
    %310 = math.tanh %309 : vector<2x16xf32>
    %311 = arith.subf %291, %310 : vector<2x16xf32>
    %312 = arith.mulf %303, %311 : vector<2x16xf32>
    %313 = arith.addf %310, %312 : vector<2x16xf32>
    %314 = vector.extract_strided_slice %224 {offsets = [8, 0], sizes = [2, 48], strides = [1, 1]} : vector<16x48xf32> to vector<2x48xf32>
    %cst_69 = arith.constant dense<0.000000e+00> : vector<2x48xf32>
    %315 = tpu.matmul %313, %219, %cst_69 {dimension_numbers = #tpu.dot_dimension_numbers<[1], [0], [0], [1], [0, 0, 1, 1], [], []>} : vector<2x16xf32>, vector<16x48xf32>, vector<2x48xf32> -> vector<2x48xf32>
    %316 = vector.extract_strided_slice %314 {offsets = [0, 0], sizes = [2, 32], strides = [1, 1]} : vector<2x48xf32> to vector<2x32xf32>
    %317 = vector.extract_strided_slice %315 {offsets = [0, 0], sizes = [2, 32], strides = [1, 1]} : vector<2x48xf32> to vector<2x32xf32>
    %318 = arith.addf %316, %317 : vector<2x32xf32>
    %319 = arith.negf %318 : vector<2x32xf32>
    %320 = math.exp %319 : vector<2x32xf32>
    %cst_70 = arith.constant 1.000000e+00 : f32
    %321 = vector.broadcast %cst_70 : f32 to vector<2x32xf32>
    %322 = arith.addf %321, %320 : vector<2x32xf32>
    %323 = arith.divf %321, %322 : vector<2x32xf32>
    %324 = vector.extract_strided_slice %323 {offsets = [0, 0], sizes = [2, 16], strides = [1, 1]} : vector<2x32xf32> to vector<2x16xf32>
    %325 = vector.extract_strided_slice %323 {offsets = [0, 16], sizes = [2, 16], strides = [1, 1]} : vector<2x32xf32> to vector<2x16xf32>
    %326 = vector.extract_strided_slice %314 {offsets = [0, 32], sizes = [2, 16], strides = [1, 1]} : vector<2x48xf32> to vector<2x16xf32>
    %327 = vector.extract_strided_slice %315 {offsets = [0, 32], sizes = [2, 16], strides = [1, 1]} : vector<2x48xf32> to vector<2x16xf32>
    %328 = vector.broadcast %221 : vector<1x16xf32> to vector<2x16xf32>
    %329 = arith.addf %327, %328 : vector<2x16xf32>
    %330 = arith.mulf %324, %329 : vector<2x16xf32>
    %331 = arith.addf %326, %330 : vector<2x16xf32>
    %332 = math.tanh %331 : vector<2x16xf32>
    %333 = arith.subf %313, %332 : vector<2x16xf32>
    %334 = arith.mulf %325, %333 : vector<2x16xf32>
    %335 = arith.addf %332, %334 : vector<2x16xf32>
    %336 = vector.extract_strided_slice %224 {offsets = [10, 0], sizes = [2, 48], strides = [1, 1]} : vector<16x48xf32> to vector<2x48xf32>
    %cst_71 = arith.constant dense<0.000000e+00> : vector<2x48xf32>
    %337 = tpu.matmul %335, %219, %cst_71 {dimension_numbers = #tpu.dot_dimension_numbers<[1], [0], [0], [1], [0, 0, 1, 1], [], []>} : vector<2x16xf32>, vector<16x48xf32>, vector<2x48xf32> -> vector<2x48xf32>
    %338 = vector.extract_strided_slice %336 {offsets = [0, 0], sizes = [2, 32], strides = [1, 1]} : vector<2x48xf32> to vector<2x32xf32>
    %339 = vector.extract_strided_slice %337 {offsets = [0, 0], sizes = [2, 32], strides = [1, 1]} : vector<2x48xf32> to vector<2x32xf32>
    %340 = arith.addf %338, %339 : vector<2x32xf32>
    %341 = arith.negf %340 : vector<2x32xf32>
    %342 = math.exp %341 : vector<2x32xf32>
    %cst_72 = arith.constant 1.000000e+00 : f32
    %343 = vector.broadcast %cst_72 : f32 to vector<2x32xf32>
    %344 = arith.addf %343, %342 : vector<2x32xf32>
    %345 = arith.divf %343, %344 : vector<2x32xf32>
    %346 = vector.extract_strided_slice %345 {offsets = [0, 0], sizes = [2, 16], strides = [1, 1]} : vector<2x32xf32> to vector<2x16xf32>
    %347 = vector.extract_strided_slice %345 {offsets = [0, 16], sizes = [2, 16], strides = [1, 1]} : vector<2x32xf32> to vector<2x16xf32>
    %348 = vector.extract_strided_slice %336 {offsets = [0, 32], sizes = [2, 16], strides = [1, 1]} : vector<2x48xf32> to vector<2x16xf32>
    %349 = vector.extract_strided_slice %337 {offsets = [0, 32], sizes = [2, 16], strides = [1, 1]} : vector<2x48xf32> to vector<2x16xf32>
    %350 = vector.broadcast %221 : vector<1x16xf32> to vector<2x16xf32>
    %351 = arith.addf %349, %350 : vector<2x16xf32>
    %352 = arith.mulf %346, %351 : vector<2x16xf32>
    %353 = arith.addf %348, %352 : vector<2x16xf32>
    %354 = math.tanh %353 : vector<2x16xf32>
    %355 = arith.subf %335, %354 : vector<2x16xf32>
    %356 = arith.mulf %347, %355 : vector<2x16xf32>
    %357 = arith.addf %354, %356 : vector<2x16xf32>
    %358 = vector.extract_strided_slice %224 {offsets = [12, 0], sizes = [2, 48], strides = [1, 1]} : vector<16x48xf32> to vector<2x48xf32>
    %cst_73 = arith.constant dense<0.000000e+00> : vector<2x48xf32>
    %359 = tpu.matmul %357, %219, %cst_73 {dimension_numbers = #tpu.dot_dimension_numbers<[1], [0], [0], [1], [0, 0, 1, 1], [], []>} : vector<2x16xf32>, vector<16x48xf32>, vector<2x48xf32> -> vector<2x48xf32>
    %360 = vector.extract_strided_slice %358 {offsets = [0, 0], sizes = [2, 32], strides = [1, 1]} : vector<2x48xf32> to vector<2x32xf32>
    %361 = vector.extract_strided_slice %359 {offsets = [0, 0], sizes = [2, 32], strides = [1, 1]} : vector<2x48xf32> to vector<2x32xf32>
    %362 = arith.addf %360, %361 : vector<2x32xf32>
    %363 = arith.negf %362 : vector<2x32xf32>
    %364 = math.exp %363 : vector<2x32xf32>
    %cst_74 = arith.constant 1.000000e+00 : f32
    %365 = vector.broadcast %cst_74 : f32 to vector<2x32xf32>
    %366 = arith.addf %365, %364 : vector<2x32xf32>
    %367 = arith.divf %365, %366 : vector<2x32xf32>
    %368 = vector.extract_strided_slice %367 {offsets = [0, 0], sizes = [2, 16], strides = [1, 1]} : vector<2x32xf32> to vector<2x16xf32>
    %369 = vector.extract_strided_slice %367 {offsets = [0, 16], sizes = [2, 16], strides = [1, 1]} : vector<2x32xf32> to vector<2x16xf32>
    %370 = vector.extract_strided_slice %358 {offsets = [0, 32], sizes = [2, 16], strides = [1, 1]} : vector<2x48xf32> to vector<2x16xf32>
    %371 = vector.extract_strided_slice %359 {offsets = [0, 32], sizes = [2, 16], strides = [1, 1]} : vector<2x48xf32> to vector<2x16xf32>
    %372 = vector.broadcast %221 : vector<1x16xf32> to vector<2x16xf32>
    %373 = arith.addf %371, %372 : vector<2x16xf32>
    %374 = arith.mulf %368, %373 : vector<2x16xf32>
    %375 = arith.addf %370, %374 : vector<2x16xf32>
    %376 = math.tanh %375 : vector<2x16xf32>
    %377 = arith.subf %357, %376 : vector<2x16xf32>
    %378 = arith.mulf %369, %377 : vector<2x16xf32>
    %379 = arith.addf %376, %378 : vector<2x16xf32>
    %380 = vector.extract_strided_slice %224 {offsets = [14, 0], sizes = [2, 48], strides = [1, 1]} : vector<16x48xf32> to vector<2x48xf32>
    %cst_75 = arith.constant dense<0.000000e+00> : vector<2x48xf32>
    %381 = tpu.matmul %379, %219, %cst_75 {dimension_numbers = #tpu.dot_dimension_numbers<[1], [0], [0], [1], [0, 0, 1, 1], [], []>} : vector<2x16xf32>, vector<16x48xf32>, vector<2x48xf32> -> vector<2x48xf32>
    %382 = vector.extract_strided_slice %380 {offsets = [0, 0], sizes = [2, 32], strides = [1, 1]} : vector<2x48xf32> to vector<2x32xf32>
    %383 = vector.extract_strided_slice %381 {offsets = [0, 0], sizes = [2, 32], strides = [1, 1]} : vector<2x48xf32> to vector<2x32xf32>
    %384 = arith.addf %382, %383 : vector<2x32xf32>
    %385 = arith.negf %384 : vector<2x32xf32>
    %386 = math.exp %385 : vector<2x32xf32>
    %cst_76 = arith.constant 1.000000e+00 : f32
    %387 = vector.broadcast %cst_76 : f32 to vector<2x32xf32>
    %388 = arith.addf %387, %386 : vector<2x32xf32>
    %389 = arith.divf %387, %388 : vector<2x32xf32>
    %390 = vector.extract_strided_slice %389 {offsets = [0, 0], sizes = [2, 16], strides = [1, 1]} : vector<2x32xf32> to vector<2x16xf32>
    %391 = vector.extract_strided_slice %389 {offsets = [0, 16], sizes = [2, 16], strides = [1, 1]} : vector<2x32xf32> to vector<2x16xf32>
    %392 = vector.extract_strided_slice %380 {offsets = [0, 32], sizes = [2, 16], strides = [1, 1]} : vector<2x48xf32> to vector<2x16xf32>
    %393 = vector.extract_strided_slice %381 {offsets = [0, 32], sizes = [2, 16], strides = [1, 1]} : vector<2x48xf32> to vector<2x16xf32>
    %394 = vector.broadcast %221 : vector<1x16xf32> to vector<2x16xf32>
    %395 = arith.addf %393, %394 : vector<2x16xf32>
    %396 = arith.mulf %390, %395 : vector<2x16xf32>
    %397 = arith.addf %392, %396 : vector<2x16xf32>
    %398 = math.tanh %397 : vector<2x16xf32>
    %399 = arith.subf %379, %398 : vector<2x16xf32>
    %400 = arith.mulf %391, %399 : vector<2x16xf32>
    %401 = arith.addf %398, %400 : vector<2x16xf32>
    %402 = tpu.concatenate %247, %269, %291, %313, %335, %357, %379, %401 in 0 : vector<2x16xf32>, vector<2x16xf32>, vector<2x16xf32>, vector<2x16xf32>, vector<2x16xf32>, vector<2x16xf32>, vector<2x16xf32>, vector<2x16xf32> -> vector<16x16xf32>
    %c2_77 = arith.constant 2 : index
    %c0_78 = arith.constant 0 : index
    %c0_79 = arith.constant 0 : index
    %c0_80 = arith.constant 0 : index
    %403 = vector.load %arg3[%c2_77, %c0_78, %c0_79, %c0_80] : memref<8x2x16x48xf32, #tpu.memory_space<vmem>>, vector<1x1x16x48xf32>
    %404 = vector.shape_cast %403 : vector<1x1x16x48xf32> to vector<16x48xf32>
    %c2_81 = arith.constant 2 : index
    %c1_82 = arith.constant 1 : index
    %c0_83 = arith.constant 0 : index
    %c0_84 = arith.constant 0 : index
    %405 = vector.load %arg3[%c2_81, %c1_82, %c0_83, %c0_84] : memref<8x2x16x48xf32, #tpu.memory_space<vmem>>, vector<1x1x16x48xf32>
    %406 = vector.shape_cast %405 : vector<1x1x16x48xf32> to vector<16x48xf32>
    %c2_85 = arith.constant 2 : index
    %c0_86 = arith.constant 0 : index
    %407 = vector.load %arg4[%c2_85, %c0_86] : memref<8x64xf32, #tpu.memory_space<vmem>>, vector<1x48xf32>
    %c2_87 = arith.constant 2 : index
    %c48_88 = arith.constant 48 : index
    %408 = vector.load %arg4[%c2_87, %c48_88] : memref<8x64xf32, #tpu.memory_space<vmem>>, vector<1x16xf32>
    %cst_89 = arith.constant dense<0.000000e+00> : vector<16x48xf32>
    %409 = tpu.matmul %402, %404, %cst_89 {dimension_numbers = #tpu.dot_dimension_numbers<[1], [0], [0], [1], [0, 0, 1, 1], [], []>} : vector<16x16xf32>, vector<16x48xf32>, vector<16x48xf32> -> vector<16x48xf32>
    %410 = vector.broadcast %407 : vector<1x48xf32> to vector<16x48xf32>
    %411 = arith.addf %409, %410 : vector<16x48xf32>
    %cst_90 = arith.constant 0.000000e+00 : f32
    %412 = vector.broadcast %cst_90 : f32 to vector<2x16xf32>
    %413 = vector.extract_strided_slice %411 {offsets = [0, 0], sizes = [2, 48], strides = [1, 1]} : vector<16x48xf32> to vector<2x48xf32>
    %cst_91 = arith.constant dense<0.000000e+00> : vector<2x48xf32>
    %414 = tpu.matmul %412, %406, %cst_91 {dimension_numbers = #tpu.dot_dimension_numbers<[1], [0], [0], [1], [0, 0, 1, 1], [], []>} : vector<2x16xf32>, vector<16x48xf32>, vector<2x48xf32> -> vector<2x48xf32>
    %415 = vector.extract_strided_slice %413 {offsets = [0, 0], sizes = [2, 32], strides = [1, 1]} : vector<2x48xf32> to vector<2x32xf32>
    %416 = vector.extract_strided_slice %414 {offsets = [0, 0], sizes = [2, 32], strides = [1, 1]} : vector<2x48xf32> to vector<2x32xf32>
    %417 = arith.addf %415, %416 : vector<2x32xf32>
    %418 = arith.negf %417 : vector<2x32xf32>
    %419 = math.exp %418 : vector<2x32xf32>
    %cst_92 = arith.constant 1.000000e+00 : f32
    %420 = vector.broadcast %cst_92 : f32 to vector<2x32xf32>
    %421 = arith.addf %420, %419 : vector<2x32xf32>
    %422 = arith.divf %420, %421 : vector<2x32xf32>
    %423 = vector.extract_strided_slice %422 {offsets = [0, 0], sizes = [2, 16], strides = [1, 1]} : vector<2x32xf32> to vector<2x16xf32>
    %424 = vector.extract_strided_slice %422 {offsets = [0, 16], sizes = [2, 16], strides = [1, 1]} : vector<2x32xf32> to vector<2x16xf32>
    %425 = vector.extract_strided_slice %413 {offsets = [0, 32], sizes = [2, 16], strides = [1, 1]} : vector<2x48xf32> to vector<2x16xf32>
    %426 = vector.extract_strided_slice %414 {offsets = [0, 32], sizes = [2, 16], strides = [1, 1]} : vector<2x48xf32> to vector<2x16xf32>
    %427 = vector.broadcast %408 : vector<1x16xf32> to vector<2x16xf32>
    %428 = arith.addf %426, %427 : vector<2x16xf32>
    %429 = arith.mulf %423, %428 : vector<2x16xf32>
    %430 = arith.addf %425, %429 : vector<2x16xf32>
    %431 = math.tanh %430 : vector<2x16xf32>
    %432 = arith.subf %412, %431 : vector<2x16xf32>
    %433 = arith.mulf %424, %432 : vector<2x16xf32>
    %434 = arith.addf %431, %433 : vector<2x16xf32>
    %435 = vector.extract_strided_slice %411 {offsets = [2, 0], sizes = [2, 48], strides = [1, 1]} : vector<16x48xf32> to vector<2x48xf32>
    %cst_93 = arith.constant dense<0.000000e+00> : vector<2x48xf32>
    %436 = tpu.matmul %434, %406, %cst_93 {dimension_numbers = #tpu.dot_dimension_numbers<[1], [0], [0], [1], [0, 0, 1, 1], [], []>} : vector<2x16xf32>, vector<16x48xf32>, vector<2x48xf32> -> vector<2x48xf32>
    %437 = vector.extract_strided_slice %435 {offsets = [0, 0], sizes = [2, 32], strides = [1, 1]} : vector<2x48xf32> to vector<2x32xf32>
    %438 = vector.extract_strided_slice %436 {offsets = [0, 0], sizes = [2, 32], strides = [1, 1]} : vector<2x48xf32> to vector<2x32xf32>
    %439 = arith.addf %437, %438 : vector<2x32xf32>
    %440 = arith.negf %439 : vector<2x32xf32>
    %441 = math.exp %440 : vector<2x32xf32>
    %cst_94 = arith.constant 1.000000e+00 : f32
    %442 = vector.broadcast %cst_94 : f32 to vector<2x32xf32>
    %443 = arith.addf %442, %441 : vector<2x32xf32>
    %444 = arith.divf %442, %443 : vector<2x32xf32>
    %445 = vector.extract_strided_slice %444 {offsets = [0, 0], sizes = [2, 16], strides = [1, 1]} : vector<2x32xf32> to vector<2x16xf32>
    %446 = vector.extract_strided_slice %444 {offsets = [0, 16], sizes = [2, 16], strides = [1, 1]} : vector<2x32xf32> to vector<2x16xf32>
    %447 = vector.extract_strided_slice %435 {offsets = [0, 32], sizes = [2, 16], strides = [1, 1]} : vector<2x48xf32> to vector<2x16xf32>
    %448 = vector.extract_strided_slice %436 {offsets = [0, 32], sizes = [2, 16], strides = [1, 1]} : vector<2x48xf32> to vector<2x16xf32>
    %449 = vector.broadcast %408 : vector<1x16xf32> to vector<2x16xf32>
    %450 = arith.addf %448, %449 : vector<2x16xf32>
    %451 = arith.mulf %445, %450 : vector<2x16xf32>
    %452 = arith.addf %447, %451 : vector<2x16xf32>
    %453 = math.tanh %452 : vector<2x16xf32>
    %454 = arith.subf %434, %453 : vector<2x16xf32>
    %455 = arith.mulf %446, %454 : vector<2x16xf32>
    %456 = arith.addf %453, %455 : vector<2x16xf32>
    %457 = vector.extract_strided_slice %411 {offsets = [4, 0], sizes = [2, 48], strides = [1, 1]} : vector<16x48xf32> to vector<2x48xf32>
    %cst_95 = arith.constant dense<0.000000e+00> : vector<2x48xf32>
    %458 = tpu.matmul %456, %406, %cst_95 {dimension_numbers = #tpu.dot_dimension_numbers<[1], [0], [0], [1], [0, 0, 1, 1], [], []>} : vector<2x16xf32>, vector<16x48xf32>, vector<2x48xf32> -> vector<2x48xf32>
    %459 = vector.extract_strided_slice %457 {offsets = [0, 0], sizes = [2, 32], strides = [1, 1]} : vector<2x48xf32> to vector<2x32xf32>
    %460 = vector.extract_strided_slice %458 {offsets = [0, 0], sizes = [2, 32], strides = [1, 1]} : vector<2x48xf32> to vector<2x32xf32>
    %461 = arith.addf %459, %460 : vector<2x32xf32>
    %462 = arith.negf %461 : vector<2x32xf32>
    %463 = math.exp %462 : vector<2x32xf32>
    %cst_96 = arith.constant 1.000000e+00 : f32
    %464 = vector.broadcast %cst_96 : f32 to vector<2x32xf32>
    %465 = arith.addf %464, %463 : vector<2x32xf32>
    %466 = arith.divf %464, %465 : vector<2x32xf32>
    %467 = vector.extract_strided_slice %466 {offsets = [0, 0], sizes = [2, 16], strides = [1, 1]} : vector<2x32xf32> to vector<2x16xf32>
    %468 = vector.extract_strided_slice %466 {offsets = [0, 16], sizes = [2, 16], strides = [1, 1]} : vector<2x32xf32> to vector<2x16xf32>
    %469 = vector.extract_strided_slice %457 {offsets = [0, 32], sizes = [2, 16], strides = [1, 1]} : vector<2x48xf32> to vector<2x16xf32>
    %470 = vector.extract_strided_slice %458 {offsets = [0, 32], sizes = [2, 16], strides = [1, 1]} : vector<2x48xf32> to vector<2x16xf32>
    %471 = vector.broadcast %408 : vector<1x16xf32> to vector<2x16xf32>
    %472 = arith.addf %470, %471 : vector<2x16xf32>
    %473 = arith.mulf %467, %472 : vector<2x16xf32>
    %474 = arith.addf %469, %473 : vector<2x16xf32>
    %475 = math.tanh %474 : vector<2x16xf32>
    %476 = arith.subf %456, %475 : vector<2x16xf32>
    %477 = arith.mulf %468, %476 : vector<2x16xf32>
    %478 = arith.addf %475, %477 : vector<2x16xf32>
    %479 = vector.extract_strided_slice %411 {offsets = [6, 0], sizes = [2, 48], strides = [1, 1]} : vector<16x48xf32> to vector<2x48xf32>
    %cst_97 = arith.constant dense<0.000000e+00> : vector<2x48xf32>
    %480 = tpu.matmul %478, %406, %cst_97 {dimension_numbers = #tpu.dot_dimension_numbers<[1], [0], [0], [1], [0, 0, 1, 1], [], []>} : vector<2x16xf32>, vector<16x48xf32>, vector<2x48xf32> -> vector<2x48xf32>
    %481 = vector.extract_strided_slice %479 {offsets = [0, 0], sizes = [2, 32], strides = [1, 1]} : vector<2x48xf32> to vector<2x32xf32>
    %482 = vector.extract_strided_slice %480 {offsets = [0, 0], sizes = [2, 32], strides = [1, 1]} : vector<2x48xf32> to vector<2x32xf32>
    %483 = arith.addf %481, %482 : vector<2x32xf32>
    %484 = arith.negf %483 : vector<2x32xf32>
    %485 = math.exp %484 : vector<2x32xf32>
    %cst_98 = arith.constant 1.000000e+00 : f32
    %486 = vector.broadcast %cst_98 : f32 to vector<2x32xf32>
    %487 = arith.addf %486, %485 : vector<2x32xf32>
    %488 = arith.divf %486, %487 : vector<2x32xf32>
    %489 = vector.extract_strided_slice %488 {offsets = [0, 0], sizes = [2, 16], strides = [1, 1]} : vector<2x32xf32> to vector<2x16xf32>
    %490 = vector.extract_strided_slice %488 {offsets = [0, 16], sizes = [2, 16], strides = [1, 1]} : vector<2x32xf32> to vector<2x16xf32>
    %491 = vector.extract_strided_slice %479 {offsets = [0, 32], sizes = [2, 16], strides = [1, 1]} : vector<2x48xf32> to vector<2x16xf32>
    %492 = vector.extract_strided_slice %480 {offsets = [0, 32], sizes = [2, 16], strides = [1, 1]} : vector<2x48xf32> to vector<2x16xf32>
    %493 = vector.broadcast %408 : vector<1x16xf32> to vector<2x16xf32>
    %494 = arith.addf %492, %493 : vector<2x16xf32>
    %495 = arith.mulf %489, %494 : vector<2x16xf32>
    %496 = arith.addf %491, %495 : vector<2x16xf32>
    %497 = math.tanh %496 : vector<2x16xf32>
    %498 = arith.subf %478, %497 : vector<2x16xf32>
    %499 = arith.mulf %490, %498 : vector<2x16xf32>
    %500 = arith.addf %497, %499 : vector<2x16xf32>
    %501 = vector.extract_strided_slice %411 {offsets = [8, 0], sizes = [2, 48], strides = [1, 1]} : vector<16x48xf32> to vector<2x48xf32>
    %cst_99 = arith.constant dense<0.000000e+00> : vector<2x48xf32>
    %502 = tpu.matmul %500, %406, %cst_99 {dimension_numbers = #tpu.dot_dimension_numbers<[1], [0], [0], [1], [0, 0, 1, 1], [], []>} : vector<2x16xf32>, vector<16x48xf32>, vector<2x48xf32> -> vector<2x48xf32>
    %503 = vector.extract_strided_slice %501 {offsets = [0, 0], sizes = [2, 32], strides = [1, 1]} : vector<2x48xf32> to vector<2x32xf32>
    %504 = vector.extract_strided_slice %502 {offsets = [0, 0], sizes = [2, 32], strides = [1, 1]} : vector<2x48xf32> to vector<2x32xf32>
    %505 = arith.addf %503, %504 : vector<2x32xf32>
    %506 = arith.negf %505 : vector<2x32xf32>
    %507 = math.exp %506 : vector<2x32xf32>
    %cst_100 = arith.constant 1.000000e+00 : f32
    %508 = vector.broadcast %cst_100 : f32 to vector<2x32xf32>
    %509 = arith.addf %508, %507 : vector<2x32xf32>
    %510 = arith.divf %508, %509 : vector<2x32xf32>
    %511 = vector.extract_strided_slice %510 {offsets = [0, 0], sizes = [2, 16], strides = [1, 1]} : vector<2x32xf32> to vector<2x16xf32>
    %512 = vector.extract_strided_slice %510 {offsets = [0, 16], sizes = [2, 16], strides = [1, 1]} : vector<2x32xf32> to vector<2x16xf32>
    %513 = vector.extract_strided_slice %501 {offsets = [0, 32], sizes = [2, 16], strides = [1, 1]} : vector<2x48xf32> to vector<2x16xf32>
    %514 = vector.extract_strided_slice %502 {offsets = [0, 32], sizes = [2, 16], strides = [1, 1]} : vector<2x48xf32> to vector<2x16xf32>
    %515 = vector.broadcast %408 : vector<1x16xf32> to vector<2x16xf32>
    %516 = arith.addf %514, %515 : vector<2x16xf32>
    %517 = arith.mulf %511, %516 : vector<2x16xf32>
    %518 = arith.addf %513, %517 : vector<2x16xf32>
    %519 = math.tanh %518 : vector<2x16xf32>
    %520 = arith.subf %500, %519 : vector<2x16xf32>
    %521 = arith.mulf %512, %520 : vector<2x16xf32>
    %522 = arith.addf %519, %521 : vector<2x16xf32>
    %523 = vector.extract_strided_slice %411 {offsets = [10, 0], sizes = [2, 48], strides = [1, 1]} : vector<16x48xf32> to vector<2x48xf32>
    %cst_101 = arith.constant dense<0.000000e+00> : vector<2x48xf32>
    %524 = tpu.matmul %522, %406, %cst_101 {dimension_numbers = #tpu.dot_dimension_numbers<[1], [0], [0], [1], [0, 0, 1, 1], [], []>} : vector<2x16xf32>, vector<16x48xf32>, vector<2x48xf32> -> vector<2x48xf32>
    %525 = vector.extract_strided_slice %523 {offsets = [0, 0], sizes = [2, 32], strides = [1, 1]} : vector<2x48xf32> to vector<2x32xf32>
    %526 = vector.extract_strided_slice %524 {offsets = [0, 0], sizes = [2, 32], strides = [1, 1]} : vector<2x48xf32> to vector<2x32xf32>
    %527 = arith.addf %525, %526 : vector<2x32xf32>
    %528 = arith.negf %527 : vector<2x32xf32>
    %529 = math.exp %528 : vector<2x32xf32>
    %cst_102 = arith.constant 1.000000e+00 : f32
    %530 = vector.broadcast %cst_102 : f32 to vector<2x32xf32>
    %531 = arith.addf %530, %529 : vector<2x32xf32>
    %532 = arith.divf %530, %531 : vector<2x32xf32>
    %533 = vector.extract_strided_slice %532 {offsets = [0, 0], sizes = [2, 16], strides = [1, 1]} : vector<2x32xf32> to vector<2x16xf32>
    %534 = vector.extract_strided_slice %532 {offsets = [0, 16], sizes = [2, 16], strides = [1, 1]} : vector<2x32xf32> to vector<2x16xf32>
    %535 = vector.extract_strided_slice %523 {offsets = [0, 32], sizes = [2, 16], strides = [1, 1]} : vector<2x48xf32> to vector<2x16xf32>
    %536 = vector.extract_strided_slice %524 {offsets = [0, 32], sizes = [2, 16], strides = [1, 1]} : vector<2x48xf32> to vector<2x16xf32>
    %537 = vector.broadcast %408 : vector<1x16xf32> to vector<2x16xf32>
    %538 = arith.addf %536, %537 : vector<2x16xf32>
    %539 = arith.mulf %533, %538 : vector<2x16xf32>
    %540 = arith.addf %535, %539 : vector<2x16xf32>
    %541 = math.tanh %540 : vector<2x16xf32>
    %542 = arith.subf %522, %541 : vector<2x16xf32>
    %543 = arith.mulf %534, %542 : vector<2x16xf32>
    %544 = arith.addf %541, %543 : vector<2x16xf32>
    %545 = vector.extract_strided_slice %411 {offsets = [12, 0], sizes = [2, 48], strides = [1, 1]} : vector<16x48xf32> to vector<2x48xf32>
    %cst_103 = arith.constant dense<0.000000e+00> : vector<2x48xf32>
    %546 = tpu.matmul %544, %406, %cst_103 {dimension_numbers = #tpu.dot_dimension_numbers<[1], [0], [0], [1], [0, 0, 1, 1], [], []>} : vector<2x16xf32>, vector<16x48xf32>, vector<2x48xf32> -> vector<2x48xf32>
    %547 = vector.extract_strided_slice %545 {offsets = [0, 0], sizes = [2, 32], strides = [1, 1]} : vector<2x48xf32> to vector<2x32xf32>
    %548 = vector.extract_strided_slice %546 {offsets = [0, 0], sizes = [2, 32], strides = [1, 1]} : vector<2x48xf32> to vector<2x32xf32>
    %549 = arith.addf %547, %548 : vector<2x32xf32>
    %550 = arith.negf %549 : vector<2x32xf32>
    %551 = math.exp %550 : vector<2x32xf32>
    %cst_104 = arith.constant 1.000000e+00 : f32
    %552 = vector.broadcast %cst_104 : f32 to vector<2x32xf32>
    %553 = arith.addf %552, %551 : vector<2x32xf32>
    %554 = arith.divf %552, %553 : vector<2x32xf32>
    %555 = vector.extract_strided_slice %554 {offsets = [0, 0], sizes = [2, 16], strides = [1, 1]} : vector<2x32xf32> to vector<2x16xf32>
    %556 = vector.extract_strided_slice %554 {offsets = [0, 16], sizes = [2, 16], strides = [1, 1]} : vector<2x32xf32> to vector<2x16xf32>
    %557 = vector.extract_strided_slice %545 {offsets = [0, 32], sizes = [2, 16], strides = [1, 1]} : vector<2x48xf32> to vector<2x16xf32>
    %558 = vector.extract_strided_slice %546 {offsets = [0, 32], sizes = [2, 16], strides = [1, 1]} : vector<2x48xf32> to vector<2x16xf32>
    %559 = vector.broadcast %408 : vector<1x16xf32> to vector<2x16xf32>
    %560 = arith.addf %558, %559 : vector<2x16xf32>
    %561 = arith.mulf %555, %560 : vector<2x16xf32>
    %562 = arith.addf %557, %561 : vector<2x16xf32>
    %563 = math.tanh %562 : vector<2x16xf32>
    %564 = arith.subf %544, %563 : vector<2x16xf32>
    %565 = arith.mulf %556, %564 : vector<2x16xf32>
    %566 = arith.addf %563, %565 : vector<2x16xf32>
    %567 = vector.extract_strided_slice %411 {offsets = [14, 0], sizes = [2, 48], strides = [1, 1]} : vector<16x48xf32> to vector<2x48xf32>
    %cst_105 = arith.constant dense<0.000000e+00> : vector<2x48xf32>
    %568 = tpu.matmul %566, %406, %cst_105 {dimension_numbers = #tpu.dot_dimension_numbers<[1], [0], [0], [1], [0, 0, 1, 1], [], []>} : vector<2x16xf32>, vector<16x48xf32>, vector<2x48xf32> -> vector<2x48xf32>
    %569 = vector.extract_strided_slice %567 {offsets = [0, 0], sizes = [2, 32], strides = [1, 1]} : vector<2x48xf32> to vector<2x32xf32>
    %570 = vector.extract_strided_slice %568 {offsets = [0, 0], sizes = [2, 32], strides = [1, 1]} : vector<2x48xf32> to vector<2x32xf32>
    %571 = arith.addf %569, %570 : vector<2x32xf32>
    %572 = arith.negf %571 : vector<2x32xf32>
    %573 = math.exp %572 : vector<2x32xf32>
    %cst_106 = arith.constant 1.000000e+00 : f32
    %574 = vector.broadcast %cst_106 : f32 to vector<2x32xf32>
    %575 = arith.addf %574, %573 : vector<2x32xf32>
    %576 = arith.divf %574, %575 : vector<2x32xf32>
    %577 = vector.extract_strided_slice %576 {offsets = [0, 0], sizes = [2, 16], strides = [1, 1]} : vector<2x32xf32> to vector<2x16xf32>
    %578 = vector.extract_strided_slice %576 {offsets = [0, 16], sizes = [2, 16], strides = [1, 1]} : vector<2x32xf32> to vector<2x16xf32>
    %579 = vector.extract_strided_slice %567 {offsets = [0, 32], sizes = [2, 16], strides = [1, 1]} : vector<2x48xf32> to vector<2x16xf32>
    %580 = vector.extract_strided_slice %568 {offsets = [0, 32], sizes = [2, 16], strides = [1, 1]} : vector<2x48xf32> to vector<2x16xf32>
    %581 = vector.broadcast %408 : vector<1x16xf32> to vector<2x16xf32>
    %582 = arith.addf %580, %581 : vector<2x16xf32>
    %583 = arith.mulf %577, %582 : vector<2x16xf32>
    %584 = arith.addf %579, %583 : vector<2x16xf32>
    %585 = math.tanh %584 : vector<2x16xf32>
    %586 = arith.subf %566, %585 : vector<2x16xf32>
    %587 = arith.mulf %578, %586 : vector<2x16xf32>
    %588 = arith.addf %585, %587 : vector<2x16xf32>
    %589 = tpu.concatenate %434, %456, %478, %500, %522, %544, %566, %588 in 0 : vector<2x16xf32>, vector<2x16xf32>, vector<2x16xf32>, vector<2x16xf32>, vector<2x16xf32>, vector<2x16xf32>, vector<2x16xf32>, vector<2x16xf32> -> vector<16x16xf32>
    %c3 = arith.constant 3 : index
    %c0_107 = arith.constant 0 : index
    %c0_108 = arith.constant 0 : index
    %c0_109 = arith.constant 0 : index
    %590 = vector.load %arg3[%c3, %c0_107, %c0_108, %c0_109] : memref<8x2x16x48xf32, #tpu.memory_space<vmem>>, vector<1x1x16x48xf32>
    %591 = vector.shape_cast %590 : vector<1x1x16x48xf32> to vector<16x48xf32>
    %c3_110 = arith.constant 3 : index
    %c1_111 = arith.constant 1 : index
    %c0_112 = arith.constant 0 : index
    %c0_113 = arith.constant 0 : index
    %592 = vector.load %arg3[%c3_110, %c1_111, %c0_112, %c0_113] : memref<8x2x16x48xf32, #tpu.memory_space<vmem>>, vector<1x1x16x48xf32>
    %593 = vector.shape_cast %592 : vector<1x1x16x48xf32> to vector<16x48xf32>
    %c3_114 = arith.constant 3 : index
    %c0_115 = arith.constant 0 : index
    %594 = vector.load %arg4[%c3_114, %c0_115] : memref<8x64xf32, #tpu.memory_space<vmem>>, vector<1x48xf32>
    %c3_116 = arith.constant 3 : index
    %c48_117 = arith.constant 48 : index
    %595 = vector.load %arg4[%c3_116, %c48_117] : memref<8x64xf32, #tpu.memory_space<vmem>>, vector<1x16xf32>
    %cst_118 = arith.constant dense<0.000000e+00> : vector<16x48xf32>
    %596 = tpu.matmul %589, %591, %cst_118 {dimension_numbers = #tpu.dot_dimension_numbers<[1], [0], [0], [1], [0, 0, 1, 1], [], []>} : vector<16x16xf32>, vector<16x48xf32>, vector<16x48xf32> -> vector<16x48xf32>
    %597 = vector.broadcast %594 : vector<1x48xf32> to vector<16x48xf32>
    %598 = arith.addf %596, %597 : vector<16x48xf32>
    %cst_119 = arith.constant 0.000000e+00 : f32
    %599 = vector.broadcast %cst_119 : f32 to vector<2x16xf32>
    %600 = vector.extract_strided_slice %598 {offsets = [0, 0], sizes = [2, 48], strides = [1, 1]} : vector<16x48xf32> to vector<2x48xf32>
    %cst_120 = arith.constant dense<0.000000e+00> : vector<2x48xf32>
    %601 = tpu.matmul %599, %593, %cst_120 {dimension_numbers = #tpu.dot_dimension_numbers<[1], [0], [0], [1], [0, 0, 1, 1], [], []>} : vector<2x16xf32>, vector<16x48xf32>, vector<2x48xf32> -> vector<2x48xf32>
    %602 = vector.extract_strided_slice %600 {offsets = [0, 0], sizes = [2, 32], strides = [1, 1]} : vector<2x48xf32> to vector<2x32xf32>
    %603 = vector.extract_strided_slice %601 {offsets = [0, 0], sizes = [2, 32], strides = [1, 1]} : vector<2x48xf32> to vector<2x32xf32>
    %604 = arith.addf %602, %603 : vector<2x32xf32>
    %605 = arith.negf %604 : vector<2x32xf32>
    %606 = math.exp %605 : vector<2x32xf32>
    %cst_121 = arith.constant 1.000000e+00 : f32
    %607 = vector.broadcast %cst_121 : f32 to vector<2x32xf32>
    %608 = arith.addf %607, %606 : vector<2x32xf32>
    %609 = arith.divf %607, %608 : vector<2x32xf32>
    %610 = vector.extract_strided_slice %609 {offsets = [0, 0], sizes = [2, 16], strides = [1, 1]} : vector<2x32xf32> to vector<2x16xf32>
    %611 = vector.extract_strided_slice %609 {offsets = [0, 16], sizes = [2, 16], strides = [1, 1]} : vector<2x32xf32> to vector<2x16xf32>
    %612 = vector.extract_strided_slice %600 {offsets = [0, 32], sizes = [2, 16], strides = [1, 1]} : vector<2x48xf32> to vector<2x16xf32>
    %613 = vector.extract_strided_slice %601 {offsets = [0, 32], sizes = [2, 16], strides = [1, 1]} : vector<2x48xf32> to vector<2x16xf32>
    %614 = vector.broadcast %595 : vector<1x16xf32> to vector<2x16xf32>
    %615 = arith.addf %613, %614 : vector<2x16xf32>
    %616 = arith.mulf %610, %615 : vector<2x16xf32>
    %617 = arith.addf %612, %616 : vector<2x16xf32>
    %618 = math.tanh %617 : vector<2x16xf32>
    %619 = arith.subf %599, %618 : vector<2x16xf32>
    %620 = arith.mulf %611, %619 : vector<2x16xf32>
    %621 = arith.addf %618, %620 : vector<2x16xf32>
    %622 = vector.extract_strided_slice %598 {offsets = [2, 0], sizes = [2, 48], strides = [1, 1]} : vector<16x48xf32> to vector<2x48xf32>
    %cst_122 = arith.constant dense<0.000000e+00> : vector<2x48xf32>
    %623 = tpu.matmul %621, %593, %cst_122 {dimension_numbers = #tpu.dot_dimension_numbers<[1], [0], [0], [1], [0, 0, 1, 1], [], []>} : vector<2x16xf32>, vector<16x48xf32>, vector<2x48xf32> -> vector<2x48xf32>
    %624 = vector.extract_strided_slice %622 {offsets = [0, 0], sizes = [2, 32], strides = [1, 1]} : vector<2x48xf32> to vector<2x32xf32>
    %625 = vector.extract_strided_slice %623 {offsets = [0, 0], sizes = [2, 32], strides = [1, 1]} : vector<2x48xf32> to vector<2x32xf32>
    %626 = arith.addf %624, %625 : vector<2x32xf32>
    %627 = arith.negf %626 : vector<2x32xf32>
    %628 = math.exp %627 : vector<2x32xf32>
    %cst_123 = arith.constant 1.000000e+00 : f32
    %629 = vector.broadcast %cst_123 : f32 to vector<2x32xf32>
    %630 = arith.addf %629, %628 : vector<2x32xf32>
    %631 = arith.divf %629, %630 : vector<2x32xf32>
    %632 = vector.extract_strided_slice %631 {offsets = [0, 0], sizes = [2, 16], strides = [1, 1]} : vector<2x32xf32> to vector<2x16xf32>
    %633 = vector.extract_strided_slice %631 {offsets = [0, 16], sizes = [2, 16], strides = [1, 1]} : vector<2x32xf32> to vector<2x16xf32>
    %634 = vector.extract_strided_slice %622 {offsets = [0, 32], sizes = [2, 16], strides = [1, 1]} : vector<2x48xf32> to vector<2x16xf32>
    %635 = vector.extract_strided_slice %623 {offsets = [0, 32], sizes = [2, 16], strides = [1, 1]} : vector<2x48xf32> to vector<2x16xf32>
    %636 = vector.broadcast %595 : vector<1x16xf32> to vector<2x16xf32>
    %637 = arith.addf %635, %636 : vector<2x16xf32>
    %638 = arith.mulf %632, %637 : vector<2x16xf32>
    %639 = arith.addf %634, %638 : vector<2x16xf32>
    %640 = math.tanh %639 : vector<2x16xf32>
    %641 = arith.subf %621, %640 : vector<2x16xf32>
    %642 = arith.mulf %633, %641 : vector<2x16xf32>
    %643 = arith.addf %640, %642 : vector<2x16xf32>
    %644 = vector.extract_strided_slice %598 {offsets = [4, 0], sizes = [2, 48], strides = [1, 1]} : vector<16x48xf32> to vector<2x48xf32>
    %cst_124 = arith.constant dense<0.000000e+00> : vector<2x48xf32>
    %645 = tpu.matmul %643, %593, %cst_124 {dimension_numbers = #tpu.dot_dimension_numbers<[1], [0], [0], [1], [0, 0, 1, 1], [], []>} : vector<2x16xf32>, vector<16x48xf32>, vector<2x48xf32> -> vector<2x48xf32>
    %646 = vector.extract_strided_slice %644 {offsets = [0, 0], sizes = [2, 32], strides = [1, 1]} : vector<2x48xf32> to vector<2x32xf32>
    %647 = vector.extract_strided_slice %645 {offsets = [0, 0], sizes = [2, 32], strides = [1, 1]} : vector<2x48xf32> to vector<2x32xf32>
    %648 = arith.addf %646, %647 : vector<2x32xf32>
    %649 = arith.negf %648 : vector<2x32xf32>
    %650 = math.exp %649 : vector<2x32xf32>
    %cst_125 = arith.constant 1.000000e+00 : f32
    %651 = vector.broadcast %cst_125 : f32 to vector<2x32xf32>
    %652 = arith.addf %651, %650 : vector<2x32xf32>
    %653 = arith.divf %651, %652 : vector<2x32xf32>
    %654 = vector.extract_strided_slice %653 {offsets = [0, 0], sizes = [2, 16], strides = [1, 1]} : vector<2x32xf32> to vector<2x16xf32>
    %655 = vector.extract_strided_slice %653 {offsets = [0, 16], sizes = [2, 16], strides = [1, 1]} : vector<2x32xf32> to vector<2x16xf32>
    %656 = vector.extract_strided_slice %644 {offsets = [0, 32], sizes = [2, 16], strides = [1, 1]} : vector<2x48xf32> to vector<2x16xf32>
    %657 = vector.extract_strided_slice %645 {offsets = [0, 32], sizes = [2, 16], strides = [1, 1]} : vector<2x48xf32> to vector<2x16xf32>
    %658 = vector.broadcast %595 : vector<1x16xf32> to vector<2x16xf32>
    %659 = arith.addf %657, %658 : vector<2x16xf32>
    %660 = arith.mulf %654, %659 : vector<2x16xf32>
    %661 = arith.addf %656, %660 : vector<2x16xf32>
    %662 = math.tanh %661 : vector<2x16xf32>
    %663 = arith.subf %643, %662 : vector<2x16xf32>
    %664 = arith.mulf %655, %663 : vector<2x16xf32>
    %665 = arith.addf %662, %664 : vector<2x16xf32>
    %666 = vector.extract_strided_slice %598 {offsets = [6, 0], sizes = [2, 48], strides = [1, 1]} : vector<16x48xf32> to vector<2x48xf32>
    %cst_126 = arith.constant dense<0.000000e+00> : vector<2x48xf32>
    %667 = tpu.matmul %665, %593, %cst_126 {dimension_numbers = #tpu.dot_dimension_numbers<[1], [0], [0], [1], [0, 0, 1, 1], [], []>} : vector<2x16xf32>, vector<16x48xf32>, vector<2x48xf32> -> vector<2x48xf32>
    %668 = vector.extract_strided_slice %666 {offsets = [0, 0], sizes = [2, 32], strides = [1, 1]} : vector<2x48xf32> to vector<2x32xf32>
    %669 = vector.extract_strided_slice %667 {offsets = [0, 0], sizes = [2, 32], strides = [1, 1]} : vector<2x48xf32> to vector<2x32xf32>
    %670 = arith.addf %668, %669 : vector<2x32xf32>
    %671 = arith.negf %670 : vector<2x32xf32>
    %672 = math.exp %671 : vector<2x32xf32>
    %cst_127 = arith.constant 1.000000e+00 : f32
    %673 = vector.broadcast %cst_127 : f32 to vector<2x32xf32>
    %674 = arith.addf %673, %672 : vector<2x32xf32>
    %675 = arith.divf %673, %674 : vector<2x32xf32>
    %676 = vector.extract_strided_slice %675 {offsets = [0, 0], sizes = [2, 16], strides = [1, 1]} : vector<2x32xf32> to vector<2x16xf32>
    %677 = vector.extract_strided_slice %675 {offsets = [0, 16], sizes = [2, 16], strides = [1, 1]} : vector<2x32xf32> to vector<2x16xf32>
    %678 = vector.extract_strided_slice %666 {offsets = [0, 32], sizes = [2, 16], strides = [1, 1]} : vector<2x48xf32> to vector<2x16xf32>
    %679 = vector.extract_strided_slice %667 {offsets = [0, 32], sizes = [2, 16], strides = [1, 1]} : vector<2x48xf32> to vector<2x16xf32>
    %680 = vector.broadcast %595 : vector<1x16xf32> to vector<2x16xf32>
    %681 = arith.addf %679, %680 : vector<2x16xf32>
    %682 = arith.mulf %676, %681 : vector<2x16xf32>
    %683 = arith.addf %678, %682 : vector<2x16xf32>
    %684 = math.tanh %683 : vector<2x16xf32>
    %685 = arith.subf %665, %684 : vector<2x16xf32>
    %686 = arith.mulf %677, %685 : vector<2x16xf32>
    %687 = arith.addf %684, %686 : vector<2x16xf32>
    %688 = vector.extract_strided_slice %598 {offsets = [8, 0], sizes = [2, 48], strides = [1, 1]} : vector<16x48xf32> to vector<2x48xf32>
    %cst_128 = arith.constant dense<0.000000e+00> : vector<2x48xf32>
    %689 = tpu.matmul %687, %593, %cst_128 {dimension_numbers = #tpu.dot_dimension_numbers<[1], [0], [0], [1], [0, 0, 1, 1], [], []>} : vector<2x16xf32>, vector<16x48xf32>, vector<2x48xf32> -> vector<2x48xf32>
    %690 = vector.extract_strided_slice %688 {offsets = [0, 0], sizes = [2, 32], strides = [1, 1]} : vector<2x48xf32> to vector<2x32xf32>
    %691 = vector.extract_strided_slice %689 {offsets = [0, 0], sizes = [2, 32], strides = [1, 1]} : vector<2x48xf32> to vector<2x32xf32>
    %692 = arith.addf %690, %691 : vector<2x32xf32>
    %693 = arith.negf %692 : vector<2x32xf32>
    %694 = math.exp %693 : vector<2x32xf32>
    %cst_129 = arith.constant 1.000000e+00 : f32
    %695 = vector.broadcast %cst_129 : f32 to vector<2x32xf32>
    %696 = arith.addf %695, %694 : vector<2x32xf32>
    %697 = arith.divf %695, %696 : vector<2x32xf32>
    %698 = vector.extract_strided_slice %697 {offsets = [0, 0], sizes = [2, 16], strides = [1, 1]} : vector<2x32xf32> to vector<2x16xf32>
    %699 = vector.extract_strided_slice %697 {offsets = [0, 16], sizes = [2, 16], strides = [1, 1]} : vector<2x32xf32> to vector<2x16xf32>
    %700 = vector.extract_strided_slice %688 {offsets = [0, 32], sizes = [2, 16], strides = [1, 1]} : vector<2x48xf32> to vector<2x16xf32>
    %701 = vector.extract_strided_slice %689 {offsets = [0, 32], sizes = [2, 16], strides = [1, 1]} : vector<2x48xf32> to vector<2x16xf32>
    %702 = vector.broadcast %595 : vector<1x16xf32> to vector<2x16xf32>
    %703 = arith.addf %701, %702 : vector<2x16xf32>
    %704 = arith.mulf %698, %703 : vector<2x16xf32>
    %705 = arith.addf %700, %704 : vector<2x16xf32>
    %706 = math.tanh %705 : vector<2x16xf32>
    %707 = arith.subf %687, %706 : vector<2x16xf32>
    %708 = arith.mulf %699, %707 : vector<2x16xf32>
    %709 = arith.addf %706, %708 : vector<2x16xf32>
    %710 = vector.extract_strided_slice %598 {offsets = [10, 0], sizes = [2, 48], strides = [1, 1]} : vector<16x48xf32> to vector<2x48xf32>
    %cst_130 = arith.constant dense<0.000000e+00> : vector<2x48xf32>
    %711 = tpu.matmul %709, %593, %cst_130 {dimension_numbers = #tpu.dot_dimension_numbers<[1], [0], [0], [1], [0, 0, 1, 1], [], []>} : vector<2x16xf32>, vector<16x48xf32>, vector<2x48xf32> -> vector<2x48xf32>
    %712 = vector.extract_strided_slice %710 {offsets = [0, 0], sizes = [2, 32], strides = [1, 1]} : vector<2x48xf32> to vector<2x32xf32>
    %713 = vector.extract_strided_slice %711 {offsets = [0, 0], sizes = [2, 32], strides = [1, 1]} : vector<2x48xf32> to vector<2x32xf32>
    %714 = arith.addf %712, %713 : vector<2x32xf32>
    %715 = arith.negf %714 : vector<2x32xf32>
    %716 = math.exp %715 : vector<2x32xf32>
    %cst_131 = arith.constant 1.000000e+00 : f32
    %717 = vector.broadcast %cst_131 : f32 to vector<2x32xf32>
    %718 = arith.addf %717, %716 : vector<2x32xf32>
    %719 = arith.divf %717, %718 : vector<2x32xf32>
    %720 = vector.extract_strided_slice %719 {offsets = [0, 0], sizes = [2, 16], strides = [1, 1]} : vector<2x32xf32> to vector<2x16xf32>
    %721 = vector.extract_strided_slice %719 {offsets = [0, 16], sizes = [2, 16], strides = [1, 1]} : vector<2x32xf32> to vector<2x16xf32>
    %722 = vector.extract_strided_slice %710 {offsets = [0, 32], sizes = [2, 16], strides = [1, 1]} : vector<2x48xf32> to vector<2x16xf32>
    %723 = vector.extract_strided_slice %711 {offsets = [0, 32], sizes = [2, 16], strides = [1, 1]} : vector<2x48xf32> to vector<2x16xf32>
    %724 = vector.broadcast %595 : vector<1x16xf32> to vector<2x16xf32>
    %725 = arith.addf %723, %724 : vector<2x16xf32>
    %726 = arith.mulf %720, %725 : vector<2x16xf32>
    %727 = arith.addf %722, %726 : vector<2x16xf32>
    %728 = math.tanh %727 : vector<2x16xf32>
    %729 = arith.subf %709, %728 : vector<2x16xf32>
    %730 = arith.mulf %721, %729 : vector<2x16xf32>
    %731 = arith.addf %728, %730 : vector<2x16xf32>
    %732 = vector.extract_strided_slice %598 {offsets = [12, 0], sizes = [2, 48], strides = [1, 1]} : vector<16x48xf32> to vector<2x48xf32>
    %cst_132 = arith.constant dense<0.000000e+00> : vector<2x48xf32>
    %733 = tpu.matmul %731, %593, %cst_132 {dimension_numbers = #tpu.dot_dimension_numbers<[1], [0], [0], [1], [0, 0, 1, 1], [], []>} : vector<2x16xf32>, vector<16x48xf32>, vector<2x48xf32> -> vector<2x48xf32>
    %734 = vector.extract_strided_slice %732 {offsets = [0, 0], sizes = [2, 32], strides = [1, 1]} : vector<2x48xf32> to vector<2x32xf32>
    %735 = vector.extract_strided_slice %733 {offsets = [0, 0], sizes = [2, 32], strides = [1, 1]} : vector<2x48xf32> to vector<2x32xf32>
    %736 = arith.addf %734, %735 : vector<2x32xf32>
    %737 = arith.negf %736 : vector<2x32xf32>
    %738 = math.exp %737 : vector<2x32xf32>
    %cst_133 = arith.constant 1.000000e+00 : f32
    %739 = vector.broadcast %cst_133 : f32 to vector<2x32xf32>
    %740 = arith.addf %739, %738 : vector<2x32xf32>
    %741 = arith.divf %739, %740 : vector<2x32xf32>
    %742 = vector.extract_strided_slice %741 {offsets = [0, 0], sizes = [2, 16], strides = [1, 1]} : vector<2x32xf32> to vector<2x16xf32>
    %743 = vector.extract_strided_slice %741 {offsets = [0, 16], sizes = [2, 16], strides = [1, 1]} : vector<2x32xf32> to vector<2x16xf32>
    %744 = vector.extract_strided_slice %732 {offsets = [0, 32], sizes = [2, 16], strides = [1, 1]} : vector<2x48xf32> to vector<2x16xf32>
    %745 = vector.extract_strided_slice %733 {offsets = [0, 32], sizes = [2, 16], strides = [1, 1]} : vector<2x48xf32> to vector<2x16xf32>
    %746 = vector.broadcast %595 : vector<1x16xf32> to vector<2x16xf32>
    %747 = arith.addf %745, %746 : vector<2x16xf32>
    %748 = arith.mulf %742, %747 : vector<2x16xf32>
    %749 = arith.addf %744, %748 : vector<2x16xf32>
    %750 = math.tanh %749 : vector<2x16xf32>
    %751 = arith.subf %731, %750 : vector<2x16xf32>
    %752 = arith.mulf %743, %751 : vector<2x16xf32>
    %753 = arith.addf %750, %752 : vector<2x16xf32>
    %754 = vector.extract_strided_slice %598 {offsets = [14, 0], sizes = [2, 48], strides = [1, 1]} : vector<16x48xf32> to vector<2x48xf32>
    %cst_134 = arith.constant dense<0.000000e+00> : vector<2x48xf32>
    %755 = tpu.matmul %753, %593, %cst_134 {dimension_numbers = #tpu.dot_dimension_numbers<[1], [0], [0], [1], [0, 0, 1, 1], [], []>} : vector<2x16xf32>, vector<16x48xf32>, vector<2x48xf32> -> vector<2x48xf32>
    %756 = vector.extract_strided_slice %754 {offsets = [0, 0], sizes = [2, 32], strides = [1, 1]} : vector<2x48xf32> to vector<2x32xf32>
    %757 = vector.extract_strided_slice %755 {offsets = [0, 0], sizes = [2, 32], strides = [1, 1]} : vector<2x48xf32> to vector<2x32xf32>
    %758 = arith.addf %756, %757 : vector<2x32xf32>
    %759 = arith.negf %758 : vector<2x32xf32>
    %760 = math.exp %759 : vector<2x32xf32>
    %cst_135 = arith.constant 1.000000e+00 : f32
    %761 = vector.broadcast %cst_135 : f32 to vector<2x32xf32>
    %762 = arith.addf %761, %760 : vector<2x32xf32>
    %763 = arith.divf %761, %762 : vector<2x32xf32>
    %764 = vector.extract_strided_slice %763 {offsets = [0, 0], sizes = [2, 16], strides = [1, 1]} : vector<2x32xf32> to vector<2x16xf32>
    %765 = vector.extract_strided_slice %763 {offsets = [0, 16], sizes = [2, 16], strides = [1, 1]} : vector<2x32xf32> to vector<2x16xf32>
    %766 = vector.extract_strided_slice %754 {offsets = [0, 32], sizes = [2, 16], strides = [1, 1]} : vector<2x48xf32> to vector<2x16xf32>
    %767 = vector.extract_strided_slice %755 {offsets = [0, 32], sizes = [2, 16], strides = [1, 1]} : vector<2x48xf32> to vector<2x16xf32>
    %768 = vector.broadcast %595 : vector<1x16xf32> to vector<2x16xf32>
    %769 = arith.addf %767, %768 : vector<2x16xf32>
    %770 = arith.mulf %764, %769 : vector<2x16xf32>
    %771 = arith.addf %766, %770 : vector<2x16xf32>
    %772 = math.tanh %771 : vector<2x16xf32>
    %773 = arith.subf %753, %772 : vector<2x16xf32>
    %774 = arith.mulf %765, %773 : vector<2x16xf32>
    %775 = arith.addf %772, %774 : vector<2x16xf32>
    %776 = tpu.concatenate %621, %643, %665, %687, %709, %731, %753, %775 in 0 : vector<2x16xf32>, vector<2x16xf32>, vector<2x16xf32>, vector<2x16xf32>, vector<2x16xf32>, vector<2x16xf32>, vector<2x16xf32>, vector<2x16xf32> -> vector<16x16xf32>
    %c4 = arith.constant 4 : index
    %c0_136 = arith.constant 0 : index
    %c0_137 = arith.constant 0 : index
    %c0_138 = arith.constant 0 : index
    %777 = vector.load %arg3[%c4, %c0_136, %c0_137, %c0_138] : memref<8x2x16x48xf32, #tpu.memory_space<vmem>>, vector<1x1x16x48xf32>
    %778 = vector.shape_cast %777 : vector<1x1x16x48xf32> to vector<16x48xf32>
    %c4_139 = arith.constant 4 : index
    %c1_140 = arith.constant 1 : index
    %c0_141 = arith.constant 0 : index
    %c0_142 = arith.constant 0 : index
    %779 = vector.load %arg3[%c4_139, %c1_140, %c0_141, %c0_142] : memref<8x2x16x48xf32, #tpu.memory_space<vmem>>, vector<1x1x16x48xf32>
    %780 = vector.shape_cast %779 : vector<1x1x16x48xf32> to vector<16x48xf32>
    %c4_143 = arith.constant 4 : index
    %c0_144 = arith.constant 0 : index
    %781 = vector.load %arg4[%c4_143, %c0_144] : memref<8x64xf32, #tpu.memory_space<vmem>>, vector<1x48xf32>
    %c4_145 = arith.constant 4 : index
    %c48_146 = arith.constant 48 : index
    %782 = vector.load %arg4[%c4_145, %c48_146] : memref<8x64xf32, #tpu.memory_space<vmem>>, vector<1x16xf32>
    %cst_147 = arith.constant dense<0.000000e+00> : vector<16x48xf32>
    %783 = tpu.matmul %776, %778, %cst_147 {dimension_numbers = #tpu.dot_dimension_numbers<[1], [0], [0], [1], [0, 0, 1, 1], [], []>} : vector<16x16xf32>, vector<16x48xf32>, vector<16x48xf32> -> vector<16x48xf32>
    %784 = vector.broadcast %781 : vector<1x48xf32> to vector<16x48xf32>
    %785 = arith.addf %783, %784 : vector<16x48xf32>
    %cst_148 = arith.constant 0.000000e+00 : f32
    %786 = vector.broadcast %cst_148 : f32 to vector<2x16xf32>
    %787 = vector.extract_strided_slice %785 {offsets = [0, 0], sizes = [2, 48], strides = [1, 1]} : vector<16x48xf32> to vector<2x48xf32>
    %cst_149 = arith.constant dense<0.000000e+00> : vector<2x48xf32>
    %788 = tpu.matmul %786, %780, %cst_149 {dimension_numbers = #tpu.dot_dimension_numbers<[1], [0], [0], [1], [0, 0, 1, 1], [], []>} : vector<2x16xf32>, vector<16x48xf32>, vector<2x48xf32> -> vector<2x48xf32>
    %789 = vector.extract_strided_slice %787 {offsets = [0, 0], sizes = [2, 32], strides = [1, 1]} : vector<2x48xf32> to vector<2x32xf32>
    %790 = vector.extract_strided_slice %788 {offsets = [0, 0], sizes = [2, 32], strides = [1, 1]} : vector<2x48xf32> to vector<2x32xf32>
    %791 = arith.addf %789, %790 : vector<2x32xf32>
    %792 = arith.negf %791 : vector<2x32xf32>
    %793 = math.exp %792 : vector<2x32xf32>
    %cst_150 = arith.constant 1.000000e+00 : f32
    %794 = vector.broadcast %cst_150 : f32 to vector<2x32xf32>
    %795 = arith.addf %794, %793 : vector<2x32xf32>
    %796 = arith.divf %794, %795 : vector<2x32xf32>
    %797 = vector.extract_strided_slice %796 {offsets = [0, 0], sizes = [2, 16], strides = [1, 1]} : vector<2x32xf32> to vector<2x16xf32>
    %798 = vector.extract_strided_slice %796 {offsets = [0, 16], sizes = [2, 16], strides = [1, 1]} : vector<2x32xf32> to vector<2x16xf32>
    %799 = vector.extract_strided_slice %787 {offsets = [0, 32], sizes = [2, 16], strides = [1, 1]} : vector<2x48xf32> to vector<2x16xf32>
    %800 = vector.extract_strided_slice %788 {offsets = [0, 32], sizes = [2, 16], strides = [1, 1]} : vector<2x48xf32> to vector<2x16xf32>
    %801 = vector.broadcast %782 : vector<1x16xf32> to vector<2x16xf32>
    %802 = arith.addf %800, %801 : vector<2x16xf32>
    %803 = arith.mulf %797, %802 : vector<2x16xf32>
    %804 = arith.addf %799, %803 : vector<2x16xf32>
    %805 = math.tanh %804 : vector<2x16xf32>
    %806 = arith.subf %786, %805 : vector<2x16xf32>
    %807 = arith.mulf %798, %806 : vector<2x16xf32>
    %808 = arith.addf %805, %807 : vector<2x16xf32>
    %809 = vector.extract_strided_slice %785 {offsets = [2, 0], sizes = [2, 48], strides = [1, 1]} : vector<16x48xf32> to vector<2x48xf32>
    %cst_151 = arith.constant dense<0.000000e+00> : vector<2x48xf32>
    %810 = tpu.matmul %808, %780, %cst_151 {dimension_numbers = #tpu.dot_dimension_numbers<[1], [0], [0], [1], [0, 0, 1, 1], [], []>} : vector<2x16xf32>, vector<16x48xf32>, vector<2x48xf32> -> vector<2x48xf32>
    %811 = vector.extract_strided_slice %809 {offsets = [0, 0], sizes = [2, 32], strides = [1, 1]} : vector<2x48xf32> to vector<2x32xf32>
    %812 = vector.extract_strided_slice %810 {offsets = [0, 0], sizes = [2, 32], strides = [1, 1]} : vector<2x48xf32> to vector<2x32xf32>
    %813 = arith.addf %811, %812 : vector<2x32xf32>
    %814 = arith.negf %813 : vector<2x32xf32>
    %815 = math.exp %814 : vector<2x32xf32>
    %cst_152 = arith.constant 1.000000e+00 : f32
    %816 = vector.broadcast %cst_152 : f32 to vector<2x32xf32>
    %817 = arith.addf %816, %815 : vector<2x32xf32>
    %818 = arith.divf %816, %817 : vector<2x32xf32>
    %819 = vector.extract_strided_slice %818 {offsets = [0, 0], sizes = [2, 16], strides = [1, 1]} : vector<2x32xf32> to vector<2x16xf32>
    %820 = vector.extract_strided_slice %818 {offsets = [0, 16], sizes = [2, 16], strides = [1, 1]} : vector<2x32xf32> to vector<2x16xf32>
    %821 = vector.extract_strided_slice %809 {offsets = [0, 32], sizes = [2, 16], strides = [1, 1]} : vector<2x48xf32> to vector<2x16xf32>
    %822 = vector.extract_strided_slice %810 {offsets = [0, 32], sizes = [2, 16], strides = [1, 1]} : vector<2x48xf32> to vector<2x16xf32>
    %823 = vector.broadcast %782 : vector<1x16xf32> to vector<2x16xf32>
    %824 = arith.addf %822, %823 : vector<2x16xf32>
    %825 = arith.mulf %819, %824 : vector<2x16xf32>
    %826 = arith.addf %821, %825 : vector<2x16xf32>
    %827 = math.tanh %826 : vector<2x16xf32>
    %828 = arith.subf %808, %827 : vector<2x16xf32>
    %829 = arith.mulf %820, %828 : vector<2x16xf32>
    %830 = arith.addf %827, %829 : vector<2x16xf32>
    %831 = vector.extract_strided_slice %785 {offsets = [4, 0], sizes = [2, 48], strides = [1, 1]} : vector<16x48xf32> to vector<2x48xf32>
    %cst_153 = arith.constant dense<0.000000e+00> : vector<2x48xf32>
    %832 = tpu.matmul %830, %780, %cst_153 {dimension_numbers = #tpu.dot_dimension_numbers<[1], [0], [0], [1], [0, 0, 1, 1], [], []>} : vector<2x16xf32>, vector<16x48xf32>, vector<2x48xf32> -> vector<2x48xf32>
    %833 = vector.extract_strided_slice %831 {offsets = [0, 0], sizes = [2, 32], strides = [1, 1]} : vector<2x48xf32> to vector<2x32xf32>
    %834 = vector.extract_strided_slice %832 {offsets = [0, 0], sizes = [2, 32], strides = [1, 1]} : vector<2x48xf32> to vector<2x32xf32>
    %835 = arith.addf %833, %834 : vector<2x32xf32>
    %836 = arith.negf %835 : vector<2x32xf32>
    %837 = math.exp %836 : vector<2x32xf32>
    %cst_154 = arith.constant 1.000000e+00 : f32
    %838 = vector.broadcast %cst_154 : f32 to vector<2x32xf32>
    %839 = arith.addf %838, %837 : vector<2x32xf32>
    %840 = arith.divf %838, %839 : vector<2x32xf32>
    %841 = vector.extract_strided_slice %840 {offsets = [0, 0], sizes = [2, 16], strides = [1, 1]} : vector<2x32xf32> to vector<2x16xf32>
    %842 = vector.extract_strided_slice %840 {offsets = [0, 16], sizes = [2, 16], strides = [1, 1]} : vector<2x32xf32> to vector<2x16xf32>
    %843 = vector.extract_strided_slice %831 {offsets = [0, 32], sizes = [2, 16], strides = [1, 1]} : vector<2x48xf32> to vector<2x16xf32>
    %844 = vector.extract_strided_slice %832 {offsets = [0, 32], sizes = [2, 16], strides = [1, 1]} : vector<2x48xf32> to vector<2x16xf32>
    %845 = vector.broadcast %782 : vector<1x16xf32> to vector<2x16xf32>
    %846 = arith.addf %844, %845 : vector<2x16xf32>
    %847 = arith.mulf %841, %846 : vector<2x16xf32>
    %848 = arith.addf %843, %847 : vector<2x16xf32>
    %849 = math.tanh %848 : vector<2x16xf32>
    %850 = arith.subf %830, %849 : vector<2x16xf32>
    %851 = arith.mulf %842, %850 : vector<2x16xf32>
    %852 = arith.addf %849, %851 : vector<2x16xf32>
    %853 = vector.extract_strided_slice %785 {offsets = [6, 0], sizes = [2, 48], strides = [1, 1]} : vector<16x48xf32> to vector<2x48xf32>
    %cst_155 = arith.constant dense<0.000000e+00> : vector<2x48xf32>
    %854 = tpu.matmul %852, %780, %cst_155 {dimension_numbers = #tpu.dot_dimension_numbers<[1], [0], [0], [1], [0, 0, 1, 1], [], []>} : vector<2x16xf32>, vector<16x48xf32>, vector<2x48xf32> -> vector<2x48xf32>
    %855 = vector.extract_strided_slice %853 {offsets = [0, 0], sizes = [2, 32], strides = [1, 1]} : vector<2x48xf32> to vector<2x32xf32>
    %856 = vector.extract_strided_slice %854 {offsets = [0, 0], sizes = [2, 32], strides = [1, 1]} : vector<2x48xf32> to vector<2x32xf32>
    %857 = arith.addf %855, %856 : vector<2x32xf32>
    %858 = arith.negf %857 : vector<2x32xf32>
    %859 = math.exp %858 : vector<2x32xf32>
    %cst_156 = arith.constant 1.000000e+00 : f32
    %860 = vector.broadcast %cst_156 : f32 to vector<2x32xf32>
    %861 = arith.addf %860, %859 : vector<2x32xf32>
    %862 = arith.divf %860, %861 : vector<2x32xf32>
    %863 = vector.extract_strided_slice %862 {offsets = [0, 0], sizes = [2, 16], strides = [1, 1]} : vector<2x32xf32> to vector<2x16xf32>
    %864 = vector.extract_strided_slice %862 {offsets = [0, 16], sizes = [2, 16], strides = [1, 1]} : vector<2x32xf32> to vector<2x16xf32>
    %865 = vector.extract_strided_slice %853 {offsets = [0, 32], sizes = [2, 16], strides = [1, 1]} : vector<2x48xf32> to vector<2x16xf32>
    %866 = vector.extract_strided_slice %854 {offsets = [0, 32], sizes = [2, 16], strides = [1, 1]} : vector<2x48xf32> to vector<2x16xf32>
    %867 = vector.broadcast %782 : vector<1x16xf32> to vector<2x16xf32>
    %868 = arith.addf %866, %867 : vector<2x16xf32>
    %869 = arith.mulf %863, %868 : vector<2x16xf32>
    %870 = arith.addf %865, %869 : vector<2x16xf32>
    %871 = math.tanh %870 : vector<2x16xf32>
    %872 = arith.subf %852, %871 : vector<2x16xf32>
    %873 = arith.mulf %864, %872 : vector<2x16xf32>
    %874 = arith.addf %871, %873 : vector<2x16xf32>
    %875 = vector.extract_strided_slice %785 {offsets = [8, 0], sizes = [2, 48], strides = [1, 1]} : vector<16x48xf32> to vector<2x48xf32>
    %cst_157 = arith.constant dense<0.000000e+00> : vector<2x48xf32>
    %876 = tpu.matmul %874, %780, %cst_157 {dimension_numbers = #tpu.dot_dimension_numbers<[1], [0], [0], [1], [0, 0, 1, 1], [], []>} : vector<2x16xf32>, vector<16x48xf32>, vector<2x48xf32> -> vector<2x48xf32>
    %877 = vector.extract_strided_slice %875 {offsets = [0, 0], sizes = [2, 32], strides = [1, 1]} : vector<2x48xf32> to vector<2x32xf32>
    %878 = vector.extract_strided_slice %876 {offsets = [0, 0], sizes = [2, 32], strides = [1, 1]} : vector<2x48xf32> to vector<2x32xf32>
    %879 = arith.addf %877, %878 : vector<2x32xf32>
    %880 = arith.negf %879 : vector<2x32xf32>
    %881 = math.exp %880 : vector<2x32xf32>
    %cst_158 = arith.constant 1.000000e+00 : f32
    %882 = vector.broadcast %cst_158 : f32 to vector<2x32xf32>
    %883 = arith.addf %882, %881 : vector<2x32xf32>
    %884 = arith.divf %882, %883 : vector<2x32xf32>
    %885 = vector.extract_strided_slice %884 {offsets = [0, 0], sizes = [2, 16], strides = [1, 1]} : vector<2x32xf32> to vector<2x16xf32>
    %886 = vector.extract_strided_slice %884 {offsets = [0, 16], sizes = [2, 16], strides = [1, 1]} : vector<2x32xf32> to vector<2x16xf32>
    %887 = vector.extract_strided_slice %875 {offsets = [0, 32], sizes = [2, 16], strides = [1, 1]} : vector<2x48xf32> to vector<2x16xf32>
    %888 = vector.extract_strided_slice %876 {offsets = [0, 32], sizes = [2, 16], strides = [1, 1]} : vector<2x48xf32> to vector<2x16xf32>
    %889 = vector.broadcast %782 : vector<1x16xf32> to vector<2x16xf32>
    %890 = arith.addf %888, %889 : vector<2x16xf32>
    %891 = arith.mulf %885, %890 : vector<2x16xf32>
    %892 = arith.addf %887, %891 : vector<2x16xf32>
    %893 = math.tanh %892 : vector<2x16xf32>
    %894 = arith.subf %874, %893 : vector<2x16xf32>
    %895 = arith.mulf %886, %894 : vector<2x16xf32>
    %896 = arith.addf %893, %895 : vector<2x16xf32>
    %897 = vector.extract_strided_slice %785 {offsets = [10, 0], sizes = [2, 48], strides = [1, 1]} : vector<16x48xf32> to vector<2x48xf32>
    %cst_159 = arith.constant dense<0.000000e+00> : vector<2x48xf32>
    %898 = tpu.matmul %896, %780, %cst_159 {dimension_numbers = #tpu.dot_dimension_numbers<[1], [0], [0], [1], [0, 0, 1, 1], [], []>} : vector<2x16xf32>, vector<16x48xf32>, vector<2x48xf32> -> vector<2x48xf32>
    %899 = vector.extract_strided_slice %897 {offsets = [0, 0], sizes = [2, 32], strides = [1, 1]} : vector<2x48xf32> to vector<2x32xf32>
    %900 = vector.extract_strided_slice %898 {offsets = [0, 0], sizes = [2, 32], strides = [1, 1]} : vector<2x48xf32> to vector<2x32xf32>
    %901 = arith.addf %899, %900 : vector<2x32xf32>
    %902 = arith.negf %901 : vector<2x32xf32>
    %903 = math.exp %902 : vector<2x32xf32>
    %cst_160 = arith.constant 1.000000e+00 : f32
    %904 = vector.broadcast %cst_160 : f32 to vector<2x32xf32>
    %905 = arith.addf %904, %903 : vector<2x32xf32>
    %906 = arith.divf %904, %905 : vector<2x32xf32>
    %907 = vector.extract_strided_slice %906 {offsets = [0, 0], sizes = [2, 16], strides = [1, 1]} : vector<2x32xf32> to vector<2x16xf32>
    %908 = vector.extract_strided_slice %906 {offsets = [0, 16], sizes = [2, 16], strides = [1, 1]} : vector<2x32xf32> to vector<2x16xf32>
    %909 = vector.extract_strided_slice %897 {offsets = [0, 32], sizes = [2, 16], strides = [1, 1]} : vector<2x48xf32> to vector<2x16xf32>
    %910 = vector.extract_strided_slice %898 {offsets = [0, 32], sizes = [2, 16], strides = [1, 1]} : vector<2x48xf32> to vector<2x16xf32>
    %911 = vector.broadcast %782 : vector<1x16xf32> to vector<2x16xf32>
    %912 = arith.addf %910, %911 : vector<2x16xf32>
    %913 = arith.mulf %907, %912 : vector<2x16xf32>
    %914 = arith.addf %909, %913 : vector<2x16xf32>
    %915 = math.tanh %914 : vector<2x16xf32>
    %916 = arith.subf %896, %915 : vector<2x16xf32>
    %917 = arith.mulf %908, %916 : vector<2x16xf32>
    %918 = arith.addf %915, %917 : vector<2x16xf32>
    %919 = vector.extract_strided_slice %785 {offsets = [12, 0], sizes = [2, 48], strides = [1, 1]} : vector<16x48xf32> to vector<2x48xf32>
    %cst_161 = arith.constant dense<0.000000e+00> : vector<2x48xf32>
    %920 = tpu.matmul %918, %780, %cst_161 {dimension_numbers = #tpu.dot_dimension_numbers<[1], [0], [0], [1], [0, 0, 1, 1], [], []>} : vector<2x16xf32>, vector<16x48xf32>, vector<2x48xf32> -> vector<2x48xf32>
    %921 = vector.extract_strided_slice %919 {offsets = [0, 0], sizes = [2, 32], strides = [1, 1]} : vector<2x48xf32> to vector<2x32xf32>
    %922 = vector.extract_strided_slice %920 {offsets = [0, 0], sizes = [2, 32], strides = [1, 1]} : vector<2x48xf32> to vector<2x32xf32>
    %923 = arith.addf %921, %922 : vector<2x32xf32>
    %924 = arith.negf %923 : vector<2x32xf32>
    %925 = math.exp %924 : vector<2x32xf32>
    %cst_162 = arith.constant 1.000000e+00 : f32
    %926 = vector.broadcast %cst_162 : f32 to vector<2x32xf32>
    %927 = arith.addf %926, %925 : vector<2x32xf32>
    %928 = arith.divf %926, %927 : vector<2x32xf32>
    %929 = vector.extract_strided_slice %928 {offsets = [0, 0], sizes = [2, 16], strides = [1, 1]} : vector<2x32xf32> to vector<2x16xf32>
    %930 = vector.extract_strided_slice %928 {offsets = [0, 16], sizes = [2, 16], strides = [1, 1]} : vector<2x32xf32> to vector<2x16xf32>
    %931 = vector.extract_strided_slice %919 {offsets = [0, 32], sizes = [2, 16], strides = [1, 1]} : vector<2x48xf32> to vector<2x16xf32>
    %932 = vector.extract_strided_slice %920 {offsets = [0, 32], sizes = [2, 16], strides = [1, 1]} : vector<2x48xf32> to vector<2x16xf32>
    %933 = vector.broadcast %782 : vector<1x16xf32> to vector<2x16xf32>
    %934 = arith.addf %932, %933 : vector<2x16xf32>
    %935 = arith.mulf %929, %934 : vector<2x16xf32>
    %936 = arith.addf %931, %935 : vector<2x16xf32>
    %937 = math.tanh %936 : vector<2x16xf32>
    %938 = arith.subf %918, %937 : vector<2x16xf32>
    %939 = arith.mulf %930, %938 : vector<2x16xf32>
    %940 = arith.addf %937, %939 : vector<2x16xf32>
    %941 = vector.extract_strided_slice %785 {offsets = [14, 0], sizes = [2, 48], strides = [1, 1]} : vector<16x48xf32> to vector<2x48xf32>
    %cst_163 = arith.constant dense<0.000000e+00> : vector<2x48xf32>
    %942 = tpu.matmul %940, %780, %cst_163 {dimension_numbers = #tpu.dot_dimension_numbers<[1], [0], [0], [1], [0, 0, 1, 1], [], []>} : vector<2x16xf32>, vector<16x48xf32>, vector<2x48xf32> -> vector<2x48xf32>
    %943 = vector.extract_strided_slice %941 {offsets = [0, 0], sizes = [2, 32], strides = [1, 1]} : vector<2x48xf32> to vector<2x32xf32>
    %944 = vector.extract_strided_slice %942 {offsets = [0, 0], sizes = [2, 32], strides = [1, 1]} : vector<2x48xf32> to vector<2x32xf32>
    %945 = arith.addf %943, %944 : vector<2x32xf32>
    %946 = arith.negf %945 : vector<2x32xf32>
    %947 = math.exp %946 : vector<2x32xf32>
    %cst_164 = arith.constant 1.000000e+00 : f32
    %948 = vector.broadcast %cst_164 : f32 to vector<2x32xf32>
    %949 = arith.addf %948, %947 : vector<2x32xf32>
    %950 = arith.divf %948, %949 : vector<2x32xf32>
    %951 = vector.extract_strided_slice %950 {offsets = [0, 0], sizes = [2, 16], strides = [1, 1]} : vector<2x32xf32> to vector<2x16xf32>
    %952 = vector.extract_strided_slice %950 {offsets = [0, 16], sizes = [2, 16], strides = [1, 1]} : vector<2x32xf32> to vector<2x16xf32>
    %953 = vector.extract_strided_slice %941 {offsets = [0, 32], sizes = [2, 16], strides = [1, 1]} : vector<2x48xf32> to vector<2x16xf32>
    %954 = vector.extract_strided_slice %942 {offsets = [0, 32], sizes = [2, 16], strides = [1, 1]} : vector<2x48xf32> to vector<2x16xf32>
    %955 = vector.broadcast %782 : vector<1x16xf32> to vector<2x16xf32>
    %956 = arith.addf %954, %955 : vector<2x16xf32>
    %957 = arith.mulf %951, %956 : vector<2x16xf32>
    %958 = arith.addf %953, %957 : vector<2x16xf32>
    %959 = math.tanh %958 : vector<2x16xf32>
    %960 = arith.subf %940, %959 : vector<2x16xf32>
    %961 = arith.mulf %952, %960 : vector<2x16xf32>
    %962 = arith.addf %959, %961 : vector<2x16xf32>
    %963 = tpu.concatenate %808, %830, %852, %874, %896, %918, %940, %962 in 0 : vector<2x16xf32>, vector<2x16xf32>, vector<2x16xf32>, vector<2x16xf32>, vector<2x16xf32>, vector<2x16xf32>, vector<2x16xf32>, vector<2x16xf32> -> vector<16x16xf32>
    %c5 = arith.constant 5 : index
    %c0_165 = arith.constant 0 : index
    %c0_166 = arith.constant 0 : index
    %c0_167 = arith.constant 0 : index
    %964 = vector.load %arg3[%c5, %c0_165, %c0_166, %c0_167] : memref<8x2x16x48xf32, #tpu.memory_space<vmem>>, vector<1x1x16x48xf32>
    %965 = vector.shape_cast %964 : vector<1x1x16x48xf32> to vector<16x48xf32>
    %c5_168 = arith.constant 5 : index
    %c1_169 = arith.constant 1 : index
    %c0_170 = arith.constant 0 : index
    %c0_171 = arith.constant 0 : index
    %966 = vector.load %arg3[%c5_168, %c1_169, %c0_170, %c0_171] : memref<8x2x16x48xf32, #tpu.memory_space<vmem>>, vector<1x1x16x48xf32>
    %967 = vector.shape_cast %966 : vector<1x1x16x48xf32> to vector<16x48xf32>
    %c5_172 = arith.constant 5 : index
    %c0_173 = arith.constant 0 : index
    %968 = vector.load %arg4[%c5_172, %c0_173] : memref<8x64xf32, #tpu.memory_space<vmem>>, vector<1x48xf32>
    %c5_174 = arith.constant 5 : index
    %c48_175 = arith.constant 48 : index
    %969 = vector.load %arg4[%c5_174, %c48_175] : memref<8x64xf32, #tpu.memory_space<vmem>>, vector<1x16xf32>
    %cst_176 = arith.constant dense<0.000000e+00> : vector<16x48xf32>
    %970 = tpu.matmul %963, %965, %cst_176 {dimension_numbers = #tpu.dot_dimension_numbers<[1], [0], [0], [1], [0, 0, 1, 1], [], []>} : vector<16x16xf32>, vector<16x48xf32>, vector<16x48xf32> -> vector<16x48xf32>
    %971 = vector.broadcast %968 : vector<1x48xf32> to vector<16x48xf32>
    %972 = arith.addf %970, %971 : vector<16x48xf32>
    %cst_177 = arith.constant 0.000000e+00 : f32
    %973 = vector.broadcast %cst_177 : f32 to vector<2x16xf32>
    %974 = vector.extract_strided_slice %972 {offsets = [0, 0], sizes = [2, 48], strides = [1, 1]} : vector<16x48xf32> to vector<2x48xf32>
    %cst_178 = arith.constant dense<0.000000e+00> : vector<2x48xf32>
    %975 = tpu.matmul %973, %967, %cst_178 {dimension_numbers = #tpu.dot_dimension_numbers<[1], [0], [0], [1], [0, 0, 1, 1], [], []>} : vector<2x16xf32>, vector<16x48xf32>, vector<2x48xf32> -> vector<2x48xf32>
    %976 = vector.extract_strided_slice %974 {offsets = [0, 0], sizes = [2, 32], strides = [1, 1]} : vector<2x48xf32> to vector<2x32xf32>
    %977 = vector.extract_strided_slice %975 {offsets = [0, 0], sizes = [2, 32], strides = [1, 1]} : vector<2x48xf32> to vector<2x32xf32>
    %978 = arith.addf %976, %977 : vector<2x32xf32>
    %979 = arith.negf %978 : vector<2x32xf32>
    %980 = math.exp %979 : vector<2x32xf32>
    %cst_179 = arith.constant 1.000000e+00 : f32
    %981 = vector.broadcast %cst_179 : f32 to vector<2x32xf32>
    %982 = arith.addf %981, %980 : vector<2x32xf32>
    %983 = arith.divf %981, %982 : vector<2x32xf32>
    %984 = vector.extract_strided_slice %983 {offsets = [0, 0], sizes = [2, 16], strides = [1, 1]} : vector<2x32xf32> to vector<2x16xf32>
    %985 = vector.extract_strided_slice %983 {offsets = [0, 16], sizes = [2, 16], strides = [1, 1]} : vector<2x32xf32> to vector<2x16xf32>
    %986 = vector.extract_strided_slice %974 {offsets = [0, 32], sizes = [2, 16], strides = [1, 1]} : vector<2x48xf32> to vector<2x16xf32>
    %987 = vector.extract_strided_slice %975 {offsets = [0, 32], sizes = [2, 16], strides = [1, 1]} : vector<2x48xf32> to vector<2x16xf32>
    %988 = vector.broadcast %969 : vector<1x16xf32> to vector<2x16xf32>
    %989 = arith.addf %987, %988 : vector<2x16xf32>
    %990 = arith.mulf %984, %989 : vector<2x16xf32>
    %991 = arith.addf %986, %990 : vector<2x16xf32>
    %992 = math.tanh %991 : vector<2x16xf32>
    %993 = arith.subf %973, %992 : vector<2x16xf32>
    %994 = arith.mulf %985, %993 : vector<2x16xf32>
    %995 = arith.addf %992, %994 : vector<2x16xf32>
    %996 = vector.extract_strided_slice %972 {offsets = [2, 0], sizes = [2, 48], strides = [1, 1]} : vector<16x48xf32> to vector<2x48xf32>
    %cst_180 = arith.constant dense<0.000000e+00> : vector<2x48xf32>
    %997 = tpu.matmul %995, %967, %cst_180 {dimension_numbers = #tpu.dot_dimension_numbers<[1], [0], [0], [1], [0, 0, 1, 1], [], []>} : vector<2x16xf32>, vector<16x48xf32>, vector<2x48xf32> -> vector<2x48xf32>
    %998 = vector.extract_strided_slice %996 {offsets = [0, 0], sizes = [2, 32], strides = [1, 1]} : vector<2x48xf32> to vector<2x32xf32>
    %999 = vector.extract_strided_slice %997 {offsets = [0, 0], sizes = [2, 32], strides = [1, 1]} : vector<2x48xf32> to vector<2x32xf32>
    %1000 = arith.addf %998, %999 : vector<2x32xf32>
    %1001 = arith.negf %1000 : vector<2x32xf32>
    %1002 = math.exp %1001 : vector<2x32xf32>
    %cst_181 = arith.constant 1.000000e+00 : f32
    %1003 = vector.broadcast %cst_181 : f32 to vector<2x32xf32>
    %1004 = arith.addf %1003, %1002 : vector<2x32xf32>
    %1005 = arith.divf %1003, %1004 : vector<2x32xf32>
    %1006 = vector.extract_strided_slice %1005 {offsets = [0, 0], sizes = [2, 16], strides = [1, 1]} : vector<2x32xf32> to vector<2x16xf32>
    %1007 = vector.extract_strided_slice %1005 {offsets = [0, 16], sizes = [2, 16], strides = [1, 1]} : vector<2x32xf32> to vector<2x16xf32>
    %1008 = vector.extract_strided_slice %996 {offsets = [0, 32], sizes = [2, 16], strides = [1, 1]} : vector<2x48xf32> to vector<2x16xf32>
    %1009 = vector.extract_strided_slice %997 {offsets = [0, 32], sizes = [2, 16], strides = [1, 1]} : vector<2x48xf32> to vector<2x16xf32>
    %1010 = vector.broadcast %969 : vector<1x16xf32> to vector<2x16xf32>
    %1011 = arith.addf %1009, %1010 : vector<2x16xf32>
    %1012 = arith.mulf %1006, %1011 : vector<2x16xf32>
    %1013 = arith.addf %1008, %1012 : vector<2x16xf32>
    %1014 = math.tanh %1013 : vector<2x16xf32>
    %1015 = arith.subf %995, %1014 : vector<2x16xf32>
    %1016 = arith.mulf %1007, %1015 : vector<2x16xf32>
    %1017 = arith.addf %1014, %1016 : vector<2x16xf32>
    %1018 = vector.extract_strided_slice %972 {offsets = [4, 0], sizes = [2, 48], strides = [1, 1]} : vector<16x48xf32> to vector<2x48xf32>
    %cst_182 = arith.constant dense<0.000000e+00> : vector<2x48xf32>
    %1019 = tpu.matmul %1017, %967, %cst_182 {dimension_numbers = #tpu.dot_dimension_numbers<[1], [0], [0], [1], [0, 0, 1, 1], [], []>} : vector<2x16xf32>, vector<16x48xf32>, vector<2x48xf32> -> vector<2x48xf32>
    %1020 = vector.extract_strided_slice %1018 {offsets = [0, 0], sizes = [2, 32], strides = [1, 1]} : vector<2x48xf32> to vector<2x32xf32>
    %1021 = vector.extract_strided_slice %1019 {offsets = [0, 0], sizes = [2, 32], strides = [1, 1]} : vector<2x48xf32> to vector<2x32xf32>
    %1022 = arith.addf %1020, %1021 : vector<2x32xf32>
    %1023 = arith.negf %1022 : vector<2x32xf32>
    %1024 = math.exp %1023 : vector<2x32xf32>
    %cst_183 = arith.constant 1.000000e+00 : f32
    %1025 = vector.broadcast %cst_183 : f32 to vector<2x32xf32>
    %1026 = arith.addf %1025, %1024 : vector<2x32xf32>
    %1027 = arith.divf %1025, %1026 : vector<2x32xf32>
    %1028 = vector.extract_strided_slice %1027 {offsets = [0, 0], sizes = [2, 16], strides = [1, 1]} : vector<2x32xf32> to vector<2x16xf32>
    %1029 = vector.extract_strided_slice %1027 {offsets = [0, 16], sizes = [2, 16], strides = [1, 1]} : vector<2x32xf32> to vector<2x16xf32>
    %1030 = vector.extract_strided_slice %1018 {offsets = [0, 32], sizes = [2, 16], strides = [1, 1]} : vector<2x48xf32> to vector<2x16xf32>
    %1031 = vector.extract_strided_slice %1019 {offsets = [0, 32], sizes = [2, 16], strides = [1, 1]} : vector<2x48xf32> to vector<2x16xf32>
    %1032 = vector.broadcast %969 : vector<1x16xf32> to vector<2x16xf32>
    %1033 = arith.addf %1031, %1032 : vector<2x16xf32>
    %1034 = arith.mulf %1028, %1033 : vector<2x16xf32>
    %1035 = arith.addf %1030, %1034 : vector<2x16xf32>
    %1036 = math.tanh %1035 : vector<2x16xf32>
    %1037 = arith.subf %1017, %1036 : vector<2x16xf32>
    %1038 = arith.mulf %1029, %1037 : vector<2x16xf32>
    %1039 = arith.addf %1036, %1038 : vector<2x16xf32>
    %1040 = vector.extract_strided_slice %972 {offsets = [6, 0], sizes = [2, 48], strides = [1, 1]} : vector<16x48xf32> to vector<2x48xf32>
    %cst_184 = arith.constant dense<0.000000e+00> : vector<2x48xf32>
    %1041 = tpu.matmul %1039, %967, %cst_184 {dimension_numbers = #tpu.dot_dimension_numbers<[1], [0], [0], [1], [0, 0, 1, 1], [], []>} : vector<2x16xf32>, vector<16x48xf32>, vector<2x48xf32> -> vector<2x48xf32>
    %1042 = vector.extract_strided_slice %1040 {offsets = [0, 0], sizes = [2, 32], strides = [1, 1]} : vector<2x48xf32> to vector<2x32xf32>
    %1043 = vector.extract_strided_slice %1041 {offsets = [0, 0], sizes = [2, 32], strides = [1, 1]} : vector<2x48xf32> to vector<2x32xf32>
    %1044 = arith.addf %1042, %1043 : vector<2x32xf32>
    %1045 = arith.negf %1044 : vector<2x32xf32>
    %1046 = math.exp %1045 : vector<2x32xf32>
    %cst_185 = arith.constant 1.000000e+00 : f32
    %1047 = vector.broadcast %cst_185 : f32 to vector<2x32xf32>
    %1048 = arith.addf %1047, %1046 : vector<2x32xf32>
    %1049 = arith.divf %1047, %1048 : vector<2x32xf32>
    %1050 = vector.extract_strided_slice %1049 {offsets = [0, 0], sizes = [2, 16], strides = [1, 1]} : vector<2x32xf32> to vector<2x16xf32>
    %1051 = vector.extract_strided_slice %1049 {offsets = [0, 16], sizes = [2, 16], strides = [1, 1]} : vector<2x32xf32> to vector<2x16xf32>
    %1052 = vector.extract_strided_slice %1040 {offsets = [0, 32], sizes = [2, 16], strides = [1, 1]} : vector<2x48xf32> to vector<2x16xf32>
    %1053 = vector.extract_strided_slice %1041 {offsets = [0, 32], sizes = [2, 16], strides = [1, 1]} : vector<2x48xf32> to vector<2x16xf32>
    %1054 = vector.broadcast %969 : vector<1x16xf32> to vector<2x16xf32>
    %1055 = arith.addf %1053, %1054 : vector<2x16xf32>
    %1056 = arith.mulf %1050, %1055 : vector<2x16xf32>
    %1057 = arith.addf %1052, %1056 : vector<2x16xf32>
    %1058 = math.tanh %1057 : vector<2x16xf32>
    %1059 = arith.subf %1039, %1058 : vector<2x16xf32>
    %1060 = arith.mulf %1051, %1059 : vector<2x16xf32>
    %1061 = arith.addf %1058, %1060 : vector<2x16xf32>
    %1062 = vector.extract_strided_slice %972 {offsets = [8, 0], sizes = [2, 48], strides = [1, 1]} : vector<16x48xf32> to vector<2x48xf32>
    %cst_186 = arith.constant dense<0.000000e+00> : vector<2x48xf32>
    %1063 = tpu.matmul %1061, %967, %cst_186 {dimension_numbers = #tpu.dot_dimension_numbers<[1], [0], [0], [1], [0, 0, 1, 1], [], []>} : vector<2x16xf32>, vector<16x48xf32>, vector<2x48xf32> -> vector<2x48xf32>
    %1064 = vector.extract_strided_slice %1062 {offsets = [0, 0], sizes = [2, 32], strides = [1, 1]} : vector<2x48xf32> to vector<2x32xf32>
    %1065 = vector.extract_strided_slice %1063 {offsets = [0, 0], sizes = [2, 32], strides = [1, 1]} : vector<2x48xf32> to vector<2x32xf32>
    %1066 = arith.addf %1064, %1065 : vector<2x32xf32>
    %1067 = arith.negf %1066 : vector<2x32xf32>
    %1068 = math.exp %1067 : vector<2x32xf32>
    %cst_187 = arith.constant 1.000000e+00 : f32
    %1069 = vector.broadcast %cst_187 : f32 to vector<2x32xf32>
    %1070 = arith.addf %1069, %1068 : vector<2x32xf32>
    %1071 = arith.divf %1069, %1070 : vector<2x32xf32>
    %1072 = vector.extract_strided_slice %1071 {offsets = [0, 0], sizes = [2, 16], strides = [1, 1]} : vector<2x32xf32> to vector<2x16xf32>
    %1073 = vector.extract_strided_slice %1071 {offsets = [0, 16], sizes = [2, 16], strides = [1, 1]} : vector<2x32xf32> to vector<2x16xf32>
    %1074 = vector.extract_strided_slice %1062 {offsets = [0, 32], sizes = [2, 16], strides = [1, 1]} : vector<2x48xf32> to vector<2x16xf32>
    %1075 = vector.extract_strided_slice %1063 {offsets = [0, 32], sizes = [2, 16], strides = [1, 1]} : vector<2x48xf32> to vector<2x16xf32>
    %1076 = vector.broadcast %969 : vector<1x16xf32> to vector<2x16xf32>
    %1077 = arith.addf %1075, %1076 : vector<2x16xf32>
    %1078 = arith.mulf %1072, %1077 : vector<2x16xf32>
    %1079 = arith.addf %1074, %1078 : vector<2x16xf32>
    %1080 = math.tanh %1079 : vector<2x16xf32>
    %1081 = arith.subf %1061, %1080 : vector<2x16xf32>
    %1082 = arith.mulf %1073, %1081 : vector<2x16xf32>
    %1083 = arith.addf %1080, %1082 : vector<2x16xf32>
    %1084 = vector.extract_strided_slice %972 {offsets = [10, 0], sizes = [2, 48], strides = [1, 1]} : vector<16x48xf32> to vector<2x48xf32>
    %cst_188 = arith.constant dense<0.000000e+00> : vector<2x48xf32>
    %1085 = tpu.matmul %1083, %967, %cst_188 {dimension_numbers = #tpu.dot_dimension_numbers<[1], [0], [0], [1], [0, 0, 1, 1], [], []>} : vector<2x16xf32>, vector<16x48xf32>, vector<2x48xf32> -> vector<2x48xf32>
    %1086 = vector.extract_strided_slice %1084 {offsets = [0, 0], sizes = [2, 32], strides = [1, 1]} : vector<2x48xf32> to vector<2x32xf32>
    %1087 = vector.extract_strided_slice %1085 {offsets = [0, 0], sizes = [2, 32], strides = [1, 1]} : vector<2x48xf32> to vector<2x32xf32>
    %1088 = arith.addf %1086, %1087 : vector<2x32xf32>
    %1089 = arith.negf %1088 : vector<2x32xf32>
    %1090 = math.exp %1089 : vector<2x32xf32>
    %cst_189 = arith.constant 1.000000e+00 : f32
    %1091 = vector.broadcast %cst_189 : f32 to vector<2x32xf32>
    %1092 = arith.addf %1091, %1090 : vector<2x32xf32>
    %1093 = arith.divf %1091, %1092 : vector<2x32xf32>
    %1094 = vector.extract_strided_slice %1093 {offsets = [0, 0], sizes = [2, 16], strides = [1, 1]} : vector<2x32xf32> to vector<2x16xf32>
    %1095 = vector.extract_strided_slice %1093 {offsets = [0, 16], sizes = [2, 16], strides = [1, 1]} : vector<2x32xf32> to vector<2x16xf32>
    %1096 = vector.extract_strided_slice %1084 {offsets = [0, 32], sizes = [2, 16], strides = [1, 1]} : vector<2x48xf32> to vector<2x16xf32>
    %1097 = vector.extract_strided_slice %1085 {offsets = [0, 32], sizes = [2, 16], strides = [1, 1]} : vector<2x48xf32> to vector<2x16xf32>
    %1098 = vector.broadcast %969 : vector<1x16xf32> to vector<2x16xf32>
    %1099 = arith.addf %1097, %1098 : vector<2x16xf32>
    %1100 = arith.mulf %1094, %1099 : vector<2x16xf32>
    %1101 = arith.addf %1096, %1100 : vector<2x16xf32>
    %1102 = math.tanh %1101 : vector<2x16xf32>
    %1103 = arith.subf %1083, %1102 : vector<2x16xf32>
    %1104 = arith.mulf %1095, %1103 : vector<2x16xf32>
    %1105 = arith.addf %1102, %1104 : vector<2x16xf32>
    %1106 = vector.extract_strided_slice %972 {offsets = [12, 0], sizes = [2, 48], strides = [1, 1]} : vector<16x48xf32> to vector<2x48xf32>
    %cst_190 = arith.constant dense<0.000000e+00> : vector<2x48xf32>
    %1107 = tpu.matmul %1105, %967, %cst_190 {dimension_numbers = #tpu.dot_dimension_numbers<[1], [0], [0], [1], [0, 0, 1, 1], [], []>} : vector<2x16xf32>, vector<16x48xf32>, vector<2x48xf32> -> vector<2x48xf32>
    %1108 = vector.extract_strided_slice %1106 {offsets = [0, 0], sizes = [2, 32], strides = [1, 1]} : vector<2x48xf32> to vector<2x32xf32>
    %1109 = vector.extract_strided_slice %1107 {offsets = [0, 0], sizes = [2, 32], strides = [1, 1]} : vector<2x48xf32> to vector<2x32xf32>
    %1110 = arith.addf %1108, %1109 : vector<2x32xf32>
    %1111 = arith.negf %1110 : vector<2x32xf32>
    %1112 = math.exp %1111 : vector<2x32xf32>
    %cst_191 = arith.constant 1.000000e+00 : f32
    %1113 = vector.broadcast %cst_191 : f32 to vector<2x32xf32>
    %1114 = arith.addf %1113, %1112 : vector<2x32xf32>
    %1115 = arith.divf %1113, %1114 : vector<2x32xf32>
    %1116 = vector.extract_strided_slice %1115 {offsets = [0, 0], sizes = [2, 16], strides = [1, 1]} : vector<2x32xf32> to vector<2x16xf32>
    %1117 = vector.extract_strided_slice %1115 {offsets = [0, 16], sizes = [2, 16], strides = [1, 1]} : vector<2x32xf32> to vector<2x16xf32>
    %1118 = vector.extract_strided_slice %1106 {offsets = [0, 32], sizes = [2, 16], strides = [1, 1]} : vector<2x48xf32> to vector<2x16xf32>
    %1119 = vector.extract_strided_slice %1107 {offsets = [0, 32], sizes = [2, 16], strides = [1, 1]} : vector<2x48xf32> to vector<2x16xf32>
    %1120 = vector.broadcast %969 : vector<1x16xf32> to vector<2x16xf32>
    %1121 = arith.addf %1119, %1120 : vector<2x16xf32>
    %1122 = arith.mulf %1116, %1121 : vector<2x16xf32>
    %1123 = arith.addf %1118, %1122 : vector<2x16xf32>
    %1124 = math.tanh %1123 : vector<2x16xf32>
    %1125 = arith.subf %1105, %1124 : vector<2x16xf32>
    %1126 = arith.mulf %1117, %1125 : vector<2x16xf32>
    %1127 = arith.addf %1124, %1126 : vector<2x16xf32>
    %1128 = vector.extract_strided_slice %972 {offsets = [14, 0], sizes = [2, 48], strides = [1, 1]} : vector<16x48xf32> to vector<2x48xf32>
    %cst_192 = arith.constant dense<0.000000e+00> : vector<2x48xf32>
    %1129 = tpu.matmul %1127, %967, %cst_192 {dimension_numbers = #tpu.dot_dimension_numbers<[1], [0], [0], [1], [0, 0, 1, 1], [], []>} : vector<2x16xf32>, vector<16x48xf32>, vector<2x48xf32> -> vector<2x48xf32>
    %1130 = vector.extract_strided_slice %1128 {offsets = [0, 0], sizes = [2, 32], strides = [1, 1]} : vector<2x48xf32> to vector<2x32xf32>
    %1131 = vector.extract_strided_slice %1129 {offsets = [0, 0], sizes = [2, 32], strides = [1, 1]} : vector<2x48xf32> to vector<2x32xf32>
    %1132 = arith.addf %1130, %1131 : vector<2x32xf32>
    %1133 = arith.negf %1132 : vector<2x32xf32>
    %1134 = math.exp %1133 : vector<2x32xf32>
    %cst_193 = arith.constant 1.000000e+00 : f32
    %1135 = vector.broadcast %cst_193 : f32 to vector<2x32xf32>
    %1136 = arith.addf %1135, %1134 : vector<2x32xf32>
    %1137 = arith.divf %1135, %1136 : vector<2x32xf32>
    %1138 = vector.extract_strided_slice %1137 {offsets = [0, 0], sizes = [2, 16], strides = [1, 1]} : vector<2x32xf32> to vector<2x16xf32>
    %1139 = vector.extract_strided_slice %1137 {offsets = [0, 16], sizes = [2, 16], strides = [1, 1]} : vector<2x32xf32> to vector<2x16xf32>
    %1140 = vector.extract_strided_slice %1128 {offsets = [0, 32], sizes = [2, 16], strides = [1, 1]} : vector<2x48xf32> to vector<2x16xf32>
    %1141 = vector.extract_strided_slice %1129 {offsets = [0, 32], sizes = [2, 16], strides = [1, 1]} : vector<2x48xf32> to vector<2x16xf32>
    %1142 = vector.broadcast %969 : vector<1x16xf32> to vector<2x16xf32>
    %1143 = arith.addf %1141, %1142 : vector<2x16xf32>
    %1144 = arith.mulf %1138, %1143 : vector<2x16xf32>
    %1145 = arith.addf %1140, %1144 : vector<2x16xf32>
    %1146 = math.tanh %1145 : vector<2x16xf32>
    %1147 = arith.subf %1127, %1146 : vector<2x16xf32>
    %1148 = arith.mulf %1139, %1147 : vector<2x16xf32>
    %1149 = arith.addf %1146, %1148 : vector<2x16xf32>
    %1150 = tpu.concatenate %995, %1017, %1039, %1061, %1083, %1105, %1127, %1149 in 0 : vector<2x16xf32>, vector<2x16xf32>, vector<2x16xf32>, vector<2x16xf32>, vector<2x16xf32>, vector<2x16xf32>, vector<2x16xf32>, vector<2x16xf32> -> vector<16x16xf32>
    %c6 = arith.constant 6 : index
    %c0_194 = arith.constant 0 : index
    %c0_195 = arith.constant 0 : index
    %c0_196 = arith.constant 0 : index
    %1151 = vector.load %arg3[%c6, %c0_194, %c0_195, %c0_196] : memref<8x2x16x48xf32, #tpu.memory_space<vmem>>, vector<1x1x16x48xf32>
    %1152 = vector.shape_cast %1151 : vector<1x1x16x48xf32> to vector<16x48xf32>
    %c6_197 = arith.constant 6 : index
    %c1_198 = arith.constant 1 : index
    %c0_199 = arith.constant 0 : index
    %c0_200 = arith.constant 0 : index
    %1153 = vector.load %arg3[%c6_197, %c1_198, %c0_199, %c0_200] : memref<8x2x16x48xf32, #tpu.memory_space<vmem>>, vector<1x1x16x48xf32>
    %1154 = vector.shape_cast %1153 : vector<1x1x16x48xf32> to vector<16x48xf32>
    %c6_201 = arith.constant 6 : index
    %c0_202 = arith.constant 0 : index
    %1155 = vector.load %arg4[%c6_201, %c0_202] : memref<8x64xf32, #tpu.memory_space<vmem>>, vector<1x48xf32>
    %c6_203 = arith.constant 6 : index
    %c48_204 = arith.constant 48 : index
    %1156 = vector.load %arg4[%c6_203, %c48_204] : memref<8x64xf32, #tpu.memory_space<vmem>>, vector<1x16xf32>
    %cst_205 = arith.constant dense<0.000000e+00> : vector<16x48xf32>
    %1157 = tpu.matmul %1150, %1152, %cst_205 {dimension_numbers = #tpu.dot_dimension_numbers<[1], [0], [0], [1], [0, 0, 1, 1], [], []>} : vector<16x16xf32>, vector<16x48xf32>, vector<16x48xf32> -> vector<16x48xf32>
    %1158 = vector.broadcast %1155 : vector<1x48xf32> to vector<16x48xf32>
    %1159 = arith.addf %1157, %1158 : vector<16x48xf32>
    %cst_206 = arith.constant 0.000000e+00 : f32
    %1160 = vector.broadcast %cst_206 : f32 to vector<2x16xf32>
    %1161 = vector.extract_strided_slice %1159 {offsets = [0, 0], sizes = [2, 48], strides = [1, 1]} : vector<16x48xf32> to vector<2x48xf32>
    %cst_207 = arith.constant dense<0.000000e+00> : vector<2x48xf32>
    %1162 = tpu.matmul %1160, %1154, %cst_207 {dimension_numbers = #tpu.dot_dimension_numbers<[1], [0], [0], [1], [0, 0, 1, 1], [], []>} : vector<2x16xf32>, vector<16x48xf32>, vector<2x48xf32> -> vector<2x48xf32>
    %1163 = vector.extract_strided_slice %1161 {offsets = [0, 0], sizes = [2, 32], strides = [1, 1]} : vector<2x48xf32> to vector<2x32xf32>
    %1164 = vector.extract_strided_slice %1162 {offsets = [0, 0], sizes = [2, 32], strides = [1, 1]} : vector<2x48xf32> to vector<2x32xf32>
    %1165 = arith.addf %1163, %1164 : vector<2x32xf32>
    %1166 = arith.negf %1165 : vector<2x32xf32>
    %1167 = math.exp %1166 : vector<2x32xf32>
    %cst_208 = arith.constant 1.000000e+00 : f32
    %1168 = vector.broadcast %cst_208 : f32 to vector<2x32xf32>
    %1169 = arith.addf %1168, %1167 : vector<2x32xf32>
    %1170 = arith.divf %1168, %1169 : vector<2x32xf32>
    %1171 = vector.extract_strided_slice %1170 {offsets = [0, 0], sizes = [2, 16], strides = [1, 1]} : vector<2x32xf32> to vector<2x16xf32>
    %1172 = vector.extract_strided_slice %1170 {offsets = [0, 16], sizes = [2, 16], strides = [1, 1]} : vector<2x32xf32> to vector<2x16xf32>
    %1173 = vector.extract_strided_slice %1161 {offsets = [0, 32], sizes = [2, 16], strides = [1, 1]} : vector<2x48xf32> to vector<2x16xf32>
    %1174 = vector.extract_strided_slice %1162 {offsets = [0, 32], sizes = [2, 16], strides = [1, 1]} : vector<2x48xf32> to vector<2x16xf32>
    %1175 = vector.broadcast %1156 : vector<1x16xf32> to vector<2x16xf32>
    %1176 = arith.addf %1174, %1175 : vector<2x16xf32>
    %1177 = arith.mulf %1171, %1176 : vector<2x16xf32>
    %1178 = arith.addf %1173, %1177 : vector<2x16xf32>
    %1179 = math.tanh %1178 : vector<2x16xf32>
    %1180 = arith.subf %1160, %1179 : vector<2x16xf32>
    %1181 = arith.mulf %1172, %1180 : vector<2x16xf32>
    %1182 = arith.addf %1179, %1181 : vector<2x16xf32>
    %1183 = vector.extract_strided_slice %1159 {offsets = [2, 0], sizes = [2, 48], strides = [1, 1]} : vector<16x48xf32> to vector<2x48xf32>
    %cst_209 = arith.constant dense<0.000000e+00> : vector<2x48xf32>
    %1184 = tpu.matmul %1182, %1154, %cst_209 {dimension_numbers = #tpu.dot_dimension_numbers<[1], [0], [0], [1], [0, 0, 1, 1], [], []>} : vector<2x16xf32>, vector<16x48xf32>, vector<2x48xf32> -> vector<2x48xf32>
    %1185 = vector.extract_strided_slice %1183 {offsets = [0, 0], sizes = [2, 32], strides = [1, 1]} : vector<2x48xf32> to vector<2x32xf32>
    %1186 = vector.extract_strided_slice %1184 {offsets = [0, 0], sizes = [2, 32], strides = [1, 1]} : vector<2x48xf32> to vector<2x32xf32>
    %1187 = arith.addf %1185, %1186 : vector<2x32xf32>
    %1188 = arith.negf %1187 : vector<2x32xf32>
    %1189 = math.exp %1188 : vector<2x32xf32>
    %cst_210 = arith.constant 1.000000e+00 : f32
    %1190 = vector.broadcast %cst_210 : f32 to vector<2x32xf32>
    %1191 = arith.addf %1190, %1189 : vector<2x32xf32>
    %1192 = arith.divf %1190, %1191 : vector<2x32xf32>
    %1193 = vector.extract_strided_slice %1192 {offsets = [0, 0], sizes = [2, 16], strides = [1, 1]} : vector<2x32xf32> to vector<2x16xf32>
    %1194 = vector.extract_strided_slice %1192 {offsets = [0, 16], sizes = [2, 16], strides = [1, 1]} : vector<2x32xf32> to vector<2x16xf32>
    %1195 = vector.extract_strided_slice %1183 {offsets = [0, 32], sizes = [2, 16], strides = [1, 1]} : vector<2x48xf32> to vector<2x16xf32>
    %1196 = vector.extract_strided_slice %1184 {offsets = [0, 32], sizes = [2, 16], strides = [1, 1]} : vector<2x48xf32> to vector<2x16xf32>
    %1197 = vector.broadcast %1156 : vector<1x16xf32> to vector<2x16xf32>
    %1198 = arith.addf %1196, %1197 : vector<2x16xf32>
    %1199 = arith.mulf %1193, %1198 : vector<2x16xf32>
    %1200 = arith.addf %1195, %1199 : vector<2x16xf32>
    %1201 = math.tanh %1200 : vector<2x16xf32>
    %1202 = arith.subf %1182, %1201 : vector<2x16xf32>
    %1203 = arith.mulf %1194, %1202 : vector<2x16xf32>
    %1204 = arith.addf %1201, %1203 : vector<2x16xf32>
    %1205 = vector.extract_strided_slice %1159 {offsets = [4, 0], sizes = [2, 48], strides = [1, 1]} : vector<16x48xf32> to vector<2x48xf32>
    %cst_211 = arith.constant dense<0.000000e+00> : vector<2x48xf32>
    %1206 = tpu.matmul %1204, %1154, %cst_211 {dimension_numbers = #tpu.dot_dimension_numbers<[1], [0], [0], [1], [0, 0, 1, 1], [], []>} : vector<2x16xf32>, vector<16x48xf32>, vector<2x48xf32> -> vector<2x48xf32>
    %1207 = vector.extract_strided_slice %1205 {offsets = [0, 0], sizes = [2, 32], strides = [1, 1]} : vector<2x48xf32> to vector<2x32xf32>
    %1208 = vector.extract_strided_slice %1206 {offsets = [0, 0], sizes = [2, 32], strides = [1, 1]} : vector<2x48xf32> to vector<2x32xf32>
    %1209 = arith.addf %1207, %1208 : vector<2x32xf32>
    %1210 = arith.negf %1209 : vector<2x32xf32>
    %1211 = math.exp %1210 : vector<2x32xf32>
    %cst_212 = arith.constant 1.000000e+00 : f32
    %1212 = vector.broadcast %cst_212 : f32 to vector<2x32xf32>
    %1213 = arith.addf %1212, %1211 : vector<2x32xf32>
    %1214 = arith.divf %1212, %1213 : vector<2x32xf32>
    %1215 = vector.extract_strided_slice %1214 {offsets = [0, 0], sizes = [2, 16], strides = [1, 1]} : vector<2x32xf32> to vector<2x16xf32>
    %1216 = vector.extract_strided_slice %1214 {offsets = [0, 16], sizes = [2, 16], strides = [1, 1]} : vector<2x32xf32> to vector<2x16xf32>
    %1217 = vector.extract_strided_slice %1205 {offsets = [0, 32], sizes = [2, 16], strides = [1, 1]} : vector<2x48xf32> to vector<2x16xf32>
    %1218 = vector.extract_strided_slice %1206 {offsets = [0, 32], sizes = [2, 16], strides = [1, 1]} : vector<2x48xf32> to vector<2x16xf32>
    %1219 = vector.broadcast %1156 : vector<1x16xf32> to vector<2x16xf32>
    %1220 = arith.addf %1218, %1219 : vector<2x16xf32>
    %1221 = arith.mulf %1215, %1220 : vector<2x16xf32>
    %1222 = arith.addf %1217, %1221 : vector<2x16xf32>
    %1223 = math.tanh %1222 : vector<2x16xf32>
    %1224 = arith.subf %1204, %1223 : vector<2x16xf32>
    %1225 = arith.mulf %1216, %1224 : vector<2x16xf32>
    %1226 = arith.addf %1223, %1225 : vector<2x16xf32>
    %1227 = vector.extract_strided_slice %1159 {offsets = [6, 0], sizes = [2, 48], strides = [1, 1]} : vector<16x48xf32> to vector<2x48xf32>
    %cst_213 = arith.constant dense<0.000000e+00> : vector<2x48xf32>
    %1228 = tpu.matmul %1226, %1154, %cst_213 {dimension_numbers = #tpu.dot_dimension_numbers<[1], [0], [0], [1], [0, 0, 1, 1], [], []>} : vector<2x16xf32>, vector<16x48xf32>, vector<2x48xf32> -> vector<2x48xf32>
    %1229 = vector.extract_strided_slice %1227 {offsets = [0, 0], sizes = [2, 32], strides = [1, 1]} : vector<2x48xf32> to vector<2x32xf32>
    %1230 = vector.extract_strided_slice %1228 {offsets = [0, 0], sizes = [2, 32], strides = [1, 1]} : vector<2x48xf32> to vector<2x32xf32>
    %1231 = arith.addf %1229, %1230 : vector<2x32xf32>
    %1232 = arith.negf %1231 : vector<2x32xf32>
    %1233 = math.exp %1232 : vector<2x32xf32>
    %cst_214 = arith.constant 1.000000e+00 : f32
    %1234 = vector.broadcast %cst_214 : f32 to vector<2x32xf32>
    %1235 = arith.addf %1234, %1233 : vector<2x32xf32>
    %1236 = arith.divf %1234, %1235 : vector<2x32xf32>
    %1237 = vector.extract_strided_slice %1236 {offsets = [0, 0], sizes = [2, 16], strides = [1, 1]} : vector<2x32xf32> to vector<2x16xf32>
    %1238 = vector.extract_strided_slice %1236 {offsets = [0, 16], sizes = [2, 16], strides = [1, 1]} : vector<2x32xf32> to vector<2x16xf32>
    %1239 = vector.extract_strided_slice %1227 {offsets = [0, 32], sizes = [2, 16], strides = [1, 1]} : vector<2x48xf32> to vector<2x16xf32>
    %1240 = vector.extract_strided_slice %1228 {offsets = [0, 32], sizes = [2, 16], strides = [1, 1]} : vector<2x48xf32> to vector<2x16xf32>
    %1241 = vector.broadcast %1156 : vector<1x16xf32> to vector<2x16xf32>
    %1242 = arith.addf %1240, %1241 : vector<2x16xf32>
    %1243 = arith.mulf %1237, %1242 : vector<2x16xf32>
    %1244 = arith.addf %1239, %1243 : vector<2x16xf32>
    %1245 = math.tanh %1244 : vector<2x16xf32>
    %1246 = arith.subf %1226, %1245 : vector<2x16xf32>
    %1247 = arith.mulf %1238, %1246 : vector<2x16xf32>
    %1248 = arith.addf %1245, %1247 : vector<2x16xf32>
    %1249 = vector.extract_strided_slice %1159 {offsets = [8, 0], sizes = [2, 48], strides = [1, 1]} : vector<16x48xf32> to vector<2x48xf32>
    %cst_215 = arith.constant dense<0.000000e+00> : vector<2x48xf32>
    %1250 = tpu.matmul %1248, %1154, %cst_215 {dimension_numbers = #tpu.dot_dimension_numbers<[1], [0], [0], [1], [0, 0, 1, 1], [], []>} : vector<2x16xf32>, vector<16x48xf32>, vector<2x48xf32> -> vector<2x48xf32>
    %1251 = vector.extract_strided_slice %1249 {offsets = [0, 0], sizes = [2, 32], strides = [1, 1]} : vector<2x48xf32> to vector<2x32xf32>
    %1252 = vector.extract_strided_slice %1250 {offsets = [0, 0], sizes = [2, 32], strides = [1, 1]} : vector<2x48xf32> to vector<2x32xf32>
    %1253 = arith.addf %1251, %1252 : vector<2x32xf32>
    %1254 = arith.negf %1253 : vector<2x32xf32>
    %1255 = math.exp %1254 : vector<2x32xf32>
    %cst_216 = arith.constant 1.000000e+00 : f32
    %1256 = vector.broadcast %cst_216 : f32 to vector<2x32xf32>
    %1257 = arith.addf %1256, %1255 : vector<2x32xf32>
    %1258 = arith.divf %1256, %1257 : vector<2x32xf32>
    %1259 = vector.extract_strided_slice %1258 {offsets = [0, 0], sizes = [2, 16], strides = [1, 1]} : vector<2x32xf32> to vector<2x16xf32>
    %1260 = vector.extract_strided_slice %1258 {offsets = [0, 16], sizes = [2, 16], strides = [1, 1]} : vector<2x32xf32> to vector<2x16xf32>
    %1261 = vector.extract_strided_slice %1249 {offsets = [0, 32], sizes = [2, 16], strides = [1, 1]} : vector<2x48xf32> to vector<2x16xf32>
    %1262 = vector.extract_strided_slice %1250 {offsets = [0, 32], sizes = [2, 16], strides = [1, 1]} : vector<2x48xf32> to vector<2x16xf32>
    %1263 = vector.broadcast %1156 : vector<1x16xf32> to vector<2x16xf32>
    %1264 = arith.addf %1262, %1263 : vector<2x16xf32>
    %1265 = arith.mulf %1259, %1264 : vector<2x16xf32>
    %1266 = arith.addf %1261, %1265 : vector<2x16xf32>
    %1267 = math.tanh %1266 : vector<2x16xf32>
    %1268 = arith.subf %1248, %1267 : vector<2x16xf32>
    %1269 = arith.mulf %1260, %1268 : vector<2x16xf32>
    %1270 = arith.addf %1267, %1269 : vector<2x16xf32>
    %1271 = vector.extract_strided_slice %1159 {offsets = [10, 0], sizes = [2, 48], strides = [1, 1]} : vector<16x48xf32> to vector<2x48xf32>
    %cst_217 = arith.constant dense<0.000000e+00> : vector<2x48xf32>
    %1272 = tpu.matmul %1270, %1154, %cst_217 {dimension_numbers = #tpu.dot_dimension_numbers<[1], [0], [0], [1], [0, 0, 1, 1], [], []>} : vector<2x16xf32>, vector<16x48xf32>, vector<2x48xf32> -> vector<2x48xf32>
    %1273 = vector.extract_strided_slice %1271 {offsets = [0, 0], sizes = [2, 32], strides = [1, 1]} : vector<2x48xf32> to vector<2x32xf32>
    %1274 = vector.extract_strided_slice %1272 {offsets = [0, 0], sizes = [2, 32], strides = [1, 1]} : vector<2x48xf32> to vector<2x32xf32>
    %1275 = arith.addf %1273, %1274 : vector<2x32xf32>
    %1276 = arith.negf %1275 : vector<2x32xf32>
    %1277 = math.exp %1276 : vector<2x32xf32>
    %cst_218 = arith.constant 1.000000e+00 : f32
    %1278 = vector.broadcast %cst_218 : f32 to vector<2x32xf32>
    %1279 = arith.addf %1278, %1277 : vector<2x32xf32>
    %1280 = arith.divf %1278, %1279 : vector<2x32xf32>
    %1281 = vector.extract_strided_slice %1280 {offsets = [0, 0], sizes = [2, 16], strides = [1, 1]} : vector<2x32xf32> to vector<2x16xf32>
    %1282 = vector.extract_strided_slice %1280 {offsets = [0, 16], sizes = [2, 16], strides = [1, 1]} : vector<2x32xf32> to vector<2x16xf32>
    %1283 = vector.extract_strided_slice %1271 {offsets = [0, 32], sizes = [2, 16], strides = [1, 1]} : vector<2x48xf32> to vector<2x16xf32>
    %1284 = vector.extract_strided_slice %1272 {offsets = [0, 32], sizes = [2, 16], strides = [1, 1]} : vector<2x48xf32> to vector<2x16xf32>
    %1285 = vector.broadcast %1156 : vector<1x16xf32> to vector<2x16xf32>
    %1286 = arith.addf %1284, %1285 : vector<2x16xf32>
    %1287 = arith.mulf %1281, %1286 : vector<2x16xf32>
    %1288 = arith.addf %1283, %1287 : vector<2x16xf32>
    %1289 = math.tanh %1288 : vector<2x16xf32>
    %1290 = arith.subf %1270, %1289 : vector<2x16xf32>
    %1291 = arith.mulf %1282, %1290 : vector<2x16xf32>
    %1292 = arith.addf %1289, %1291 : vector<2x16xf32>
    %1293 = vector.extract_strided_slice %1159 {offsets = [12, 0], sizes = [2, 48], strides = [1, 1]} : vector<16x48xf32> to vector<2x48xf32>
    %cst_219 = arith.constant dense<0.000000e+00> : vector<2x48xf32>
    %1294 = tpu.matmul %1292, %1154, %cst_219 {dimension_numbers = #tpu.dot_dimension_numbers<[1], [0], [0], [1], [0, 0, 1, 1], [], []>} : vector<2x16xf32>, vector<16x48xf32>, vector<2x48xf32> -> vector<2x48xf32>
    %1295 = vector.extract_strided_slice %1293 {offsets = [0, 0], sizes = [2, 32], strides = [1, 1]} : vector<2x48xf32> to vector<2x32xf32>
    %1296 = vector.extract_strided_slice %1294 {offsets = [0, 0], sizes = [2, 32], strides = [1, 1]} : vector<2x48xf32> to vector<2x32xf32>
    %1297 = arith.addf %1295, %1296 : vector<2x32xf32>
    %1298 = arith.negf %1297 : vector<2x32xf32>
    %1299 = math.exp %1298 : vector<2x32xf32>
    %cst_220 = arith.constant 1.000000e+00 : f32
    %1300 = vector.broadcast %cst_220 : f32 to vector<2x32xf32>
    %1301 = arith.addf %1300, %1299 : vector<2x32xf32>
    %1302 = arith.divf %1300, %1301 : vector<2x32xf32>
    %1303 = vector.extract_strided_slice %1302 {offsets = [0, 0], sizes = [2, 16], strides = [1, 1]} : vector<2x32xf32> to vector<2x16xf32>
    %1304 = vector.extract_strided_slice %1302 {offsets = [0, 16], sizes = [2, 16], strides = [1, 1]} : vector<2x32xf32> to vector<2x16xf32>
    %1305 = vector.extract_strided_slice %1293 {offsets = [0, 32], sizes = [2, 16], strides = [1, 1]} : vector<2x48xf32> to vector<2x16xf32>
    %1306 = vector.extract_strided_slice %1294 {offsets = [0, 32], sizes = [2, 16], strides = [1, 1]} : vector<2x48xf32> to vector<2x16xf32>
    %1307 = vector.broadcast %1156 : vector<1x16xf32> to vector<2x16xf32>
    %1308 = arith.addf %1306, %1307 : vector<2x16xf32>
    %1309 = arith.mulf %1303, %1308 : vector<2x16xf32>
    %1310 = arith.addf %1305, %1309 : vector<2x16xf32>
    %1311 = math.tanh %1310 : vector<2x16xf32>
    %1312 = arith.subf %1292, %1311 : vector<2x16xf32>
    %1313 = arith.mulf %1304, %1312 : vector<2x16xf32>
    %1314 = arith.addf %1311, %1313 : vector<2x16xf32>
    %1315 = vector.extract_strided_slice %1159 {offsets = [14, 0], sizes = [2, 48], strides = [1, 1]} : vector<16x48xf32> to vector<2x48xf32>
    %cst_221 = arith.constant dense<0.000000e+00> : vector<2x48xf32>
    %1316 = tpu.matmul %1314, %1154, %cst_221 {dimension_numbers = #tpu.dot_dimension_numbers<[1], [0], [0], [1], [0, 0, 1, 1], [], []>} : vector<2x16xf32>, vector<16x48xf32>, vector<2x48xf32> -> vector<2x48xf32>
    %1317 = vector.extract_strided_slice %1315 {offsets = [0, 0], sizes = [2, 32], strides = [1, 1]} : vector<2x48xf32> to vector<2x32xf32>
    %1318 = vector.extract_strided_slice %1316 {offsets = [0, 0], sizes = [2, 32], strides = [1, 1]} : vector<2x48xf32> to vector<2x32xf32>
    %1319 = arith.addf %1317, %1318 : vector<2x32xf32>
    %1320 = arith.negf %1319 : vector<2x32xf32>
    %1321 = math.exp %1320 : vector<2x32xf32>
    %cst_222 = arith.constant 1.000000e+00 : f32
    %1322 = vector.broadcast %cst_222 : f32 to vector<2x32xf32>
    %1323 = arith.addf %1322, %1321 : vector<2x32xf32>
    %1324 = arith.divf %1322, %1323 : vector<2x32xf32>
    %1325 = vector.extract_strided_slice %1324 {offsets = [0, 0], sizes = [2, 16], strides = [1, 1]} : vector<2x32xf32> to vector<2x16xf32>
    %1326 = vector.extract_strided_slice %1324 {offsets = [0, 16], sizes = [2, 16], strides = [1, 1]} : vector<2x32xf32> to vector<2x16xf32>
    %1327 = vector.extract_strided_slice %1315 {offsets = [0, 32], sizes = [2, 16], strides = [1, 1]} : vector<2x48xf32> to vector<2x16xf32>
    %1328 = vector.extract_strided_slice %1316 {offsets = [0, 32], sizes = [2, 16], strides = [1, 1]} : vector<2x48xf32> to vector<2x16xf32>
    %1329 = vector.broadcast %1156 : vector<1x16xf32> to vector<2x16xf32>
    %1330 = arith.addf %1328, %1329 : vector<2x16xf32>
    %1331 = arith.mulf %1325, %1330 : vector<2x16xf32>
    %1332 = arith.addf %1327, %1331 : vector<2x16xf32>
    %1333 = math.tanh %1332 : vector<2x16xf32>
    %1334 = arith.subf %1314, %1333 : vector<2x16xf32>
    %1335 = arith.mulf %1326, %1334 : vector<2x16xf32>
    %1336 = arith.addf %1333, %1335 : vector<2x16xf32>
    %1337 = tpu.concatenate %1182, %1204, %1226, %1248, %1270, %1292, %1314, %1336 in 0 : vector<2x16xf32>, vector<2x16xf32>, vector<2x16xf32>, vector<2x16xf32>, vector<2x16xf32>, vector<2x16xf32>, vector<2x16xf32>, vector<2x16xf32> -> vector<16x16xf32>
    %c7 = arith.constant 7 : index
    %c0_223 = arith.constant 0 : index
    %c0_224 = arith.constant 0 : index
    %c0_225 = arith.constant 0 : index
    %1338 = vector.load %arg3[%c7, %c0_223, %c0_224, %c0_225] : memref<8x2x16x48xf32, #tpu.memory_space<vmem>>, vector<1x1x16x48xf32>
    %1339 = vector.shape_cast %1338 : vector<1x1x16x48xf32> to vector<16x48xf32>
    %c7_226 = arith.constant 7 : index
    %c1_227 = arith.constant 1 : index
    %c0_228 = arith.constant 0 : index
    %c0_229 = arith.constant 0 : index
    %1340 = vector.load %arg3[%c7_226, %c1_227, %c0_228, %c0_229] : memref<8x2x16x48xf32, #tpu.memory_space<vmem>>, vector<1x1x16x48xf32>
    %1341 = vector.shape_cast %1340 : vector<1x1x16x48xf32> to vector<16x48xf32>
    %c7_230 = arith.constant 7 : index
    %c0_231 = arith.constant 0 : index
    %1342 = vector.load %arg4[%c7_230, %c0_231] : memref<8x64xf32, #tpu.memory_space<vmem>>, vector<1x48xf32>
    %c7_232 = arith.constant 7 : index
    %c48_233 = arith.constant 48 : index
    %1343 = vector.load %arg4[%c7_232, %c48_233] : memref<8x64xf32, #tpu.memory_space<vmem>>, vector<1x16xf32>
    %cst_234 = arith.constant dense<0.000000e+00> : vector<16x48xf32>
    %1344 = tpu.matmul %1337, %1339, %cst_234 {dimension_numbers = #tpu.dot_dimension_numbers<[1], [0], [0], [1], [0, 0, 1, 1], [], []>} : vector<16x16xf32>, vector<16x48xf32>, vector<16x48xf32> -> vector<16x48xf32>
    %1345 = vector.broadcast %1342 : vector<1x48xf32> to vector<16x48xf32>
    %1346 = arith.addf %1344, %1345 : vector<16x48xf32>
    %cst_235 = arith.constant 0.000000e+00 : f32
    %1347 = vector.broadcast %cst_235 : f32 to vector<2x16xf32>
    %1348 = vector.extract_strided_slice %1346 {offsets = [0, 0], sizes = [2, 48], strides = [1, 1]} : vector<16x48xf32> to vector<2x48xf32>
    %cst_236 = arith.constant dense<0.000000e+00> : vector<2x48xf32>
    %1349 = tpu.matmul %1347, %1341, %cst_236 {dimension_numbers = #tpu.dot_dimension_numbers<[1], [0], [0], [1], [0, 0, 1, 1], [], []>} : vector<2x16xf32>, vector<16x48xf32>, vector<2x48xf32> -> vector<2x48xf32>
    %1350 = vector.extract_strided_slice %1348 {offsets = [0, 0], sizes = [2, 32], strides = [1, 1]} : vector<2x48xf32> to vector<2x32xf32>
    %1351 = vector.extract_strided_slice %1349 {offsets = [0, 0], sizes = [2, 32], strides = [1, 1]} : vector<2x48xf32> to vector<2x32xf32>
    %1352 = arith.addf %1350, %1351 : vector<2x32xf32>
    %1353 = arith.negf %1352 : vector<2x32xf32>
    %1354 = math.exp %1353 : vector<2x32xf32>
    %cst_237 = arith.constant 1.000000e+00 : f32
    %1355 = vector.broadcast %cst_237 : f32 to vector<2x32xf32>
    %1356 = arith.addf %1355, %1354 : vector<2x32xf32>
    %1357 = arith.divf %1355, %1356 : vector<2x32xf32>
    %1358 = vector.extract_strided_slice %1357 {offsets = [0, 0], sizes = [2, 16], strides = [1, 1]} : vector<2x32xf32> to vector<2x16xf32>
    %1359 = vector.extract_strided_slice %1357 {offsets = [0, 16], sizes = [2, 16], strides = [1, 1]} : vector<2x32xf32> to vector<2x16xf32>
    %1360 = vector.extract_strided_slice %1348 {offsets = [0, 32], sizes = [2, 16], strides = [1, 1]} : vector<2x48xf32> to vector<2x16xf32>
    %1361 = vector.extract_strided_slice %1349 {offsets = [0, 32], sizes = [2, 16], strides = [1, 1]} : vector<2x48xf32> to vector<2x16xf32>
    %1362 = vector.broadcast %1343 : vector<1x16xf32> to vector<2x16xf32>
    %1363 = arith.addf %1361, %1362 : vector<2x16xf32>
    %1364 = arith.mulf %1358, %1363 : vector<2x16xf32>
    %1365 = arith.addf %1360, %1364 : vector<2x16xf32>
    %1366 = math.tanh %1365 : vector<2x16xf32>
    %1367 = arith.subf %1347, %1366 : vector<2x16xf32>
    %1368 = arith.mulf %1359, %1367 : vector<2x16xf32>
    %1369 = arith.addf %1366, %1368 : vector<2x16xf32>
    %1370 = vector.extract_strided_slice %1346 {offsets = [2, 0], sizes = [2, 48], strides = [1, 1]} : vector<16x48xf32> to vector<2x48xf32>
    %cst_238 = arith.constant dense<0.000000e+00> : vector<2x48xf32>
    %1371 = tpu.matmul %1369, %1341, %cst_238 {dimension_numbers = #tpu.dot_dimension_numbers<[1], [0], [0], [1], [0, 0, 1, 1], [], []>} : vector<2x16xf32>, vector<16x48xf32>, vector<2x48xf32> -> vector<2x48xf32>
    %1372 = vector.extract_strided_slice %1370 {offsets = [0, 0], sizes = [2, 32], strides = [1, 1]} : vector<2x48xf32> to vector<2x32xf32>
    %1373 = vector.extract_strided_slice %1371 {offsets = [0, 0], sizes = [2, 32], strides = [1, 1]} : vector<2x48xf32> to vector<2x32xf32>
    %1374 = arith.addf %1372, %1373 : vector<2x32xf32>
    %1375 = arith.negf %1374 : vector<2x32xf32>
    %1376 = math.exp %1375 : vector<2x32xf32>
    %cst_239 = arith.constant 1.000000e+00 : f32
    %1377 = vector.broadcast %cst_239 : f32 to vector<2x32xf32>
    %1378 = arith.addf %1377, %1376 : vector<2x32xf32>
    %1379 = arith.divf %1377, %1378 : vector<2x32xf32>
    %1380 = vector.extract_strided_slice %1379 {offsets = [0, 0], sizes = [2, 16], strides = [1, 1]} : vector<2x32xf32> to vector<2x16xf32>
    %1381 = vector.extract_strided_slice %1379 {offsets = [0, 16], sizes = [2, 16], strides = [1, 1]} : vector<2x32xf32> to vector<2x16xf32>
    %1382 = vector.extract_strided_slice %1370 {offsets = [0, 32], sizes = [2, 16], strides = [1, 1]} : vector<2x48xf32> to vector<2x16xf32>
    %1383 = vector.extract_strided_slice %1371 {offsets = [0, 32], sizes = [2, 16], strides = [1, 1]} : vector<2x48xf32> to vector<2x16xf32>
    %1384 = vector.broadcast %1343 : vector<1x16xf32> to vector<2x16xf32>
    %1385 = arith.addf %1383, %1384 : vector<2x16xf32>
    %1386 = arith.mulf %1380, %1385 : vector<2x16xf32>
    %1387 = arith.addf %1382, %1386 : vector<2x16xf32>
    %1388 = math.tanh %1387 : vector<2x16xf32>
    %1389 = arith.subf %1369, %1388 : vector<2x16xf32>
    %1390 = arith.mulf %1381, %1389 : vector<2x16xf32>
    %1391 = arith.addf %1388, %1390 : vector<2x16xf32>
    %1392 = vector.extract_strided_slice %1346 {offsets = [4, 0], sizes = [2, 48], strides = [1, 1]} : vector<16x48xf32> to vector<2x48xf32>
    %cst_240 = arith.constant dense<0.000000e+00> : vector<2x48xf32>
    %1393 = tpu.matmul %1391, %1341, %cst_240 {dimension_numbers = #tpu.dot_dimension_numbers<[1], [0], [0], [1], [0, 0, 1, 1], [], []>} : vector<2x16xf32>, vector<16x48xf32>, vector<2x48xf32> -> vector<2x48xf32>
    %1394 = vector.extract_strided_slice %1392 {offsets = [0, 0], sizes = [2, 32], strides = [1, 1]} : vector<2x48xf32> to vector<2x32xf32>
    %1395 = vector.extract_strided_slice %1393 {offsets = [0, 0], sizes = [2, 32], strides = [1, 1]} : vector<2x48xf32> to vector<2x32xf32>
    %1396 = arith.addf %1394, %1395 : vector<2x32xf32>
    %1397 = arith.negf %1396 : vector<2x32xf32>
    %1398 = math.exp %1397 : vector<2x32xf32>
    %cst_241 = arith.constant 1.000000e+00 : f32
    %1399 = vector.broadcast %cst_241 : f32 to vector<2x32xf32>
    %1400 = arith.addf %1399, %1398 : vector<2x32xf32>
    %1401 = arith.divf %1399, %1400 : vector<2x32xf32>
    %1402 = vector.extract_strided_slice %1401 {offsets = [0, 0], sizes = [2, 16], strides = [1, 1]} : vector<2x32xf32> to vector<2x16xf32>
    %1403 = vector.extract_strided_slice %1401 {offsets = [0, 16], sizes = [2, 16], strides = [1, 1]} : vector<2x32xf32> to vector<2x16xf32>
    %1404 = vector.extract_strided_slice %1392 {offsets = [0, 32], sizes = [2, 16], strides = [1, 1]} : vector<2x48xf32> to vector<2x16xf32>
    %1405 = vector.extract_strided_slice %1393 {offsets = [0, 32], sizes = [2, 16], strides = [1, 1]} : vector<2x48xf32> to vector<2x16xf32>
    %1406 = vector.broadcast %1343 : vector<1x16xf32> to vector<2x16xf32>
    %1407 = arith.addf %1405, %1406 : vector<2x16xf32>
    %1408 = arith.mulf %1402, %1407 : vector<2x16xf32>
    %1409 = arith.addf %1404, %1408 : vector<2x16xf32>
    %1410 = math.tanh %1409 : vector<2x16xf32>
    %1411 = arith.subf %1391, %1410 : vector<2x16xf32>
    %1412 = arith.mulf %1403, %1411 : vector<2x16xf32>
    %1413 = arith.addf %1410, %1412 : vector<2x16xf32>
    %1414 = vector.extract_strided_slice %1346 {offsets = [6, 0], sizes = [2, 48], strides = [1, 1]} : vector<16x48xf32> to vector<2x48xf32>
    %cst_242 = arith.constant dense<0.000000e+00> : vector<2x48xf32>
    %1415 = tpu.matmul %1413, %1341, %cst_242 {dimension_numbers = #tpu.dot_dimension_numbers<[1], [0], [0], [1], [0, 0, 1, 1], [], []>} : vector<2x16xf32>, vector<16x48xf32>, vector<2x48xf32> -> vector<2x48xf32>
    %1416 = vector.extract_strided_slice %1414 {offsets = [0, 0], sizes = [2, 32], strides = [1, 1]} : vector<2x48xf32> to vector<2x32xf32>
    %1417 = vector.extract_strided_slice %1415 {offsets = [0, 0], sizes = [2, 32], strides = [1, 1]} : vector<2x48xf32> to vector<2x32xf32>
    %1418 = arith.addf %1416, %1417 : vector<2x32xf32>
    %1419 = arith.negf %1418 : vector<2x32xf32>
    %1420 = math.exp %1419 : vector<2x32xf32>
    %cst_243 = arith.constant 1.000000e+00 : f32
    %1421 = vector.broadcast %cst_243 : f32 to vector<2x32xf32>
    %1422 = arith.addf %1421, %1420 : vector<2x32xf32>
    %1423 = arith.divf %1421, %1422 : vector<2x32xf32>
    %1424 = vector.extract_strided_slice %1423 {offsets = [0, 0], sizes = [2, 16], strides = [1, 1]} : vector<2x32xf32> to vector<2x16xf32>
    %1425 = vector.extract_strided_slice %1423 {offsets = [0, 16], sizes = [2, 16], strides = [1, 1]} : vector<2x32xf32> to vector<2x16xf32>
    %1426 = vector.extract_strided_slice %1414 {offsets = [0, 32], sizes = [2, 16], strides = [1, 1]} : vector<2x48xf32> to vector<2x16xf32>
    %1427 = vector.extract_strided_slice %1415 {offsets = [0, 32], sizes = [2, 16], strides = [1, 1]} : vector<2x48xf32> to vector<2x16xf32>
    %1428 = vector.broadcast %1343 : vector<1x16xf32> to vector<2x16xf32>
    %1429 = arith.addf %1427, %1428 : vector<2x16xf32>
    %1430 = arith.mulf %1424, %1429 : vector<2x16xf32>
    %1431 = arith.addf %1426, %1430 : vector<2x16xf32>
    %1432 = math.tanh %1431 : vector<2x16xf32>
    %1433 = arith.subf %1413, %1432 : vector<2x16xf32>
    %1434 = arith.mulf %1425, %1433 : vector<2x16xf32>
    %1435 = arith.addf %1432, %1434 : vector<2x16xf32>
    %1436 = vector.extract_strided_slice %1346 {offsets = [8, 0], sizes = [2, 48], strides = [1, 1]} : vector<16x48xf32> to vector<2x48xf32>
    %cst_244 = arith.constant dense<0.000000e+00> : vector<2x48xf32>
    %1437 = tpu.matmul %1435, %1341, %cst_244 {dimension_numbers = #tpu.dot_dimension_numbers<[1], [0], [0], [1], [0, 0, 1, 1], [], []>} : vector<2x16xf32>, vector<16x48xf32>, vector<2x48xf32> -> vector<2x48xf32>
    %1438 = vector.extract_strided_slice %1436 {offsets = [0, 0], sizes = [2, 32], strides = [1, 1]} : vector<2x48xf32> to vector<2x32xf32>
    %1439 = vector.extract_strided_slice %1437 {offsets = [0, 0], sizes = [2, 32], strides = [1, 1]} : vector<2x48xf32> to vector<2x32xf32>
    %1440 = arith.addf %1438, %1439 : vector<2x32xf32>
    %1441 = arith.negf %1440 : vector<2x32xf32>
    %1442 = math.exp %1441 : vector<2x32xf32>
    %cst_245 = arith.constant 1.000000e+00 : f32
    %1443 = vector.broadcast %cst_245 : f32 to vector<2x32xf32>
    %1444 = arith.addf %1443, %1442 : vector<2x32xf32>
    %1445 = arith.divf %1443, %1444 : vector<2x32xf32>
    %1446 = vector.extract_strided_slice %1445 {offsets = [0, 0], sizes = [2, 16], strides = [1, 1]} : vector<2x32xf32> to vector<2x16xf32>
    %1447 = vector.extract_strided_slice %1445 {offsets = [0, 16], sizes = [2, 16], strides = [1, 1]} : vector<2x32xf32> to vector<2x16xf32>
    %1448 = vector.extract_strided_slice %1436 {offsets = [0, 32], sizes = [2, 16], strides = [1, 1]} : vector<2x48xf32> to vector<2x16xf32>
    %1449 = vector.extract_strided_slice %1437 {offsets = [0, 32], sizes = [2, 16], strides = [1, 1]} : vector<2x48xf32> to vector<2x16xf32>
    %1450 = vector.broadcast %1343 : vector<1x16xf32> to vector<2x16xf32>
    %1451 = arith.addf %1449, %1450 : vector<2x16xf32>
    %1452 = arith.mulf %1446, %1451 : vector<2x16xf32>
    %1453 = arith.addf %1448, %1452 : vector<2x16xf32>
    %1454 = math.tanh %1453 : vector<2x16xf32>
    %1455 = arith.subf %1435, %1454 : vector<2x16xf32>
    %1456 = arith.mulf %1447, %1455 : vector<2x16xf32>
    %1457 = arith.addf %1454, %1456 : vector<2x16xf32>
    %1458 = vector.extract_strided_slice %1346 {offsets = [10, 0], sizes = [2, 48], strides = [1, 1]} : vector<16x48xf32> to vector<2x48xf32>
    %cst_246 = arith.constant dense<0.000000e+00> : vector<2x48xf32>
    %1459 = tpu.matmul %1457, %1341, %cst_246 {dimension_numbers = #tpu.dot_dimension_numbers<[1], [0], [0], [1], [0, 0, 1, 1], [], []>} : vector<2x16xf32>, vector<16x48xf32>, vector<2x48xf32> -> vector<2x48xf32>
    %1460 = vector.extract_strided_slice %1458 {offsets = [0, 0], sizes = [2, 32], strides = [1, 1]} : vector<2x48xf32> to vector<2x32xf32>
    %1461 = vector.extract_strided_slice %1459 {offsets = [0, 0], sizes = [2, 32], strides = [1, 1]} : vector<2x48xf32> to vector<2x32xf32>
    %1462 = arith.addf %1460, %1461 : vector<2x32xf32>
    %1463 = arith.negf %1462 : vector<2x32xf32>
    %1464 = math.exp %1463 : vector<2x32xf32>
    %cst_247 = arith.constant 1.000000e+00 : f32
    %1465 = vector.broadcast %cst_247 : f32 to vector<2x32xf32>
    %1466 = arith.addf %1465, %1464 : vector<2x32xf32>
    %1467 = arith.divf %1465, %1466 : vector<2x32xf32>
    %1468 = vector.extract_strided_slice %1467 {offsets = [0, 0], sizes = [2, 16], strides = [1, 1]} : vector<2x32xf32> to vector<2x16xf32>
    %1469 = vector.extract_strided_slice %1467 {offsets = [0, 16], sizes = [2, 16], strides = [1, 1]} : vector<2x32xf32> to vector<2x16xf32>
    %1470 = vector.extract_strided_slice %1458 {offsets = [0, 32], sizes = [2, 16], strides = [1, 1]} : vector<2x48xf32> to vector<2x16xf32>
    %1471 = vector.extract_strided_slice %1459 {offsets = [0, 32], sizes = [2, 16], strides = [1, 1]} : vector<2x48xf32> to vector<2x16xf32>
    %1472 = vector.broadcast %1343 : vector<1x16xf32> to vector<2x16xf32>
    %1473 = arith.addf %1471, %1472 : vector<2x16xf32>
    %1474 = arith.mulf %1468, %1473 : vector<2x16xf32>
    %1475 = arith.addf %1470, %1474 : vector<2x16xf32>
    %1476 = math.tanh %1475 : vector<2x16xf32>
    %1477 = arith.subf %1457, %1476 : vector<2x16xf32>
    %1478 = arith.mulf %1469, %1477 : vector<2x16xf32>
    %1479 = arith.addf %1476, %1478 : vector<2x16xf32>
    %1480 = vector.extract_strided_slice %1346 {offsets = [12, 0], sizes = [2, 48], strides = [1, 1]} : vector<16x48xf32> to vector<2x48xf32>
    %cst_248 = arith.constant dense<0.000000e+00> : vector<2x48xf32>
    %1481 = tpu.matmul %1479, %1341, %cst_248 {dimension_numbers = #tpu.dot_dimension_numbers<[1], [0], [0], [1], [0, 0, 1, 1], [], []>} : vector<2x16xf32>, vector<16x48xf32>, vector<2x48xf32> -> vector<2x48xf32>
    %1482 = vector.extract_strided_slice %1480 {offsets = [0, 0], sizes = [2, 32], strides = [1, 1]} : vector<2x48xf32> to vector<2x32xf32>
    %1483 = vector.extract_strided_slice %1481 {offsets = [0, 0], sizes = [2, 32], strides = [1, 1]} : vector<2x48xf32> to vector<2x32xf32>
    %1484 = arith.addf %1482, %1483 : vector<2x32xf32>
    %1485 = arith.negf %1484 : vector<2x32xf32>
    %1486 = math.exp %1485 : vector<2x32xf32>
    %cst_249 = arith.constant 1.000000e+00 : f32
    %1487 = vector.broadcast %cst_249 : f32 to vector<2x32xf32>
    %1488 = arith.addf %1487, %1486 : vector<2x32xf32>
    %1489 = arith.divf %1487, %1488 : vector<2x32xf32>
    %1490 = vector.extract_strided_slice %1489 {offsets = [0, 0], sizes = [2, 16], strides = [1, 1]} : vector<2x32xf32> to vector<2x16xf32>
    %1491 = vector.extract_strided_slice %1489 {offsets = [0, 16], sizes = [2, 16], strides = [1, 1]} : vector<2x32xf32> to vector<2x16xf32>
    %1492 = vector.extract_strided_slice %1480 {offsets = [0, 32], sizes = [2, 16], strides = [1, 1]} : vector<2x48xf32> to vector<2x16xf32>
    %1493 = vector.extract_strided_slice %1481 {offsets = [0, 32], sizes = [2, 16], strides = [1, 1]} : vector<2x48xf32> to vector<2x16xf32>
    %1494 = vector.broadcast %1343 : vector<1x16xf32> to vector<2x16xf32>
    %1495 = arith.addf %1493, %1494 : vector<2x16xf32>
    %1496 = arith.mulf %1490, %1495 : vector<2x16xf32>
    %1497 = arith.addf %1492, %1496 : vector<2x16xf32>
    %1498 = math.tanh %1497 : vector<2x16xf32>
    %1499 = arith.subf %1479, %1498 : vector<2x16xf32>
    %1500 = arith.mulf %1491, %1499 : vector<2x16xf32>
    %1501 = arith.addf %1498, %1500 : vector<2x16xf32>
    %1502 = vector.extract_strided_slice %1346 {offsets = [14, 0], sizes = [2, 48], strides = [1, 1]} : vector<16x48xf32> to vector<2x48xf32>
    %cst_250 = arith.constant dense<0.000000e+00> : vector<2x48xf32>
    %1503 = tpu.matmul %1501, %1341, %cst_250 {dimension_numbers = #tpu.dot_dimension_numbers<[1], [0], [0], [1], [0, 0, 1, 1], [], []>} : vector<2x16xf32>, vector<16x48xf32>, vector<2x48xf32> -> vector<2x48xf32>
    %1504 = vector.extract_strided_slice %1502 {offsets = [0, 0], sizes = [2, 32], strides = [1, 1]} : vector<2x48xf32> to vector<2x32xf32>
    %1505 = vector.extract_strided_slice %1503 {offsets = [0, 0], sizes = [2, 32], strides = [1, 1]} : vector<2x48xf32> to vector<2x32xf32>
    %1506 = arith.addf %1504, %1505 : vector<2x32xf32>
    %1507 = arith.negf %1506 : vector<2x32xf32>
    %1508 = math.exp %1507 : vector<2x32xf32>
    %cst_251 = arith.constant 1.000000e+00 : f32
    %1509 = vector.broadcast %cst_251 : f32 to vector<2x32xf32>
    %1510 = arith.addf %1509, %1508 : vector<2x32xf32>
    %1511 = arith.divf %1509, %1510 : vector<2x32xf32>
    %1512 = vector.extract_strided_slice %1511 {offsets = [0, 0], sizes = [2, 16], strides = [1, 1]} : vector<2x32xf32> to vector<2x16xf32>
    %1513 = vector.extract_strided_slice %1511 {offsets = [0, 16], sizes = [2, 16], strides = [1, 1]} : vector<2x32xf32> to vector<2x16xf32>
    %1514 = vector.extract_strided_slice %1502 {offsets = [0, 32], sizes = [2, 16], strides = [1, 1]} : vector<2x48xf32> to vector<2x16xf32>
    %1515 = vector.extract_strided_slice %1503 {offsets = [0, 32], sizes = [2, 16], strides = [1, 1]} : vector<2x48xf32> to vector<2x16xf32>
    %1516 = vector.broadcast %1343 : vector<1x16xf32> to vector<2x16xf32>
    %1517 = arith.addf %1515, %1516 : vector<2x16xf32>
    %1518 = arith.mulf %1512, %1517 : vector<2x16xf32>
    %1519 = arith.addf %1514, %1518 : vector<2x16xf32>
    %1520 = math.tanh %1519 : vector<2x16xf32>
    %1521 = arith.subf %1501, %1520 : vector<2x16xf32>
    %1522 = arith.mulf %1513, %1521 : vector<2x16xf32>
    %1523 = arith.addf %1520, %1522 : vector<2x16xf32>
    %1524 = tpu.concatenate %1369, %1391, %1413, %1435, %1457, %1479, %1501, %1523 in 0 : vector<2x16xf32>, vector<2x16xf32>, vector<2x16xf32>, vector<2x16xf32>, vector<2x16xf32>, vector<2x16xf32>, vector<2x16xf32>, vector<2x16xf32> -> vector<16x16xf32>
    %1525 = arith.negf %1524 : vector<16x16xf32>
    %1526 = math.exp %1525 : vector<16x16xf32>
    %cst_252 = arith.constant 1.000000e+00 : f32
    %1527 = vector.broadcast %cst_252 : f32 to vector<16x16xf32>
    %1528 = arith.addf %1527, %1526 : vector<16x16xf32>
    %1529 = arith.divf %1527, %1528 : vector<16x16xf32>
    %1530 = arith.negf %28 : vector<16x16xf32>
    %1531 = math.exp %1530 : vector<16x16xf32>
    %cst_253 = arith.constant 1.000000e+00 : f32
    %1532 = vector.broadcast %cst_253 : f32 to vector<16x16xf32>
    %1533 = arith.addf %1532, %1531 : vector<16x16xf32>
    %1534 = arith.divf %1532, %1533 : vector<16x16xf32>
    %1535 = arith.addf %1529, %1534 : vector<16x16xf32>
    %1536 = arith.mulf %28, %1535 : vector<16x16xf32>
    %c0_254 = arith.constant 0 : index
    %c0_255 = arith.constant 0 : index
    %1537 = vector.load %arg5[%c0_254, %c0_255] : memref<16x32xf32, #tpu.memory_space<vmem>>, vector<16x32xf32>
    %cst_256 = arith.constant dense<0.000000e+00> : vector<16x32xf32>
    %1538 = tpu.matmul %1536, %1537, %cst_256 {dimension_numbers = #tpu.dot_dimension_numbers<[1], [0], [0], [1], [0, 0, 1, 1], [], []>} : vector<16x16xf32>, vector<16x32xf32>, vector<16x32xf32> -> vector<16x32xf32>
    %1539 = vector.broadcast %5 : vector<1x32xf32> to vector<16x32xf32>
    %1540 = arith.addf %1538, %1539 : vector<16x32xf32>
    %1541 = arith.mulf %1540, %1540 : vector<16x32xf32>
    %cst_257 = arith.constant dense<0.000000e+00> : vector<16xf32>
    %1542 = vector.multi_reduction <add>, %1541, %cst_257 [1] : vector<16x32xf32> to vector<16xf32>
    %1543 = vector.shape_cast %1542 : vector<16xf32> to vector<16x1xf32>
    %cst_258 = arith.constant 3.200000e+01 : f32
    %1544 = vector.broadcast %cst_258 : f32 to vector<16x1xf32>
    %1545 = arith.divf %1543, %1544 : vector<16x1xf32>
    %cst_259 = arith.constant 9.99999997E-7 : f32
    %1546 = vector.broadcast %cst_259 : f32 to vector<16x1xf32>
    %1547 = arith.addf %1545, %1546 : vector<16x1xf32>
    %1548 = math.rsqrt %1547 : vector<16x1xf32>
    %1549 = vector.broadcast %1548 : vector<16x1xf32> to vector<16x32xf32>
    %1550 = arith.mulf %1540, %1549 : vector<16x32xf32>
    %1551 = vector.broadcast %6 : vector<1x32xf32> to vector<16x32xf32>
    %1552 = arith.mulf %1550, %1551 : vector<16x32xf32>
    %cst_260 = arith.constant 0.000000e+00 : f32
    %1553 = vector.broadcast %cst_260 : f32 to vector<16x32xf32>
    %1554 = arith.cmpf oge, %1552, %1553 : vector<16x32xf32>
    %1555 = vector.broadcast %7 : vector<1x32xf32> to vector<16x32xf32>
    %1556 = arith.mulf %1555, %1552 : vector<16x32xf32>
    %1557 = arith.select %1554, %1552, %1556 : vector<16x32xi1>, vector<16x32xf32>
    %1558 = arith.addf %1557, %1 : vector<16x32xf32>
    %c0_261 = arith.constant 0 : index
    %c0_262 = arith.constant 0 : index
    %c0_263 = arith.constant 0 : index
    %1559 = vector.load %arg8[%c0_261, %c0_262, %c0_263] : memref<1x16x32xf32, #tpu.memory_space<vmem>>, vector<1x16x32xf32>
    %1560 = vector.shape_cast %1559 : vector<1x16x32xf32> to vector<16x32xf32>
    %1561 = vector.shape_cast %1558 : vector<16x32xf32> to vector<1x16x32xf32>
    tpu.vector_store %arg8[%c0_261, %c0_262, %c0_263], %1561 {strides = array<i32>} : memref<1x16x32xf32, #tpu.memory_space<vmem>>, vector<1x16x32xf32>,
    return
  }
  func.func @transform_0(%arg0: i32) -> (i32, i32, i32) {
    %c0_i32 = arith.constant 0 : i32
    %c0_i32_0 = arith.constant 0 : i32
    %c0_i32_1 = arith.constant 0 : i32
    return %arg0, %c0_i32, %c0_i32_0 : i32, i32, i32
  }
  func.func @transform_1(%arg0: i32) -> (i32, i32) {
    %c0_i32 = arith.constant 0 : i32
    %c0_i32_0 = arith.constant 0 : i32
    %c0_i32_1 = arith.constant 0 : i32
    return %c0_i32, %c0_i32_0 : i32, i32
  }
  func.func @transform_2(%arg0: i32) -> (i32, i32, i32, i32) {
    %c0_i32 = arith.constant 0 : i32
    %c0_i32_0 = arith.constant 0 : i32
    %c0_i32_1 = arith.constant 0 : i32
    %c0_i32_2 = arith.constant 0 : i32
    %c0_i32_3 = arith.constant 0 : i32
    return %c0_i32, %c0_i32_0, %c0_i32_1, %c0_i32_2 : i32, i32, i32, i32
  }
  func.func @transform_3(%arg0: i32) -> (i32, i32) {
    %c0_i32 = arith.constant 0 : i32
    %c0_i32_0 = arith.constant 0 : i32
    %c0_i32_1 = arith.constant 0 : i32
    return %c0_i32, %c0_i32_0 : i32, i32
  }
  func.func @transform_4(%arg0: i32) -> (i32, i32) {
    %c0_i32 = arith.constant 0 : i32
    %c0_i32_0 = arith.constant 0 : i32
    %c0_i32_1 = arith.constant 0 : i32
    return %c0_i32, %c0_i32_0 : i32, i32
  }
  func.func @transform_5(%arg0: i32) -> (i32, i32) {
    %c0_i32 = arith.constant 0 : i32
    %c0_i32_0 = arith.constant 0 : i32
    %c0_i32_1 = arith.constant 0 : i32
    return %c0_i32, %c0_i32_0 : i32, i32
  }
  func.func @transform_6(%arg0: i32) -> (i32, i32) {
    %c0_i32 = arith.constant 0 : i32
    %c0_i32_0 = arith.constant 0 : i32
    %c0_i32_1 = arith.constant 0 : i32
    return %c0_i32, %c0_i32_0 : i32, i32
  }
  func.func @transform_7(%arg0: i32) -> (i32, i32, i32) {
    %c0_i32 = arith.constant 0 : i32
    %c0_i32_0 = arith.constant 0 : i32
    %c0_i32_1 = arith.constant 0 : i32
    return %arg0, %c0_i32, %c0_i32_0 : i32, i32, i32
  }
}

</mosaic_0001>

<llo_original>
// kernel: tpu_custom_call.1
$region0: #{tpu_custom_call.1}
  #allocation0 [shape = 'u32[]', space=smem, size = 0x4, offset = 0x4, fixed_abs, tag = 'smem constant byte address 0x4 - core index']
  #allocation1 [shape = 'u32[144,128]{1,0:T(1,128)}', space=vmem, size = 0x12000, scoped, tag = 'internal scratch']
  %s0 = inlined_call_operand.vmem [shape: f32[2,16,32], index: 0, kind: input, shape index: {}]
  %s1 = inlined_call_operand.vmem [shape: f32[32,16], index: 1, kind: input, shape index: {}]
  %s2 = inlined_call_operand.hbm [shape: f32[8,2,16,48], index: 2, kind: input, shape index: {}]
  %s3 = inlined_call_operand.vmem [shape: f32[8,64], index: 3, kind: input, shape index: {}]
  %s4 = inlined_call_operand.vmem [shape: f32[16,32], index: 4, kind: input, shape index: {}]
  %s5 = inlined_call_operand.vmem [shape: f32[3,16], index: 5, kind: input, shape index: {}]
  %s6 = inlined_call_operand.vmem [shape: f32[3,32], index: 6, kind: input, shape index: {}]
  %s7 = inlined_call_operand.hbm [shape: f32[2,16,32], index: 7, kind: output, shape index: {}]
  %s8 = sld [smem:[#allocation0]]
  $region65: #{tpu_custom_call.1} parent=0
    _
  %s10 = ssub.s32 1, %s8
  %s11 = scalar_select 0, %s10, %s8
  $region1: #{tpu_custom_call.1} parent=0
    #allocation2 [shape = 'u8[131072]{0}', space=vmem, size = 0x20000, scoped, tag = 'input window, operand 2, single buffered']
    #allocation3 [shape = 's32[2]{0}', space=sflag, size = 0x8, scoped, tag = 'scoped memory for tpu_custom_call.1']
    #allocation4 [shape = 's32[2]{0}', space=sflag, size = 0x8, scoped, tag = 'scoped memory for tpu_custom_call.1']
    #allocation5 [shape = 'u8[16384]{0}', space=vmem, size = 0x4000, scoped, tag = 'output window, operand 0']
    %12 = vsyncpa [#allocation3], 0
    %13 = vsyncpa [#allocation4], 0
    %s14 = scalar_lea.sflag [#allocation4], 1
    %15 = vsyncpa %s14, 0
    loop: start=0, step=1, limit=4
    $region2: #{tpu_custom_call.1} parent=1 // loop_pre_header
      _
    $region3: #{tpu_custom_call.1} parent=1 // loop_header
      %s17 = sphi 0, %s21
      %p18 = scmp.ge.s32.totalorder %s17, 4
      %s27 = sphi 0, %s29
      %s30 = sphi 0, %s27
      %s31 = sphi 0, %s30
      %s47 = sphi 0, %s31
      %s51 = sphi 0, %s51
      %s53 = sphi 0, %s51
      %s54 = sphi 0, %s53
      %s68 = sphi 0, %s54
      %s72 = sphi 0, %s72
      %s74 = sphi 0, %s72
      %s75 = sphi 0, %s74
      %s89 = sphi 0, %s75
      %s93 = sphi 0, %s93
      %s95 = sphi 0, %s93
      %s96 = sphi 0, %s95
      %s110 = sphi 0, %s96
      %s114 = sphi 0, %s114
      %s116 = sphi 0, %s114
      %s117 = sphi 0, %s116
      %s131 = sphi 0, %s117
      %s135 = sphi 0, %s135
      %s137 = sphi 0, %s135
      %s138 = sphi 0, %s137
      %s152 = sphi 0, %s138
      %s156 = sphi 0, %s156
      %s158 = sphi 0, %s156
      %s159 = sphi 0, %s158
      %s173 = sphi 0, %s159
      %s179 = sphi 0, %s181
      %s182 = sphi 0, %s179
      %s183 = sphi 0, %s182
      %s199 = sphi 0, %s183
    $region4: #{tpu_custom_call.1} parent=1 // loop_header_branch
      %20 = sbr.rel (%p18) target = $region8
    $region5: #{tpu_custom_call.1} parent=1 // loop_body
      %s22 = ssub.s32 %s17, 1
      %s23 = ssub.s32 %s17, 2
      %s24 = sadd.s32 %s17, 1
      %s25 = ssub.s32 %s17, %s24
      %p26 = scmp.eq.s32.totalorder %s25, 0
      %s28 = sadd.s32 %s27, 1
      %s29 = scalar_select %p26, %s27, %s28
      %p32 = pneg %p26
      %p33 = scmp.eq.s32.totalorder %s17, 1
      %p34 = por %p32, %p33
      %p35 = scmp.ne.s32.totalorder %s27, %s30
      %p36 = scmp.eq.s32.totalorder %s17, 0
      %p37 = por %p35, %p36
      %p38 = scmp.ne.s32.totalorder %s27, %s30
      %p39 = scmp.eq.s32.totalorder %s22, 1
      %p40 = por %p38, %p39
      %p41 = scmp.ne.s32.totalorder %s30, %s31
      %p42 = scmp.eq.s32.totalorder %s22, 0
      %p43 = por %p41, %p42
      %p44 = scmp.ne.s32.totalorder %s30, %s31
      %p45 = scmp.eq.s32.totalorder %s23, 1
      %p46 = por %p44, %p45
      %p48 = scmp.ne.s32.totalorder %s31, %s47
      %p49 = scmp.eq.s32.totalorder %s23, 0
      %p50 = por %p48, %p49
      %s52 = sadd.s32 %s51, 1
      %p55 = scmp.eq.s32.totalorder %s17, 1
      %p56 = scmp.ne.s32.totalorder %s51, %s53
      %p57 = scmp.eq.s32.totalorder %s17, 0
      %p58 = por %p56, %p57
      %p59 = scmp.ne.s32.totalorder %s51, %s53
      %p60 = scmp.eq.s32.totalorder %s22, 1
      %p61 = por %p59, %p60
      %p62 = scmp.ne.s32.totalorder %s53, %s54
      %p63 = scmp.eq.s32.totalorder %s22, 0
      %p64 = por %p62, %p63
      %p65 = scmp.ne.s32.totalorder %s53, %s54
      %p66 = scmp.eq.s32.totalorder %s23, 1
      %p67 = por %p65, %p66
      %p69 = scmp.ne.s32.totalorder %s54, %s68
      %p70 = scmp.eq.s32.totalorder %s23, 0
      %p71 = por %p69, %p70
      %s73 = sadd.s32 %s72, 1
      %p76 = scmp.eq.s32.totalorder %s17, 1
      %p77 = scmp.ne.s32.totalorder %s72, %s74
      %p78 = scmp.eq.s32.totalorder %s17, 0
      %p79 = por %p77, %p78
      %p80 = scmp.ne.s32.totalorder %s72, %s74
      %p81 = scmp.eq.s32.totalorder %s22, 1
      %p82 = por %p80, %p81
      %p83 = scmp.ne.s32.totalorder %s74, %s75
      %p84 = scmp.eq.s32.totalorder %s22, 0
      %p85 = por %p83, %p84
      %p86 = scmp.ne.s32.totalorder %s74, %s75
      %p87 = scmp.eq.s32.totalorder %s23, 1
      %p88 = por %p86, %p87
      %p90 = scmp.ne.s32.totalorder %s75, %s89
      %p91 = scmp.eq.s32.totalorder %s23, 0
      %p92 = por %p90, %p91
      %s94 = sadd.s32 %s93, 1
      %p97 = scmp.eq.s32.totalorder %s17, 1
      %p98 = scmp.ne.s32.totalorder %s93, %s95
      %p99 = scmp.eq.s32.totalorder %s17, 0
      %p100 = por %p98, %p99
      %p101 = scmp.ne.s32.totalorder %s93, %s95
      %p102 = scmp.eq.s32.totalorder %s22, 1
      %p103 = por %p101, %p102
      %p104 = scmp.ne.s32.totalorder %s95, %s96
      %p105 = scmp.eq.s32.totalorder %s22, 0
      %p106 = por %p104, %p105
      %p107 = scmp.ne.s32.totalorder %s95, %s96
      %p108 = scmp.eq.s32.totalorder %s23, 1
      %p109 = por %p107, %p108
      %p111 = scmp.ne.s32.totalorder %s96, %s110
      %p112 = scmp.eq.s32.totalorder %s23, 0
      %p113 = por %p111, %p112
      %s115 = sadd.s32 %s114, 1
      %p118 = scmp.eq.s32.totalorder %s17, 1
      %p119 = scmp.ne.s32.totalorder %s114, %s116
      %p120 = scmp.eq.s32.totalorder %s17, 0
      %p121 = por %p119, %p120
      %p122 = scmp.ne.s32.totalorder %s114, %s116
      %p123 = scmp.eq.s32.totalorder %s22, 1
      %p124 = por %p122, %p123
      %p125 = scmp.ne.s32.totalorder %s116, %s117
      %p126 = scmp.eq.s32.totalorder %s22, 0
      %p127 = por %p125, %p126
      %p128 = scmp.ne.s32.totalorder %s116, %s117
      %p129 = scmp.eq.s32.totalorder %s23, 1
      %p130 = por %p128, %p129
      %p132 = scmp.ne.s32.totalorder %s117, %s131
      %p133 = scmp.eq.s32.totalorder %s23, 0
      %p134 = por %p132, %p133
      %s136 = sadd.s32 %s135, 1
      %p139 = scmp.eq.s32.totalorder %s17, 1
      %p140 = scmp.ne.s32.totalorder %s135, %s137
      %p141 = scmp.eq.s32.totalorder %s17, 0
      %p142 = por %p140, %p141
      %p143 = scmp.ne.s32.totalorder %s135, %s137
      %p144 = scmp.eq.s32.totalorder %s22, 1
      %p145 = por %p143, %p144
      %p146 = scmp.ne.s32.totalorder %s137, %s138
      %p147 = scmp.eq.s32.totalorder %s22, 0
      %p148 = por %p146, %p147
      %p149 = scmp.ne.s32.totalorder %s137, %s138
      %p150 = scmp.eq.s32.totalorder %s23, 1
      %p151 = por %p149, %p150
      %p153 = scmp.ne.s32.totalorder %s138, %s152
      %p154 = scmp.eq.s32.totalorder %s23, 0
      %p155 = por %p153, %p154
      %s157 = sadd.s32 %s156, 1
      %p160 = scmp.eq.s32.totalorder %s17, 1
      %p161 = scmp.ne.s32.totalorder %s156, %s158
      %p162 = scmp.eq.s32.totalorder %s17, 0
      %p163 = por %p161, %p162
      %p164 = scmp.ne.s32.totalorder %s156, %s158
      %p165 = scmp.eq.s32.totalorder %s22, 1
      %p166 = por %p164, %p165
      %p167 = scmp.ne.s32.totalorder %s158, %s159
      %p168 = scmp.eq.s32.totalorder %s22, 0
      %p169 = por %p167, %p168
      %p170 = scmp.ne.s32.totalorder %s158, %s159
      %p171 = scmp.eq.s32.totalorder %s23, 1
      %p172 = por %p170, %p171
      %p174 = scmp.ne.s32.totalorder %s159, %s173
      %p175 = scmp.eq.s32.totalorder %s23, 0
      %p176 = por %p174, %p175
      %s177 = ssub.s32 %s17, %s24
      %p178 = scmp.eq.s32.totalorder %s177, 0
      %s180 = sadd.s32 %s179, 1
      %s181 = scalar_select %p178, %s179, %s180
      %p184 = pneg %p178
      %p185 = scmp.eq.s32.totalorder %s17, 1
      %p186 = por %p184, %p185
      %p187 = scmp.ne.s32.totalorder %s179, %s182
      %p188 = scmp.eq.s32.totalorder %s17, 0
      %p189 = por %p187, %p188
      %p190 = scmp.ne.s32.totalorder %s179, %s182
      %p191 = scmp.eq.s32.totalorder %s22, 1
      %p192 = por %p190, %p191
      %p193 = scmp.ne.s32.totalorder %s182, %s183
      %p194 = scmp.eq.s32.totalorder %s22, 0
      %p195 = por %p193, %p194
      %p196 = scmp.ne.s32.totalorder %s182, %s183
      %p197 = scmp.eq.s32.totalorder %s23, 1
      %p198 = por %p196, %p197
      %p200 = scmp.ne.s32.totalorder %s183, %s199
      %p201 = scmp.eq.s32.totalorder %s23, 0
      %p202 = por %p200, %p201
      %p203 = scmp.le.s32.totalorder 1, %s17
      %p204 = scmp.lt.s32.totalorder %s17, 3
      %p205 = pnand %p203, %p204
      %p206 = pneg %p205
      // Predicated region
      $region9: #{tpu_custom_call.1} parent=5 // pred_check
        _
      $region10: #{tpu_custom_call.1} parent=5 // pred_check_branch
        %208 = sbr.rel (%p205) target = $region12
      $region11: #{tpu_custom_call.1} parent=5 // pred_region
        %s209 = ssub.s32 %s17, 1
        // Predicated region
        $region13: #{tpu_custom_call.1} parent=11 // pred_check
          %p210 = pneg %p64
        $region14: #{tpu_custom_call.1} parent=11 // pred_check_branch
          %212 = sbr.rel (%p210) target = $region16
        $region15: #{tpu_custom_call.1} parent=11 // pred_region
          _
        $region16: #{tpu_custom_call.1} parent=11 // pred_fallthru
          _
        // Predicated region
        $region17: #{tpu_custom_call.1} parent=11 // pred_check
          %p213 = pneg %p85
        $region18: #{tpu_custom_call.1} parent=11 // pred_check_branch
          %215 = sbr.rel (%p213) target = $region20
        $region19: #{tpu_custom_call.1} parent=11 // pred_region
          %s217 = ssub.s32 4096, 4096
          %218 = vsyncadd [#allocation3], %s217
          %s219 = sshll.u32 [#allocation2], 4
          %s220 = int_to_ptr.vmem [resolvable:$true] %s219
          %225 = dma.hbm_to_vmem [thread:$0]  %s2, 4096, %s220, [#allocation3], 128, 128, 8
        $region20: #{tpu_custom_call.1} parent=11 // pred_fallthru
          _
        // Predicated region
        $region21: #{tpu_custom_call.1} parent=11 // pred_check
          %p226 = pneg %p106
        $region22: #{tpu_custom_call.1} parent=11 // pred_check_branch
          %228 = sbr.rel (%p226) target = $region24
        $region23: #{tpu_custom_call.1} parent=11 // pred_region
          _
        $region24: #{tpu_custom_call.1} parent=11 // pred_fallthru
          _
        // Predicated region
        $region25: #{tpu_custom_call.1} parent=11 // pred_check
          %p229 = pneg %p127
        $region26: #{tpu_custom_call.1} parent=11 // pred_check_branch
          %231 = sbr.rel (%p229) target = $region28
        $region27: #{tpu_custom_call.1} parent=11 // pred_region
          _
        $region28: #{tpu_custom_call.1} parent=11 // pred_fallthru
          _
        // Predicated region
        $region29: #{tpu_custom_call.1} parent=11 // pred_check
          %p232 = pneg %p148
        $region30: #{tpu_custom_call.1} parent=11 // pred_check_branch
          %234 = sbr.rel (%p232) target = $region32
        $region31: #{tpu_custom_call.1} parent=11 // pred_region
          _
        $region32: #{tpu_custom_call.1} parent=11 // pred_fallthru
          _
        // Predicated region
        $region33: #{tpu_custom_call.1} parent=11 // pred_check
          %p235 = pneg %p169
        $region34: #{tpu_custom_call.1} parent=11 // pred_check_branch
          %237 = sbr.rel (%p235) target = $region36
        $region35: #{tpu_custom_call.1} parent=11 // pred_region
          _
        $region36: #{tpu_custom_call.1} parent=11 // pred_fallthru
          _
      $region12: #{tpu_custom_call.1} parent=5 // pred_fallthru
        _
      %p238 = scmp.lt.s32.totalorder %s17, 2
      // Predicated region
      $region37: #{tpu_custom_call.1} parent=5 // pred_check
        %p239 = pneg %p238
      $region38: #{tpu_custom_call.1} parent=5 // pred_check_branch
        %241 = sbr.rel (%p239) target = $region40
      $region39: #{tpu_custom_call.1} parent=5 // pred_region
        // Predicated region
        $region41: #{tpu_custom_call.1} parent=39 // pred_check
          %p242 = pneg %p37
        $region42: #{tpu_custom_call.1} parent=39 // pred_check_branch
          %244 = sbr.rel (%p242) target = $region44
        $region43: #{tpu_custom_call.1} parent=39 // pred_region
          %p245 = scmp.lt.s32.totalorder %s17, 1
          %s246 = scalar_select %p245, %s17, 1
          %s247 = smul.addr %s246, 2
          %s248 = smul.addr %s247, 8
          %s249 = scalar_lea.vmem %s0, %s248
        $region44: #{tpu_custom_call.1} parent=39 // pred_fallthru
          _
      $region40: #{tpu_custom_call.1} parent=5 // pred_fallthru
        _
      %p250 = scmp.le.s32.totalorder 1, %s17
      %p251 = scmp.lt.s32.totalorder %s17, 3
      %p252 = pnand %p250, %p251
      %p253 = pneg %p252
      // Predicated region
      $region45: #{tpu_custom_call.1} parent=5 // pred_check
        _
      $region46: #{tpu_custom_call.1} parent=5 // pred_check_branch
        %255 = sbr.rel (%p252) target = $region48
      $region47: #{tpu_custom_call.1} parent=5 // pred_region
        %s256 = ssub.s32 %s17, 1
        // Predicated region
        $region49: #{tpu_custom_call.1} parent=47 // pred_check
          %p257 = pneg %p85
        $region50: #{tpu_custom_call.1} parent=47 // pred_check_branch
          %259 = sbr.rel (%p257) target = $region52
        $region51: #{tpu_custom_call.1} parent=47 // pred_region
          %260 = dma.done [#allocation3], 4096
        $region52: #{tpu_custom_call.1} parent=47 // pred_fallthru
          _
        %p261 = scmp.lt.s32.totalorder %s22, 1
        %s262 = scalar_select %p261, %s22, 1
        %s263 = smul.addr %s262, 2
        %s264 = smul.addr %s263, 8
        %s265 = scalar_lea.vmem %s0, %s264
        %p266 = pneg %p43
        %p267 = pneg %p40
        %p268 = pneg %p64
        %p269 = pneg %p61
        %p270 = pneg %p85
        %p271 = pneg %p82
        %p272 = pneg %p106
        %p273 = pneg %p103
        %p274 = pneg %p127
        %p275 = pneg %p124
        %p276 = pneg %p148
        %p277 = pneg %p145
        %p278 = pneg %p169
        %p279 = pneg %p166
        %p280 = pneg %p195
        %p281 = pneg %p192
        %s282 = sand.u32 %s182, 1
        %s283 = scalar_lea.sflag [#allocation4], %s282
        %s284 = sand.u32 %s182, 1
        %s285 = smul.addr %s284, 16
        %s286 = scalar_lea.vmem [#allocation5], %s285
        %p287 = scmp.lt.s32.totalorder %s22, 1
        %s288 = scalar_select %p287, %s22, 1
        %s289 = smul.addr %s288, 2
        %s290 = smul.addr %s289, 8
        %s291 = scalar_lea.vmem %s0, %s290
        %v292 = vld [vmem:[%s291] sm:$0xff]
        %v293 = vld [vmem:[%s291 + $0x8] sm:$0xff]
        %v294 = vld [vmem:[%s5] sm:$0x1]
        %v295 = vld [vmem:[%s5 + $0x1] sm:$0x1]
        %v296 = vld [vmem:[%s5 + $0x2] sm:$0x1]
        %v297 = vld [vmem:[%s6] sm:$0x1]
        %v298 = vld [vmem:[%s6 + $0x1] sm:$0x1]
        %v299 = vld [vmem:[%s6 + $0x2] sm:$0x1]
        %v300 = vld [vmem:[%s1] sm:$0xff]
        %v301 = vld [vmem:[%s1 + $0x8] sm:$0xff]
        %v302 = vld [vmem:[%s1 + $0x10] sm:$0xff]
        %v303 = vld [vmem:[%s1 + $0x18] sm:$0xff]
        %v304 = vlaneseq
        %v305 = vshrl.u32 %v304, 7
        %v306 = vsub.s32 0, %v305
        %v307 = vrot.slane %v294, %v306
        %vm308 = vcmask 261120
        %v310 = vsel %vm308, %v292, 0
        %v313 = vsel %vm308, %v293, 0
        %315 = vmatprep.subr.mxu0 0.0
        %316 = vmatpush1.msra.mxu0 %v300
        %317 = vmatprep.subr.mxu0 0.0
        %318 = vmatpush1.msra.mxu0 %v301
        %319 = vmatprep.subr.mxu0 0.0
        %320 = vmatpush1.msra.mxu0 %v302
        %321 = vmatprep.subr.mxu0 0.0
        %322 = vmatpush1.msra.mxu0 %v303
        %323 = vmatprep.subr.mxu0 0.0
        %324 = vmatpush1.msra.mxu0 0.0
        %325 = vmatprep.subr.mxu0 0.0
        %326 = vmatpush1.msra.mxu0 0.0
        %327 = vmatprep.subr.mxu0 0.0
        %328 = vmatpush1.msra.mxu0 0.0
        %329 = vmatprep.subr.mxu0 0.0
        %330 = vmatpush1.msra.mxu0 0.0
        %331 = vmatprep.subr.mxu0 0.0
        %332 = vmatpush1.msra.mxu0 0.0
        %333 = vmatprep.subr.mxu0 0.0
        %334 = vmatpush1.msra.mxu0 0.0
        %335 = vmatprep.subr.mxu0 0.0
        %336 = vmatpush1.msra.mxu0 0.0
        %337 = vmatprep.subr.mxu0 0.0
        %338 = vmatpush1.msra.mxu0 0.0
        %339 = vmatprep.subr.mxu0 0.0
        %340 = vmatpush1.msra.mxu0 0.0
        %341 = vmatprep.subr.mxu0 0.0
        %342 = vmatpush1.msra.mxu0 0.0
        %343 = vmatprep.subr.mxu0 0.0
        %344 = vmatpush1.msra.mxu0 0.0
        %345 = vmatprep.subr.mxu0 0.0
        %346 = vmatpush1.msra.mxu0 0.0
        %347 = vmatprep.subr.mxu0 0.0
        %348 = vmatpush1.msra.mxu0 0.0
        %349 = vmatprep.subr.mxu0 0.0
        %350 = vmatpush1.msra.mxu0 0.0
        %351 = vmatprep.subr.mxu0 0.0
        %352 = vmatpush1.msra.mxu0 0.0
        %353 = vmatprep.subr.mxu0 0.0
        %354 = vmatpush1.msra.mxu0 0.0
        %355 = vmatprep.subr.mxu0 0.0
        %356 = vmatpush1.msra.mxu0 0.0
        %357 = vmatprep.subr.mxu0 0.0
        %358 = vmatpush1.msra.mxu0 0.0
        %359 = vmatprep.subr.mxu0 0.0
        %360 = vmatpush1.msra.mxu0 0.0
        %361 = vmatprep.subr.mxu0 0.0
        %362 = vmatpush1.msra.mxu0 0.0
        %363 = vmatprep.subr.mxu0 0.0
        %364 = vmatpush1.msra.mxu0 0.0
        %365 = vmatprep.subr.mxu0 0.0
        %366 = vmatpush1.msra.mxu0 0.0
        %367 = vmatprep.subr.mxu0 0.0
        %368 = vmatpush1.msra.mxu0 0.0
        %369 = vmatprep.subr.mxu0 0.0
        %370 = vmatpush1.msra.mxu0 0.0
        %371 = vmatprep.subr.mxu0 0.0
        %372 = vmatpush1.msra.mxu0 0.0
        %373 = vmatprep.subr.mxu0 0.0
        %374 = vmatpush1.msra.mxu0 0.0
        %375 = vmatprep.subr.mxu0 0.0
        %376 = vmatpush1.msra.mxu0 0.0
        %377 = vmatprep.subr.mxu0 0.0
        %378 = vmatpush1.msra.mxu0 0.0
        %379 = vmatprep.mubr.f32.mxu0 0.0
        %380 = vmatmul.mubr.f32.gmra.mrb[0].mxu0 %v310
        %v381 = vpop.f32.mrb[0].mxu0
        %v382 = vadd.f32 %v307, %v381
        %v383 = vpop.f32.mrb[0].mxu0
        %384 = vmatprep.mubr.f32.mxu0 0.0
        %385 = vmatmul.mubr.f32.gmra.mrb[0].mxu0 %v313
        %v386 = vpop.f32.mrb[0].mxu0
        %v387 = vadd.f32 %v307, %v386
        %v388 = vpop.f32.mrb[0].mxu0
        %389 = vdwg.mxu0
        %v390 = vmul.f32 %v382, %v382
        %v391 = vmul.f32 %v387, %v387
        %vm392 = vcmask 130048
        %v393 = vsel %vm392, %v390, 0.0
        %394 = vadd.xlane.f32.xlu0 %v393
        %v395 = vpop.xlane.xlu0 %394
        %v396 = vsel %vm392, %v391, 0.0
        %397 = vadd.xlane.f32.xlu0 %v396
        %v398 = vpop.xlane.xlu0 %397
        %v399 = vrcp.pop 16.0
        %v400 = vmul.f32 %v395, %v399
        %v401 = vmul.f32 %v398, %v399
        %v402 = vadd.f32 %v400, 1e-06
        %v403 = vadd.f32 %v401, 1e-06
        %v404 = vrsqrt.pop %v402
        %v405 = vrsqrt.pop %v403
        %v406 = vmul.f32 %v382, %v404
        %v407 = vmul.f32 %v387, %v405
        %v408 = vlaneseq
        %v409 = vshrl.u32 %v408, 7
        %v410 = vsub.s32 0, %v409
        %v411 = vrot.slane %v295, %v410
        %v412 = vmul.f32 %v406, %v411
        %v413 = vmul.f32 %v407, %v411
        %vm414 = vcmp.ge.f32.partialorder %v412, 0.0
        %vm415 = vcmp.ge.f32.partialorder %v413, 0.0
        %v416 = vlaneseq
        %v417 = vshrl.u32 %v416, 7
        %v418 = vsub.s32 0, %v417
        %v419 = vrot.slane %v296, %v418
        %v420 = vmul.f32 %v419, %v412
        %v421 = vmul.f32 %v419, %v413
        %v422 = vsel %vm414, %v412, %v420
        %v423 = vsel %vm415, %v413, %v421
        %v424 = vld [vmem:[#allocation2] sm:$0xff]
        %v425 = vld [vmem:[#allocation2 + $0x8] sm:$0xff]
        %s426 = scalar_lea.vmem [#allocation2], 16
        %v427 = vld [vmem:[%s426] sm:$0xff]
        %v428 = vld [vmem:[%s426 + $0x8] sm:$0xff]
        %v429 = vld [vmem:[%s3] sm:$0x1]
        %v430 = vlaneseq
        %v431 = vshrl.u32 %v430, 7
        %v432 = vsub.s32 0, %v431
        %v433 = vrot.slane %v429, %v432
        %v435 = vsel %vm392, %v422, 0
        %v438 = vsel %vm392, %v423, 0
        %440 = vmatprep.subr.mxu0 0.0
        %441 = vmatpush1.msra.mxu0 %v424
        %442 = vmatprep.subr.mxu0 0.0
        %443 = vmatpush1.msra.mxu0 %v425
        %444 = vmatprep.subr.mxu0 0.0
        %445 = vmatpush1.msra.mxu0 0.0
        %446 = vmatprep.subr.mxu0 0.0
        %447 = vmatpush1.msra.mxu0 0.0
        %448 = vmatprep.subr.mxu0 0.0
        %449 = vmatpush1.msra.mxu0 0.0
        %450 = vmatprep.subr.mxu0 0.0
        %451 = vmatpush1.msra.mxu0 0.0
        %452 = vmatprep.subr.mxu0 0.0
        %453 = vmatpush1.msra.mxu0 0.0
        %454 = vmatprep.subr.mxu0 0.0
        %455 = vmatpush1.msra.mxu0 0.0
        %456 = vmatprep.subr.mxu0 0.0
        %457 = vmatpush1.msra.mxu0 0.0
        %458 = vmatprep.subr.mxu0 0.0
        %459 = vmatpush1.msra.mxu0 0.0
        %460 = vmatprep.subr.mxu0 0.0
        %461 = vmatpush1.msra.mxu0 0.0
        %462 = vmatprep.subr.mxu0 0.0
        %463 = vmatpush1.msra.mxu0 0.0
        %464 = vmatprep.subr.mxu0 0.0
        %465 = vmatpush1.msra.mxu0 0.0
        %466 = vmatprep.subr.mxu0 0.0
        %467 = vmatpush1.msra.mxu0 0.0
        %468 = vmatprep.subr.mxu0 0.0
        %469 = vmatpush1.msra.mxu0 0.0
        %470 = vmatprep.subr.mxu0 0.0
        %471 = vmatpush1.msra.mxu0 0.0
        %472 = vmatprep.subr.mxu0 0.0
        %473 = vmatpush1.msra.mxu0 0.0
        %474 = vmatprep.subr.mxu0 0.0
        %475 = vmatpush1.msra.mxu0 0.0
        %476 = vmatprep.subr.mxu0 0.0
        %477 = vmatpush1.msra.mxu0 0.0
        %478 = vmatprep.subr.mxu0 0.0
        %479 = vmatpush1.msra.mxu0 0.0
        %480 = vmatprep.subr.mxu0 0.0
        %481 = vmatpush1.msra.mxu0 0.0
        %482 = vmatprep.subr.mxu0 0.0
        %483 = vmatpush1.msra.mxu0 0.0
        %484 = vmatprep.subr.mxu0 0.0
        %485 = vmatpush1.msra.mxu0 0.0
        %486 = vmatprep.subr.mxu0 0.0
        %487 = vmatpush1.msra.mxu0 0.0
        %488 = vmatprep.subr.mxu0 0.0
        %489 = vmatpush1.msra.mxu0 0.0
        %490 = vmatprep.subr.mxu0 0.0
        %491 = vmatpush1.msra.mxu0 0.0
        %492 = vmatprep.subr.mxu0 0.0
        %493 = vmatpush1.msra.mxu0 0.0
        %494 = vmatprep.subr.mxu0 0.0
        %495 = vmatpush1.msra.mxu0 0.0
        %496 = vmatprep.subr.mxu0 0.0
        %497 = vmatpush1.msra.mxu0 0.0
        %498 = vmatprep.subr.mxu0 0.0
        %499 = vmatpush1.msra.mxu0 0.0
        %500 = vmatprep.subr.mxu0 0.0
        %501 = vmatpush1.msra.mxu0 0.0
        %502 = vmatprep.subr.mxu0 0.0
        %503 = vmatpush1.msra.mxu0 0.0
        %504 = vmatprep.mubr.f32.mxu0 0.0
        %505 = vmatmul.mubr.f32.gmra.mrb[0].mxu0 %v435
        %v506 = vpop.f32.mrb[0].mxu0
        %v507 = vadd.f32 %v433, %v506
        %v508 = vpop.f32.mrb[0].mxu0
        %509 = vmatprep.mubr.f32.mxu0 0.0
        %510 = vmatmul.mubr.f32.gmra.mrb[0].mxu0 %v438
        %v511 = vpop.f32.mrb[0].mxu0
        %v512 = vadd.f32 %v433, %v511
        %v513 = vpop.f32.mrb[0].mxu0
        %514 = vdwg.mxu0
        %v516 = vsel %vm392, 0.0, 0
        %518 = vmatprep.subr.mxu0 0.0
        %519 = vmatpush1.msra.mxu0 %v427
        %520 = vmatprep.subr.mxu0 0.0
        %521 = vmatpush1.msra.mxu0 %v428
        %522 = vmatprep.subr.mxu0 0.0
        %523 = vmatpush1.msra.mxu0 0.0
        %524 = vmatprep.subr.mxu0 0.0
        %525 = vmatpush1.msra.mxu0 0.0
        %526 = vmatprep.subr.mxu0 0.0
        %527 = vmatpush1.msra.mxu0 0.0
        %528 = vmatprep.subr.mxu0 0.0
        %529 = vmatpush1.msra.mxu0 0.0
        %530 = vmatprep.subr.mxu0 0.0
        %531 = vmatpush1.msra.mxu0 0.0
        %532 = vmatprep.subr.mxu0 0.0
        %533 = vmatpush1.msra.mxu0 0.0
        %534 = vmatprep.subr.mxu0 0.0
        %535 = vmatpush1.msra.mxu0 0.0
        %536 = vmatprep.subr.mxu0 0.0
        %537 = vmatpush1.msra.mxu0 0.0
        %538 = vmatprep.subr.mxu0 0.0
        %539 = vmatpush1.msra.mxu0 0.0
        %540 = vmatprep.subr.mxu0 0.0
        %541 = vmatpush1.msra.mxu0 0.0
        %542 = vmatprep.subr.mxu0 0.0
        %543 = vmatpush1.msra.mxu0 0.0
        %544 = vmatprep.subr.mxu0 0.0
        %545 = vmatpush1.msra.mxu0 0.0
        %546 = vmatprep.subr.mxu0 0.0
        %547 = vmatpush1.msra.mxu0 0.0
        %548 = vmatprep.subr.mxu0 0.0
        %549 = vmatpush1.msra.mxu0 0.0
        %550 = vmatprep.subr.mxu0 0.0
        %551 = vmatpush1.msra.mxu0 0.0
        %552 = vmatprep.subr.mxu0 0.0
        %553 = vmatpush1.msra.mxu0 0.0
        %554 = vmatprep.subr.mxu0 0.0
        %555 = vmatpush1.msra.mxu0 0.0
        %556 = vmatprep.subr.mxu0 0.0
        %557 = vmatpush1.msra.mxu0 0.0
        %558 = vmatprep.subr.mxu0 0.0
        %559 = vmatpush1.msra.mxu0 0.0
        %560 = vmatprep.subr.mxu0 0.0
        %561 = vmatpush1.msra.mxu0 0.0
        %562 = vmatprep.subr.mxu0 0.0
        %563 = vmatpush1.msra.mxu0 0.0
        %564 = vmatprep.subr.mxu0 0.0
        %565 = vmatpush1.msra.mxu0 0.0
        %566 = vmatprep.subr.mxu0 0.0
        %567 = vmatpush1.msra.mxu0 0.0
        %568 = vmatprep.subr.mxu0 0.0
        %569 = vmatpush1.msra.mxu0 0.0
        %570 = vmatprep.subr.mxu0 0.0
        %571 = vmatpush1.msra.mxu0 0.0
        %572 = vmatprep.subr.mxu0 0.0
        %573 = vmatpush1.msra.mxu0 0.0
        %574 = vmatprep.subr.mxu0 0.0
        %575 = vmatpush1.msra.mxu0 0.0
        %576 = vmatprep.subr.mxu0 0.0
        %577 = vmatpush1.msra.mxu0 0.0
        %578 = vmatprep.subr.mxu0 0.0
        %579 = vmatpush1.msra.mxu0 0.0
        %580 = vmatprep.subr.mxu0 0.0
        %581 = vmatpush1.msra.mxu0 0.0
        %582 = vmatprep.mubr.f32.mxu0 0.0
        %583 = vmatmul.mubr.f32.gmra.mrb[0].mxu0 %v516
        %v584 = vpop.f32.mrb[0].mxu0
        %v585 = vadd.f32 0.0, %v584
        %v586 = vpop.f32.mrb[0].mxu0
        %587 = vdwg.mxu0
        %v588 = vadd.f32 %v507, %v585
        %v589 = vxor.u32 %v588, 2147483648
        %v590 = vmul.f32 %v589, 1.442695
        %v591 = vpow.pop %v590
        %v592 = vadd.f32 %v591, 1.0
        %v593 = vrcp.pop %v592
        %v594 = vmul.f32 1.0, %v593
        %596 = vrot.lane.b32.xlu0 %v433, 112
        %v597 = vpop.permute.xlu0 %596
        %v599 = vadd.f32 %v585, %v597
        %601 = vrot.lane.b32.xlu0 %v599, 96
        %v602 = vpop.permute.xlu0 %601
        %v604 = vmul.f32 %v594, %v602
        %606 = vrot.lane.b32.xlu0 %v604, 32
        %v607 = vpop.permute.xlu0 %606
        %v609 = vadd.f32 %v507, %v607
        %v610 = vtanh.pop %v609
        %v611 = vsub.f32 0.0, %v610
        %613 = vrot.lane.b32.xlu0 %v611, 112
        %v614 = vpop.permute.xlu0 %613
        %v616 = vmul.f32 %v594, %v614
        %618 = vrot.lane.b32.xlu0 %v616, 16
        %v619 = vpop.permute.xlu0 %618
        %v621 = vadd.f32 %v610, %v619
        %623 = vrot.lane.b32.xlu0 %v621, 96
        %v624 = vpop.permute.xlu0 %623
        %v625 = vsel %vm392, %v624, 0
        %627 = vmatprep.subr.mxu0 0.0
        %628 = vmatpush1.msra.mxu0 %v427
        %629 = vmatprep.subr.mxu0 0.0
        %630 = vmatpush1.msra.mxu0 %v428
        %631 = vmatprep.subr.mxu0 0.0
        %632 = vmatpush1.msra.mxu0 0.0
        %633 = vmatprep.subr.mxu0 0.0
        %634 = vmatpush1.msra.mxu0 0.0
        %635 = vmatprep.subr.mxu0 0.0
        %636 = vmatpush1.msra.mxu0 0.0
        %637 = vmatprep.subr.mxu0 0.0
        %638 = vmatpush1.msra.mxu0 0.0
        %639 = vmatprep.subr.mxu0 0.0
        %640 = vmatpush1.msra.mxu0 0.0
        %641 = vmatprep.subr.mxu0 0.0
        %642 = vmatpush1.msra.mxu0 0.0
        %643 = vmatprep.subr.mxu0 0.0
        %644 = vmatpush1.msra.mxu0 0.0
        %645 = vmatprep.subr.mxu0 0.0
        %646 = vmatpush1.msra.mxu0 0.0
        %647 = vmatprep.subr.mxu0 0.0
        %648 = vmatpush1.msra.mxu0 0.0
        %649 = vmatprep.subr.mxu0 0.0
        %650 = vmatpush1.msra.mxu0 0.0
        %651 = vmatprep.subr.mxu0 0.0
        %652 = vmatpush1.msra.mxu0 0.0
        %653 = vmatprep.subr.mxu0 0.0
        %654 = vmatpush1.msra.mxu0 0.0
        %655 = vmatprep.subr.mxu0 0.0
        %656 = vmatpush1.msra.mxu0 0.0
        %657 = vmatprep.subr.mxu0 0.0
        %658 = vmatpush1.msra.mxu0 0.0
        %659 = vmatprep.subr.mxu0 0.0
        %660 = vmatpush1.msra.mxu0 0.0
        %661 = vmatprep.subr.mxu0 0.0
        %662 = vmatpush1.msra.mxu0 0.0
        %663 = vmatprep.subr.mxu0 0.0
        %664 = vmatpush1.msra.mxu0 0.0
        %665 = vmatprep.subr.mxu0 0.0
        %666 = vmatpush1.msra.mxu0 0.0
        %667 = vmatprep.subr.mxu0 0.0
        %668 = vmatpush1.msra.mxu0 0.0
        %669 = vmatprep.subr.mxu0 0.0
        %670 = vmatpush1.msra.mxu0 0.0
        %671 = vmatprep.subr.mxu0 0.0
        %672 = vmatpush1.msra.mxu0 0.0
        %673 = vmatprep.subr.mxu0 0.0
        %674 = vmatpush1.msra.mxu0 0.0
        %675 = vmatprep.subr.mxu0 0.0
        %676 = vmatpush1.msra.mxu0 0.0
        %677 = vmatprep.subr.mxu0 0.0
        %678 = vmatpush1.msra.mxu0 0.0
        %679 = vmatprep.subr.mxu0 0.0
        %680 = vmatpush1.msra.mxu0 0.0
        %681 = vmatprep.subr.mxu0 0.0
        %682 = vmatpush1.msra.mxu0 0.0
        %683 = vmatprep.subr.mxu0 0.0
        %684 = vmatpush1.msra.mxu0 0.0
        %685 = vmatprep.subr.mxu0 0.0
        %686 = vmatpush1.msra.mxu0 0.0
        %687 = vmatprep.subr.mxu0 0.0
        %688 = vmatpush1.msra.mxu0 0.0
        %689 = vmatprep.subr.mxu0 0.0
        %690 = vmatpush1.msra.mxu0 0.0
        %691 = vmatprep.mubr.f32.mxu0 0.0
        %692 = vmatmul.mubr.f32.gmra.mrb[0].mxu0 %v625
        %v693 = vpop.f32.mrb[0].mxu0
        %v694 = vadd.f32 0.0, %v693
        %v695 = vpop.f32.mrb[0].mxu0
        %696 = vdwg.mxu0
        %v698 = vrot.slane %v694, 6
        %v700 = vadd.f32 %v507, %v698
        %v701 = vxor.u32 %v700, 2147483648
        %v702 = vmul.f32 %v701, 1.442695
        %v703 = vpow.pop %v702
        %v704 = vadd.f32 %v703, 1.0
        %v705 = vrcp.pop %v704
        %v706 = vmul.f32 1.0, %v705
        %v707 = vadd.f32 %v694, %v597
        %v709 = vrot.slane %v707, 6
        %710 = vrot.lane.b32.xlu0 %v709, 96
        %v711 = vpop.permute.xlu0 %710
        %v713 = vmul.f32 %v706, %v711
        %715 = vrot.lane.b32.xlu0 %v713, 32
        %v716 = vpop.permute.xlu0 %715
        %v718 = vadd.f32 %v507, %v716
        %v719 = vtanh.pop %v718
        %v721 = vrot.slane %v719, 2
        %v723 = vsub.f32 %v621, %v721
        %v725 = vrot.slane %v723, 6
        %726 = vrot.lane.b32.xlu0 %v725, 112
        %v727 = vpop.permute.xlu0 %726
        %v729 = vmul.f32 %v706, %v727
        %731 = vrot.lane.b32.xlu0 %v729, 16
        %v732 = vpop.permute.xlu0 %731
        %v734 = vadd.f32 %v719, %v732
        %v736 = vrot.slane %v734, 2
        %737 = vrot.lane.b32.xlu0 %v736, 96
        %v738 = vpop.permute.xlu0 %737
        %v739 = vsel %vm392, %v738, 0
        %741 = vmatprep.subr.mxu0 0.0
        %742 = vmatpush1.msra.mxu0 %v427
        %743 = vmatprep.subr.mxu0 0.0
        %744 = vmatpush1.msra.mxu0 %v428
        %745 = vmatprep.subr.mxu0 0.0
        %746 = vmatpush1.msra.mxu0 0.0
        %747 = vmatprep.subr.mxu0 0.0
        %748 = vmatpush1.msra.mxu0 0.0
        %749 = vmatprep.subr.mxu0 0.0
        %750 = vmatpush1.msra.mxu0 0.0
        %751 = vmatprep.subr.mxu0 0.0
        %752 = vmatpush1.msra.mxu0 0.0
        %753 = vmatprep.subr.mxu0 0.0
        %754 = vmatpush1.msra.mxu0 0.0
        %755 = vmatprep.subr.mxu0 0.0
        %756 = vmatpush1.msra.mxu0 0.0
        %757 = vmatprep.subr.mxu0 0.0
        %758 = vmatpush1.msra.mxu0 0.0
        %759 = vmatprep.subr.mxu0 0.0
        %760 = vmatpush1.msra.mxu0 0.0
        %761 = vmatprep.subr.mxu0 0.0
        %762 = vmatpush1.msra.mxu0 0.0
        %763 = vmatprep.subr.mxu0 0.0
        %764 = vmatpush1.msra.mxu0 0.0
        %765 = vmatprep.subr.mxu0 0.0
        %766 = vmatpush1.msra.mxu0 0.0
        %767 = vmatprep.subr.mxu0 0.0
        %768 = vmatpush1.msra.mxu0 0.0
        %769 = vmatprep.subr.mxu0 0.0
        %770 = vmatpush1.msra.mxu0 0.0
        %771 = vmatprep.subr.mxu0 0.0
        %772 = vmatpush1.msra.mxu0 0.0
        %773 = vmatprep.subr.mxu0 0.0
        %774 = vmatpush1.msra.mxu0 0.0
        %775 = vmatprep.subr.mxu0 0.0
        %776 = vmatpush1.msra.mxu0 0.0
        %777 = vmatprep.subr.mxu0 0.0
        %778 = vmatpush1.msra.mxu0 0.0
        %779 = vmatprep.subr.mxu0 0.0
        %780 = vmatpush1.msra.mxu0 0.0
        %781 = vmatprep.subr.mxu0 0.0
        %782 = vmatpush1.msra.mxu0 0.0
        %783 = vmatprep.subr.mxu0 0.0
        %784 = vmatpush1.msra.mxu0 0.0
        %785 = vmatprep.subr.mxu0 0.0
        %786 = vmatpush1.msra.mxu0 0.0
        %787 = vmatprep.subr.mxu0 0.0
        %788 = vmatpush1.msra.mxu0 0.0
        %789 = vmatprep.subr.mxu0 0.0
        %790 = vmatpush1.msra.mxu0 0.0
        %791 = vmatprep.subr.mxu0 0.0
        %792 = vmatpush1.msra.mxu0 0.0
        %793 = vmatprep.subr.mxu0 0.0
        %794 = vmatpush1.msra.mxu0 0.0
        %795 = vmatprep.subr.mxu0 0.0
        %796 = vmatpush1.msra.mxu0 0.0
        %797 = vmatprep.subr.mxu0 0.0
        %798 = vmatpush1.msra.mxu0 0.0
        %799 = vmatprep.subr.mxu0 0.0
        %800 = vmatpush1.msra.mxu0 0.0
        %801 = vmatprep.subr.mxu0 0.0
        %802 = vmatpush1.msra.mxu0 0.0
        %803 = vmatprep.subr.mxu0 0.0
        %804 = vmatpush1.msra.mxu0 0.0
        %805 = vmatprep.mubr.f32.mxu0 0.0
        %806 = vmatmul.mubr.f32.gmra.mrb[0].mxu0 %v739
        %v807 = vpop.f32.mrb[0].mxu0
        %v808 = vadd.f32 0.0, %v807
        %v809 = vpop.f32.mrb[0].mxu0
        %810 = vdwg.mxu0
        %v812 = vrot.slane %v808, 4
        %v814 = vadd.f32 %v507, %v812
        %v815 = vxor.u32 %v814, 2147483648
        %v816 = vmul.f32 %v815, 1.442695
        %v817 = vpow.pop %v816
        %v818 = vadd.f32 %v817, 1.0
        %v819 = vrcp.pop %v818
        %v820 = vmul.f32 1.0, %v819
        %v821 = vadd.f32 %v808, %v597
        %v823 = vrot.slane %v821, 4
        %824 = vrot.lane.b32.xlu0 %v823, 96
        %v825 = vpop.permute.xlu0 %824
        %v827 = vmul.f32 %v820, %v825
        %829 = vrot.lane.b32.xlu0 %v827, 32
        %v830 = vpop.permute.xlu0 %829
        %v832 = vadd.f32 %v507, %v830
        %v833 = vtanh.pop %v832
        %v835 = vrot.slane %v833, 2
        %v837 = vsub.f32 %v734, %v835
        %v839 = vrot.slane %v837, 6
        %840 = vrot.lane.b32.xlu0 %v839, 112
        %v841 = vpop.permute.xlu0 %840
        %v843 = vmul.f32 %v820, %v841
        %845 = vrot.lane.b32.xlu0 %v843, 16
        %v846 = vpop.permute.xlu0 %845
        %v848 = vadd.f32 %v833, %v846
        %v850 = vrot.slane %v848, 4
        %851 = vrot.lane.b32.xlu0 %v850, 96
        %v852 = vpop.permute.xlu0 %851
        %v853 = vsel %vm392, %v852, 0
        %855 = vmatprep.subr.mxu0 0.0
        %856 = vmatpush1.msra.mxu0 %v427
        %857 = vmatprep.subr.mxu0 0.0
        %858 = vmatpush1.msra.mxu0 %v428
        %859 = vmatprep.subr.mxu0 0.0
        %860 = vmatpush1.msra.mxu0 0.0
        %861 = vmatprep.subr.mxu0 0.0
        %862 = vmatpush1.msra.mxu0 0.0
        %863 = vmatprep.subr.mxu0 0.0
        %864 = vmatpush1.msra.mxu0 0.0
        %865 = vmatprep.subr.mxu0 0.0
        %866 = vmatpush1.msra.mxu0 0.0
        %867 = vmatprep.subr.mxu0 0.0
        %868 = vmatpush1.msra.mxu0 0.0
        %869 = vmatprep.subr.mxu0 0.0
        %870 = vmatpush1.msra.mxu0 0.0
        %871 = vmatprep.subr.mxu0 0.0
        %872 = vmatpush1.msra.mxu0 0.0
        %873 = vmatprep.subr.mxu0 0.0
        %874 = vmatpush1.msra.mxu0 0.0
        %875 = vmatprep.subr.mxu0 0.0
        %876 = vmatpush1.msra.mxu0 0.0
        %877 = vmatprep.subr.mxu0 0.0
        %878 = vmatpush1.msra.mxu0 0.0
        %879 = vmatprep.subr.mxu0 0.0
        %880 = vmatpush1.msra.mxu0 0.0
        %881 = vmatprep.subr.mxu0 0.0
        %882 = vmatpush1.msra.mxu0 0.0
        %883 = vmatprep.subr.mxu0 0.0
        %884 = vmatpush1.msra.mxu0 0.0
        %885 = vmatprep.subr.mxu0 0.0
        %886 = vmatpush1.msra.mxu0 0.0
        %887 = vmatprep.subr.mxu0 0.0
        %888 = vmatpush1.msra.mxu0 0.0
        %889 = vmatprep.subr.mxu0 0.0
        %890 = vmatpush1.msra.mxu0 0.0
        %891 = vmatprep.subr.mxu0 0.0
        %892 = vmatpush1.msra.mxu0 0.0
        %893 = vmatprep.subr.mxu0 0.0
        %894 = vmatpush1.msra.mxu0 0.0
        %895 = vmatprep.subr.mxu0 0.0
        %896 = vmatpush1.msra.mxu0 0.0
        %897 = vmatprep.subr.mxu0 0.0
        %898 = vmatpush1.msra.mxu0 0.0
        %899 = vmatprep.subr.mxu0 0.0
        %900 = vmatpush1.msra.mxu0 0.0
        %901 = vmatprep.subr.mxu0 0.0
        %902 = vmatpush1.msra.mxu0 0.0
        %903 = vmatprep.subr.mxu0 0.0
        %904 = vmatpush1.msra.mxu0 0.0
        %905 = vmatprep.subr.mxu0 0.0
        %906 = vmatpush1.msra.mxu0 0.0
        %907 = vmatprep.subr.mxu0 0.0
        %908 = vmatpush1.msra.mxu0 0.0
        %909 = vmatprep.subr.mxu0 0.0
        %910 = vmatpush1.msra.mxu0 0.0
        %911 = vmatprep.subr.mxu0 0.0
        %912 = vmatpush1.msra.mxu0 0.0
        %913 = vmatprep.subr.mxu0 0.0
        %914 = vmatpush1.msra.mxu0 0.0
        %915 = vmatprep.subr.mxu0 0.0
        %916 = vmatpush1.msra.mxu0 0.0
        %917 = vmatprep.subr.mxu0 0.0
        %918 = vmatpush1.msra.mxu0 0.0
        %919 = vmatprep.mubr.f32.mxu0 0.0
        %920 = vmatmul.mubr.f32.gmra.mrb[0].mxu0 %v853
        %v921 = vpop.f32.mrb[0].mxu0
        %v922 = vadd.f32 0.0, %v921
        %v923 = vpop.f32.mrb[0].mxu0
        %924 = vdwg.mxu0
        %v926 = vrot.slane %v922, 2
        %v928 = vadd.f32 %v507, %v926
        %v929 = vxor.u32 %v928, 2147483648
        %v930 = vmul.f32 %v929, 1.442695
        %v931 = vpow.pop %v930
        %v932 = vadd.f32 %v931, 1.0
        %v933 = vrcp.pop %v932
        %v934 = vmul.f32 1.0, %v933
        %v935 = vadd.f32 %v922, %v597
        %v937 = vrot.slane %v935, 2
        %938 = vrot.lane.b32.xlu0 %v937, 96
        %v939 = vpop.permute.xlu0 %938
        %v941 = vmul.f32 %v934, %v939
        %943 = vrot.lane.b32.xlu0 %v941, 32
        %v944 = vpop.permute.xlu0 %943
        %v946 = vadd.f32 %v507, %v944
        %v947 = vtanh.pop %v946
        %v949 = vrot.slane %v947, 2
        %v951 = vsub.f32 %v848, %v949
        %v953 = vrot.slane %v951, 6
        %954 = vrot.lane.b32.xlu0 %v953, 112
        %v955 = vpop.permute.xlu0 %954
        %v957 = vmul.f32 %v934, %v955
        %959 = vrot.lane.b32.xlu0 %v957, 16
        %v960 = vpop.permute.xlu0 %959
        %v962 = vadd.f32 %v947, %v960
        %v964 = vrot.slane %v962, 6
        %965 = vrot.lane.b32.xlu0 %v964, 96
        %v966 = vpop.permute.xlu0 %965
        %v967 = vsel %vm392, %v966, 0
        %969 = vmatprep.subr.mxu0 0.0
        %970 = vmatpush1.msra.mxu0 %v427
        %971 = vmatprep.subr.mxu0 0.0
        %972 = vmatpush1.msra.mxu0 %v428
        %973 = vmatprep.subr.mxu0 0.0
        %974 = vmatpush1.msra.mxu0 0.0
        %975 = vmatprep.subr.mxu0 0.0
        %976 = vmatpush1.msra.mxu0 0.0
        %977 = vmatprep.subr.mxu0 0.0
        %978 = vmatpush1.msra.mxu0 0.0
        %979 = vmatprep.subr.mxu0 0.0
        %980 = vmatpush1.msra.mxu0 0.0
        %981 = vmatprep.subr.mxu0 0.0
        %982 = vmatpush1.msra.mxu0 0.0
        %983 = vmatprep.subr.mxu0 0.0
        %984 = vmatpush1.msra.mxu0 0.0
        %985 = vmatprep.subr.mxu0 0.0
        %986 = vmatpush1.msra.mxu0 0.0
        %987 = vmatprep.subr.mxu0 0.0
        %988 = vmatpush1.msra.mxu0 0.0
        %989 = vmatprep.subr.mxu0 0.0
        %990 = vmatpush1.msra.mxu0 0.0
        %991 = vmatprep.subr.mxu0 0.0
        %992 = vmatpush1.msra.mxu0 0.0
        %993 = vmatprep.subr.mxu0 0.0
        %994 = vmatpush1.msra.mxu0 0.0
        %995 = vmatprep.subr.mxu0 0.0
        %996 = vmatpush1.msra.mxu0 0.0
        %997 = vmatprep.subr.mxu0 0.0
        %998 = vmatpush1.msra.mxu0 0.0
        %999 = vmatprep.subr.mxu0 0.0
        %1000 = vmatpush1.msra.mxu0 0.0
        %1001 = vmatprep.subr.mxu0 0.0
        %1002 = vmatpush1.msra.mxu0 0.0
        %1003 = vmatprep.subr.mxu0 0.0
        %1004 = vmatpush1.msra.mxu0 0.0
        %1005 = vmatprep.subr.mxu0 0.0
        %1006 = vmatpush1.msra.mxu0 0.0
        %1007 = vmatprep.subr.mxu0 0.0
        %1008 = vmatpush1.msra.mxu0 0.0
        %1009 = vmatprep.subr.mxu0 0.0
        %1010 = vmatpush1.msra.mxu0 0.0
        %1011 = vmatprep.subr.mxu0 0.0
        %1012 = vmatpush1.msra.mxu0 0.0
        %1013 = vmatprep.subr.mxu0 0.0
        %1014 = vmatpush1.msra.mxu0 0.0
        %1015 = vmatprep.subr.mxu0 0.0
        %1016 = vmatpush1.msra.mxu0 0.0
        %1017 = vmatprep.subr.mxu0 0.0
        %1018 = vmatpush1.msra.mxu0 0.0
        %1019 = vmatprep.subr.mxu0 0.0
        %1020 = vmatpush1.msra.mxu0 0.0
        %1021 = vmatprep.subr.mxu0 0.0
        %1022 = vmatpush1.msra.mxu0 0.0
        %1023 = vmatprep.subr.mxu0 0.0
        %1024 = vmatpush1.msra.mxu0 0.0
        %1025 = vmatprep.subr.mxu0 0.0
        %1026 = vmatpush1.msra.mxu0 0.0
        %1027 = vmatprep.subr.mxu0 0.0
        %1028 = vmatpush1.msra.mxu0 0.0
        %1029 = vmatprep.subr.mxu0 0.0
        %1030 = vmatpush1.msra.mxu0 0.0
        %1031 = vmatprep.subr.mxu0 0.0
        %1032 = vmatpush1.msra.mxu0 0.0
        %1033 = vmatprep.mubr.f32.mxu0 0.0
        %1034 = vmatmul.mubr.f32.gmra.mrb[0].mxu0 %v967
        %v1035 = vpop.f32.mrb[0].mxu0
        %v1036 = vadd.f32 0.0, %v1035
        %v1037 = vpop.f32.mrb[0].mxu0
        %1038 = vdwg.mxu0
        %v1039 = vadd.f32 %v512, %v1036
        %v1040 = vxor.u32 %v1039, 2147483648
        %v1041 = vmul.f32 %v1040, 1.442695
        %v1042 = vpow.pop %v1041
        %v1043 = vadd.f32 %v1042, 1.0
        %v1044 = vrcp.pop %v1043
        %v1045 = vmul.f32 1.0, %v1044
        %v1046 = vadd.f32 %v1036, %v597
        %1048 = vrot.lane.b32.xlu0 %v1046, 96
        %v1049 = vpop.permute.xlu0 %1048
        %v1051 = vmul.f32 %v1045, %v1049
        %1053 = vrot.lane.b32.xlu0 %v1051, 32
        %v1054 = vpop.permute.xlu0 %1053
        %v1056 = vadd.f32 %v512, %v1054
        %v1057 = vtanh.pop %v1056
        %v1059 = vrot.slane %v1057, 2
        %v1061 = vsub.f32 %v962, %v1059
        %v1063 = vrot.slane %v1061, 6
        %1064 = vrot.lane.b32.xlu0 %v1063, 112
        %v1065 = vpop.permute.xlu0 %1064
        %v1067 = vmul.f32 %v1045, %v1065
        %1069 = vrot.lane.b32.xlu0 %v1067, 16
        %v1070 = vpop.permute.xlu0 %1069
        %v1072 = vadd.f32 %v1057, %v1070
        %1074 = vrot.lane.b32.xlu0 %v1072, 96
        %v1075 = vpop.permute.xlu0 %1074
        %v1076 = vsel %vm392, %v1075, 0
        %1078 = vmatprep.subr.mxu0 0.0
        %1079 = vmatpush1.msra.mxu0 %v427
        %1080 = vmatprep.subr.mxu0 0.0
        %1081 = vmatpush1.msra.mxu0 %v428
        %1082 = vmatprep.subr.mxu0 0.0
        %1083 = vmatpush1.msra.mxu0 0.0
        %1084 = vmatprep.subr.mxu0 0.0
        %1085 = vmatpush1.msra.mxu0 0.0
        %1086 = vmatprep.subr.mxu0 0.0
        %1087 = vmatpush1.msra.mxu0 0.0
        %1088 = vmatprep.subr.mxu0 0.0
        %1089 = vmatpush1.msra.mxu0 0.0
        %1090 = vmatprep.subr.mxu0 0.0
        %1091 = vmatpush1.msra.mxu0 0.0
        %1092 = vmatprep.subr.mxu0 0.0
        %1093 = vmatpush1.msra.mxu0 0.0
        %1094 = vmatprep.subr.mxu0 0.0
        %1095 = vmatpush1.msra.mxu0 0.0
        %1096 = vmatprep.subr.mxu0 0.0
        %1097 = vmatpush1.msra.mxu0 0.0
        %1098 = vmatprep.subr.mxu0 0.0
        %1099 = vmatpush1.msra.mxu0 0.0
        %1100 = vmatprep.subr.mxu0 0.0
        %1101 = vmatpush1.msra.mxu0 0.0
        %1102 = vmatprep.subr.mxu0 0.0
        %1103 = vmatpush1.msra.mxu0 0.0
        %1104 = vmatprep.subr.mxu0 0.0
        %1105 = vmatpush1.msra.mxu0 0.0
        %1106 = vmatprep.subr.mxu0 0.0
        %1107 = vmatpush1.msra.mxu0 0.0
        %1108 = vmatprep.subr.mxu0 0.0
        %1109 = vmatpush1.msra.mxu0 0.0
        %1110 = vmatprep.subr.mxu0 0.0
        %1111 = vmatpush1.msra.mxu0 0.0
        %1112 = vmatprep.subr.mxu0 0.0
        %1113 = vmatpush1.msra.mxu0 0.0
        %1114 = vmatprep.subr.mxu0 0.0
        %1115 = vmatpush1.msra.mxu0 0.0
        %1116 = vmatprep.subr.mxu0 0.0
        %1117 = vmatpush1.msra.mxu0 0.0
        %1118 = vmatprep.subr.mxu0 0.0
        %1119 = vmatpush1.msra.mxu0 0.0
        %1120 = vmatprep.subr.mxu0 0.0
        %1121 = vmatpush1.msra.mxu0 0.0
        %1122 = vmatprep.subr.mxu0 0.0
        %1123 = vmatpush1.msra.mxu0 0.0
        %1124 = vmatprep.subr.mxu0 0.0
        %1125 = vmatpush1.msra.mxu0 0.0
        %1126 = vmatprep.subr.mxu0 0.0
        %1127 = vmatpush1.msra.mxu0 0.0
        %1128 = vmatprep.subr.mxu0 0.0
        %1129 = vmatpush1.msra.mxu0 0.0
        %1130 = vmatprep.subr.mxu0 0.0
        %1131 = vmatpush1.msra.mxu0 0.0
        %1132 = vmatprep.subr.mxu0 0.0
        %1133 = vmatpush1.msra.mxu0 0.0
        %1134 = vmatprep.subr.mxu0 0.0
        %1135 = vmatpush1.msra.mxu0 0.0
        %1136 = vmatprep.subr.mxu0 0.0
        %1137 = vmatpush1.msra.mxu0 0.0
        %1138 = vmatprep.subr.mxu0 0.0
        %1139 = vmatpush1.msra.mxu0 0.0
        %1140 = vmatprep.subr.mxu0 0.0
        %1141 = vmatpush1.msra.mxu0 0.0
        %1142 = vmatprep.mubr.f32.mxu0 0.0
        %1143 = vmatmul.mubr.f32.gmra.mrb[0].mxu0 %v1076
        %v1144 = vpop.f32.mrb[0].mxu0
        %v1145 = vadd.f32 0.0, %v1144
        %v1146 = vpop.f32.mrb[0].mxu0
        %1147 = vdwg.mxu0
        %v1149 = vrot.slane %v1145, 6
        %v1151 = vadd.f32 %v512, %v1149
        %v1152 = vxor.u32 %v1151, 2147483648
        %v1153 = vmul.f32 %v1152, 1.442695
        %v1154 = vpow.pop %v1153
        %v1155 = vadd.f32 %v1154, 1.0
        %v1156 = vrcp.pop %v1155
        %v1157 = vmul.f32 1.0, %v1156
        %v1158 = vadd.f32 %v1145, %v597
        %v1160 = vrot.slane %v1158, 6
        %1161 = vrot.lane.b32.xlu0 %v1160, 96
        %v1162 = vpop.permute.xlu0 %1161
        %v1164 = vmul.f32 %v1157, %v1162
        %1166 = vrot.lane.b32.xlu0 %v1164, 32
        %v1167 = vpop.permute.xlu0 %1166
        %v1169 = vadd.f32 %v512, %v1167
        %v1170 = vtanh.pop %v1169
        %v1172 = vrot.slane %v1170, 2
        %v1174 = vsub.f32 %v1072, %v1172
        %v1176 = vrot.slane %v1174, 6
        %1177 = vrot.lane.b32.xlu0 %v1176, 112
        %v1178 = vpop.permute.xlu0 %1177
        %v1180 = vmul.f32 %v1157, %v1178
        %1182 = vrot.lane.b32.xlu0 %v1180, 16
        %v1183 = vpop.permute.xlu0 %1182
        %v1185 = vadd.f32 %v1170, %v1183
        %v1187 = vrot.slane %v1185, 2
        %1188 = vrot.lane.b32.xlu0 %v1187, 96
        %v1189 = vpop.permute.xlu0 %1188
        %v1190 = vsel %vm392, %v1189, 0
        %1192 = vmatprep.subr.mxu0 0.0
        %1193 = vmatpush1.msra.mxu0 %v427
        %1194 = vmatprep.subr.mxu0 0.0
        %1195 = vmatpush1.msra.mxu0 %v428
        %1196 = vmatprep.subr.mxu0 0.0
        %1197 = vmatpush1.msra.mxu0 0.0
        %1198 = vmatprep.subr.mxu0 0.0
        %1199 = vmatpush1.msra.mxu0 0.0
        %1200 = vmatprep.subr.mxu0 0.0
        %1201 = vmatpush1.msra.mxu0 0.0
        %1202 = vmatprep.subr.mxu0 0.0
        %1203 = vmatpush1.msra.mxu0 0.0
        %1204 = vmatprep.subr.mxu0 0.0
        %1205 = vmatpush1.msra.mxu0 0.0
        %1206 = vmatprep.subr.mxu0 0.0
        %1207 = vmatpush1.msra.mxu0 0.0
        %1208 = vmatprep.subr.mxu0 0.0
        %1209 = vmatpush1.msra.mxu0 0.0
        %1210 = vmatprep.subr.mxu0 0.0
        %1211 = vmatpush1.msra.mxu0 0.0
        %1212 = vmatprep.subr.mxu0 0.0
        %1213 = vmatpush1.msra.mxu0 0.0
        %1214 = vmatprep.subr.mxu0 0.0
        %1215 = vmatpush1.msra.mxu0 0.0
        %1216 = vmatprep.subr.mxu0 0.0
        %1217 = vmatpush1.msra.mxu0 0.0
        %1218 = vmatprep.subr.mxu0 0.0
        %1219 = vmatpush1.msra.mxu0 0.0
        %1220 = vmatprep.subr.mxu0 0.0
        %1221 = vmatpush1.msra.mxu0 0.0
        %1222 = vmatprep.subr.mxu0 0.0
        %1223 = vmatpush1.msra.mxu0 0.0
        %1224 = vmatprep.subr.mxu0 0.0
        %1225 = vmatpush1.msra.mxu0 0.0
        %1226 = vmatprep.subr.mxu0 0.0
        %1227 = vmatpush1.msra.mxu0 0.0
        %1228 = vmatprep.subr.mxu0 0.0
        %1229 = vmatpush1.msra.mxu0 0.0
        %1230 = vmatprep.subr.mxu0 0.0
        %1231 = vmatpush1.msra.mxu0 0.0
        %1232 = vmatprep.subr.mxu0 0.0
        %1233 = vmatpush1.msra.mxu0 0.0
        %1234 = vmatprep.subr.mxu0 0.0
        %1235 = vmatpush1.msra.mxu0 0.0
        %1236 = vmatprep.subr.mxu0 0.0
        %1237 = vmatpush1.msra.mxu0 0.0
        %1238 = vmatprep.subr.mxu0 0.0
        %1239 = vmatpush1.msra.mxu0 0.0
        %1240 = vmatprep.subr.mxu0 0.0
        %1241 = vmatpush1.msra.mxu0 0.0
        %1242 = vmatprep.subr.mxu0 0.0
        %1243 = vmatpush1.msra.mxu0 0.0
        %1244 = vmatprep.subr.mxu0 0.0
        %1245 = vmatpush1.msra.mxu0 0.0
        %1246 = vmatprep.subr.mxu0 0.0
        %1247 = vmatpush1.msra.mxu0 0.0
        %1248 = vmatprep.subr.mxu0 0.0
        %1249 = vmatpush1.msra.mxu0 0.0
        %1250 = vmatprep.subr.mxu0 0.0
        %1251 = vmatpush1.msra.mxu0 0.0
        %1252 = vmatprep.subr.mxu0 0.0
        %1253 = vmatpush1.msra.mxu0 0.0
        %1254 = vmatprep.subr.mxu0 0.0
        %1255 = vmatpush1.msra.mxu0 0.0
        %1256 = vmatprep.mubr.f32.mxu0 0.0
        %1257 = vmatmul.mubr.f32.gmra.mrb[0].mxu0 %v1190
        %v1258 = vpop.f32.mrb[0].mxu0
        %v1259 = vadd.f32 0.0, %v1258
        %v1260 = vpop.f32.mrb[0].mxu0
        %1261 = vdwg.mxu0
        %v1263 = vrot.slane %v1259, 4
        %v1265 = vadd.f32 %v512, %v1263
        %v1266 = vxor.u32 %v1265, 2147483648
        %v1267 = vmul.f32 %v1266, 1.442695
        %v1268 = vpow.pop %v1267
        %v1269 = vadd.f32 %v1268, 1.0
        %v1270 = vrcp.pop %v1269
        %v1271 = vmul.f32 1.0, %v1270
        %v1272 = vadd.f32 %v1259, %v597
        %v1274 = vrot.slane %v1272, 4
        %1275 = vrot.lane.b32.xlu0 %v1274, 96
        %v1276 = vpop.permute.xlu0 %1275
        %v1278 = vmul.f32 %v1271, %v1276
        %1280 = vrot.lane.b32.xlu0 %v1278, 32
        %v1281 = vpop.permute.xlu0 %1280
        %v1283 = vadd.f32 %v512, %v1281
        %v1284 = vtanh.pop %v1283
        %v1286 = vrot.slane %v1284, 2
        %v1288 = vsub.f32 %v1185, %v1286
        %v1290 = vrot.slane %v1288, 6
        %1291 = vrot.lane.b32.xlu0 %v1290, 112
        %v1292 = vpop.permute.xlu0 %1291
        %v1294 = vmul.f32 %v1271, %v1292
        %1296 = vrot.lane.b32.xlu0 %v1294, 16
        %v1297 = vpop.permute.xlu0 %1296
        %v1299 = vadd.f32 %v1284, %v1297
        %v1301 = vrot.slane %v1299, 4
        %1302 = vrot.lane.b32.xlu0 %v1301, 96
        %v1303 = vpop.permute.xlu0 %1302
        %v1304 = vsel %vm392, %v1303, 0
        %1306 = vmatprep.subr.mxu0 0.0
        %1307 = vmatpush1.msra.mxu0 %v427
        %1308 = vmatprep.subr.mxu0 0.0
        %1309 = vmatpush1.msra.mxu0 %v428
        %1310 = vmatprep.subr.mxu0 0.0
        %1311 = vmatpush1.msra.mxu0 0.0
        %1312 = vmatprep.subr.mxu0 0.0
        %1313 = vmatpush1.msra.mxu0 0.0
        %1314 = vmatprep.subr.mxu0 0.0
        %1315 = vmatpush1.msra.mxu0 0.0
        %1316 = vmatprep.subr.mxu0 0.0
        %1317 = vmatpush1.msra.mxu0 0.0
        %1318 = vmatprep.subr.mxu0 0.0
        %1319 = vmatpush1.msra.mxu0 0.0
        %1320 = vmatprep.subr.mxu0 0.0
        %1321 = vmatpush1.msra.mxu0 0.0
        %1322 = vmatprep.subr.mxu0 0.0
        %1323 = vmatpush1.msra.mxu0 0.0
        %1324 = vmatprep.subr.mxu0 0.0
        %1325 = vmatpush1.msra.mxu0 0.0
        %1326 = vmatprep.subr.mxu0 0.0
        %1327 = vmatpush1.msra.mxu0 0.0
        %1328 = vmatprep.subr.mxu0 0.0
        %1329 = vmatpush1.msra.mxu0 0.0
        %1330 = vmatprep.subr.mxu0 0.0
        %1331 = vmatpush1.msra.mxu0 0.0
        %1332 = vmatprep.subr.mxu0 0.0
        %1333 = vmatpush1.msra.mxu0 0.0
        %1334 = vmatprep.subr.mxu0 0.0
        %1335 = vmatpush1.msra.mxu0 0.0
        %1336 = vmatprep.subr.mxu0 0.0
        %1337 = vmatpush1.msra.mxu0 0.0
        %1338 = vmatprep.subr.mxu0 0.0
        %1339 = vmatpush1.msra.mxu0 0.0
        %1340 = vmatprep.subr.mxu0 0.0
        %1341 = vmatpush1.msra.mxu0 0.0
        %1342 = vmatprep.subr.mxu0 0.0
        %1343 = vmatpush1.msra.mxu0 0.0
        %1344 = vmatprep.subr.mxu0 0.0
        %1345 = vmatpush1.msra.mxu0 0.0
        %1346 = vmatprep.subr.mxu0 0.0
        %1347 = vmatpush1.msra.mxu0 0.0
        %1348 = vmatprep.subr.mxu0 0.0
        %1349 = vmatpush1.msra.mxu0 0.0
        %1350 = vmatprep.subr.mxu0 0.0
        %1351 = vmatpush1.msra.mxu0 0.0
        %1352 = vmatprep.subr.mxu0 0.0
        %1353 = vmatpush1.msra.mxu0 0.0
        %1354 = vmatprep.subr.mxu0 0.0
        %1355 = vmatpush1.msra.mxu0 0.0
        %1356 = vmatprep.subr.mxu0 0.0
        %1357 = vmatpush1.msra.mxu0 0.0
        %1358 = vmatprep.subr.mxu0 0.0
        %1359 = vmatpush1.msra.mxu0 0.0
        %1360 = vmatprep.subr.mxu0 0.0
        %1361 = vmatpush1.msra.mxu0 0.0
        %1362 = vmatprep.subr.mxu0 0.0
        %1363 = vmatpush1.msra.mxu0 0.0
        %1364 = vmatprep.subr.mxu0 0.0
        %1365 = vmatpush1.msra.mxu0 0.0
        %1366 = vmatprep.subr.mxu0 0.0
        %1367 = vmatpush1.msra.mxu0 0.0
        %1368 = vmatprep.subr.mxu0 0.0
        %1369 = vmatpush1.msra.mxu0 0.0
        %1370 = vmatprep.mubr.f32.mxu0 0.0
        %1371 = vmatmul.mubr.f32.gmra.mrb[0].mxu0 %v1304
        %v1372 = vpop.f32.mrb[0].mxu0
        %v1373 = vadd.f32 0.0, %v1372
        %v1374 = vpop.f32.mrb[0].mxu0
        %1375 = vdwg.mxu0
        %v1377 = vrot.slane %v1373, 2
        %v1379 = vadd.f32 %v512, %v1377
        %v1380 = vxor.u32 %v1379, 2147483648
        %v1381 = vmul.f32 %v1380, 1.442695
        %v1382 = vpow.pop %v1381
        %v1383 = vadd.f32 %v1382, 1.0
        %v1384 = vrcp.pop %v1383
        %v1385 = vmul.f32 1.0, %v1384
        %v1386 = vadd.f32 %v1373, %v597
        %v1388 = vrot.slane %v1386, 2
        %1389 = vrot.lane.b32.xlu0 %v1388, 96
        %v1390 = vpop.permute.xlu0 %1389
        %v1392 = vmul.f32 %v1385, %v1390
        %1394 = vrot.lane.b32.xlu0 %v1392, 32
        %v1395 = vpop.permute.xlu0 %1394
        %v1397 = vadd.f32 %v512, %v1395
        %v1398 = vtanh.pop %v1397
        %v1400 = vrot.slane %v1398, 2
        %v1402 = vsub.f32 %v1299, %v1400
        %v1404 = vrot.slane %v1402, 6
        %1405 = vrot.lane.b32.xlu0 %v1404, 112
        %v1406 = vpop.permute.xlu0 %1405
        %v1408 = vmul.f32 %v1385, %v1406
        %1410 = vrot.lane.b32.xlu0 %v1408, 16
        %v1411 = vpop.permute.xlu0 %1410
        %v1413 = vadd.f32 %v1398, %v1411
        %vm1414 = vcmask 1041408
        %v1415 = vsel %vm1414, %v621, %v734
        %vm1416 = vcmask 1043456
        %v1417 = vsel %vm1416, %v1415, %v848
        %vm1418 = vcmask 1045504
        %v1419 = vsel %vm1418, %v1417, %v962
        %v1420 = vsel %vm1414, %v1072, %v1185
        %v1421 = vsel %vm1416, %v1420, %v1299
        %v1422 = vsel %vm1418, %v1421, %v1413
        %s1423 = scalar_lea.vmem [#allocation2], 32
        %v1424 = vld [vmem:[%s1423] sm:$0xff]
        %v1425 = vld [vmem:[%s1423 + $0x8] sm:$0xff]
        %s1426 = scalar_lea.vmem [#allocation2], 48
        %v1427 = vld [vmem:[%s1426] sm:$0xff]
        %v1428 = vld [vmem:[%s1426 + $0x8] sm:$0xff]
        %v1429 = vld [vmem:[%s3 + $0x1] sm:$0x1]
        %v1430 = vlaneseq
        %v1431 = vshrl.u32 %v1430, 7
        %v1432 = vsub.s32 0, %v1431
        %v1433 = vrot.slane %v1429, %v1432
        %1436 = vrot.lane.b32.xlu0 %v1419, 96
        %v1437 = vpop.permute.xlu0 %1436
        %1438 = vrot.lane.b32.xlu0 %v1422, 96
        %v1439 = vpop.permute.xlu0 %1438
        %v1440 = vsel %vm392, %v1437, 0
        %v1442 = vsel %vm392, %v1439, 0
        %1444 = vmatprep.subr.mxu0 0.0
        %1445 = vmatpush1.msra.mxu0 %v1424
        %1446 = vmatprep.subr.mxu0 0.0
        %1447 = vmatpush1.msra.mxu0 %v1425
        %1448 = vmatprep.subr.mxu0 0.0
        %1449 = vmatpush1.msra.mxu0 0.0
        %1450 = vmatprep.subr.mxu0 0.0
        %1451 = vmatpush1.msra.mxu0 0.0
        %1452 = vmatprep.subr.mxu0 0.0
        %1453 = vmatpush1.msra.mxu0 0.0
        %1454 = vmatprep.subr.mxu0 0.0
        %1455 = vmatpush1.msra.mxu0 0.0
        %1456 = vmatprep.subr.mxu0 0.0
        %1457 = vmatpush1.msra.mxu0 0.0
        %1458 = vmatprep.subr.mxu0 0.0
        %1459 = vmatpush1.msra.mxu0 0.0
        %1460 = vmatprep.subr.mxu0 0.0
        %1461 = vmatpush1.msra.mxu0 0.0
        %1462 = vmatprep.subr.mxu0 0.0
        %1463 = vmatpush1.msra.mxu0 0.0
        %1464 = vmatprep.subr.mxu0 0.0
        %1465 = vmatpush1.msra.mxu0 0.0
        %1466 = vmatprep.subr.mxu0 0.0
        %1467 = vmatpush1.msra.mxu0 0.0
        %1468 = vmatprep.subr.mxu0 0.0
        %1469 = vmatpush1.msra.mxu0 0.0
        %1470 = vmatprep.subr.mxu0 0.0
        %1471 = vmatpush1.msra.mxu0 0.0
        %1472 = vmatprep.subr.mxu0 0.0
        %1473 = vmatpush1.msra.mxu0 0.0
        %1474 = vmatprep.subr.mxu0 0.0
        %1475 = vmatpush1.msra.mxu0 0.0
        %1476 = vmatprep.subr.mxu0 0.0
        %1477 = vmatpush1.msra.mxu0 0.0
        %1478 = vmatprep.subr.mxu0 0.0
        %1479 = vmatpush1.msra.mxu0 0.0
        %1480 = vmatprep.subr.mxu0 0.0
        %1481 = vmatpush1.msra.mxu0 0.0
        %1482 = vmatprep.subr.mxu0 0.0
        %1483 = vmatpush1.msra.mxu0 0.0
        %1484 = vmatprep.subr.mxu0 0.0
        %1485 = vmatpush1.msra.mxu0 0.0
        %1486 = vmatprep.subr.mxu0 0.0
        %1487 = vmatpush1.msra.mxu0 0.0
        %1488 = vmatprep.subr.mxu0 0.0
        %1489 = vmatpush1.msra.mxu0 0.0
        %1490 = vmatprep.subr.mxu0 0.0
        %1491 = vmatpush1.msra.mxu0 0.0
        %1492 = vmatprep.subr.mxu0 0.0
        %1493 = vmatpush1.msra.mxu0 0.0
        %1494 = vmatprep.subr.mxu0 0.0
        %1495 = vmatpush1.msra.mxu0 0.0
        %1496 = vmatprep.subr.mxu0 0.0
        %1497 = vmatpush1.msra.mxu0 0.0
        %1498 = vmatprep.subr.mxu0 0.0
        %1499 = vmatpush1.msra.mxu0 0.0
        %1500 = vmatprep.subr.mxu0 0.0
        %1501 = vmatpush1.msra.mxu0 0.0
        %1502 = vmatprep.subr.mxu0 0.0
        %1503 = vmatpush1.msra.mxu0 0.0
        %1504 = vmatprep.subr.mxu0 0.0
        %1505 = vmatpush1.msra.mxu0 0.0
        %1506 = vmatprep.subr.mxu0 0.0
        %1507 = vmatpush1.msra.mxu0 0.0
        %1508 = vmatprep.mubr.f32.mxu0 0.0
        %1509 = vmatmul.mubr.f32.gmra.mrb[0].mxu0 %v1440
        %v1510 = vpop.f32.mrb[0].mxu0
        %v1511 = vadd.f32 %v1433, %v1510
        %v1512 = vpop.f32.mrb[0].mxu0
        %1513 = vmatprep.mubr.f32.mxu0 0.0
        %1514 = vmatmul.mubr.f32.gmra.mrb[0].mxu0 %v1442
        %v1515 = vpop.f32.mrb[0].mxu0
        %v1516 = vadd.f32 %v1433, %v1515
        %v1517 = vpop.f32.mrb[0].mxu0
        %1518 = vdwg.mxu0
        %1519 = vmatprep.subr.mxu0 0.0
        %1520 = vmatpush1.msra.mxu0 %v1427
        %1521 = vmatprep.subr.mxu0 0.0
        %1522 = vmatpush1.msra.mxu0 %v1428
        %1523 = vmatprep.subr.mxu0 0.0
        %1524 = vmatpush1.msra.mxu0 0.0
        %1525 = vmatprep.subr.mxu0 0.0
        %1526 = vmatpush1.msra.mxu0 0.0
        %1527 = vmatprep.subr.mxu0 0.0
        %1528 = vmatpush1.msra.mxu0 0.0
        %1529 = vmatprep.subr.mxu0 0.0
        %1530 = vmatpush1.msra.mxu0 0.0
        %1531 = vmatprep.subr.mxu0 0.0
        %1532 = vmatpush1.msra.mxu0 0.0
        %1533 = vmatprep.subr.mxu0 0.0
        %1534 = vmatpush1.msra.mxu0 0.0
        %1535 = vmatprep.subr.mxu0 0.0
        %1536 = vmatpush1.msra.mxu0 0.0
        %1537 = vmatprep.subr.mxu0 0.0
        %1538 = vmatpush1.msra.mxu0 0.0
        %1539 = vmatprep.subr.mxu0 0.0
        %1540 = vmatpush1.msra.mxu0 0.0
        %1541 = vmatprep.subr.mxu0 0.0
        %1542 = vmatpush1.msra.mxu0 0.0
        %1543 = vmatprep.subr.mxu0 0.0
        %1544 = vmatpush1.msra.mxu0 0.0
        %1545 = vmatprep.subr.mxu0 0.0
        %1546 = vmatpush1.msra.mxu0 0.0
        %1547 = vmatprep.subr.mxu0 0.0
        %1548 = vmatpush1.msra.mxu0 0.0
        %1549 = vmatprep.subr.mxu0 0.0
        %1550 = vmatpush1.msra.mxu0 0.0
        %1551 = vmatprep.subr.mxu0 0.0
        %1552 = vmatpush1.msra.mxu0 0.0
        %1553 = vmatprep.subr.mxu0 0.0
        %1554 = vmatpush1.msra.mxu0 0.0
        %1555 = vmatprep.subr.mxu0 0.0
        %1556 = vmatpush1.msra.mxu0 0.0
        %1557 = vmatprep.subr.mxu0 0.0
        %1558 = vmatpush1.msra.mxu0 0.0
        %1559 = vmatprep.subr.mxu0 0.0
        %1560 = vmatpush1.msra.mxu0 0.0
        %1561 = vmatprep.subr.mxu0 0.0
        %1562 = vmatpush1.msra.mxu0 0.0
        %1563 = vmatprep.subr.mxu0 0.0
        %1564 = vmatpush1.msra.mxu0 0.0
        %1565 = vmatprep.subr.mxu0 0.0
        %1566 = vmatpush1.msra.mxu0 0.0
        %1567 = vmatprep.subr.mxu0 0.0
        %1568 = vmatpush1.msra.mxu0 0.0
        %1569 = vmatprep.subr.mxu0 0.0
        %1570 = vmatpush1.msra.mxu0 0.0
        %1571 = vmatprep.subr.mxu0 0.0
        %1572 = vmatpush1.msra.mxu0 0.0
        %1573 = vmatprep.subr.mxu0 0.0
        %1574 = vmatpush1.msra.mxu0 0.0
        %1575 = vmatprep.subr.mxu0 0.0
        %1576 = vmatpush1.msra.mxu0 0.0
        %1577 = vmatprep.subr.mxu0 0.0
        %1578 = vmatpush1.msra.mxu0 0.0
        %1579 = vmatprep.subr.mxu0 0.0
        %1580 = vmatpush1.msra.mxu0 0.0
        %1581 = vmatprep.subr.mxu0 0.0
        %1582 = vmatpush1.msra.mxu0 0.0
        %1583 = vmatprep.mubr.f32.mxu0 0.0
        %1584 = vmatmul.mubr.f32.gmra.mrb[0].mxu0 %v516
        %v1585 = vpop.f32.mrb[0].mxu0
        %v1586 = vadd.f32 0.0, %v1585
        %v1587 = vpop.f32.mrb[0].mxu0
        %1588 = vdwg.mxu0
        %v1589 = vadd.f32 %v1511, %v1586
        %v1590 = vxor.u32 %v1589, 2147483648
        %v1591 = vmul.f32 %v1590, 1.442695
        %v1592 = vpow.pop %v1591
        %v1593 = vadd.f32 %v1592, 1.0
        %v1594 = vrcp.pop %v1593
        %v1595 = vmul.f32 1.0, %v1594
        %1597 = vrot.lane.b32.xlu0 %v1433, 112
        %v1598 = vpop.permute.xlu0 %1597
        %v1600 = vadd.f32 %v1586, %v1598
        %1602 = vrot.lane.b32.xlu0 %v1600, 96
        %v1603 = vpop.permute.xlu0 %1602
        %v1605 = vmul.f32 %v1595, %v1603
        %1607 = vrot.lane.b32.xlu0 %v1605, 32
        %v1608 = vpop.permute.xlu0 %1607
        %v1610 = vadd.f32 %v1511, %v1608
        %v1611 = vtanh.pop %v1610
        %v1612 = vsub.f32 0.0, %v1611
        %1614 = vrot.lane.b32.xlu0 %v1612, 112
        %v1615 = vpop.permute.xlu0 %1614
        %v1617 = vmul.f32 %v1595, %v1615
        %1619 = vrot.lane.b32.xlu0 %v1617, 16
        %v1620 = vpop.permute.xlu0 %1619
        %v1622 = vadd.f32 %v1611, %v1620
        %1624 = vrot.lane.b32.xlu0 %v1622, 96
        %v1625 = vpop.permute.xlu0 %1624
        %v1626 = vsel %vm392, %v1625, 0
        %1628 = vmatprep.subr.mxu0 0.0
        %1629 = vmatpush1.msra.mxu0 %v1427
        %1630 = vmatprep.subr.mxu0 0.0
        %1631 = vmatpush1.msra.mxu0 %v1428
        %1632 = vmatprep.subr.mxu0 0.0
        %1633 = vmatpush1.msra.mxu0 0.0
        %1634 = vmatprep.subr.mxu0 0.0
        %1635 = vmatpush1.msra.mxu0 0.0
        %1636 = vmatprep.subr.mxu0 0.0
        %1637 = vmatpush1.msra.mxu0 0.0
        %1638 = vmatprep.subr.mxu0 0.0
        %1639 = vmatpush1.msra.mxu0 0.0
        %1640 = vmatprep.subr.mxu0 0.0
        %1641 = vmatpush1.msra.mxu0 0.0
        %1642 = vmatprep.subr.mxu0 0.0
        %1643 = vmatpush1.msra.mxu0 0.0
        %1644 = vmatprep.subr.mxu0 0.0
        %1645 = vmatpush1.msra.mxu0 0.0
        %1646 = vmatprep.subr.mxu0 0.0
        %1647 = vmatpush1.msra.mxu0 0.0
        %1648 = vmatprep.subr.mxu0 0.0
        %1649 = vmatpush1.msra.mxu0 0.0
        %1650 = vmatprep.subr.mxu0 0.0
        %1651 = vmatpush1.msra.mxu0 0.0
        %1652 = vmatprep.subr.mxu0 0.0
        %1653 = vmatpush1.msra.mxu0 0.0
        %1654 = vmatprep.subr.mxu0 0.0
        %1655 = vmatpush1.msra.mxu0 0.0
        %1656 = vmatprep.subr.mxu0 0.0
        %1657 = vmatpush1.msra.mxu0 0.0
        %1658 = vmatprep.subr.mxu0 0.0
        %1659 = vmatpush1.msra.mxu0 0.0
        %1660 = vmatprep.subr.mxu0 0.0
        %1661 = vmatpush1.msra.mxu0 0.0
        %1662 = vmatprep.subr.mxu0 0.0
        %1663 = vmatpush1.msra.mxu0 0.0
        %1664 = vmatprep.subr.mxu0 0.0
        %1665 = vmatpush1.msra.mxu0 0.0
        %1666 = vmatprep.subr.mxu0 0.0
        %1667 = vmatpush1.msra.mxu0 0.0
        %1668 = vmatprep.subr.mxu0 0.0
        %1669 = vmatpush1.msra.mxu0 0.0
        %1670 = vmatprep.subr.mxu0 0.0
        %1671 = vmatpush1.msra.mxu0 0.0
        %1672 = vmatprep.subr.mxu0 0.0
        %1673 = vmatpush1.msra.mxu0 0.0
        %1674 = vmatprep.subr.mxu0 0.0
        %1675 = vmatpush1.msra.mxu0 0.0
        %1676 = vmatprep.subr.mxu0 0.0
        %1677 = vmatpush1.msra.mxu0 0.0
        %1678 = vmatprep.subr.mxu0 0.0
        %1679 = vmatpush1.msra.mxu0 0.0
        %1680 = vmatprep.subr.mxu0 0.0
        %1681 = vmatpush1.msra.mxu0 0.0
        %1682 = vmatprep.subr.mxu0 0.0
        %1683 = vmatpush1.msra.mxu0 0.0
        %1684 = vmatprep.subr.mxu0 0.0
        %1685 = vmatpush1.msra.mxu0 0.0
        %1686 = vmatprep.subr.mxu0 0.0
        %1687 = vmatpush1.msra.mxu0 0.0
        %1688 = vmatprep.subr.mxu0 0.0
        %1689 = vmatpush1.msra.mxu0 0.0
        %1690 = vmatprep.subr.mxu0 0.0
        %1691 = vmatpush1.msra.mxu0 0.0
        %1692 = vmatprep.mubr.f32.mxu0 0.0
        %1693 = vmatmul.mubr.f32.gmra.mrb[0].mxu0 %v1626
        %v1694 = vpop.f32.mrb[0].mxu0
        %v1695 = vadd.f32 0.0, %v1694
        %v1696 = vpop.f32.mrb[0].mxu0
        %1697 = vdwg.mxu0
        %v1699 = vrot.slane %v1695, 6
        %v1701 = vadd.f32 %v1511, %v1699
        %v1702 = vxor.u32 %v1701, 2147483648
        %v1703 = vmul.f32 %v1702, 1.442695
        %v1704 = vpow.pop %v1703
        %v1705 = vadd.f32 %v1704, 1.0
        %v1706 = vrcp.pop %v1705
        %v1707 = vmul.f32 1.0, %v1706
        %v1708 = vadd.f32 %v1695, %v1598
        %v1710 = vrot.slane %v1708, 6
        %1711 = vrot.lane.b32.xlu0 %v1710, 96
        %v1712 = vpop.permute.xlu0 %1711
        %v1714 = vmul.f32 %v1707, %v1712
        %1716 = vrot.lane.b32.xlu0 %v1714, 32
        %v1717 = vpop.permute.xlu0 %1716
        %v1719 = vadd.f32 %v1511, %v1717
        %v1720 = vtanh.pop %v1719
        %v1722 = vrot.slane %v1720, 2
        %v1724 = vsub.f32 %v1622, %v1722
        %v1726 = vrot.slane %v1724, 6
        %1727 = vrot.lane.b32.xlu0 %v1726, 112
        %v1728 = vpop.permute.xlu0 %1727
        %v1730 = vmul.f32 %v1707, %v1728
        %1732 = vrot.lane.b32.xlu0 %v1730, 16
        %v1733 = vpop.permute.xlu0 %1732
        %v1735 = vadd.f32 %v1720, %v1733
        %v1737 = vrot.slane %v1735, 2
        %1738 = vrot.lane.b32.xlu0 %v1737, 96
        %v1739 = vpop.permute.xlu0 %1738
        %v1740 = vsel %vm392, %v1739, 0
        %1742 = vmatprep.subr.mxu0 0.0
        %1743 = vmatpush1.msra.mxu0 %v1427
        %1744 = vmatprep.subr.mxu0 0.0
        %1745 = vmatpush1.msra.mxu0 %v1428
        %1746 = vmatprep.subr.mxu0 0.0
        %1747 = vmatpush1.msra.mxu0 0.0
        %1748 = vmatprep.subr.mxu0 0.0
        %1749 = vmatpush1.msra.mxu0 0.0
        %1750 = vmatprep.subr.mxu0 0.0
        %1751 = vmatpush1.msra.mxu0 0.0
        %1752 = vmatprep.subr.mxu0 0.0
        %1753 = vmatpush1.msra.mxu0 0.0
        %1754 = vmatprep.subr.mxu0 0.0
        %1755 = vmatpush1.msra.mxu0 0.0
        %1756 = vmatprep.subr.mxu0 0.0
        %1757 = vmatpush1.msra.mxu0 0.0
        %1758 = vmatprep.subr.mxu0 0.0
        %1759 = vmatpush1.msra.mxu0 0.0
        %1760 = vmatprep.subr.mxu0 0.0
        %1761 = vmatpush1.msra.mxu0 0.0
        %1762 = vmatprep.subr.mxu0 0.0
        %1763 = vmatpush1.msra.mxu0 0.0
        %1764 = vmatprep.subr.mxu0 0.0
        %1765 = vmatpush1.msra.mxu0 0.0
        %1766 = vmatprep.subr.mxu0 0.0
        %1767 = vmatpush1.msra.mxu0 0.0
        %1768 = vmatprep.subr.mxu0 0.0
        %1769 = vmatpush1.msra.mxu0 0.0
        %1770 = vmatprep.subr.mxu0 0.0
        %1771 = vmatpush1.msra.mxu0 0.0
        %1772 = vmatprep.subr.mxu0 0.0
        %1773 = vmatpush1.msra.mxu0 0.0
        %1774 = vmatprep.subr.mxu0 0.0
        %1775 = vmatpush1.msra.mxu0 0.0
        %1776 = vmatprep.subr.mxu0 0.0
        %1777 = vmatpush1.msra.mxu0 0.0
        %1778 = vmatprep.subr.mxu0 0.0
        %1779 = vmatpush1.msra.mxu0 0.0
        %1780 = vmatprep.subr.mxu0 0.0
        %1781 = vmatpush1.msra.mxu0 0.0
        %1782 = vmatprep.subr.mxu0 0.0
        %1783 = vmatpush1.msra.mxu0 0.0
        %1784 = vmatprep.subr.mxu0 0.0
        %1785 = vmatpush1.msra.mxu0 0.0
        %1786 = vmatprep.subr.mxu0 0.0
        %1787 = vmatpush1.msra.mxu0 0.0
        %1788 = vmatprep.subr.mxu0 0.0
        %1789 = vmatpush1.msra.mxu0 0.0
        %1790 = vmatprep.subr.mxu0 0.0
        %1791 = vmatpush1.msra.mxu0 0.0
        %1792 = vmatprep.subr.mxu0 0.0
        %1793 = vmatpush1.msra.mxu0 0.0
        %1794 = vmatprep.subr.mxu0 0.0
        %1795 = vmatpush1.msra.mxu0 0.0
        %1796 = vmatprep.subr.mxu0 0.0
        %1797 = vmatpush1.msra.mxu0 0.0
        %1798 = vmatprep.subr.mxu0 0.0
        %1799 = vmatpush1.msra.mxu0 0.0
        %1800 = vmatprep.subr.mxu0 0.0
        %1801 = vmatpush1.msra.mxu0 0.0
        %1802 = vmatprep.subr.mxu0 0.0
        %1803 = vmatpush1.msra.mxu0 0.0
        %1804 = vmatprep.subr.mxu0 0.0
        %1805 = vmatpush1.msra.mxu0 0.0
        %1806 = vmatprep.mubr.f32.mxu0 0.0
        %1807 = vmatmul.mubr.f32.gmra.mrb[0].mxu0 %v1740
        %v1808 = vpop.f32.mrb[0].mxu0
        %v1809 = vadd.f32 0.0, %v1808
        %v1810 = vpop.f32.mrb[0].mxu0
        %1811 = vdwg.mxu0
        %v1813 = vrot.slane %v1809, 4
        %v1815 = vadd.f32 %v1511, %v1813
        %v1816 = vxor.u32 %v1815, 2147483648
        %v1817 = vmul.f32 %v1816, 1.442695
        %v1818 = vpow.pop %v1817
        %v1819 = vadd.f32 %v1818, 1.0
        %v1820 = vrcp.pop %v1819
        %v1821 = vmul.f32 1.0, %v1820
        %v1822 = vadd.f32 %v1809, %v1598
        %v1824 = vrot.slane %v1822, 4
        %1825 = vrot.lane.b32.xlu0 %v1824, 96
        %v1826 = vpop.permute.xlu0 %1825
        %v1828 = vmul.f32 %v1821, %v1826
        %1830 = vrot.lane.b32.xlu0 %v1828, 32
        %v1831 = vpop.permute.xlu0 %1830
        %v1833 = vadd.f32 %v1511, %v1831
        %v1834 = vtanh.pop %v1833
        %v1836 = vrot.slane %v1834, 2
        %v1838 = vsub.f32 %v1735, %v1836
        %v1840 = vrot.slane %v1838, 6
        %1841 = vrot.lane.b32.xlu0 %v1840, 112
        %v1842 = vpop.permute.xlu0 %1841
        %v1844 = vmul.f32 %v1821, %v1842
        %1846 = vrot.lane.b32.xlu0 %v1844, 16
        %v1847 = vpop.permute.xlu0 %1846
        %v1849 = vadd.f32 %v1834, %v1847
        %v1851 = vrot.slane %v1849, 4
        %1852 = vrot.lane.b32.xlu0 %v1851, 96
        %v1853 = vpop.permute.xlu0 %1852
        %v1854 = vsel %vm392, %v1853, 0
        %1856 = vmatprep.subr.mxu0 0.0
        %1857 = vmatpush1.msra.mxu0 %v1427
        %1858 = vmatprep.subr.mxu0 0.0
        %1859 = vmatpush1.msra.mxu0 %v1428
        %1860 = vmatprep.subr.mxu0 0.0
        %1861 = vmatpush1.msra.mxu0 0.0
        %1862 = vmatprep.subr.mxu0 0.0
        %1863 = vmatpush1.msra.mxu0 0.0
        %1864 = vmatprep.subr.mxu0 0.0
        %1865 = vmatpush1.msra.mxu0 0.0
        %1866 = vmatprep.subr.mxu0 0.0
        %1867 = vmatpush1.msra.mxu0 0.0
        %1868 = vmatprep.subr.mxu0 0.0
        %1869 = vmatpush1.msra.mxu0 0.0
        %1870 = vmatprep.subr.mxu0 0.0
        %1871 = vmatpush1.msra.mxu0 0.0
        %1872 = vmatprep.subr.mxu0 0.0
        %1873 = vmatpush1.msra.mxu0 0.0
        %1874 = vmatprep.subr.mxu0 0.0
        %1875 = vmatpush1.msra.mxu0 0.0
        %1876 = vmatprep.subr.mxu0 0.0
        %1877 = vmatpush1.msra.mxu0 0.0
        %1878 = vmatprep.subr.mxu0 0.0
        %1879 = vmatpush1.msra.mxu0 0.0
        %1880 = vmatprep.subr.mxu0 0.0
        %1881 = vmatpush1.msra.mxu0 0.0
        %1882 = vmatprep.subr.mxu0 0.0
        %1883 = vmatpush1.msra.mxu0 0.0
        %1884 = vmatprep.subr.mxu0 0.0
        %1885 = vmatpush1.msra.mxu0 0.0
        %1886 = vmatprep.subr.mxu0 0.0
        %1887 = vmatpush1.msra.mxu0 0.0
        %1888 = vmatprep.subr.mxu0 0.0
        %1889 = vmatpush1.msra.mxu0 0.0
        %1890 = vmatprep.subr.mxu0 0.0
        %1891 = vmatpush1.msra.mxu0 0.0
        %1892 = vmatprep.subr.mxu0 0.0
        %1893 = vmatpush1.msra.mxu0 0.0
        %1894 = vmatprep.subr.mxu0 0.0
        %1895 = vmatpush1.msra.mxu0 0.0
        %1896 = vmatprep.subr.mxu0 0.0
        %1897 = vmatpush1.msra.mxu0 0.0
        %1898 = vmatprep.subr.mxu0 0.0
        %1899 = vmatpush1.msra.mxu0 0.0
        %1900 = vmatprep.subr.mxu0 0.0
        %1901 = vmatpush1.msra.mxu0 0.0
        %1902 = vmatprep.subr.mxu0 0.0
        %1903 = vmatpush1.msra.mxu0 0.0
        %1904 = vmatprep.subr.mxu0 0.0
        %1905 = vmatpush1.msra.mxu0 0.0
        %1906 = vmatprep.subr.mxu0 0.0
        %1907 = vmatpush1.msra.mxu0 0.0
        %1908 = vmatprep.subr.mxu0 0.0
        %1909 = vmatpush1.msra.mxu0 0.0
        %1910 = vmatprep.subr.mxu0 0.0
        %1911 = vmatpush1.msra.mxu0 0.0
        %1912 = vmatprep.subr.mxu0 0.0
        %1913 = vmatpush1.msra.mxu0 0.0
        %1914 = vmatprep.subr.mxu0 0.0
        %1915 = vmatpush1.msra.mxu0 0.0
        %1916 = vmatprep.subr.mxu0 0.0
        %1917 = vmatpush1.msra.mxu0 0.0
        %1918 = vmatprep.subr.mxu0 0.0
        %1919 = vmatpush1.msra.mxu0 0.0
        %1920 = vmatprep.mubr.f32.mxu0 0.0
        %1921 = vmatmul.mubr.f32.gmra.mrb[0].mxu0 %v1854
        %v1922 = vpop.f32.mrb[0].mxu0
        %v1923 = vadd.f32 0.0, %v1922
        %v1924 = vpop.f32.mrb[0].mxu0
        %1925 = vdwg.mxu0
        %v1927 = vrot.slane %v1923, 2
        %v1929 = vadd.f32 %v1511, %v1927
        %v1930 = vxor.u32 %v1929, 2147483648
        %v1931 = vmul.f32 %v1930, 1.442695
        %v1932 = vpow.pop %v1931
        %v1933 = vadd.f32 %v1932, 1.0
        %v1934 = vrcp.pop %v1933
        %v1935 = vmul.f32 1.0, %v1934
        %v1936 = vadd.f32 %v1923, %v1598
        %v1938 = vrot.slane %v1936, 2
        %1939 = vrot.lane.b32.xlu0 %v1938, 96
        %v1940 = vpop.permute.xlu0 %1939
        %v1942 = vmul.f32 %v1935, %v1940
        %1944 = vrot.lane.b32.xlu0 %v1942, 32
        %v1945 = vpop.permute.xlu0 %1944
        %v1947 = vadd.f32 %v1511, %v1945
        %v1948 = vtanh.pop %v1947
        %v1950 = vrot.slane %v1948, 2
        %v1952 = vsub.f32 %v1849, %v1950
        %v1954 = vrot.slane %v1952, 6
        %1955 = vrot.lane.b32.xlu0 %v1954, 112
        %v1956 = vpop.permute.xlu0 %1955
        %v1958 = vmul.f32 %v1935, %v1956
        %1960 = vrot.lane.b32.xlu0 %v1958, 16
        %v1961 = vpop.permute.xlu0 %1960
        %v1963 = vadd.f32 %v1948, %v1961
        %v1965 = vrot.slane %v1963, 6
        %1966 = vrot.lane.b32.xlu0 %v1965, 96
        %v1967 = vpop.permute.xlu0 %1966
        %v1968 = vsel %vm392, %v1967, 0
        %1970 = vmatprep.subr.mxu0 0.0
        %1971 = vmatpush1.msra.mxu0 %v1427
        %1972 = vmatprep.subr.mxu0 0.0
        %1973 = vmatpush1.msra.mxu0 %v1428
        %1974 = vmatprep.subr.mxu0 0.0
        %1975 = vmatpush1.msra.mxu0 0.0
        %1976 = vmatprep.subr.mxu0 0.0
        %1977 = vmatpush1.msra.mxu0 0.0
        %1978 = vmatprep.subr.mxu0 0.0
        %1979 = vmatpush1.msra.mxu0 0.0
        %1980 = vmatprep.subr.mxu0 0.0
        %1981 = vmatpush1.msra.mxu0 0.0
        %1982 = vmatprep.subr.mxu0 0.0
        %1983 = vmatpush1.msra.mxu0 0.0
        %1984 = vmatprep.subr.mxu0 0.0
        %1985 = vmatpush1.msra.mxu0 0.0
        %1986 = vmatprep.subr.mxu0 0.0
        %1987 = vmatpush1.msra.mxu0 0.0
        %1988 = vmatprep.subr.mxu0 0.0
        %1989 = vmatpush1.msra.mxu0 0.0
        %1990 = vmatprep.subr.mxu0 0.0
        %1991 = vmatpush1.msra.mxu0 0.0
        %1992 = vmatprep.subr.mxu0 0.0
        %1993 = vmatpush1.msra.mxu0 0.0
        %1994 = vmatprep.subr.mxu0 0.0
        %1995 = vmatpush1.msra.mxu0 0.0
        %1996 = vmatprep.subr.mxu0 0.0
        %1997 = vmatpush1.msra.mxu0 0.0
        %1998 = vmatprep.subr.mxu0 0.0
        %1999 = vmatpush1.msra.mxu0 0.0
        %2000 = vmatprep.subr.mxu0 0.0
        %2001 = vmatpush1.msra.mxu0 0.0
        %2002 = vmatprep.subr.mxu0 0.0
        %2003 = vmatpush1.msra.mxu0 0.0
        %2004 = vmatprep.subr.mxu0 0.0
        %2005 = vmatpush1.msra.mxu0 0.0
        %2006 = vmatprep.subr.mxu0 0.0
        %2007 = vmatpush1.msra.mxu0 0.0
        %2008 = vmatprep.subr.mxu0 0.0
        %2009 = vmatpush1.msra.mxu0 0.0
        %2010 = vmatprep.subr.mxu0 0.0
        %2011 = vmatpush1.msra.mxu0 0.0
        %2012 = vmatprep.subr.mxu0 0.0
        %2013 = vmatpush1.msra.mxu0 0.0
        %2014 = vmatprep.subr.mxu0 0.0
        %2015 = vmatpush1.msra.mxu0 0.0
        %2016 = vmatprep.subr.mxu0 0.0
        %2017 = vmatpush1.msra.mxu0 0.0
        %2018 = vmatprep.subr.mxu0 0.0
        %2019 = vmatpush1.msra.mxu0 0.0
        %2020 = vmatprep.subr.mxu0 0.0
        %2021 = vmatpush1.msra.mxu0 0.0
        %2022 = vmatprep.subr.mxu0 0.0
        %2023 = vmatpush1.msra.mxu0 0.0
        %2024 = vmatprep.subr.mxu0 0.0
        %2025 = vmatpush1.msra.mxu0 0.0
        %2026 = vmatprep.subr.mxu0 0.0
        %2027 = vmatpush1.msra.mxu0 0.0
        %2028 = vmatprep.subr.mxu0 0.0
        %2029 = vmatpush1.msra.mxu0 0.0
        %2030 = vmatprep.subr.mxu0 0.0
        %2031 = vmatpush1.msra.mxu0 0.0
        %2032 = vmatprep.subr.mxu0 0.0
        %2033 = vmatpush1.msra.mxu0 0.0
        %2034 = vmatprep.mubr.f32.mxu0 0.0
        %2035 = vmatmul.mubr.f32.gmra.mrb[0].mxu0 %v1968
        %v2036 = vpop.f32.mrb[0].mxu0
        %v2037 = vadd.f32 0.0, %v2036
        %v2038 = vpop.f32.mrb[0].mxu0
        %2039 = vdwg.mxu0
        %v2040 = vadd.f32 %v1516, %v2037
        %v2041 = vxor.u32 %v2040, 2147483648
        %v2042 = vmul.f32 %v2041, 1.442695
        %v2043 = vpow.pop %v2042
        %v2044 = vadd.f32 %v2043, 1.0
        %v2045 = vrcp.pop %v2044
        %v2046 = vmul.f32 1.0, %v2045
        %v2047 = vadd.f32 %v2037, %v1598
        %2049 = vrot.lane.b32.xlu0 %v2047, 96
        %v2050 = vpop.permute.xlu0 %2049
        %v2052 = vmul.f32 %v2046, %v2050
        %2054 = vrot.lane.b32.xlu0 %v2052, 32
        %v2055 = vpop.permute.xlu0 %2054
        %v2057 = vadd.f32 %v1516, %v2055
        %v2058 = vtanh.pop %v2057
        %v2060 = vrot.slane %v2058, 2
        %v2062 = vsub.f32 %v1963, %v2060
        %v2064 = vrot.slane %v2062, 6
        %2065 = vrot.lane.b32.xlu0 %v2064, 112
        %v2066 = vpop.permute.xlu0 %2065
        %v2068 = vmul.f32 %v2046, %v2066
        %2070 = vrot.lane.b32.xlu0 %v2068, 16
        %v2071 = vpop.permute.xlu0 %2070
        %v2073 = vadd.f32 %v2058, %v2071
        %2075 = vrot.lane.b32.xlu0 %v2073, 96
        %v2076 = vpop.permute.xlu0 %2075
        %v2077 = vsel %vm392, %v2076, 0
        %2079 = vmatprep.subr.mxu0 0.0
        %2080 = vmatpush1.msra.mxu0 %v1427
        %2081 = vmatprep.subr.mxu0 0.0
        %2082 = vmatpush1.msra.mxu0 %v1428
        %2083 = vmatprep.subr.mxu0 0.0
        %2084 = vmatpush1.msra.mxu0 0.0
        %2085 = vmatprep.subr.mxu0 0.0
        %2086 = vmatpush1.msra.mxu0 0.0
        %2087 = vmatprep.subr.mxu0 0.0
        %2088 = vmatpush1.msra.mxu0 0.0
        %2089 = vmatprep.subr.mxu0 0.0
        %2090 = vmatpush1.msra.mxu0 0.0
        %2091 = vmatprep.subr.mxu0 0.0
        %2092 = vmatpush1.msra.mxu0 0.0
        %2093 = vmatprep.subr.mxu0 0.0
        %2094 = vmatpush1.msra.mxu0 0.0
        %2095 = vmatprep.subr.mxu0 0.0
        %2096 = vmatpush1.msra.mxu0 0.0
        %2097 = vmatprep.subr.mxu0 0.0
        %2098 = vmatpush1.msra.mxu0 0.0
        %2099 = vmatprep.subr.mxu0 0.0
        %2100 = vmatpush1.msra.mxu0 0.0
        %2101 = vmatprep.subr.mxu0 0.0
        %2102 = vmatpush1.msra.mxu0 0.0
        %2103 = vmatprep.subr.mxu0 0.0
        %2104 = vmatpush1.msra.mxu0 0.0
        %2105 = vmatprep.subr.mxu0 0.0
        %2106 = vmatpush1.msra.mxu0 0.0
        %2107 = vmatprep.subr.mxu0 0.0
        %2108 = vmatpush1.msra.mxu0 0.0
        %2109 = vmatprep.subr.mxu0 0.0
        %2110 = vmatpush1.msra.mxu0 0.0
        %2111 = vmatprep.subr.mxu0 0.0
        %2112 = vmatpush1.msra.mxu0 0.0
        %2113 = vmatprep.subr.mxu0 0.0
        %2114 = vmatpush1.msra.mxu0 0.0
        %2115 = vmatprep.subr.mxu0 0.0
        %2116 = vmatpush1.msra.mxu0 0.0
        %2117 = vmatprep.subr.mxu0 0.0
        %2118 = vmatpush1.msra.mxu0 0.0
        %2119 = vmatprep.subr.mxu0 0.0
        %2120 = vmatpush1.msra.mxu0 0.0
        %2121 = vmatprep.subr.mxu0 0.0
        %2122 = vmatpush1.msra.mxu0 0.0
        %2123 = vmatprep.subr.mxu0 0.0
        %2124 = vmatpush1.msra.mxu0 0.0
        %2125 = vmatprep.subr.mxu0 0.0
        %2126 = vmatpush1.msra.mxu0 0.0
        %2127 = vmatprep.subr.mxu0 0.0
        %2128 = vmatpush1.msra.mxu0 0.0
        %2129 = vmatprep.subr.mxu0 0.0
        %2130 = vmatpush1.msra.mxu0 0.0
        %2131 = vmatprep.subr.mxu0 0.0
        %2132 = vmatpush1.msra.mxu0 0.0
        %2133 = vmatprep.subr.mxu0 0.0
        %2134 = vmatpush1.msra.mxu0 0.0
        %2135 = vmatprep.subr.mxu0 0.0
        %2136 = vmatpush1.msra.mxu0 0.0
        %2137 = vmatprep.subr.mxu0 0.0
        %2138 = vmatpush1.msra.mxu0 0.0
        %2139 = vmatprep.subr.mxu0 0.0
        %2140 = vmatpush1.msra.mxu0 0.0
        %2141 = vmatprep.subr.mxu0 0.0
        %2142 = vmatpush1.msra.mxu0 0.0
        %2143 = vmatprep.mubr.f32.mxu0 0.0
        %2144 = vmatmul.mubr.f32.gmra.mrb[0].mxu0 %v2077
        %v2145 = vpop.f32.mrb[0].mxu0
        %v2146 = vadd.f32 0.0, %v2145
        %v2147 = vpop.f32.mrb[0].mxu0
        %2148 = vdwg.mxu0
        %v2150 = vrot.slane %v2146, 6
        %v2152 = vadd.f32 %v1516, %v2150
        %v2153 = vxor.u32 %v2152, 2147483648
        %v2154 = vmul.f32 %v2153, 1.442695
        %v2155 = vpow.pop %v2154
        %v2156 = vadd.f32 %v2155, 1.0
        %v2157 = vrcp.pop %v2156
        %v2158 = vmul.f32 1.0, %v2157
        %v2159 = vadd.f32 %v2146, %v1598
        %v2161 = vrot.slane %v2159, 6
        %2162 = vrot.lane.b32.xlu0 %v2161, 96
        %v2163 = vpop.permute.xlu0 %2162
        %v2165 = vmul.f32 %v2158, %v2163
        %2167 = vrot.lane.b32.xlu0 %v2165, 32
        %v2168 = vpop.permute.xlu0 %2167
        %v2170 = vadd.f32 %v1516, %v2168
        %v2171 = vtanh.pop %v2170
        %v2173 = vrot.slane %v2171, 2
        %v2175 = vsub.f32 %v2073, %v2173
        %v2177 = vrot.slane %v2175, 6
        %2178 = vrot.lane.b32.xlu0 %v2177, 112
        %v2179 = vpop.permute.xlu0 %2178
        %v2181 = vmul.f32 %v2158, %v2179
        %2183 = vrot.lane.b32.xlu0 %v2181, 16
        %v2184 = vpop.permute.xlu0 %2183
        %v2186 = vadd.f32 %v2171, %v2184
        %v2188 = vrot.slane %v2186, 2
        %2189 = vrot.lane.b32.xlu0 %v2188, 96
        %v2190 = vpop.permute.xlu0 %2189
        %v2191 = vsel %vm392, %v2190, 0
        %2193 = vmatprep.subr.mxu0 0.0
        %2194 = vmatpush1.msra.mxu0 %v1427
        %2195 = vmatprep.subr.mxu0 0.0
        %2196 = vmatpush1.msra.mxu0 %v1428
        %2197 = vmatprep.subr.mxu0 0.0
        %2198 = vmatpush1.msra.mxu0 0.0
        %2199 = vmatprep.subr.mxu0 0.0
        %2200 = vmatpush1.msra.mxu0 0.0
        %2201 = vmatprep.subr.mxu0 0.0
        %2202 = vmatpush1.msra.mxu0 0.0
        %2203 = vmatprep.subr.mxu0 0.0
        %2204 = vmatpush1.msra.mxu0 0.0
        %2205 = vmatprep.subr.mxu0 0.0
        %2206 = vmatpush1.msra.mxu0 0.0
        %2207 = vmatprep.subr.mxu0 0.0
        %2208 = vmatpush1.msra.mxu0 0.0
        %2209 = vmatprep.subr.mxu0 0.0
        %2210 = vmatpush1.msra.mxu0 0.0
        %2211 = vmatprep.subr.mxu0 0.0
        %2212 = vmatpush1.msra.mxu0 0.0
        %2213 = vmatprep.subr.mxu0 0.0
        %2214 = vmatpush1.msra.mxu0 0.0
        %2215 = vmatprep.subr.mxu0 0.0
        %2216 = vmatpush1.msra.mxu0 0.0
        %2217 = vmatprep.subr.mxu0 0.0
        %2218 = vmatpush1.msra.mxu0 0.0
        %2219 = vmatprep.subr.mxu0 0.0
        %2220 = vmatpush1.msra.mxu0 0.0
        %2221 = vmatprep.subr.mxu0 0.0
        %2222 = vmatpush1.msra.mxu0 0.0
        %2223 = vmatprep.subr.mxu0 0.0
        %2224 = vmatpush1.msra.mxu0 0.0
        %2225 = vmatprep.subr.mxu0 0.0
        %2226 = vmatpush1.msra.mxu0 0.0
        %2227 = vmatprep.subr.mxu0 0.0
        %2228 = vmatpush1.msra.mxu0 0.0
        %2229 = vmatprep.subr.mxu0 0.0
        %2230 = vmatpush1.msra.mxu0 0.0
        %2231 = vmatprep.subr.mxu0 0.0
        %2232 = vmatpush1.msra.mxu0 0.0
        %2233 = vmatprep.subr.mxu0 0.0
        %2234 = vmatpush1.msra.mxu0 0.0
        %2235 = vmatprep.subr.mxu0 0.0
        %2236 = vmatpush1.msra.mxu0 0.0
        %2237 = vmatprep.subr.mxu0 0.0
        %2238 = vmatpush1.msra.mxu0 0.0
        %2239 = vmatprep.subr.mxu0 0.0
        %2240 = vmatpush1.msra.mxu0 0.0
        %2241 = vmatprep.subr.mxu0 0.0
        %2242 = vmatpush1.msra.mxu0 0.0
        %2243 = vmatprep.subr.mxu0 0.0
        %2244 = vmatpush1.msra.mxu0 0.0
        %2245 = vmatprep.subr.mxu0 0.0
        %2246 = vmatpush1.msra.mxu0 0.0
        %2247 = vmatprep.subr.mxu0 0.0
        %2248 = vmatpush1.msra.mxu0 0.0
        %2249 = vmatprep.subr.mxu0 0.0
        %2250 = vmatpush1.msra.mxu0 0.0
        %2251 = vmatprep.subr.mxu0 0.0
        %2252 = vmatpush1.msra.mxu0 0.0
        %2253 = vmatprep.subr.mxu0 0.0
        %2254 = vmatpush1.msra.mxu0 0.0
        %2255 = vmatprep.subr.mxu0 0.0
        %2256 = vmatpush1.msra.mxu0 0.0
        %2257 = vmatprep.mubr.f32.mxu0 0.0
        %2258 = vmatmul.mubr.f32.gmra.mrb[0].mxu0 %v2191
        %v2259 = vpop.f32.mrb[0].mxu0
        %v2260 = vadd.f32 0.0, %v2259
        %v2261 = vpop.f32.mrb[0].mxu0
        %2262 = vdwg.mxu0
        %v2264 = vrot.slane %v2260, 4
        %v2266 = vadd.f32 %v1516, %v2264
        %v2267 = vxor.u32 %v2266, 2147483648
        %v2268 = vmul.f32 %v2267, 1.442695
        %v2269 = vpow.pop %v2268
        %v2270 = vadd.f32 %v2269, 1.0
        %v2271 = vrcp.pop %v2270
        %v2272 = vmul.f32 1.0, %v2271
        %v2273 = vadd.f32 %v2260, %v1598
        %v2275 = vrot.slane %v2273, 4
        %2276 = vrot.lane.b32.xlu0 %v2275, 96
        %v2277 = vpop.permute.xlu0 %2276
        %v2279 = vmul.f32 %v2272, %v2277
        %2281 = vrot.lane.b32.xlu0 %v2279, 32
        %v2282 = vpop.permute.xlu0 %2281
        %v2284 = vadd.f32 %v1516, %v2282
        %v2285 = vtanh.pop %v2284
        %v2287 = vrot.slane %v2285, 2
        %v2289 = vsub.f32 %v2186, %v2287
        %v2291 = vrot.slane %v2289, 6
        %2292 = vrot.lane.b32.xlu0 %v2291, 112
        %v2293 = vpop.permute.xlu0 %2292
        %v2295 = vmul.f32 %v2272, %v2293
        %2297 = vrot.lane.b32.xlu0 %v2295, 16
        %v2298 = vpop.permute.xlu0 %2297
        %v2300 = vadd.f32 %v2285, %v2298
        %v2302 = vrot.slane %v2300, 4
        %2303 = vrot.lane.b32.xlu0 %v2302, 96
        %v2304 = vpop.permute.xlu0 %2303
        %v2305 = vsel %vm392, %v2304, 0
        %2307 = vmatprep.subr.mxu0 0.0
        %2308 = vmatpush1.msra.mxu0 %v1427
        %2309 = vmatprep.subr.mxu0 0.0
        %2310 = vmatpush1.msra.mxu0 %v1428
        %2311 = vmatprep.subr.mxu0 0.0
        %2312 = vmatpush1.msra.mxu0 0.0
        %2313 = vmatprep.subr.mxu0 0.0
        %2314 = vmatpush1.msra.mxu0 0.0
        %2315 = vmatprep.subr.mxu0 0.0
        %2316 = vmatpush1.msra.mxu0 0.0
        %2317 = vmatprep.subr.mxu0 0.0
        %2318 = vmatpush1.msra.mxu0 0.0
        %2319 = vmatprep.subr.mxu0 0.0
        %2320 = vmatpush1.msra.mxu0 0.0
        %2321 = vmatprep.subr.mxu0 0.0
        %2322 = vmatpush1.msra.mxu0 0.0
        %2323 = vmatprep.subr.mxu0 0.0
        %2324 = vmatpush1.msra.mxu0 0.0
        %2325 = vmatprep.subr.mxu0 0.0
        %2326 = vmatpush1.msra.mxu0 0.0
        %2327 = vmatprep.subr.mxu0 0.0
        %2328 = vmatpush1.msra.mxu0 0.0
        %2329 = vmatprep.subr.mxu0 0.0
        %2330 = vmatpush1.msra.mxu0 0.0
        %2331 = vmatprep.subr.mxu0 0.0
        %2332 = vmatpush1.msra.mxu0 0.0
        %2333 = vmatprep.subr.mxu0 0.0
        %2334 = vmatpush1.msra.mxu0 0.0
        %2335 = vmatprep.subr.mxu0 0.0
        %2336 = vmatpush1.msra.mxu0 0.0
        %2337 = vmatprep.subr.mxu0 0.0
        %2338 = vmatpush1.msra.mxu0 0.0
        %2339 = vmatprep.subr.mxu0 0.0
        %2340 = vmatpush1.msra.mxu0 0.0
        %2341 = vmatprep.subr.mxu0 0.0
        %2342 = vmatpush1.msra.mxu0 0.0
        %2343 = vmatprep.subr.mxu0 0.0
        %2344 = vmatpush1.msra.mxu0 0.0
        %2345 = vmatprep.subr.mxu0 0.0
        %2346 = vmatpush1.msra.mxu0 0.0
        %2347 = vmatprep.subr.mxu0 0.0
        %2348 = vmatpush1.msra.mxu0 0.0
        %2349 = vmatprep.subr.mxu0 0.0
        %2350 = vmatpush1.msra.mxu0 0.0
        %2351 = vmatprep.subr.mxu0 0.0
        %2352 = vmatpush1.msra.mxu0 0.0
        %2353 = vmatprep.subr.mxu0 0.0
        %2354 = vmatpush1.msra.mxu0 0.0
        %2355 = vmatprep.subr.mxu0 0.0
        %2356 = vmatpush1.msra.mxu0 0.0
        %2357 = vmatprep.subr.mxu0 0.0
        %2358 = vmatpush1.msra.mxu0 0.0
        %2359 = vmatprep.subr.mxu0 0.0
        %2360 = vmatpush1.msra.mxu0 0.0
        %2361 = vmatprep.subr.mxu0 0.0
        %2362 = vmatpush1.msra.mxu0 0.0
        %2363 = vmatprep.subr.mxu0 0.0
        %2364 = vmatpush1.msra.mxu0 0.0
        %2365 = vmatprep.subr.mxu0 0.0
        %2366 = vmatpush1.msra.mxu0 0.0
        %2367 = vmatprep.subr.mxu0 0.0
        %2368 = vmatpush1.msra.mxu0 0.0
        %2369 = vmatprep.subr.mxu0 0.0
        %2370 = vmatpush1.msra.mxu0 0.0
        %2371 = vmatprep.mubr.f32.mxu0 0.0
        %2372 = vmatmul.mubr.f32.gmra.mrb[0].mxu0 %v2305
        %v2373 = vpop.f32.mrb[0].mxu0
        %v2374 = vadd.f32 0.0, %v2373
        %v2375 = vpop.f32.mrb[0].mxu0
        %2376 = vdwg.mxu0
        %v2378 = vrot.slane %v2374, 2
        %v2380 = vadd.f32 %v1516, %v2378
        %v2381 = vxor.u32 %v2380, 2147483648
        %v2382 = vmul.f32 %v2381, 1.442695
        %v2383 = vpow.pop %v2382
        %v2384 = vadd.f32 %v2383, 1.0
        %v2385 = vrcp.pop %v2384
        %v2386 = vmul.f32 1.0, %v2385
        %v2387 = vadd.f32 %v2374, %v1598
        %v2389 = vrot.slane %v2387, 2
        %2390 = vrot.lane.b32.xlu0 %v2389, 96
        %v2391 = vpop.permute.xlu0 %2390
        %v2393 = vmul.f32 %v2386, %v2391
        %2395 = vrot.lane.b32.xlu0 %v2393, 32
        %v2396 = vpop.permute.xlu0 %2395
        %v2398 = vadd.f32 %v1516, %v2396
        %v2399 = vtanh.pop %v2398
        %v2401 = vrot.slane %v2399, 2
        %v2403 = vsub.f32 %v2300, %v2401
        %v2405 = vrot.slane %v2403, 6
        %2406 = vrot.lane.b32.xlu0 %v2405, 112
        %v2407 = vpop.permute.xlu0 %2406
        %v2409 = vmul.f32 %v2386, %v2407
        %2411 = vrot.lane.b32.xlu0 %v2409, 16
        %v2412 = vpop.permute.xlu0 %2411
        %v2414 = vadd.f32 %v2399, %v2412
        %v2415 = vsel %vm1414, %v1622, %v1735
        %v2416 = vsel %vm1416, %v2415, %v1849
        %v2417 = vsel %vm1418, %v2416, %v1963
        %v2418 = vsel %vm1414, %v2073, %v2186
        %v2419 = vsel %vm1416, %v2418, %v2300
        %v2420 = vsel %vm1418, %v2419, %v2414
        %s2421 = scalar_lea.vmem [#allocation2], 64
        %v2422 = vld [vmem:[%s2421] sm:$0xff]
        %v2423 = vld [vmem:[%s2421 + $0x8] sm:$0xff]
        %s2424 = scalar_lea.vmem [#allocation2], 80
        %v2425 = vld [vmem:[%s2424] sm:$0xff]
        %v2426 = vld [vmem:[%s2424 + $0x8] sm:$0xff]
        %v2427 = vld [vmem:[%s3 + $0x2] sm:$0x1]
        %v2428 = vlaneseq
        %v2429 = vshrl.u32 %v2428, 7
        %v2430 = vsub.s32 0, %v2429
        %v2431 = vrot.slane %v2427, %v2430
        %2434 = vrot.lane.b32.xlu0 %v2417, 96
        %v2435 = vpop.permute.xlu0 %2434
        %2436 = vrot.lane.b32.xlu0 %v2420, 96
        %v2437 = vpop.permute.xlu0 %2436
        %v2438 = vsel %vm392, %v2435, 0
        %v2440 = vsel %vm392, %v2437, 0
        %2442 = vmatprep.subr.mxu0 0.0
        %2443 = vmatpush1.msra.mxu0 %v2422
        %2444 = vmatprep.subr.mxu0 0.0
        %2445 = vmatpush1.msra.mxu0 %v2423
        %2446 = vmatprep.subr.mxu0 0.0
        %2447 = vmatpush1.msra.mxu0 0.0
        %2448 = vmatprep.subr.mxu0 0.0
        %2449 = vmatpush1.msra.mxu0 0.0
        %2450 = vmatprep.subr.mxu0 0.0
        %2451 = vmatpush1.msra.mxu0 0.0
        %2452 = vmatprep.subr.mxu0 0.0
        %2453 = vmatpush1.msra.mxu0 0.0
        %2454 = vmatprep.subr.mxu0 0.0
        %2455 = vmatpush1.msra.mxu0 0.0
        %2456 = vmatprep.subr.mxu0 0.0
        %2457 = vmatpush1.msra.mxu0 0.0
        %2458 = vmatprep.subr.mxu0 0.0
        %2459 = vmatpush1.msra.mxu0 0.0
        %2460 = vmatprep.subr.mxu0 0.0
        %2461 = vmatpush1.msra.mxu0 0.0
        %2462 = vmatprep.subr.mxu0 0.0
        %2463 = vmatpush1.msra.mxu0 0.0
        %2464 = vmatprep.subr.mxu0 0.0
        %2465 = vmatpush1.msra.mxu0 0.0
        %2466 = vmatprep.subr.mxu0 0.0
        %2467 = vmatpush1.msra.mxu0 0.0
        %2468 = vmatprep.subr.mxu0 0.0
        %2469 = vmatpush1.msra.mxu0 0.0
        %2470 = vmatprep.subr.mxu0 0.0
        %2471 = vmatpush1.msra.mxu0 0.0
        %2472 = vmatprep.subr.mxu0 0.0
        %2473 = vmatpush1.msra.mxu0 0.0
        %2474 = vmatprep.subr.mxu0 0.0
        %2475 = vmatpush1.msra.mxu0 0.0
        %2476 = vmatprep.subr.mxu0 0.0
        %2477 = vmatpush1.msra.mxu0 0.0
        %2478 = vmatprep.subr.mxu0 0.0
        %2479 = vmatpush1.msra.mxu0 0.0
        %2480 = vmatprep.subr.mxu0 0.0
        %2481 = vmatpush1.msra.mxu0 0.0
        %2482 = vmatprep.subr.mxu0 0.0
        %2483 = vmatpush1.msra.mxu0 0.0
        %2484 = vmatprep.subr.mxu0 0.0
        %2485 = vmatpush1.msra.mxu0 0.0
        %2486 = vmatprep.subr.mxu0 0.0
        %2487 = vmatpush1.msra.mxu0 0.0
        %2488 = vmatprep.subr.mxu0 0.0
        %2489 = vmatpush1.msra.mxu0 0.0
        %2490 = vmatprep.subr.mxu0 0.0
        %2491 = vmatpush1.msra.mxu0 0.0
        %2492 = vmatprep.subr.mxu0 0.0
        %2493 = vmatpush1.msra.mxu0 0.0
        %2494 = vmatprep.subr.mxu0 0.0
        %2495 = vmatpush1.msra.mxu0 0.0
        %2496 = vmatprep.subr.mxu0 0.0
        %2497 = vmatpush1.msra.mxu0 0.0
        %2498 = vmatprep.subr.mxu0 0.0
        %2499 = vmatpush1.msra.mxu0 0.0
        %2500 = vmatprep.subr.mxu0 0.0
        %2501 = vmatpush1.msra.mxu0 0.0
        %2502 = vmatprep.subr.mxu0 0.0
        %2503 = vmatpush1.msra.mxu0 0.0
        %2504 = vmatprep.subr.mxu0 0.0
        %2505 = vmatpush1.msra.mxu0 0.0
        %2506 = vmatprep.mubr.f32.mxu0 0.0
        %2507 = vmatmul.mubr.f32.gmra.mrb[0].mxu0 %v2438
        %v2508 = vpop.f32.mrb[0].mxu0
        %v2509 = vadd.f32 %v2431, %v2508
        %v2510 = vpop.f32.mrb[0].mxu0
        %2511 = vmatprep.mubr.f32.mxu0 0.0
        %2512 = vmatmul.mubr.f32.gmra.mrb[0].mxu0 %v2440
        %v2513 = vpop.f32.mrb[0].mxu0
        %v2514 = vadd.f32 %v2431, %v2513
        %v2515 = vpop.f32.mrb[0].mxu0
        %2516 = vdwg.mxu0
        %2517 = vmatprep.subr.mxu0 0.0
        %2518 = vmatpush1.msra.mxu0 %v2425
        %2519 = vmatprep.subr.mxu0 0.0
        %2520 = vmatpush1.msra.mxu0 %v2426
        %2521 = vmatprep.subr.mxu0 0.0
        %2522 = vmatpush1.msra.mxu0 0.0
        %2523 = vmatprep.subr.mxu0 0.0
        %2524 = vmatpush1.msra.mxu0 0.0
        %2525 = vmatprep.subr.mxu0 0.0
        %2526 = vmatpush1.msra.mxu0 0.0
        %2527 = vmatprep.subr.mxu0 0.0
        %2528 = vmatpush1.msra.mxu0 0.0
        %2529 = vmatprep.subr.mxu0 0.0
        %2530 = vmatpush1.msra.mxu0 0.0
        %2531 = vmatprep.subr.mxu0 0.0
        %2532 = vmatpush1.msra.mxu0 0.0
        %2533 = vmatprep.subr.mxu0 0.0
        %2534 = vmatpush1.msra.mxu0 0.0
        %2535 = vmatprep.subr.mxu0 0.0
        %2536 = vmatpush1.msra.mxu0 0.0
        %2537 = vmatprep.subr.mxu0 0.0
        %2538 = vmatpush1.msra.mxu0 0.0
        %2539 = vmatprep.subr.mxu0 0.0
        %2540 = vmatpush1.msra.mxu0 0.0
        %2541 = vmatprep.subr.mxu0 0.0
        %2542 = vmatpush1.msra.mxu0 0.0
        %2543 = vmatprep.subr.mxu0 0.0
        %2544 = vmatpush1.msra.mxu0 0.0
        %2545 = vmatprep.subr.mxu0 0.0
        %2546 = vmatpush1.msra.mxu0 0.0
        %2547 = vmatprep.subr.mxu0 0.0
        %2548 = vmatpush1.msra.mxu0 0.0
        %2549 = vmatprep.subr.mxu0 0.0
        %2550 = vmatpush1.msra.mxu0 0.0
        %2551 = vmatprep.subr.mxu0 0.0
        %2552 = vmatpush1.msra.mxu0 0.0
        %2553 = vmatprep.subr.mxu0 0.0
        %2554 = vmatpush1.msra.mxu0 0.0
        %2555 = vmatprep.subr.mxu0 0.0
        %2556 = vmatpush1.msra.mxu0 0.0
        %2557 = vmatprep.subr.mxu0 0.0
        %2558 = vmatpush1.msra.mxu0 0.0
        %2559 = vmatprep.subr.mxu0 0.0
        %2560 = vmatpush1.msra.mxu0 0.0
        %2561 = vmatprep.subr.mxu0 0.0
        %2562 = vmatpush1.msra.mxu0 0.0
        %2563 = vmatprep.subr.mxu0 0.0
        %2564 = vmatpush1.msra.mxu0 0.0
        %2565 = vmatprep.subr.mxu0 0.0
        %2566 = vmatpush1.msra.mxu0 0.0
        %2567 = vmatprep.subr.mxu0 0.0
        %2568 = vmatpush1.msra.mxu0 0.0
        %2569 = vmatprep.subr.mxu0 0.0
        %2570 = vmatpush1.msra.mxu0 0.0
        %2571 = vmatprep.subr.mxu0 0.0
        %2572 = vmatpush1.msra.mxu0 0.0
        %2573 = vmatprep.subr.mxu0 0.0
        %2574 = vmatpush1.msra.mxu0 0.0
        %2575 = vmatprep.subr.mxu0 0.0
        %2576 = vmatpush1.msra.mxu0 0.0
        %2577 = vmatprep.subr.mxu0 0.0
        %2578 = vmatpush1.msra.mxu0 0.0
        %2579 = vmatprep.subr.mxu0 0.0
        %2580 = vmatpush1.msra.mxu0 0.0
        %2581 = vmatprep.mubr.f32.mxu0 0.0
        %2582 = vmatmul.mubr.f32.gmra.mrb[0].mxu0 %v516
        %v2583 = vpop.f32.mrb[0].mxu0
        %v2584 = vadd.f32 0.0, %v2583
        %v2585 = vpop.f32.mrb[0].mxu0
        %2586 = vdwg.mxu0
        %v2587 = vadd.f32 %v2509, %v2584
        %v2588 = vxor.u32 %v2587, 2147483648
        %v2589 = vmul.f32 %v2588, 1.442695
        %v2590 = vpow.pop %v2589
        %v2591 = vadd.f32 %v2590, 1.0
        %v2592 = vrcp.pop %v2591
        %v2593 = vmul.f32 1.0, %v2592
        %2595 = vrot.lane.b32.xlu0 %v2431, 112
        %v2596 = vpop.permute.xlu0 %2595
        %v2598 = vadd.f32 %v2584, %v2596
        %2600 = vrot.lane.b32.xlu0 %v2598, 96
        %v2601 = vpop.permute.xlu0 %2600
        %v2603 = vmul.f32 %v2593, %v2601
        %2605 = vrot.lane.b32.xlu0 %v2603, 32
        %v2606 = vpop.permute.xlu0 %2605
        %v2608 = vadd.f32 %v2509, %v2606
        %v2609 = vtanh.pop %v2608
        %v2610 = vsub.f32 0.0, %v2609
        %2612 = vrot.lane.b32.xlu0 %v2610, 112
        %v2613 = vpop.permute.xlu0 %2612
        %v2615 = vmul.f32 %v2593, %v2613
        %2617 = vrot.lane.b32.xlu0 %v2615, 16
        %v2618 = vpop.permute.xlu0 %2617
        %v2620 = vadd.f32 %v2609, %v2618
        %2622 = vrot.lane.b32.xlu0 %v2620, 96
        %v2623 = vpop.permute.xlu0 %2622
        %v2624 = vsel %vm392, %v2623, 0
        %2626 = vmatprep.subr.mxu0 0.0
        %2627 = vmatpush1.msra.mxu0 %v2425
        %2628 = vmatprep.subr.mxu0 0.0
        %2629 = vmatpush1.msra.mxu0 %v2426
        %2630 = vmatprep.subr.mxu0 0.0
        %2631 = vmatpush1.msra.mxu0 0.0
        %2632 = vmatprep.subr.mxu0 0.0
        %2633 = vmatpush1.msra.mxu0 0.0
        %2634 = vmatprep.subr.mxu0 0.0
        %2635 = vmatpush1.msra.mxu0 0.0
        %2636 = vmatprep.subr.mxu0 0.0
        %2637 = vmatpush1.msra.mxu0 0.0
        %2638 = vmatprep.subr.mxu0 0.0
        %2639 = vmatpush1.msra.mxu0 0.0
        %2640 = vmatprep.subr.mxu0 0.0
        %2641 = vmatpush1.msra.mxu0 0.0
        %2642 = vmatprep.subr.mxu0 0.0
        %2643 = vmatpush1.msra.mxu0 0.0
        %2644 = vmatprep.subr.mxu0 0.0
        %2645 = vmatpush1.msra.mxu0 0.0
        %2646 = vmatprep.subr.mxu0 0.0
        %2647 = vmatpush1.msra.mxu0 0.0
        %2648 = vmatprep.subr.mxu0 0.0
        %2649 = vmatpush1.msra.mxu0 0.0
        %2650 = vmatprep.subr.mxu0 0.0
        %2651 = vmatpush1.msra.mxu0 0.0
        %2652 = vmatprep.subr.mxu0 0.0
        %2653 = vmatpush1.msra.mxu0 0.0
        %2654 = vmatprep.subr.mxu0 0.0
        %2655 = vmatpush1.msra.mxu0 0.0
        %2656 = vmatprep.subr.mxu0 0.0
        %2657 = vmatpush1.msra.mxu0 0.0
        %2658 = vmatprep.subr.mxu0 0.0
        %2659 = vmatpush1.msra.mxu0 0.0
        %2660 = vmatprep.subr.mxu0 0.0
        %2661 = vmatpush1.msra.mxu0 0.0
        %2662 = vmatprep.subr.mxu0 0.0
        %2663 = vmatpush1.msra.mxu0 0.0
        %2664 = vmatprep.subr.mxu0 0.0
        %2665 = vmatpush1.msra.mxu0 0.0
        %2666 = vmatprep.subr.mxu0 0.0
        %2667 = vmatpush1.msra.mxu0 0.0
        %2668 = vmatprep.subr.mxu0 0.0
        %2669 = vmatpush1.msra.mxu0 0.0
        %2670 = vmatprep.subr.mxu0 0.0
        %2671 = vmatpush1.msra.mxu0 0.0
        %2672 = vmatprep.subr.mxu0 0.0
        %2673 = vmatpush1.msra.mxu0 0.0
        %2674 = vmatprep.subr.mxu0 0.0
        %2675 = vmatpush1.msra.mxu0 0.0
        %2676 = vmatprep.subr.mxu0 0.0
        %2677 = vmatpush1.msra.mxu0 0.0
        %2678 = vmatprep.subr.mxu0 0.0
        %2679 = vmatpush1.msra.mxu0 0.0
        %2680 = vmatprep.subr.mxu0 0.0
        %2681 = vmatpush1.msra.mxu0 0.0
        %2682 = vmatprep.subr.mxu0 0.0
        %2683 = vmatpush1.msra.mxu0 0.0
        %2684 = vmatprep.subr.mxu0 0.0
        %2685 = vmatpush1.msra.mxu0 0.0
        %2686 = vmatprep.subr.mxu0 0.0
        %2687 = vmatpush1.msra.mxu0 0.0
        %2688 = vmatprep.subr.mxu0 0.0
        %2689 = vmatpush1.msra.mxu0 0.0
        %2690 = vmatprep.mubr.f32.mxu0 0.0
        %2691 = vmatmul.mubr.f32.gmra.mrb[0].mxu0 %v2624
        %v2692 = vpop.f32.mrb[0].mxu0
        %v2693 = vadd.f32 0.0, %v2692
        %v2694 = vpop.f32.mrb[0].mxu0
        %2695 = vdwg.mxu0
        %v2697 = vrot.slane %v2693, 6
        %v2699 = vadd.f32 %v2509, %v2697
        %v2700 = vxor.u32 %v2699, 2147483648
        %v2701 = vmul.f32 %v2700, 1.442695
        %v2702 = vpow.pop %v2701
        %v2703 = vadd.f32 %v2702, 1.0
        %v2704 = vrcp.pop %v2703
        %v2705 = vmul.f32 1.0, %v2704
        %v2706 = vadd.f32 %v2693, %v2596
        %v2708 = vrot.slane %v2706, 6
        %2709 = vrot.lane.b32.xlu0 %v2708, 96
        %v2710 = vpop.permute.xlu0 %2709
        %v2712 = vmul.f32 %v2705, %v2710
        %2714 = vrot.lane.b32.xlu0 %v2712, 32
        %v2715 = vpop.permute.xlu0 %2714
        %v2717 = vadd.f32 %v2509, %v2715
        %v2718 = vtanh.pop %v2717
        %v2720 = vrot.slane %v2718, 2
        %v2722 = vsub.f32 %v2620, %v2720
        %v2724 = vrot.slane %v2722, 6
        %2725 = vrot.lane.b32.xlu0 %v2724, 112
        %v2726 = vpop.permute.xlu0 %2725
        %v2728 = vmul.f32 %v2705, %v2726
        %2730 = vrot.lane.b32.xlu0 %v2728, 16
        %v2731 = vpop.permute.xlu0 %2730
        %v2733 = vadd.f32 %v2718, %v2731
        %v2735 = vrot.slane %v2733, 2
        %2736 = vrot.lane.b32.xlu0 %v2735, 96
        %v2737 = vpop.permute.xlu0 %2736
        %v2738 = vsel %vm392, %v2737, 0
        %2740 = vmatprep.subr.mxu0 0.0
        %2741 = vmatpush1.msra.mxu0 %v2425
        %2742 = vmatprep.subr.mxu0 0.0
        %2743 = vmatpush1.msra.mxu0 %v2426
        %2744 = vmatprep.subr.mxu0 0.0
        %2745 = vmatpush1.msra.mxu0 0.0
        %2746 = vmatprep.subr.mxu0 0.0
        %2747 = vmatpush1.msra.mxu0 0.0
        %2748 = vmatprep.subr.mxu0 0.0
        %2749 = vmatpush1.msra.mxu0 0.0
        %2750 = vmatprep.subr.mxu0 0.0
        %2751 = vmatpush1.msra.mxu0 0.0
        %2752 = vmatprep.subr.mxu0 0.0
        %2753 = vmatpush1.msra.mxu0 0.0
        %2754 = vmatprep.subr.mxu0 0.0
        %2755 = vmatpush1.msra.mxu0 0.0
        %2756 = vmatprep.subr.mxu0 0.0
        %2757 = vmatpush1.msra.mxu0 0.0
        %2758 = vmatprep.subr.mxu0 0.0
        %2759 = vmatpush1.msra.mxu0 0.0
        %2760 = vmatprep.subr.mxu0 0.0
        %2761 = vmatpush1.msra.mxu0 0.0
        %2762 = vmatprep.subr.mxu0 0.0
        %2763 = vmatpush1.msra.mxu0 0.0
        %2764 = vmatprep.subr.mxu0 0.0
        %2765 = vmatpush1.msra.mxu0 0.0
        %2766 = vmatprep.subr.mxu0 0.0
        %2767 = vmatpush1.msra.mxu0 0.0
        %2768 = vmatprep.subr.mxu0 0.0
        %2769 = vmatpush1.msra.mxu0 0.0
        %2770 = vmatprep.subr.mxu0 0.0
        %2771 = vmatpush1.msra.mxu0 0.0
        %2772 = vmatprep.subr.mxu0 0.0
        %2773 = vmatpush1.msra.mxu0 0.0
        %2774 = vmatprep.subr.mxu0 0.0
        %2775 = vmatpush1.msra.mxu0 0.0
        %2776 = vmatprep.subr.mxu0 0.0
        %2777 = vmatpush1.msra.mxu0 0.0
        %2778 = vmatprep.subr.mxu0 0.0
        %2779 = vmatpush1.msra.mxu0 0.0
        %2780 = vmatprep.subr.mxu0 0.0
        %2781 = vmatpush1.msra.mxu0 0.0
        %2782 = vmatprep.subr.mxu0 0.0
        %2783 = vmatpush1.msra.mxu0 0.0
        %2784 = vmatprep.subr.mxu0 0.0
        %2785 = vmatpush1.msra.mxu0 0.0
        %2786 = vmatprep.subr.mxu0 0.0
        %2787 = vmatpush1.msra.mxu0 0.0
        %2788 = vmatprep.subr.mxu0 0.0
        %2789 = vmatpush1.msra.mxu0 0.0
        %2790 = vmatprep.subr.mxu0 0.0
        %2791 = vmatpush1.msra.mxu0 0.0
        %2792 = vmatprep.subr.mxu0 0.0
        %2793 = vmatpush1.msra.mxu0 0.0
        %2794 = vmatprep.subr.mxu0 0.0
        %2795 = vmatpush1.msra.mxu0 0.0
        %2796 = vmatprep.subr.mxu0 0.0
        %2797 = vmatpush1.msra.mxu0 0.0
        %2798 = vmatprep.subr.mxu0 0.0
        %2799 = vmatpush1.msra.mxu0 0.0
        %2800 = vmatprep.subr.mxu0 0.0
        %2801 = vmatpush1.msra.mxu0 0.0
        %2802 = vmatprep.subr.mxu0 0.0
        %2803 = vmatpush1.msra.mxu0 0.0
        %2804 = vmatprep.mubr.f32.mxu0 0.0
        %2805 = vmatmul.mubr.f32.gmra.mrb[0].mxu0 %v2738
        %v2806 = vpop.f32.mrb[0].mxu0
        %v2807 = vadd.f32 0.0, %v2806
        %v2808 = vpop.f32.mrb[0].mxu0
        %2809 = vdwg.mxu0
        %v2811 = vrot.slane %v2807, 4
        %v2813 = vadd.f32 %v2509, %v2811
        %v2814 = vxor.u32 %v2813, 2147483648
        %v2815 = vmul.f32 %v2814, 1.442695
        %v2816 = vpow.pop %v2815
        %v2817 = vadd.f32 %v2816, 1.0
        %v2818 = vrcp.pop %v2817
        %v2819 = vmul.f32 1.0, %v2818
        %v2820 = vadd.f32 %v2807, %v2596
        %v2822 = vrot.slane %v2820, 4
        %2823 = vrot.lane.b32.xlu0 %v2822, 96
        %v2824 = vpop.permute.xlu0 %2823
        %v2826 = vmul.f32 %v2819, %v2824
        %2828 = vrot.lane.b32.xlu0 %v2826, 32
        %v2829 = vpop.permute.xlu0 %2828
        %v2831 = vadd.f32 %v2509, %v2829
        %v2832 = vtanh.pop %v2831
        %v2834 = vrot.slane %v2832, 2
        %v2836 = vsub.f32 %v2733, %v2834
        %v2838 = vrot.slane %v2836, 6
        %2839 = vrot.lane.b32.xlu0 %v2838, 112
        %v2840 = vpop.permute.xlu0 %2839
        %v2842 = vmul.f32 %v2819, %v2840
        %2844 = vrot.lane.b32.xlu0 %v2842, 16
        %v2845 = vpop.permute.xlu0 %2844
        %v2847 = vadd.f32 %v2832, %v2845
        %v2849 = vrot.slane %v2847, 4
        %2850 = vrot.lane.b32.xlu0 %v2849, 96
        %v2851 = vpop.permute.xlu0 %2850
        %v2852 = vsel %vm392, %v2851, 0
        %2854 = vmatprep.subr.mxu0 0.0
        %2855 = vmatpush1.msra.mxu0 %v2425
        %2856 = vmatprep.subr.mxu0 0.0
        %2857 = vmatpush1.msra.mxu0 %v2426
        %2858 = vmatprep.subr.mxu0 0.0
        %2859 = vmatpush1.msra.mxu0 0.0
        %2860 = vmatprep.subr.mxu0 0.0
        %2861 = vmatpush1.msra.mxu0 0.0
        %2862 = vmatprep.subr.mxu0 0.0
        %2863 = vmatpush1.msra.mxu0 0.0
        %2864 = vmatprep.subr.mxu0 0.0
        %2865 = vmatpush1.msra.mxu0 0.0
        %2866 = vmatprep.subr.mxu0 0.0
        %2867 = vmatpush1.msra.mxu0 0.0
        %2868 = vmatprep.subr.mxu0 0.0
        %2869 = vmatpush1.msra.mxu0 0.0
        %2870 = vmatprep.subr.mxu0 0.0
        %2871 = vmatpush1.msra.mxu0 0.0
        %2872 = vmatprep.subr.mxu0 0.0
        %2873 = vmatpush1.msra.mxu0 0.0
        %2874 = vmatprep.subr.mxu0 0.0
        %2875 = vmatpush1.msra.mxu0 0.0
        %2876 = vmatprep.subr.mxu0 0.0
        %2877 = vmatpush1.msra.mxu0 0.0
        %2878 = vmatprep.subr.mxu0 0.0
        %2879 = vmatpush1.msra.mxu0 0.0
        %2880 = vmatprep.subr.mxu0 0.0
        %2881 = vmatpush1.msra.mxu0 0.0
        %2882 = vmatprep.subr.mxu0 0.0
        %2883 = vmatpush1.msra.mxu0 0.0
        %2884 = vmatprep.subr.mxu0 0.0
        %2885 = vmatpush1.msra.mxu0 0.0
        %2886 = vmatprep.subr.mxu0 0.0
        %2887 = vmatpush1.msra.mxu0 0.0
        %2888 = vmatprep.subr.mxu0 0.0
        %2889 = vmatpush1.msra.mxu0 0.0
        %2890 = vmatprep.subr.mxu0 0.0
        %2891 = vmatpush1.msra.mxu0 0.0
        %2892 = vmatprep.subr.mxu0 0.0
        %2893 = vmatpush1.msra.mxu0 0.0
        %2894 = vmatprep.subr.mxu0 0.0
        %2895 = vmatpush1.msra.mxu0 0.0
        %2896 = vmatprep.subr.mxu0 0.0
        %2897 = vmatpush1.msra.mxu0 0.0
        %2898 = vmatprep.subr.mxu0 0.0
        %2899 = vmatpush1.msra.mxu0 0.0
        %2900 = vmatprep.subr.mxu0 0.0
        %2901 = vmatpush1.msra.mxu0 0.0
        %2902 = vmatprep.subr.mxu0 0.0
        %2903 = vmatpush1.msra.mxu0 0.0
        %2904 = vmatprep.subr.mxu0 0.0
        %2905 = vmatpush1.msra.mxu0 0.0
        %2906 = vmatprep.subr.mxu0 0.0
        %2907 = vmatpush1.msra.mxu0 0.0
        %2908 = vmatprep.subr.mxu0 0.0
        %2909 = vmatpush1.msra.mxu0 0.0
        %2910 = vmatprep.subr.mxu0 0.0
        %2911 = vmatpush1.msra.mxu0 0.0
        %2912 = vmatprep.subr.mxu0 0.0
        %2913 = vmatpush1.msra.mxu0 0.0
        %2914 = vmatprep.subr.mxu0 0.0
        %2915 = vmatpush1.msra.mxu0 0.0
        %2916 = vmatprep.subr.mxu0 0.0
        %2917 = vmatpush1.msra.mxu0 0.0
        %2918 = vmatprep.mubr.f32.mxu0 0.0
        %2919 = vmatmul.mubr.f32.gmra.mrb[0].mxu0 %v2852
        %v2920 = vpop.f32.mrb[0].mxu0
        %v2921 = vadd.f32 0.0, %v2920
        %v2922 = vpop.f32.mrb[0].mxu0
        %2923 = vdwg.mxu0
        %v2925 = vrot.slane %v2921, 2
        %v2927 = vadd.f32 %v2509, %v2925
        %v2928 = vxor.u32 %v2927, 2147483648
        %v2929 = vmul.f32 %v2928, 1.442695
        %v2930 = vpow.pop %v2929
        %v2931 = vadd.f32 %v2930, 1.0
        %v2932 = vrcp.pop %v2931
        %v2933 = vmul.f32 1.0, %v2932
        %v2934 = vadd.f32 %v2921, %v2596
        %v2936 = vrot.slane %v2934, 2
        %2937 = vrot.lane.b32.xlu0 %v2936, 96
        %v2938 = vpop.permute.xlu0 %2937
        %v2940 = vmul.f32 %v2933, %v2938
        %2942 = vrot.lane.b32.xlu0 %v2940, 32
        %v2943 = vpop.permute.xlu0 %2942
        %v2945 = vadd.f32 %v2509, %v2943
        %v2946 = vtanh.pop %v2945
        %v2948 = vrot.slane %v2946, 2
        %v2950 = vsub.f32 %v2847, %v2948
        %v2952 = vrot.slane %v2950, 6
        %2953 = vrot.lane.b32.xlu0 %v2952, 112
        %v2954 = vpop.permute.xlu0 %2953
        %v2956 = vmul.f32 %v2933, %v2954
        %2958 = vrot.lane.b32.xlu0 %v2956, 16
        %v2959 = vpop.permute.xlu0 %2958
        %v2961 = vadd.f32 %v2946, %v2959
        %v2963 = vrot.slane %v2961, 6
        %2964 = vrot.lane.b32.xlu0 %v2963, 96
        %v2965 = vpop.permute.xlu0 %2964
        %v2966 = vsel %vm392, %v2965, 0
        %2968 = vmatprep.subr.mxu0 0.0
        %2969 = vmatpush1.msra.mxu0 %v2425
        %2970 = vmatprep.subr.mxu0 0.0
        %2971 = vmatpush1.msra.mxu0 %v2426
        %2972 = vmatprep.subr.mxu0 0.0
        %2973 = vmatpush1.msra.mxu0 0.0
        %2974 = vmatprep.subr.mxu0 0.0
        %2975 = vmatpush1.msra.mxu0 0.0
        %2976 = vmatprep.subr.mxu0 0.0
        %2977 = vmatpush1.msra.mxu0 0.0
        %2978 = vmatprep.subr.mxu0 0.0
        %2979 = vmatpush1.msra.mxu0 0.0
        %2980 = vmatprep.subr.mxu0 0.0
        %2981 = vmatpush1.msra.mxu0 0.0
        %2982 = vmatprep.subr.mxu0 0.0
        %2983 = vmatpush1.msra.mxu0 0.0
        %2984 = vmatprep.subr.mxu0 0.0
        %2985 = vmatpush1.msra.mxu0 0.0
        %2986 = vmatprep.subr.mxu0 0.0
        %2987 = vmatpush1.msra.mxu0 0.0
        %2988 = vmatprep.subr.mxu0 0.0
        %2989 = vmatpush1.msra.mxu0 0.0
        %2990 = vmatprep.subr.mxu0 0.0
        %2991 = vmatpush1.msra.mxu0 0.0
        %2992 = vmatprep.subr.mxu0 0.0
        %2993 = vmatpush1.msra.mxu0 0.0
        %2994 = vmatprep.subr.mxu0 0.0
        %2995 = vmatpush1.msra.mxu0 0.0
        %2996 = vmatprep.subr.mxu0 0.0
        %2997 = vmatpush1.msra.mxu0 0.0
        %2998 = vmatprep.subr.mxu0 0.0
        %2999 = vmatpush1.msra.mxu0 0.0
        %3000 = vmatprep.subr.mxu0 0.0
        %3001 = vmatpush1.msra.mxu0 0.0
        %3002 = vmatprep.subr.mxu0 0.0
        %3003 = vmatpush1.msra.mxu0 0.0
        %3004 = vmatprep.subr.mxu0 0.0
        %3005 = vmatpush1.msra.mxu0 0.0
        %3006 = vmatprep.subr.mxu0 0.0
        %3007 = vmatpush1.msra.mxu0 0.0
        %3008 = vmatprep.subr.mxu0 0.0
        %3009 = vmatpush1.msra.mxu0 0.0
        %3010 = vmatprep.subr.mxu0 0.0
        %3011 = vmatpush1.msra.mxu0 0.0
        %3012 = vmatprep.subr.mxu0 0.0
        %3013 = vmatpush1.msra.mxu0 0.0
        %3014 = vmatprep.subr.mxu0 0.0
        %3015 = vmatpush1.msra.mxu0 0.0
        %3016 = vmatprep.subr.mxu0 0.0
        %3017 = vmatpush1.msra.mxu0 0.0
        %3018 = vmatprep.subr.mxu0 0.0
        %3019 = vmatpush1.msra.mxu0 0.0
        %3020 = vmatprep.subr.mxu0 0.0
        %3021 = vmatpush1.msra.mxu0 0.0
        %3022 = vmatprep.subr.mxu0 0.0
        %3023 = vmatpush1.msra.mxu0 0.0
        %3024 = vmatprep.subr.mxu0 0.0
        %3025 = vmatpush1.msra.mxu0 0.0
        %3026 = vmatprep.subr.mxu0 0.0
        %3027 = vmatpush1.msra.mxu0 0.0
        %3028 = vmatprep.subr.mxu0 0.0
        %3029 = vmatpush1.msra.mxu0 0.0
        %3030 = vmatprep.subr.mxu0 0.0
        %3031 = vmatpush1.msra.mxu0 0.0
        %3032 = vmatprep.mubr.f32.mxu0 0.0
        %3033 = vmatmul.mubr.f32.gmra.mrb[0].mxu0 %v2966
        %v3034 = vpop.f32.mrb[0].mxu0
        %v3035 = vadd.f32 0.0, %v3034
        %v3036 = vpop.f32.mrb[0].mxu0
        %3037 = vdwg.mxu0
        %v3038 = vadd.f32 %v2514, %v3035
        %v3039 = vxor.u32 %v3038, 2147483648
        %v3040 = vmul.f32 %v3039, 1.442695
        %v3041 = vpow.pop %v3040
        %v3042 = vadd.f32 %v3041, 1.0
        %v3043 = vrcp.pop %v3042
        %v3044 = vmul.f32 1.0, %v3043
        %v3045 = vadd.f32 %v3035, %v2596
        %3047 = vrot.lane.b32.xlu0 %v3045, 96
        %v3048 = vpop.permute.xlu0 %3047
        %v3050 = vmul.f32 %v3044, %v3048
        %3052 = vrot.lane.b32.xlu0 %v3050, 32
        %v3053 = vpop.permute.xlu0 %3052
        %v3055 = vadd.f32 %v2514, %v3053
        %v3056 = vtanh.pop %v3055
        %v3058 = vrot.slane %v3056, 2
        %v3060 = vsub.f32 %v2961, %v3058
        %v3062 = vrot.slane %v3060, 6
        %3063 = vrot.lane.b32.xlu0 %v3062, 112
        %v3064 = vpop.permute.xlu0 %3063
        %v3066 = vmul.f32 %v3044, %v3064
        %3068 = vrot.lane.b32.xlu0 %v3066, 16
        %v3069 = vpop.permute.xlu0 %3068
        %v3071 = vadd.f32 %v3056, %v3069
        %3073 = vrot.lane.b32.xlu0 %v3071, 96
        %v3074 = vpop.permute.xlu0 %3073
        %v3075 = vsel %vm392, %v3074, 0
        %3077 = vmatprep.subr.mxu0 0.0
        %3078 = vmatpush1.msra.mxu0 %v2425
        %3079 = vmatprep.subr.mxu0 0.0
        %3080 = vmatpush1.msra.mxu0 %v2426
        %3081 = vmatprep.subr.mxu0 0.0
        %3082 = vmatpush1.msra.mxu0 0.0
        %3083 = vmatprep.subr.mxu0 0.0
        %3084 = vmatpush1.msra.mxu0 0.0
        %3085 = vmatprep.subr.mxu0 0.0
        %3086 = vmatpush1.msra.mxu0 0.0
        %3087 = vmatprep.subr.mxu0 0.0
        %3088 = vmatpush1.msra.mxu0 0.0
        %3089 = vmatprep.subr.mxu0 0.0
        %3090 = vmatpush1.msra.mxu0 0.0
        %3091 = vmatprep.subr.mxu0 0.0
        %3092 = vmatpush1.msra.mxu0 0.0
        %3093 = vmatprep.subr.mxu0 0.0
        %3094 = vmatpush1.msra.mxu0 0.0
        %3095 = vmatprep.subr.mxu0 0.0
        %3096 = vmatpush1.msra.mxu0 0.0
        %3097 = vmatprep.subr.mxu0 0.0
        %3098 = vmatpush1.msra.mxu0 0.0
        %3099 = vmatprep.subr.mxu0 0.0
        %3100 = vmatpush1.msra.mxu0 0.0
        %3101 = vmatprep.subr.mxu0 0.0
        %3102 = vmatpush1.msra.mxu0 0.0
        %3103 = vmatprep.subr.mxu0 0.0
        %3104 = vmatpush1.msra.mxu0 0.0
        %3105 = vmatprep.subr.mxu0 0.0
        %3106 = vmatpush1.msra.mxu0 0.0
        %3107 = vmatprep.subr.mxu0 0.0
        %3108 = vmatpush1.msra.mxu0 0.0
        %3109 = vmatprep.subr.mxu0 0.0
        %3110 = vmatpush1.msra.mxu0 0.0
        %3111 = vmatprep.subr.mxu0 0.0
        %3112 = vmatpush1.msra.mxu0 0.0
        %3113 = vmatprep.subr.mxu0 0.0
        %3114 = vmatpush1.msra.mxu0 0.0
        %3115 = vmatprep.subr.mxu0 0.0
        %3116 = vmatpush1.msra.mxu0 0.0
        %3117 = vmatprep.subr.mxu0 0.0
        %3118 = vmatpush1.msra.mxu0 0.0
        %3119 = vmatprep.subr.mxu0 0.0
        %3120 = vmatpush1.msra.mxu0 0.0
        %3121 = vmatprep.subr.mxu0 0.0
        %3122 = vmatpush1.msra.mxu0 0.0
        %3123 = vmatprep.subr.mxu0 0.0
        %3124 = vmatpush1.msra.mxu0 0.0
        %3125 = vmatprep.subr.mxu0 0.0
        %3126 = vmatpush1.msra.mxu0 0.0
        %3127 = vmatprep.subr.mxu0 0.0
        %3128 = vmatpush1.msra.mxu0 0.0
        %3129 = vmatprep.subr.mxu0 0.0
        %3130 = vmatpush1.msra.mxu0 0.0
        %3131 = vmatprep.subr.mxu0 0.0
        %3132 = vmatpush1.msra.mxu0 0.0
        %3133 = vmatprep.subr.mxu0 0.0
        %3134 = vmatpush1.msra.mxu0 0.0
        %3135 = vmatprep.subr.mxu0 0.0
        %3136 = vmatpush1.msra.mxu0 0.0
        %3137 = vmatprep.subr.mxu0 0.0
        %3138 = vmatpush1.msra.mxu0 0.0
        %3139 = vmatprep.subr.mxu0 0.0
        %3140 = vmatpush1.msra.mxu0 0.0
        %3141 = vmatprep.mubr.f32.mxu0 0.0
        %3142 = vmatmul.mubr.f32.gmra.mrb[0].mxu0 %v3075
        %v3143 = vpop.f32.mrb[0].mxu0
        %v3144 = vadd.f32 0.0, %v3143
        %v3145 = vpop.f32.mrb[0].mxu0
        %3146 = vdwg.mxu0
        %v3148 = vrot.slane %v3144, 6
        %v3150 = vadd.f32 %v2514, %v3148
        %v3151 = vxor.u32 %v3150, 2147483648
        %v3152 = vmul.f32 %v3151, 1.442695
        %v3153 = vpow.pop %v3152
        %v3154 = vadd.f32 %v3153, 1.0
        %v3155 = vrcp.pop %v3154
        %v3156 = vmul.f32 1.0, %v3155
        %v3157 = vadd.f32 %v3144, %v2596
        %v3159 = vrot.slane %v3157, 6
        %3160 = vrot.lane.b32.xlu0 %v3159, 96
        %v3161 = vpop.permute.xlu0 %3160
        %v3163 = vmul.f32 %v3156, %v3161
        %3165 = vrot.lane.b32.xlu0 %v3163, 32
        %v3166 = vpop.permute.xlu0 %3165
        %v3168 = vadd.f32 %v2514, %v3166
        %v3169 = vtanh.pop %v3168
        %v3171 = vrot.slane %v3169, 2
        %v3173 = vsub.f32 %v3071, %v3171
        %v3175 = vrot.slane %v3173, 6
        %3176 = vrot.lane.b32.xlu0 %v3175, 112
        %v3177 = vpop.permute.xlu0 %3176
        %v3179 = vmul.f32 %v3156, %v3177
        %3181 = vrot.lane.b32.xlu0 %v3179, 16
        %v3182 = vpop.permute.xlu0 %3181
        %v3184 = vadd.f32 %v3169, %v3182
        %v3186 = vrot.slane %v3184, 2
        %3187 = vrot.lane.b32.xlu0 %v3186, 96
        %v3188 = vpop.permute.xlu0 %3187
        %v3189 = vsel %vm392, %v3188, 0
        %3191 = vmatprep.subr.mxu0 0.0
        %3192 = vmatpush1.msra.mxu0 %v2425
        %3193 = vmatprep.subr.mxu0 0.0
        %3194 = vmatpush1.msra.mxu0 %v2426
        %3195 = vmatprep.subr.mxu0 0.0
        %3196 = vmatpush1.msra.mxu0 0.0
        %3197 = vmatprep.subr.mxu0 0.0
        %3198 = vmatpush1.msra.mxu0 0.0
        %3199 = vmatprep.subr.mxu0 0.0
        %3200 = vmatpush1.msra.mxu0 0.0
        %3201 = vmatprep.subr.mxu0 0.0
        %3202 = vmatpush1.msra.mxu0 0.0
        %3203 = vmatprep.subr.mxu0 0.0
        %3204 = vmatpush1.msra.mxu0 0.0
        %3205 = vmatprep.subr.mxu0 0.0
        %3206 = vmatpush1.msra.mxu0 0.0
        %3207 = vmatprep.subr.mxu0 0.0
        %3208 = vmatpush1.msra.mxu0 0.0
        %3209 = vmatprep.subr.mxu0 0.0
        %3210 = vmatpush1.msra.mxu0 0.0
        %3211 = vmatprep.subr.mxu0 0.0
        %3212 = vmatpush1.msra.mxu0 0.0
        %3213 = vmatprep.subr.mxu0 0.0
        %3214 = vmatpush1.msra.mxu0 0.0
        %3215 = vmatprep.subr.mxu0 0.0
        %3216 = vmatpush1.msra.mxu0 0.0
        %3217 = vmatprep.subr.mxu0 0.0
        %3218 = vmatpush1.msra.mxu0 0.0
        %3219 = vmatprep.subr.mxu0 0.0
        %3220 = vmatpush1.msra.mxu0 0.0
        %3221 = vmatprep.subr.mxu0 0.0
        %3222 = vmatpush1.msra.mxu0 0.0
        %3223 = vmatprep.subr.mxu0 0.0
        %3224 = vmatpush1.msra.mxu0 0.0
        %3225 = vmatprep.subr.mxu0 0.0
        %3226 = vmatpush1.msra.mxu0 0.0
        %3227 = vmatprep.subr.mxu0 0.0
        %3228 = vmatpush1.msra.mxu0 0.0
        %3229 = vmatprep.subr.mxu0 0.0
        %3230 = vmatpush1.msra.mxu0 0.0
        %3231 = vmatprep.subr.mxu0 0.0
        %3232 = vmatpush1.msra.mxu0 0.0
        %3233 = vmatprep.subr.mxu0 0.0
        %3234 = vmatpush1.msra.mxu0 0.0
        %3235 = vmatprep.subr.mxu0 0.0
        %3236 = vmatpush1.msra.mxu0 0.0
        %3237 = vmatprep.subr.mxu0 0.0
        %3238 = vmatpush1.msra.mxu0 0.0
        %3239 = vmatprep.subr.mxu0 0.0
        %3240 = vmatpush1.msra.mxu0 0.0
        %3241 = vmatprep.subr.mxu0 0.0
        %3242 = vmatpush1.msra.mxu0 0.0
        %3243 = vmatprep.subr.mxu0 0.0
        %3244 = vmatpush1.msra.mxu0 0.0
        %3245 = vmatprep.subr.mxu0 0.0
        %3246 = vmatpush1.msra.mxu0 0.0
        %3247 = vmatprep.subr.mxu0 0.0
        %3248 = vmatpush1.msra.mxu0 0.0
        %3249 = vmatprep.subr.mxu0 0.0
        %3250 = vmatpush1.msra.mxu0 0.0
        %3251 = vmatprep.subr.mxu0 0.0
        %3252 = vmatpush1.msra.mxu0 0.0
        %3253 = vmatprep.subr.mxu0 0.0
        %3254 = vmatpush1.msra.mxu0 0.0
        %3255 = vmatprep.mubr.f32.mxu0 0.0
        %3256 = vmatmul.mubr.f32.gmra.mrb[0].mxu0 %v3189
        %v3257 = vpop.f32.mrb[0].mxu0
        %v3258 = vadd.f32 0.0, %v3257
        %v3259 = vpop.f32.mrb[0].mxu0
        %3260 = vdwg.mxu0
        %v3262 = vrot.slane %v3258, 4
        %v3264 = vadd.f32 %v2514, %v3262
        %v3265 = vxor.u32 %v3264, 2147483648
        %v3266 = vmul.f32 %v3265, 1.442695
        %v3267 = vpow.pop %v3266
        %v3268 = vadd.f32 %v3267, 1.0
        %v3269 = vrcp.pop %v3268
        %v3270 = vmul.f32 1.0, %v3269
        %v3271 = vadd.f32 %v3258, %v2596
        %v3273 = vrot.slane %v3271, 4
        %3274 = vrot.lane.b32.xlu0 %v3273, 96
        %v3275 = vpop.permute.xlu0 %3274
        %v3277 = vmul.f32 %v3270, %v3275
        %3279 = vrot.lane.b32.xlu0 %v3277, 32
        %v3280 = vpop.permute.xlu0 %3279
        %v3282 = vadd.f32 %v2514, %v3280
        %v3283 = vtanh.pop %v3282
        %v3285 = vrot.slane %v3283, 2
        %v3287 = vsub.f32 %v3184, %v3285
        %v3289 = vrot.slane %v3287, 6
        %3290 = vrot.lane.b32.xlu0 %v3289, 112
        %v3291 = vpop.permute.xlu0 %3290
        %v3293 = vmul.f32 %v3270, %v3291
        %3295 = vrot.lane.b32.xlu0 %v3293, 16
        %v3296 = vpop.permute.xlu0 %3295
        %v3298 = vadd.f32 %v3283, %v3296
        %v3300 = vrot.slane %v3298, 4
        %3301 = vrot.lane.b32.xlu0 %v3300, 96
        %v3302 = vpop.permute.xlu0 %3301
        %v3303 = vsel %vm392, %v3302, 0
        %3305 = vmatprep.subr.mxu0 0.0
        %3306 = vmatpush1.msra.mxu0 %v2425
        %3307 = vmatprep.subr.mxu0 0.0
        %3308 = vmatpush1.msra.mxu0 %v2426
        %3309 = vmatprep.subr.mxu0 0.0
        %3310 = vmatpush1.msra.mxu0 0.0
        %3311 = vmatprep.subr.mxu0 0.0
        %3312 = vmatpush1.msra.mxu0 0.0
        %3313 = vmatprep.subr.mxu0 0.0
        %3314 = vmatpush1.msra.mxu0 0.0
        %3315 = vmatprep.subr.mxu0 0.0
        %3316 = vmatpush1.msra.mxu0 0.0
        %3317 = vmatprep.subr.mxu0 0.0
        %3318 = vmatpush1.msra.mxu0 0.0
        %3319 = vmatprep.subr.mxu0 0.0
        %3320 = vmatpush1.msra.mxu0 0.0
        %3321 = vmatprep.subr.mxu0 0.0
        %3322 = vmatpush1.msra.mxu0 0.0
        %3323 = vmatprep.subr.mxu0 0.0
        %3324 = vmatpush1.msra.mxu0 0.0
        %3325 = vmatprep.subr.mxu0 0.0
        %3326 = vmatpush1.msra.mxu0 0.0
        %3327 = vmatprep.subr.mxu0 0.0
        %3328 = vmatpush1.msra.mxu0 0.0
        %3329 = vmatprep.subr.mxu0 0.0
        %3330 = vmatpush1.msra.mxu0 0.0
        %3331 = vmatprep.subr.mxu0 0.0
        %3332 = vmatpush1.msra.mxu0 0.0
        %3333 = vmatprep.subr.mxu0 0.0
        %3334 = vmatpush1.msra.mxu0 0.0
        %3335 = vmatprep.subr.mxu0 0.0
        %3336 = vmatpush1.msra.mxu0 0.0
        %3337 = vmatprep.subr.mxu0 0.0
        %3338 = vmatpush1.msra.mxu0 0.0
        %3339 = vmatprep.subr.mxu0 0.0
        %3340 = vmatpush1.msra.mxu0 0.0
        %3341 = vmatprep.subr.mxu0 0.0
        %3342 = vmatpush1.msra.mxu0 0.0
        %3343 = vmatprep.subr.mxu0 0.0
        %3344 = vmatpush1.msra.mxu0 0.0
        %3345 = vmatprep.subr.mxu0 0.0
        %3346 = vmatpush1.msra.mxu0 0.0
        %3347 = vmatprep.subr.mxu0 0.0
        %3348 = vmatpush1.msra.mxu0 0.0
        %3349 = vmatprep.subr.mxu0 0.0
        %3350 = vmatpush1.msra.mxu0 0.0
        %3351 = vmatprep.subr.mxu0 0.0
        %3352 = vmatpush1.msra.mxu0 0.0
        %3353 = vmatprep.subr.mxu0 0.0
        %3354 = vmatpush1.msra.mxu0 0.0
        %3355 = vmatprep.subr.mxu0 0.0
        %3356 = vmatpush1.msra.mxu0 0.0
        %3357 = vmatprep.subr.mxu0 0.0
        %3358 = vmatpush1.msra.mxu0 0.0
        %3359 = vmatprep.subr.mxu0 0.0
        %3360 = vmatpush1.msra.mxu0 0.0
        %3361 = vmatprep.subr.mxu0 0.0
        %3362 = vmatpush1.msra.mxu0 0.0
        %3363 = vmatprep.subr.mxu0 0.0
        %3364 = vmatpush1.msra.mxu0 0.0
        %3365 = vmatprep.subr.mxu0 0.0
        %3366 = vmatpush1.msra.mxu0 0.0
        %3367 = vmatprep.subr.mxu0 0.0
        %3368 = vmatpush1.msra.mxu0 0.0
        %3369 = vmatprep.mubr.f32.mxu0 0.0
        %3370 = vmatmul.mubr.f32.gmra.mrb[0].mxu0 %v3303
        %v3371 = vpop.f32.mrb[0].mxu0
        %v3372 = vadd.f32 0.0, %v3371
        %v3373 = vpop.f32.mrb[0].mxu0
        %3374 = vdwg.mxu0
        %v3376 = vrot.slane %v3372, 2
        %v3378 = vadd.f32 %v2514, %v3376
        %v3379 = vxor.u32 %v3378, 2147483648
        %v3380 = vmul.f32 %v3379, 1.442695
        %v3381 = vpow.pop %v3380
        %v3382 = vadd.f32 %v3381, 1.0
        %v3383 = vrcp.pop %v3382
        %v3384 = vmul.f32 1.0, %v3383
        %v3385 = vadd.f32 %v3372, %v2596
        %v3387 = vrot.slane %v3385, 2
        %3388 = vrot.lane.b32.xlu0 %v3387, 96
        %v3389 = vpop.permute.xlu0 %3388
        %v3391 = vmul.f32 %v3384, %v3389
        %3393 = vrot.lane.b32.xlu0 %v3391, 32
        %v3394 = vpop.permute.xlu0 %3393
        %v3396 = vadd.f32 %v2514, %v3394
        %v3397 = vtanh.pop %v3396
        %v3399 = vrot.slane %v3397, 2
        %v3401 = vsub.f32 %v3298, %v3399
        %v3403 = vrot.slane %v3401, 6
        %3404 = vrot.lane.b32.xlu0 %v3403, 112
        %v3405 = vpop.permute.xlu0 %3404
        %v3407 = vmul.f32 %v3384, %v3405
        %3409 = vrot.lane.b32.xlu0 %v3407, 16
        %v3410 = vpop.permute.xlu0 %3409
        %v3412 = vadd.f32 %v3397, %v3410
        %v3413 = vsel %vm1414, %v2620, %v2733
        %v3414 = vsel %vm1416, %v3413, %v2847
        %v3415 = vsel %vm1418, %v3414, %v2961
        %v3416 = vsel %vm1414, %v3071, %v3184
        %v3417 = vsel %vm1416, %v3416, %v3298
        %v3418 = vsel %vm1418, %v3417, %v3412
        %s3419 = scalar_lea.vmem [#allocation2], 96
        %v3420 = vld [vmem:[%s3419] sm:$0xff]
        %v3421 = vld [vmem:[%s3419 + $0x8] sm:$0xff]
        %s3422 = scalar_lea.vmem [#allocation2], 112
        %v3423 = vld [vmem:[%s3422] sm:$0xff]
        %v3424 = vld [vmem:[%s3422 + $0x8] sm:$0xff]
        %v3425 = vld [vmem:[%s3 + $0x3] sm:$0x1]
        %v3426 = vlaneseq
        %v3427 = vshrl.u32 %v3426, 7
        %v3428 = vsub.s32 0, %v3427
        %v3429 = vrot.slane %v3425, %v3428
        %3432 = vrot.lane.b32.xlu0 %v3415, 96
        %v3433 = vpop.permute.xlu0 %3432
        %3434 = vrot.lane.b32.xlu0 %v3418, 96
        %v3435 = vpop.permute.xlu0 %3434
        %v3436 = vsel %vm392, %v3433, 0
        %v3438 = vsel %vm392, %v3435, 0
        %3440 = vmatprep.subr.mxu0 0.0
        %3441 = vmatpush1.msra.mxu0 %v3420
        %3442 = vmatprep.subr.mxu0 0.0
        %3443 = vmatpush1.msra.mxu0 %v3421
        %3444 = vmatprep.subr.mxu0 0.0
        %3445 = vmatpush1.msra.mxu0 0.0
        %3446 = vmatprep.subr.mxu0 0.0
        %3447 = vmatpush1.msra.mxu0 0.0
        %3448 = vmatprep.subr.mxu0 0.0
        %3449 = vmatpush1.msra.mxu0 0.0
        %3450 = vmatprep.subr.mxu0 0.0
        %3451 = vmatpush1.msra.mxu0 0.0
        %3452 = vmatprep.subr.mxu0 0.0
        %3453 = vmatpush1.msra.mxu0 0.0
        %3454 = vmatprep.subr.mxu0 0.0
        %3455 = vmatpush1.msra.mxu0 0.0
        %3456 = vmatprep.subr.mxu0 0.0
        %3457 = vmatpush1.msra.mxu0 0.0
        %3458 = vmatprep.subr.mxu0 0.0
        %3459 = vmatpush1.msra.mxu0 0.0
        %3460 = vmatprep.subr.mxu0 0.0
        %3461 = vmatpush1.msra.mxu0 0.0
        %3462 = vmatprep.subr.mxu0 0.0
        %3463 = vmatpush1.msra.mxu0 0.0
        %3464 = vmatprep.subr.mxu0 0.0
        %3465 = vmatpush1.msra.mxu0 0.0
        %3466 = vmatprep.subr.mxu0 0.0
        %3467 = vmatpush1.msra.mxu0 0.0
        %3468 = vmatprep.subr.mxu0 0.0
        %3469 = vmatpush1.msra.mxu0 0.0
        %3470 = vmatprep.subr.mxu0 0.0
        %3471 = vmatpush1.msra.mxu0 0.0
        %3472 = vmatprep.subr.mxu0 0.0
        %3473 = vmatpush1.msra.mxu0 0.0
        %3474 = vmatprep.subr.mxu0 0.0
        %3475 = vmatpush1.msra.mxu0 0.0
        %3476 = vmatprep.subr.mxu0 0.0
        %3477 = vmatpush1.msra.mxu0 0.0
        %3478 = vmatprep.subr.mxu0 0.0
        %3479 = vmatpush1.msra.mxu0 0.0
        %3480 = vmatprep.subr.mxu0 0.0
        %3481 = vmatpush1.msra.mxu0 0.0
        %3482 = vmatprep.subr.mxu0 0.0
        %3483 = vmatpush1.msra.mxu0 0.0
        %3484 = vmatprep.subr.mxu0 0.0
        %3485 = vmatpush1.msra.mxu0 0.0
        %3486 = vmatprep.subr.mxu0 0.0
        %3487 = vmatpush1.msra.mxu0 0.0
        %3488 = vmatprep.subr.mxu0 0.0
        %3489 = vmatpush1.msra.mxu0 0.0
        %3490 = vmatprep.subr.mxu0 0.0
        %3491 = vmatpush1.msra.mxu0 0.0
        %3492 = vmatprep.subr.mxu0 0.0
        %3493 = vmatpush1.msra.mxu0 0.0
        %3494 = vmatprep.subr.mxu0 0.0
        %3495 = vmatpush1.msra.mxu0 0.0
        %3496 = vmatprep.subr.mxu0 0.0
        %3497 = vmatpush1.msra.mxu0 0.0
        %3498 = vmatprep.subr.mxu0 0.0
        %3499 = vmatpush1.msra.mxu0 0.0
        %3500 = vmatprep.subr.mxu0 0.0
        %3501 = vmatpush1.msra.mxu0 0.0
        %3502 = vmatprep.subr.mxu0 0.0
        %3503 = vmatpush1.msra.mxu0 0.0
        %3504 = vmatprep.mubr.f32.mxu0 0.0
        %3505 = vmatmul.mubr.f32.gmra.mrb[0].mxu0 %v3436
        %v3506 = vpop.f32.mrb[0].mxu0
        %v3507 = vadd.f32 %v3429, %v3506
        %v3508 = vpop.f32.mrb[0].mxu0
        %3509 = vmatprep.mubr.f32.mxu0 0.0
        %3510 = vmatmul.mubr.f32.gmra.mrb[0].mxu0 %v3438
        %v3511 = vpop.f32.mrb[0].mxu0
        %v3512 = vadd.f32 %v3429, %v3511
        %v3513 = vpop.f32.mrb[0].mxu0
        %3514 = vdwg.mxu0
        %3515 = vmatprep.subr.mxu0 0.0
        %3516 = vmatpush1.msra.mxu0 %v3423
        %3517 = vmatprep.subr.mxu0 0.0
        %3518 = vmatpush1.msra.mxu0 %v3424
        %3519 = vmatprep.subr.mxu0 0.0
        %3520 = vmatpush1.msra.mxu0 0.0
        %3521 = vmatprep.subr.mxu0 0.0
        %3522 = vmatpush1.msra.mxu0 0.0
        %3523 = vmatprep.subr.mxu0 0.0
        %3524 = vmatpush1.msra.mxu0 0.0
        %3525 = vmatprep.subr.mxu0 0.0
        %3526 = vmatpush1.msra.mxu0 0.0
        %3527 = vmatprep.subr.mxu0 0.0
        %3528 = vmatpush1.msra.mxu0 0.0
        %3529 = vmatprep.subr.mxu0 0.0
        %3530 = vmatpush1.msra.mxu0 0.0
        %3531 = vmatprep.subr.mxu0 0.0
        %3532 = vmatpush1.msra.mxu0 0.0
        %3533 = vmatprep.subr.mxu0 0.0
        %3534 = vmatpush1.msra.mxu0 0.0
        %3535 = vmatprep.subr.mxu0 0.0
        %3536 = vmatpush1.msra.mxu0 0.0
        %3537 = vmatprep.subr.mxu0 0.0
        %3538 = vmatpush1.msra.mxu0 0.0
        %3539 = vmatprep.subr.mxu0 0.0
        %3540 = vmatpush1.msra.mxu0 0.0
        %3541 = vmatprep.subr.mxu0 0.0
        %3542 = vmatpush1.msra.mxu0 0.0
        %3543 = vmatprep.subr.mxu0 0.0
        %3544 = vmatpush1.msra.mxu0 0.0
        %3545 = vmatprep.subr.mxu0 0.0
        %3546 = vmatpush1.msra.mxu0 0.0
        %3547 = vmatprep.subr.mxu0 0.0
        %3548 = vmatpush1.msra.mxu0 0.0
        %3549 = vmatprep.subr.mxu0 0.0
        %3550 = vmatpush1.msra.mxu0 0.0
        %3551 = vmatprep.subr.mxu0 0.0
        %3552 = vmatpush1.msra.mxu0 0.0
        %3553 = vmatprep.subr.mxu0 0.0
        %3554 = vmatpush1.msra.mxu0 0.0
        %3555 = vmatprep.subr.mxu0 0.0
        %3556 = vmatpush1.msra.mxu0 0.0
        %3557 = vmatprep.subr.mxu0 0.0
        %3558 = vmatpush1.msra.mxu0 0.0
        %3559 = vmatprep.subr.mxu0 0.0
        %3560 = vmatpush1.msra.mxu0 0.0
        %3561 = vmatprep.subr.mxu0 0.0
        %3562 = vmatpush1.msra.mxu0 0.0
        %3563 = vmatprep.subr.mxu0 0.0
        %3564 = vmatpush1.msra.mxu0 0.0
        %3565 = vmatprep.subr.mxu0 0.0
        %3566 = vmatpush1.msra.mxu0 0.0
        %3567 = vmatprep.subr.mxu0 0.0
        %3568 = vmatpush1.msra.mxu0 0.0
        %3569 = vmatprep.subr.mxu0 0.0
        %3570 = vmatpush1.msra.mxu0 0.0
        %3571 = vmatprep.subr.mxu0 0.0
        %3572 = vmatpush1.msra.mxu0 0.0
        %3573 = vmatprep.subr.mxu0 0.0
        %3574 = vmatpush1.msra.mxu0 0.0
        %3575 = vmatprep.subr.mxu0 0.0
        %3576 = vmatpush1.msra.mxu0 0.0
        %3577 = vmatprep.subr.mxu0 0.0
        %3578 = vmatpush1.msra.mxu0 0.0
        %3579 = vmatprep.mubr.f32.mxu0 0.0
        %3580 = vmatmul.mubr.f32.gmra.mrb[0].mxu0 %v516
        %v3581 = vpop.f32.mrb[0].mxu0
        %v3582 = vadd.f32 0.0, %v3581
        %v3583 = vpop.f32.mrb[0].mxu0
        %3584 = vdwg.mxu0
        %v3585 = vadd.f32 %v3507, %v3582
        %v3586 = vxor.u32 %v3585, 2147483648
        %v3587 = vmul.f32 %v3586, 1.442695
        %v3588 = vpow.pop %v3587
        %v3589 = vadd.f32 %v3588, 1.0
        %v3590 = vrcp.pop %v3589
        %v3591 = vmul.f32 1.0, %v3590
        %3593 = vrot.lane.b32.xlu0 %v3429, 112
        %v3594 = vpop.permute.xlu0 %3593
        %v3596 = vadd.f32 %v3582, %v3594
        %3598 = vrot.lane.b32.xlu0 %v3596, 96
        %v3599 = vpop.permute.xlu0 %3598
        %v3601 = vmul.f32 %v3591, %v3599
        %3603 = vrot.lane.b32.xlu0 %v3601, 32
        %v3604 = vpop.permute.xlu0 %3603
        %v3606 = vadd.f32 %v3507, %v3604
        %v3607 = vtanh.pop %v3606
        %v3608 = vsub.f32 0.0, %v3607
        %3610 = vrot.lane.b32.xlu0 %v3608, 112
        %v3611 = vpop.permute.xlu0 %3610
        %v3613 = vmul.f32 %v3591, %v3611
        %3615 = vrot.lane.b32.xlu0 %v3613, 16
        %v3616 = vpop.permute.xlu0 %3615
        %v3618 = vadd.f32 %v3607, %v3616
        %3620 = vrot.lane.b32.xlu0 %v3618, 96
        %v3621 = vpop.permute.xlu0 %3620
        %v3622 = vsel %vm392, %v3621, 0
        %3624 = vmatprep.subr.mxu0 0.0
        %3625 = vmatpush1.msra.mxu0 %v3423
        %3626 = vmatprep.subr.mxu0 0.0
        %3627 = vmatpush1.msra.mxu0 %v3424
        %3628 = vmatprep.subr.mxu0 0.0
        %3629 = vmatpush1.msra.mxu0 0.0
        %3630 = vmatprep.subr.mxu0 0.0
        %3631 = vmatpush1.msra.mxu0 0.0
        %3632 = vmatprep.subr.mxu0 0.0
        %3633 = vmatpush1.msra.mxu0 0.0
        %3634 = vmatprep.subr.mxu0 0.0
        %3635 = vmatpush1.msra.mxu0 0.0
        %3636 = vmatprep.subr.mxu0 0.0
        %3637 = vmatpush1.msra.mxu0 0.0
        %3638 = vmatprep.subr.mxu0 0.0
        %3639 = vmatpush1.msra.mxu0 0.0
        %3640 = vmatprep.subr.mxu0 0.0
        %3641 = vmatpush1.msra.mxu0 0.0
        %3642 = vmatprep.subr.mxu0 0.0
        %3643 = vmatpush1.msra.mxu0 0.0
        %3644 = vmatprep.subr.mxu0 0.0
        %3645 = vmatpush1.msra.mxu0 0.0
        %3646 = vmatprep.subr.mxu0 0.0
        %3647 = vmatpush1.msra.mxu0 0.0
        %3648 = vmatprep.subr.mxu0 0.0
        %3649 = vmatpush1.msra.mxu0 0.0
        %3650 = vmatprep.subr.mxu0 0.0
        %3651 = vmatpush1.msra.mxu0 0.0
        %3652 = vmatprep.subr.mxu0 0.0
        %3653 = vmatpush1.msra.mxu0 0.0
        %3654 = vmatprep.subr.mxu0 0.0
        %3655 = vmatpush1.msra.mxu0 0.0
        %3656 = vmatprep.subr.mxu0 0.0
        %3657 = vmatpush1.msra.mxu0 0.0
        %3658 = vmatprep.subr.mxu0 0.0
        %3659 = vmatpush1.msra.mxu0 0.0
        %3660 = vmatprep.subr.mxu0 0.0
        %3661 = vmatpush1.msra.mxu0 0.0
        %3662 = vmatprep.subr.mxu0 0.0
        %3663 = vmatpush1.msra.mxu0 0.0
        %3664 = vmatprep.subr.mxu0 0.0
        %3665 = vmatpush1.msra.mxu0 0.0
        %3666 = vmatprep.subr.mxu0 0.0
        %3667 = vmatpush1.msra.mxu0 0.0
        %3668 = vmatprep.subr.mxu0 0.0
        %3669 = vmatpush1.msra.mxu0 0.0
        %3670 = vmatprep.subr.mxu0 0.0
        %3671 = vmatpush1.msra.mxu0 0.0
        %3672 = vmatprep.subr.mxu0 0.0
        %3673 = vmatpush1.msra.mxu0 0.0
        %3674 = vmatprep.subr.mxu0 0.0
        %3675 = vmatpush1.msra.mxu0 0.0
        %3676 = vmatprep.subr.mxu0 0.0
        %3677 = vmatpush1.msra.mxu0 0.0
        %3678 = vmatprep.subr.mxu0 0.0
        %3679 = vmatpush1.msra.mxu0 0.0
        %3680 = vmatprep.subr.mxu0 0.0
        %3681 = vmatpush1.msra.mxu0 0.0
        %3682 = vmatprep.subr.mxu0 0.0
        %3683 = vmatpush1.msra.mxu0 0.0
        %3684 = vmatprep.subr.mxu0 0.0
        %3685 = vmatpush1.msra.mxu0 0.0
        %3686 = vmatprep.subr.mxu0 0.0
        %3687 = vmatpush1.msra.mxu0 0.0
        %3688 = vmatprep.mubr.f32.mxu0 0.0
        %3689 = vmatmul.mubr.f32.gmra.mrb[0].mxu0 %v3622
        %v3690 = vpop.f32.mrb[0].mxu0
        %v3691 = vadd.f32 0.0, %v3690
        %v3692 = vpop.f32.mrb[0].mxu0
        %3693 = vdwg.mxu0
        %v3695 = vrot.slane %v3691, 6
        %v3697 = vadd.f32 %v3507, %v3695
        %v3698 = vxor.u32 %v3697, 2147483648
        %v3699 = vmul.f32 %v3698, 1.442695
        %v3700 = vpow.pop %v3699
        %v3701 = vadd.f32 %v3700, 1.0
        %v3702 = vrcp.pop %v3701
        %v3703 = vmul.f32 1.0, %v3702
        %v3704 = vadd.f32 %v3691, %v3594
        %v3706 = vrot.slane %v3704, 6
        %3707 = vrot.lane.b32.xlu0 %v3706, 96
        %v3708 = vpop.permute.xlu0 %3707
        %v3710 = vmul.f32 %v3703, %v3708
        %3712 = vrot.lane.b32.xlu0 %v3710, 32
        %v3713 = vpop.permute.xlu0 %3712
        %v3715 = vadd.f32 %v3507, %v3713
        %v3716 = vtanh.pop %v3715
        %v3718 = vrot.slane %v3716, 2
        %v3720 = vsub.f32 %v3618, %v3718
        %v3722 = vrot.slane %v3720, 6
        %3723 = vrot.lane.b32.xlu0 %v3722, 112
        %v3724 = vpop.permute.xlu0 %3723
        %v3726 = vmul.f32 %v3703, %v3724
        %3728 = vrot.lane.b32.xlu0 %v3726, 16
        %v3729 = vpop.permute.xlu0 %3728
        %v3731 = vadd.f32 %v3716, %v3729
        %v3733 = vrot.slane %v3731, 2
        %3734 = vrot.lane.b32.xlu0 %v3733, 96
        %v3735 = vpop.permute.xlu0 %3734
        %v3736 = vsel %vm392, %v3735, 0
        %3738 = vmatprep.subr.mxu0 0.0
        %3739 = vmatpush1.msra.mxu0 %v3423
        %3740 = vmatprep.subr.mxu0 0.0
        %3741 = vmatpush1.msra.mxu0 %v3424
        %3742 = vmatprep.subr.mxu0 0.0
        %3743 = vmatpush1.msra.mxu0 0.0
        %3744 = vmatprep.subr.mxu0 0.0
        %3745 = vmatpush1.msra.mxu0 0.0
        %3746 = vmatprep.subr.mxu0 0.0
        %3747 = vmatpush1.msra.mxu0 0.0
        %3748 = vmatprep.subr.mxu0 0.0
        %3749 = vmatpush1.msra.mxu0 0.0
        %3750 = vmatprep.subr.mxu0 0.0
        %3751 = vmatpush1.msra.mxu0 0.0
        %3752 = vmatprep.subr.mxu0 0.0
        %3753 = vmatpush1.msra.mxu0 0.0
        %3754 = vmatprep.subr.mxu0 0.0
        %3755 = vmatpush1.msra.mxu0 0.0
        %3756 = vmatprep.subr.mxu0 0.0
        %3757 = vmatpush1.msra.mxu0 0.0
        %3758 = vmatprep.subr.mxu0 0.0
        %3759 = vmatpush1.msra.mxu0 0.0
        %3760 = vmatprep.subr.mxu0 0.0
        %3761 = vmatpush1.msra.mxu0 0.0
        %3762 = vmatprep.subr.mxu0 0.0
        %3763 = vmatpush1.msra.mxu0 0.0
        %3764 = vmatprep.subr.mxu0 0.0
        %3765 = vmatpush1.msra.mxu0 0.0
        %3766 = vmatprep.subr.mxu0 0.0
        %3767 = vmatpush1.msra.mxu0 0.0
        %3768 = vmatprep.subr.mxu0 0.0
        %3769 = vmatpush1.msra.mxu0 0.0
        %3770 = vmatprep.subr.mxu0 0.0
        %3771 = vmatpush1.msra.mxu0 0.0
        %3772 = vmatprep.subr.mxu0 0.0
        %3773 = vmatpush1.msra.mxu0 0.0
        %3774 = vmatprep.subr.mxu0 0.0
        %3775 = vmatpush1.msra.mxu0 0.0
        %3776 = vmatprep.subr.mxu0 0.0
        %3777 = vmatpush1.msra.mxu0 0.0
        %3778 = vmatprep.subr.mxu0 0.0
        %3779 = vmatpush1.msra.mxu0 0.0
        %3780 = vmatprep.subr.mxu0 0.0
        %3781 = vmatpush1.msra.mxu0 0.0
        %3782 = vmatprep.subr.mxu0 0.0
        %3783 = vmatpush1.msra.mxu0 0.0
        %3784 = vmatprep.subr.mxu0 0.0
        %3785 = vmatpush1.msra.mxu0 0.0
        %3786 = vmatprep.subr.mxu0 0.0
        %3787 = vmatpush1.msra.mxu0 0.0
        %3788 = vmatprep.subr.mxu0 0.0
        %3789 = vmatpush1.msra.mxu0 0.0
        %3790 = vmatprep.subr.mxu0 0.0
        %3791 = vmatpush1.msra.mxu0 0.0
        %3792 = vmatprep.subr.mxu0 0.0
        %3793 = vmatpush1.msra.mxu0 0.0
        %3794 = vmatprep.subr.mxu0 0.0
        %3795 = vmatpush1.msra.mxu0 0.0
        %3796 = vmatprep.subr.mxu0 0.0
        %3797 = vmatpush1.msra.mxu0 0.0
        %3798 = vmatprep.subr.mxu0 0.0
        %3799 = vmatpush1.msra.mxu0 0.0
        %3800 = vmatprep.subr.mxu0 0.0
        %3801 = vmatpush1.msra.mxu0 0.0
        %3802 = vmatprep.mubr.f32.mxu0 0.0
        %3803 = vmatmul.mubr.f32.gmra.mrb[0].mxu0 %v3736
        %v3804 = vpop.f32.mrb[0].mxu0
        %v3805 = vadd.f32 0.0, %v3804
        %v3806 = vpop.f32.mrb[0].mxu0
        %3807 = vdwg.mxu0
        %v3809 = vrot.slane %v3805, 4
        %v3811 = vadd.f32 %v3507, %v3809
        %v3812 = vxor.u32 %v3811, 2147483648
        %v3813 = vmul.f32 %v3812, 1.442695
        %v3814 = vpow.pop %v3813
        %v3815 = vadd.f32 %v3814, 1.0
        %v3816 = vrcp.pop %v3815
        %v3817 = vmul.f32 1.0, %v3816
        %v3818 = vadd.f32 %v3805, %v3594
        %v3820 = vrot.slane %v3818, 4
        %3821 = vrot.lane.b32.xlu0 %v3820, 96
        %v3822 = vpop.permute.xlu0 %3821
        %v3824 = vmul.f32 %v3817, %v3822
        %3826 = vrot.lane.b32.xlu0 %v3824, 32
        %v3827 = vpop.permute.xlu0 %3826
        %v3829 = vadd.f32 %v3507, %v3827
        %v3830 = vtanh.pop %v3829
        %v3832 = vrot.slane %v3830, 2
        %v3834 = vsub.f32 %v3731, %v3832
        %v3836 = vrot.slane %v3834, 6
        %3837 = vrot.lane.b32.xlu0 %v3836, 112
        %v3838 = vpop.permute.xlu0 %3837
        %v3840 = vmul.f32 %v3817, %v3838
        %3842 = vrot.lane.b32.xlu0 %v3840, 16
        %v3843 = vpop.permute.xlu0 %3842
        %v3845 = vadd.f32 %v3830, %v3843
        %v3847 = vrot.slane %v3845, 4
        %3848 = vrot.lane.b32.xlu0 %v3847, 96
        %v3849 = vpop.permute.xlu0 %3848
        %v3850 = vsel %vm392, %v3849, 0
        %3852 = vmatprep.subr.mxu0 0.0
        %3853 = vmatpush1.msra.mxu0 %v3423
        %3854 = vmatprep.subr.mxu0 0.0
        %3855 = vmatpush1.msra.mxu0 %v3424
        %3856 = vmatprep.subr.mxu0 0.0
        %3857 = vmatpush1.msra.mxu0 0.0
        %3858 = vmatprep.subr.mxu0 0.0
        %3859 = vmatpush1.msra.mxu0 0.0
        %3860 = vmatprep.subr.mxu0 0.0
        %3861 = vmatpush1.msra.mxu0 0.0
        %3862 = vmatprep.subr.mxu0 0.0
        %3863 = vmatpush1.msra.mxu0 0.0
        %3864 = vmatprep.subr.mxu0 0.0
        %3865 = vmatpush1.msra.mxu0 0.0
        %3866 = vmatprep.subr.mxu0 0.0
        %3867 = vmatpush1.msra.mxu0 0.0
        %3868 = vmatprep.subr.mxu0 0.0
        %3869 = vmatpush1.msra.mxu0 0.0
        %3870 = vmatprep.subr.mxu0 0.0
        %3871 = vmatpush1.msra.mxu0 0.0
        %3872 = vmatprep.subr.mxu0 0.0
        %3873 = vmatpush1.msra.mxu0 0.0
        %3874 = vmatprep.subr.mxu0 0.0
        %3875 = vmatpush1.msra.mxu0 0.0
        %3876 = vmatprep.subr.mxu0 0.0
        %3877 = vmatpush1.msra.mxu0 0.0
        %3878 = vmatprep.subr.mxu0 0.0
        %3879 = vmatpush1.msra.mxu0 0.0
        %3880 = vmatprep.subr.mxu0 0.0
        %3881 = vmatpush1.msra.mxu0 0.0
        %3882 = vmatprep.subr.mxu0 0.0
        %3883 = vmatpush1.msra.mxu0 0.0
        %3884 = vmatprep.subr.mxu0 0.0
        %3885 = vmatpush1.msra.mxu0 0.0
        %3886 = vmatprep.subr.mxu0 0.0
        %3887 = vmatpush1.msra.mxu0 0.0
        %3888 = vmatprep.subr.mxu0 0.0
        %3889 = vmatpush1.msra.mxu0 0.0
        %3890 = vmatprep.subr.mxu0 0.0
        %3891 = vmatpush1.msra.mxu0 0.0
        %3892 = vmatprep.subr.mxu0 0.0
        %3893 = vmatpush1.msra.mxu0 0.0
        %3894 = vmatprep.subr.mxu0 0.0
        %3895 = vmatpush1.msra.mxu0 0.0
        %3896 = vmatprep.subr.mxu0 0.0
        %3897 = vmatpush1.msra.mxu0 0.0
        %3898 = vmatprep.subr.mxu0 0.0
        %3899 = vmatpush1.msra.mxu0 0.0
        %3900 = vmatprep.subr.mxu0 0.0
        %3901 = vmatpush1.msra.mxu0 0.0
        %3902 = vmatprep.subr.mxu0 0.0
        %3903 = vmatpush1.msra.mxu0 0.0
        %3904 = vmatprep.subr.mxu0 0.0
        %3905 = vmatpush1.msra.mxu0 0.0
        %3906 = vmatprep.subr.mxu0 0.0
        %3907 = vmatpush1.msra.mxu0 0.0
        %3908 = vmatprep.subr.mxu0 0.0
        %3909 = vmatpush1.msra.mxu0 0.0
        %3910 = vmatprep.subr.mxu0 0.0
        %3911 = vmatpush1.msra.mxu0 0.0
        %3912 = vmatprep.subr.mxu0 0.0
        %3913 = vmatpush1.msra.mxu0 0.0
        %3914 = vmatprep.subr.mxu0 0.0
        %3915 = vmatpush1.msra.mxu0 0.0
        %3916 = vmatprep.mubr.f32.mxu0 0.0
        %3917 = vmatmul.mubr.f32.gmra.mrb[0].mxu0 %v3850
        %v3918 = vpop.f32.mrb[0].mxu0
        %v3919 = vadd.f32 0.0, %v3918
        %v3920 = vpop.f32.mrb[0].mxu0
        %3921 = vdwg.mxu0
        %v3923 = vrot.slane %v3919, 2
        %v3925 = vadd.f32 %v3507, %v3923
        %v3926 = vxor.u32 %v3925, 2147483648
        %v3927 = vmul.f32 %v3926, 1.442695
        %v3928 = vpow.pop %v3927
        %v3929 = vadd.f32 %v3928, 1.0
        %v3930 = vrcp.pop %v3929
        %v3931 = vmul.f32 1.0, %v3930
        %v3932 = vadd.f32 %v3919, %v3594
        %v3934 = vrot.slane %v3932, 2
        %3935 = vrot.lane.b32.xlu0 %v3934, 96
        %v3936 = vpop.permute.xlu0 %3935
        %v3938 = vmul.f32 %v3931, %v3936
        %3940 = vrot.lane.b32.xlu0 %v3938, 32
        %v3941 = vpop.permute.xlu0 %3940
        %v3943 = vadd.f32 %v3507, %v3941
        %v3944 = vtanh.pop %v3943
        %v3946 = vrot.slane %v3944, 2
        %v3948 = vsub.f32 %v3845, %v3946
        %v3950 = vrot.slane %v3948, 6
        %3951 = vrot.lane.b32.xlu0 %v3950, 112
        %v3952 = vpop.permute.xlu0 %3951
        %v3954 = vmul.f32 %v3931, %v3952
        %3956 = vrot.lane.b32.xlu0 %v3954, 16
        %v3957 = vpop.permute.xlu0 %3956
        %v3959 = vadd.f32 %v3944, %v3957
        %v3961 = vrot.slane %v3959, 6
        %3962 = vrot.lane.b32.xlu0 %v3961, 96
        %v3963 = vpop.permute.xlu0 %3962
        %v3964 = vsel %vm392, %v3963, 0
        %3966 = vmatprep.subr.mxu0 0.0
        %3967 = vmatpush1.msra.mxu0 %v3423
        %3968 = vmatprep.subr.mxu0 0.0
        %3969 = vmatpush1.msra.mxu0 %v3424
        %3970 = vmatprep.subr.mxu0 0.0
        %3971 = vmatpush1.msra.mxu0 0.0
        %3972 = vmatprep.subr.mxu0 0.0
        %3973 = vmatpush1.msra.mxu0 0.0
        %3974 = vmatprep.subr.mxu0 0.0
        %3975 = vmatpush1.msra.mxu0 0.0
        %3976 = vmatprep.subr.mxu0 0.0
        %3977 = vmatpush1.msra.mxu0 0.0
        %3978 = vmatprep.subr.mxu0 0.0
        %3979 = vmatpush1.msra.mxu0 0.0
        %3980 = vmatprep.subr.mxu0 0.0
        %3981 = vmatpush1.msra.mxu0 0.0
        %3982 = vmatprep.subr.mxu0 0.0
        %3983 = vmatpush1.msra.mxu0 0.0
        %3984 = vmatprep.subr.mxu0 0.0
        %3985 = vmatpush1.msra.mxu0 0.0
        %3986 = vmatprep.subr.mxu0 0.0
        %3987 = vmatpush1.msra.mxu0 0.0
        %3988 = vmatprep.subr.mxu0 0.0
        %3989 = vmatpush1.msra.mxu0 0.0
        %3990 = vmatprep.subr.mxu0 0.0
        %3991 = vmatpush1.msra.mxu0 0.0
        %3992 = vmatprep.subr.mxu0 0.0
        %3993 = vmatpush1.msra.mxu0 0.0
        %3994 = vmatprep.subr.mxu0 0.0
        %3995 = vmatpush1.msra.mxu0 0.0
        %3996 = vmatprep.subr.mxu0 0.0
        %3997 = vmatpush1.msra.mxu0 0.0
        %3998 = vmatprep.subr.mxu0 0.0
        %3999 = vmatpush1.msra.mxu0 0.0
        %4000 = vmatprep.subr.mxu0 0.0
        %4001 = vmatpush1.msra.mxu0 0.0
        %4002 = vmatprep.subr.mxu0 0.0
        %4003 = vmatpush1.msra.mxu0 0.0
        %4004 = vmatprep.subr.mxu0 0.0
        %4005 = vmatpush1.msra.mxu0 0.0
        %4006 = vmatprep.subr.mxu0 0.0
        %4007 = vmatpush1.msra.mxu0 0.0
        %4008 = vmatprep.subr.mxu0 0.0
        %4009 = vmatpush1.msra.mxu0 0.0
        %4010 = vmatprep.subr.mxu0 0.0
        %4011 = vmatpush1.msra.mxu0 0.0
        %4012 = vmatprep.subr.mxu0 0.0
        %4013 = vmatpush1.msra.mxu0 0.0
        %4014 = vmatprep.subr.mxu0 0.0
        %4015 = vmatpush1.msra.mxu0 0.0
        %4016 = vmatprep.subr.mxu0 0.0
        %4017 = vmatpush1.msra.mxu0 0.0
        %4018 = vmatprep.subr.mxu0 0.0
        %4019 = vmatpush1.msra.mxu0 0.0
        %4020 = vmatprep.subr.mxu0 0.0
        %4021 = vmatpush1.msra.mxu0 0.0
        %4022 = vmatprep.subr.mxu0 0.0
        %4023 = vmatpush1.msra.mxu0 0.0
        %4024 = vmatprep.subr.mxu0 0.0
        %4025 = vmatpush1.msra.mxu0 0.0
        %4026 = vmatprep.subr.mxu0 0.0
        %4027 = vmatpush1.msra.mxu0 0.0
        %4028 = vmatprep.subr.mxu0 0.0
        %4029 = vmatpush1.msra.mxu0 0.0
        %4030 = vmatprep.mubr.f32.mxu0 0.0
        %4031 = vmatmul.mubr.f32.gmra.mrb[0].mxu0 %v3964
        %v4032 = vpop.f32.mrb[0].mxu0
        %v4033 = vadd.f32 0.0, %v4032
        %v4034 = vpop.f32.mrb[0].mxu0
        %4035 = vdwg.mxu0
        %v4036 = vadd.f32 %v3512, %v4033
        %v4037 = vxor.u32 %v4036, 2147483648
        %v4038 = vmul.f32 %v4037, 1.442695
        %v4039 = vpow.pop %v4038
        %v4040 = vadd.f32 %v4039, 1.0
        %v4041 = vrcp.pop %v4040
        %v4042 = vmul.f32 1.0, %v4041
        %v4043 = vadd.f32 %v4033, %v3594
        %4045 = vrot.lane.b32.xlu0 %v4043, 96
        %v4046 = vpop.permute.xlu0 %4045
        %v4048 = vmul.f32 %v4042, %v4046
        %4050 = vrot.lane.b32.xlu0 %v4048, 32
        %v4051 = vpop.permute.xlu0 %4050
        %v4053 = vadd.f32 %v3512, %v4051
        %v4054 = vtanh.pop %v4053
        %v4056 = vrot.slane %v4054, 2
        %v4058 = vsub.f32 %v3959, %v4056
        %v4060 = vrot.slane %v4058, 6
        %4061 = vrot.lane.b32.xlu0 %v4060, 112
        %v4062 = vpop.permute.xlu0 %4061
        %v4064 = vmul.f32 %v4042, %v4062
        %4066 = vrot.lane.b32.xlu0 %v4064, 16
        %v4067 = vpop.permute.xlu0 %4066
        %v4069 = vadd.f32 %v4054, %v4067
        %4071 = vrot.lane.b32.xlu0 %v4069, 96
        %v4072 = vpop.permute.xlu0 %4071
        %v4073 = vsel %vm392, %v4072, 0
        %4075 = vmatprep.subr.mxu0 0.0
        %4076 = vmatpush1.msra.mxu0 %v3423
        %4077 = vmatprep.subr.mxu0 0.0
        %4078 = vmatpush1.msra.mxu0 %v3424
        %4079 = vmatprep.subr.mxu0 0.0
        %4080 = vmatpush1.msra.mxu0 0.0
        %4081 = vmatprep.subr.mxu0 0.0
        %4082 = vmatpush1.msra.mxu0 0.0
        %4083 = vmatprep.subr.mxu0 0.0
        %4084 = vmatpush1.msra.mxu0 0.0
        %4085 = vmatprep.subr.mxu0 0.0
        %4086 = vmatpush1.msra.mxu0 0.0
        %4087 = vmatprep.subr.mxu0 0.0
        %4088 = vmatpush1.msra.mxu0 0.0
        %4089 = vmatprep.subr.mxu0 0.0
        %4090 = vmatpush1.msra.mxu0 0.0
        %4091 = vmatprep.subr.mxu0 0.0
        %4092 = vmatpush1.msra.mxu0 0.0
        %4093 = vmatprep.subr.mxu0 0.0
        %4094 = vmatpush1.msra.mxu0 0.0
        %4095 = vmatprep.subr.mxu0 0.0
        %4096 = vmatpush1.msra.mxu0 0.0
        %4097 = vmatprep.subr.mxu0 0.0
        %4098 = vmatpush1.msra.mxu0 0.0
        %4099 = vmatprep.subr.mxu0 0.0
        %4100 = vmatpush1.msra.mxu0 0.0
        %4101 = vmatprep.subr.mxu0 0.0
        %4102 = vmatpush1.msra.mxu0 0.0
        %4103 = vmatprep.subr.mxu0 0.0
        %4104 = vmatpush1.msra.mxu0 0.0
        %4105 = vmatprep.subr.mxu0 0.0
        %4106 = vmatpush1.msra.mxu0 0.0
        %4107 = vmatprep.subr.mxu0 0.0
        %4108 = vmatpush1.msra.mxu0 0.0
        %4109 = vmatprep.subr.mxu0 0.0
        %4110 = vmatpush1.msra.mxu0 0.0
        %4111 = vmatprep.subr.mxu0 0.0
        %4112 = vmatpush1.msra.mxu0 0.0
        %4113 = vmatprep.subr.mxu0 0.0
        %4114 = vmatpush1.msra.mxu0 0.0
        %4115 = vmatprep.subr.mxu0 0.0
        %4116 = vmatpush1.msra.mxu0 0.0
        %4117 = vmatprep.subr.mxu0 0.0
        %4118 = vmatpush1.msra.mxu0 0.0
        %4119 = vmatprep.subr.mxu0 0.0
        %4120 = vmatpush1.msra.mxu0 0.0
        %4121 = vmatprep.subr.mxu0 0.0
        %4122 = vmatpush1.msra.mxu0 0.0
        %4123 = vmatprep.subr.mxu0 0.0
        %4124 = vmatpush1.msra.mxu0 0.0
        %4125 = vmatprep.subr.mxu0 0.0
        %4126 = vmatpush1.msra.mxu0 0.0
        %4127 = vmatprep.subr.mxu0 0.0
        %4128 = vmatpush1.msra.mxu0 0.0
        %4129 = vmatprep.subr.mxu0 0.0
        %4130 = vmatpush1.msra.mxu0 0.0
        %4131 = vmatprep.subr.mxu0 0.0
        %4132 = vmatpush1.msra.mxu0 0.0
        %4133 = vmatprep.subr.mxu0 0.0
        %4134 = vmatpush1.msra.mxu0 0.0
        %4135 = vmatprep.subr.mxu0 0.0
        %4136 = vmatpush1.msra.mxu0 0.0
        %4137 = vmatprep.subr.mxu0 0.0
        %4138 = vmatpush1.msra.mxu0 0.0
        %4139 = vmatprep.mubr.f32.mxu0 0.0
        %4140 = vmatmul.mubr.f32.gmra.mrb[0].mxu0 %v4073
        %v4141 = vpop.f32.mrb[0].mxu0
        %v4142 = vadd.f32 0.0, %v4141
        %v4143 = vpop.f32.mrb[0].mxu0
        %4144 = vdwg.mxu0
        %v4146 = vrot.slane %v4142, 6
        %v4148 = vadd.f32 %v3512, %v4146
        %v4149 = vxor.u32 %v4148, 2147483648
        %v4150 = vmul.f32 %v4149, 1.442695
        %v4151 = vpow.pop %v4150
        %v4152 = vadd.f32 %v4151, 1.0
        %v4153 = vrcp.pop %v4152
        %v4154 = vmul.f32 1.0, %v4153
        %v4155 = vadd.f32 %v4142, %v3594
        %v4157 = vrot.slane %v4155, 6
        %4158 = vrot.lane.b32.xlu0 %v4157, 96
        %v4159 = vpop.permute.xlu0 %4158
        %v4161 = vmul.f32 %v4154, %v4159
        %4163 = vrot.lane.b32.xlu0 %v4161, 32
        %v4164 = vpop.permute.xlu0 %4163
        %v4166 = vadd.f32 %v3512, %v4164
        %v4167 = vtanh.pop %v4166
        %v4169 = vrot.slane %v4167, 2
        %v4171 = vsub.f32 %v4069, %v4169
        %v4173 = vrot.slane %v4171, 6
        %4174 = vrot.lane.b32.xlu0 %v4173, 112
        %v4175 = vpop.permute.xlu0 %4174
        %v4177 = vmul.f32 %v4154, %v4175
        %4179 = vrot.lane.b32.xlu0 %v4177, 16
        %v4180 = vpop.permute.xlu0 %4179
        %v4182 = vadd.f32 %v4167, %v4180
        %v4184 = vrot.slane %v4182, 2
        %4185 = vrot.lane.b32.xlu0 %v4184, 96
        %v4186 = vpop.permute.xlu0 %4185
        %v4187 = vsel %vm392, %v4186, 0
        %4189 = vmatprep.subr.mxu0 0.0
        %4190 = vmatpush1.msra.mxu0 %v3423
        %4191 = vmatprep.subr.mxu0 0.0
        %4192 = vmatpush1.msra.mxu0 %v3424
        %4193 = vmatprep.subr.mxu0 0.0
        %4194 = vmatpush1.msra.mxu0 0.0
        %4195 = vmatprep.subr.mxu0 0.0
        %4196 = vmatpush1.msra.mxu0 0.0
        %4197 = vmatprep.subr.mxu0 0.0
        %4198 = vmatpush1.msra.mxu0 0.0
        %4199 = vmatprep.subr.mxu0 0.0
        %4200 = vmatpush1.msra.mxu0 0.0
        %4201 = vmatprep.subr.mxu0 0.0
        %4202 = vmatpush1.msra.mxu0 0.0
        %4203 = vmatprep.subr.mxu0 0.0
        %4204 = vmatpush1.msra.mxu0 0.0
        %4205 = vmatprep.subr.mxu0 0.0
        %4206 = vmatpush1.msra.mxu0 0.0
        %4207 = vmatprep.subr.mxu0 0.0
        %4208 = vmatpush1.msra.mxu0 0.0
        %4209 = vmatprep.subr.mxu0 0.0
        %4210 = vmatpush1.msra.mxu0 0.0
        %4211 = vmatprep.subr.mxu0 0.0
        %4212 = vmatpush1.msra.mxu0 0.0
        %4213 = vmatprep.subr.mxu0 0.0
        %4214 = vmatpush1.msra.mxu0 0.0
        %4215 = vmatprep.subr.mxu0 0.0
        %4216 = vmatpush1.msra.mxu0 0.0
        %4217 = vmatprep.subr.mxu0 0.0
        %4218 = vmatpush1.msra.mxu0 0.0
        %4219 = vmatprep.subr.mxu0 0.0
        %4220 = vmatpush1.msra.mxu0 0.0
        %4221 = vmatprep.subr.mxu0 0.0
        %4222 = vmatpush1.msra.mxu0 0.0
        %4223 = vmatprep.subr.mxu0 0.0
        %4224 = vmatpush1.msra.mxu0 0.0
        %4225 = vmatprep.subr.mxu0 0.0
        %4226 = vmatpush1.msra.mxu0 0.0
        %4227 = vmatprep.subr.mxu0 0.0
        %4228 = vmatpush1.msra.mxu0 0.0
        %4229 = vmatprep.subr.mxu0 0.0
        %4230 = vmatpush1.msra.mxu0 0.0
        %4231 = vmatprep.subr.mxu0 0.0
        %4232 = vmatpush1.msra.mxu0 0.0
        %4233 = vmatprep.subr.mxu0 0.0
        %4234 = vmatpush1.msra.mxu0 0.0
        %4235 = vmatprep.subr.mxu0 0.0
        %4236 = vmatpush1.msra.mxu0 0.0
        %4237 = vmatprep.subr.mxu0 0.0
        %4238 = vmatpush1.msra.mxu0 0.0
        %4239 = vmatprep.subr.mxu0 0.0
        %4240 = vmatpush1.msra.mxu0 0.0
        %4241 = vmatprep.subr.mxu0 0.0
        %4242 = vmatpush1.msra.mxu0 0.0
        %4243 = vmatprep.subr.mxu0 0.0
        %4244 = vmatpush1.msra.mxu0 0.0
        %4245 = vmatprep.subr.mxu0 0.0
        %4246 = vmatpush1.msra.mxu0 0.0
        %4247 = vmatprep.subr.mxu0 0.0
        %4248 = vmatpush1.msra.mxu0 0.0
        %4249 = vmatprep.subr.mxu0 0.0
        %4250 = vmatpush1.msra.mxu0 0.0
        %4251 = vmatprep.subr.mxu0 0.0
        %4252 = vmatpush1.msra.mxu0 0.0
        %4253 = vmatprep.mubr.f32.mxu0 0.0
        %4254 = vmatmul.mubr.f32.gmra.mrb[0].mxu0 %v4187
        %v4255 = vpop.f32.mrb[0].mxu0
        %v4256 = vadd.f32 0.0, %v4255
        %v4257 = vpop.f32.mrb[0].mxu0
        %4258 = vdwg.mxu0
        %v4260 = vrot.slane %v4256, 4
        %v4262 = vadd.f32 %v3512, %v4260
        %v4263 = vxor.u32 %v4262, 2147483648
        %v4264 = vmul.f32 %v4263, 1.442695
        %v4265 = vpow.pop %v4264
        %v4266 = vadd.f32 %v4265, 1.0
        %v4267 = vrcp.pop %v4266
        %v4268 = vmul.f32 1.0, %v4267
        %v4269 = vadd.f32 %v4256, %v3594
        %v4271 = vrot.slane %v4269, 4
        %4272 = vrot.lane.b32.xlu0 %v4271, 96
        %v4273 = vpop.permute.xlu0 %4272
        %v4275 = vmul.f32 %v4268, %v4273
        %4277 = vrot.lane.b32.xlu0 %v4275, 32
        %v4278 = vpop.permute.xlu0 %4277
        %v4280 = vadd.f32 %v3512, %v4278
        %v4281 = vtanh.pop %v4280
        %v4283 = vrot.slane %v4281, 2
        %v4285 = vsub.f32 %v4182, %v4283
        %v4287 = vrot.slane %v4285, 6
        %4288 = vrot.lane.b32.xlu0 %v4287, 112
        %v4289 = vpop.permute.xlu0 %4288
        %v4291 = vmul.f32 %v4268, %v4289
        %4293 = vrot.lane.b32.xlu0 %v4291, 16
        %v4294 = vpop.permute.xlu0 %4293
        %v4296 = vadd.f32 %v4281, %v4294
        %v4298 = vrot.slane %v4296, 4
        %4299 = vrot.lane.b32.xlu0 %v4298, 96
        %v4300 = vpop.permute.xlu0 %4299
        %v4301 = vsel %vm392, %v4300, 0
        %4303 = vmatprep.subr.mxu0 0.0
        %4304 = vmatpush1.msra.mxu0 %v3423
        %4305 = vmatprep.subr.mxu0 0.0
        %4306 = vmatpush1.msra.mxu0 %v3424
        %4307 = vmatprep.subr.mxu0 0.0
        %4308 = vmatpush1.msra.mxu0 0.0
        %4309 = vmatprep.subr.mxu0 0.0
        %4310 = vmatpush1.msra.mxu0 0.0
        %4311 = vmatprep.subr.mxu0 0.0
        %4312 = vmatpush1.msra.mxu0 0.0
        %4313 = vmatprep.subr.mxu0 0.0
        %4314 = vmatpush1.msra.mxu0 0.0
        %4315 = vmatprep.subr.mxu0 0.0
        %4316 = vmatpush1.msra.mxu0 0.0
        %4317 = vmatprep.subr.mxu0 0.0
        %4318 = vmatpush1.msra.mxu0 0.0
        %4319 = vmatprep.subr.mxu0 0.0
        %4320 = vmatpush1.msra.mxu0 0.0
        %4321 = vmatprep.subr.mxu0 0.0
        %4322 = vmatpush1.msra.mxu0 0.0
        %4323 = vmatprep.subr.mxu0 0.0
        %4324 = vmatpush1.msra.mxu0 0.0
        %4325 = vmatprep.subr.mxu0 0.0
        %4326 = vmatpush1.msra.mxu0 0.0
        %4327 = vmatprep.subr.mxu0 0.0
        %4328 = vmatpush1.msra.mxu0 0.0
        %4329 = vmatprep.subr.mxu0 0.0
        %4330 = vmatpush1.msra.mxu0 0.0
        %4331 = vmatprep.subr.mxu0 0.0
        %4332 = vmatpush1.msra.mxu0 0.0
        %4333 = vmatprep.subr.mxu0 0.0
        %4334 = vmatpush1.msra.mxu0 0.0
        %4335 = vmatprep.subr.mxu0 0.0
        %4336 = vmatpush1.msra.mxu0 0.0
        %4337 = vmatprep.subr.mxu0 0.0
        %4338 = vmatpush1.msra.mxu0 0.0
        %4339 = vmatprep.subr.mxu0 0.0
        %4340 = vmatpush1.msra.mxu0 0.0
        %4341 = vmatprep.subr.mxu0 0.0
        %4342 = vmatpush1.msra.mxu0 0.0
        %4343 = vmatprep.subr.mxu0 0.0
        %4344 = vmatpush1.msra.mxu0 0.0
        %4345 = vmatprep.subr.mxu0 0.0
        %4346 = vmatpush1.msra.mxu0 0.0
        %4347 = vmatprep.subr.mxu0 0.0
        %4348 = vmatpush1.msra.mxu0 0.0
        %4349 = vmatprep.subr.mxu0 0.0
        %4350 = vmatpush1.msra.mxu0 0.0
        %4351 = vmatprep.subr.mxu0 0.0
        %4352 = vmatpush1.msra.mxu0 0.0
        %4353 = vmatprep.subr.mxu0 0.0
        %4354 = vmatpush1.msra.mxu0 0.0
        %4355 = vmatprep.subr.mxu0 0.0
        %4356 = vmatpush1.msra.mxu0 0.0
        %4357 = vmatprep.subr.mxu0 0.0
        %4358 = vmatpush1.msra.mxu0 0.0
        %4359 = vmatprep.subr.mxu0 0.0
        %4360 = vmatpush1.msra.mxu0 0.0
        %4361 = vmatprep.subr.mxu0 0.0
        %4362 = vmatpush1.msra.mxu0 0.0
        %4363 = vmatprep.subr.mxu0 0.0
        %4364 = vmatpush1.msra.mxu0 0.0
        %4365 = vmatprep.subr.mxu0 0.0
        %4366 = vmatpush1.msra.mxu0 0.0
        %4367 = vmatprep.mubr.f32.mxu0 0.0
        %4368 = vmatmul.mubr.f32.gmra.mrb[0].mxu0 %v4301
        %v4369 = vpop.f32.mrb[0].mxu0
        %v4370 = vadd.f32 0.0, %v4369
        %v4371 = vpop.f32.mrb[0].mxu0
        %4372 = vdwg.mxu0
        %v4374 = vrot.slane %v4370, 2
        %v4376 = vadd.f32 %v3512, %v4374
        %v4377 = vxor.u32 %v4376, 2147483648
        %v4378 = vmul.f32 %v4377, 1.442695
        %v4379 = vpow.pop %v4378
        %v4380 = vadd.f32 %v4379, 1.0
        %v4381 = vrcp.pop %v4380
        %v4382 = vmul.f32 1.0, %v4381
        %v4383 = vadd.f32 %v4370, %v3594
        %v4385 = vrot.slane %v4383, 2
        %4386 = vrot.lane.b32.xlu0 %v4385, 96
        %v4387 = vpop.permute.xlu0 %4386
        %v4389 = vmul.f32 %v4382, %v4387
        %4391 = vrot.lane.b32.xlu0 %v4389, 32
        %v4392 = vpop.permute.xlu0 %4391
        %v4394 = vadd.f32 %v3512, %v4392
        %v4395 = vtanh.pop %v4394
        %v4397 = vrot.slane %v4395, 2
        %v4399 = vsub.f32 %v4296, %v4397
        %v4401 = vrot.slane %v4399, 6
        %4402 = vrot.lane.b32.xlu0 %v4401, 112
        %v4403 = vpop.permute.xlu0 %4402
        %v4405 = vmul.f32 %v4382, %v4403
        %4407 = vrot.lane.b32.xlu0 %v4405, 16
        %v4408 = vpop.permute.xlu0 %4407
        %v4410 = vadd.f32 %v4395, %v4408
        %v4411 = vsel %vm1414, %v3618, %v3731
        %v4412 = vsel %vm1416, %v4411, %v3845
        %v4413 = vsel %vm1418, %v4412, %v3959
        %v4414 = vsel %vm1414, %v4069, %v4182
        %v4415 = vsel %vm1416, %v4414, %v4296
        %v4416 = vsel %vm1418, %v4415, %v4410
        %s4417 = scalar_lea.vmem [#allocation2], 128
        %v4418 = vld [vmem:[%s4417] sm:$0xff]
        %v4419 = vld [vmem:[%s4417 + $0x8] sm:$0xff]
        %s4420 = scalar_lea.vmem [#allocation2], 144
        %v4421 = vld [vmem:[%s4420] sm:$0xff]
        %v4422 = vld [vmem:[%s4420 + $0x8] sm:$0xff]
        %v4423 = vld [vmem:[%s3 + $0x4] sm:$0x1]
        %v4424 = vlaneseq
        %v4425 = vshrl.u32 %v4424, 7
        %v4426 = vsub.s32 0, %v4425
        %v4427 = vrot.slane %v4423, %v4426
        %4430 = vrot.lane.b32.xlu0 %v4413, 96
        %v4431 = vpop.permute.xlu0 %4430
        %4432 = vrot.lane.b32.xlu0 %v4416, 96
        %v4433 = vpop.permute.xlu0 %4432
        %v4434 = vsel %vm392, %v4431, 0
        %v4436 = vsel %vm392, %v4433, 0
        %4438 = vmatprep.subr.mxu0 0.0
        %4439 = vmatpush1.msra.mxu0 %v4418
        %4440 = vmatprep.subr.mxu0 0.0
        %4441 = vmatpush1.msra.mxu0 %v4419
        %4442 = vmatprep.subr.mxu0 0.0
        %4443 = vmatpush1.msra.mxu0 0.0
        %4444 = vmatprep.subr.mxu0 0.0
        %4445 = vmatpush1.msra.mxu0 0.0
        %4446 = vmatprep.subr.mxu0 0.0
        %4447 = vmatpush1.msra.mxu0 0.0
        %4448 = vmatprep.subr.mxu0 0.0
        %4449 = vmatpush1.msra.mxu0 0.0
        %4450 = vmatprep.subr.mxu0 0.0
        %4451 = vmatpush1.msra.mxu0 0.0
        %4452 = vmatprep.subr.mxu0 0.0
        %4453 = vmatpush1.msra.mxu0 0.0
        %4454 = vmatprep.subr.mxu0 0.0
        %4455 = vmatpush1.msra.mxu0 0.0
        %4456 = vmatprep.subr.mxu0 0.0
        %4457 = vmatpush1.msra.mxu0 0.0
        %4458 = vmatprep.subr.mxu0 0.0
        %4459 = vmatpush1.msra.mxu0 0.0
        %4460 = vmatprep.subr.mxu0 0.0
        %4461 = vmatpush1.msra.mxu0 0.0
        %4462 = vmatprep.subr.mxu0 0.0
        %4463 = vmatpush1.msra.mxu0 0.0
        %4464 = vmatprep.subr.mxu0 0.0
        %4465 = vmatpush1.msra.mxu0 0.0
        %4466 = vmatprep.subr.mxu0 0.0
        %4467 = vmatpush1.msra.mxu0 0.0
        %4468 = vmatprep.subr.mxu0 0.0
        %4469 = vmatpush1.msra.mxu0 0.0
        %4470 = vmatprep.subr.mxu0 0.0
        %4471 = vmatpush1.msra.mxu0 0.0
        %4472 = vmatprep.subr.mxu0 0.0
        %4473 = vmatpush1.msra.mxu0 0.0
        %4474 = vmatprep.subr.mxu0 0.0
        %4475 = vmatpush1.msra.mxu0 0.0
        %4476 = vmatprep.subr.mxu0 0.0
        %4477 = vmatpush1.msra.mxu0 0.0
        %4478 = vmatprep.subr.mxu0 0.0
        %4479 = vmatpush1.msra.mxu0 0.0
        %4480 = vmatprep.subr.mxu0 0.0
        %4481 = vmatpush1.msra.mxu0 0.0
        %4482 = vmatprep.subr.mxu0 0.0
        %4483 = vmatpush1.msra.mxu0 0.0
        %4484 = vmatprep.subr.mxu0 0.0
        %4485 = vmatpush1.msra.mxu0 0.0
        %4486 = vmatprep.subr.mxu0 0.0
        %4487 = vmatpush1.msra.mxu0 0.0
        %4488 = vmatprep.subr.mxu0 0.0
        %4489 = vmatpush1.msra.mxu0 0.0
        %4490 = vmatprep.subr.mxu0 0.0
        %4491 = vmatpush1.msra.mxu0 0.0
        %4492 = vmatprep.subr.mxu0 0.0
        %4493 = vmatpush1.msra.mxu0 0.0
        %4494 = vmatprep.subr.mxu0 0.0
        %4495 = vmatpush1.msra.mxu0 0.0
        %4496 = vmatprep.subr.mxu0 0.0
        %4497 = vmatpush1.msra.mxu0 0.0
        %4498 = vmatprep.subr.mxu0 0.0
        %4499 = vmatpush1.msra.mxu0 0.0
        %4500 = vmatprep.subr.mxu0 0.0
        %4501 = vmatpush1.msra.mxu0 0.0
        %4502 = vmatprep.mubr.f32.mxu0 0.0
        %4503 = vmatmul.mubr.f32.gmra.mrb[0].mxu0 %v4434
        %v4504 = vpop.f32.mrb[0].mxu0
        %v4505 = vadd.f32 %v4427, %v4504
        %v4506 = vpop.f32.mrb[0].mxu0
        %4507 = vmatprep.mubr.f32.mxu0 0.0
        %4508 = vmatmul.mubr.f32.gmra.mrb[0].mxu0 %v4436
        %v4509 = vpop.f32.mrb[0].mxu0
        %v4510 = vadd.f32 %v4427, %v4509
        %v4511 = vpop.f32.mrb[0].mxu0
        %4512 = vdwg.mxu0
        %4513 = vmatprep.subr.mxu0 0.0
        %4514 = vmatpush1.msra.mxu0 %v4421
        %4515 = vmatprep.subr.mxu0 0.0
        %4516 = vmatpush1.msra.mxu0 %v4422
        %4517 = vmatprep.subr.mxu0 0.0
        %4518 = vmatpush1.msra.mxu0 0.0
        %4519 = vmatprep.subr.mxu0 0.0
        %4520 = vmatpush1.msra.mxu0 0.0
        %4521 = vmatprep.subr.mxu0 0.0
        %4522 = vmatpush1.msra.mxu0 0.0
        %4523 = vmatprep.subr.mxu0 0.0
        %4524 = vmatpush1.msra.mxu0 0.0
        %4525 = vmatprep.subr.mxu0 0.0
        %4526 = vmatpush1.msra.mxu0 0.0
        %4527 = vmatprep.subr.mxu0 0.0
        %4528 = vmatpush1.msra.mxu0 0.0
        %4529 = vmatprep.subr.mxu0 0.0
        %4530 = vmatpush1.msra.mxu0 0.0
        %4531 = vmatprep.subr.mxu0 0.0
        %4532 = vmatpush1.msra.mxu0 0.0
        %4533 = vmatprep.subr.mxu0 0.0
        %4534 = vmatpush1.msra.mxu0 0.0
        %4535 = vmatprep.subr.mxu0 0.0
        %4536 = vmatpush1.msra.mxu0 0.0
        %4537 = vmatprep.subr.mxu0 0.0
        %4538 = vmatpush1.msra.mxu0 0.0
        %4539 = vmatprep.subr.mxu0 0.0
        %4540 = vmatpush1.msra.mxu0 0.0
        %4541 = vmatprep.subr.mxu0 0.0
        %4542 = vmatpush1.msra.mxu0 0.0
        %4543 = vmatprep.subr.mxu0 0.0
        %4544 = vmatpush1.msra.mxu0 0.0
        %4545 = vmatprep.subr.mxu0 0.0
        %4546 = vmatpush1.msra.mxu0 0.0
        %4547 = vmatprep.subr.mxu0 0.0
        %4548 = vmatpush1.msra.mxu0 0.0
        %4549 = vmatprep.subr.mxu0 0.0
        %4550 = vmatpush1.msra.mxu0 0.0
        %4551 = vmatprep.subr.mxu0 0.0
        %4552 = vmatpush1.msra.mxu0 0.0
        %4553 = vmatprep.subr.mxu0 0.0
        %4554 = vmatpush1.msra.mxu0 0.0
        %4555 = vmatprep.subr.mxu0 0.0
        %4556 = vmatpush1.msra.mxu0 0.0
        %4557 = vmatprep.subr.mxu0 0.0
        %4558 = vmatpush1.msra.mxu0 0.0
        %4559 = vmatprep.subr.mxu0 0.0
        %4560 = vmatpush1.msra.mxu0 0.0
        %4561 = vmatprep.subr.mxu0 0.0
        %4562 = vmatpush1.msra.mxu0 0.0
        %4563 = vmatprep.subr.mxu0 0.0
        %4564 = vmatpush1.msra.mxu0 0.0
        %4565 = vmatprep.subr.mxu0 0.0
        %4566 = vmatpush1.msra.mxu0 0.0
        %4567 = vmatprep.subr.mxu0 0.0
        %4568 = vmatpush1.msra.mxu0 0.0
        %4569 = vmatprep.subr.mxu0 0.0
        %4570 = vmatpush1.msra.mxu0 0.0
        %4571 = vmatprep.subr.mxu0 0.0
        %4572 = vmatpush1.msra.mxu0 0.0
        %4573 = vmatprep.subr.mxu0 0.0
        %4574 = vmatpush1.msra.mxu0 0.0
        %4575 = vmatprep.subr.mxu0 0.0
        %4576 = vmatpush1.msra.mxu0 0.0
        %4577 = vmatprep.mubr.f32.mxu0 0.0
        %4578 = vmatmul.mubr.f32.gmra.mrb[0].mxu0 %v516
        %v4579 = vpop.f32.mrb[0].mxu0
        %v4580 = vadd.f32 0.0, %v4579
        %v4581 = vpop.f32.mrb[0].mxu0
        %4582 = vdwg.mxu0
        %v4583 = vadd.f32 %v4505, %v4580
        %v4584 = vxor.u32 %v4583, 2147483648
        %v4585 = vmul.f32 %v4584, 1.442695
        %v4586 = vpow.pop %v4585
        %v4587 = vadd.f32 %v4586, 1.0
        %v4588 = vrcp.pop %v4587
        %v4589 = vmul.f32 1.0, %v4588
        %4591 = vrot.lane.b32.xlu0 %v4427, 112
        %v4592 = vpop.permute.xlu0 %4591
        %v4594 = vadd.f32 %v4580, %v4592
        %4596 = vrot.lane.b32.xlu0 %v4594, 96
        %v4597 = vpop.permute.xlu0 %4596
        %v4599 = vmul.f32 %v4589, %v4597
        %4601 = vrot.lane.b32.xlu0 %v4599, 32
        %v4602 = vpop.permute.xlu0 %4601
        %v4604 = vadd.f32 %v4505, %v4602
        %v4605 = vtanh.pop %v4604
        %v4606 = vsub.f32 0.0, %v4605
        %4608 = vrot.lane.b32.xlu0 %v4606, 112
        %v4609 = vpop.permute.xlu0 %4608
        %v4611 = vmul.f32 %v4589, %v4609
        %4613 = vrot.lane.b32.xlu0 %v4611, 16
        %v4614 = vpop.permute.xlu0 %4613
        %v4616 = vadd.f32 %v4605, %v4614
        %4618 = vrot.lane.b32.xlu0 %v4616, 96
        %v4619 = vpop.permute.xlu0 %4618
        %v4620 = vsel %vm392, %v4619, 0
        %4622 = vmatprep.subr.mxu0 0.0
        %4623 = vmatpush1.msra.mxu0 %v4421
        %4624 = vmatprep.subr.mxu0 0.0
        %4625 = vmatpush1.msra.mxu0 %v4422
        %4626 = vmatprep.subr.mxu0 0.0
        %4627 = vmatpush1.msra.mxu0 0.0
        %4628 = vmatprep.subr.mxu0 0.0
        %4629 = vmatpush1.msra.mxu0 0.0
        %4630 = vmatprep.subr.mxu0 0.0
        %4631 = vmatpush1.msra.mxu0 0.0
        %4632 = vmatprep.subr.mxu0 0.0
        %4633 = vmatpush1.msra.mxu0 0.0
        %4634 = vmatprep.subr.mxu0 0.0
        %4635 = vmatpush1.msra.mxu0 0.0
        %4636 = vmatprep.subr.mxu0 0.0
        %4637 = vmatpush1.msra.mxu0 0.0
        %4638 = vmatprep.subr.mxu0 0.0
        %4639 = vmatpush1.msra.mxu0 0.0
        %4640 = vmatprep.subr.mxu0 0.0
        %4641 = vmatpush1.msra.mxu0 0.0
        %4642 = vmatprep.subr.mxu0 0.0
        %4643 = vmatpush1.msra.mxu0 0.0
        %4644 = vmatprep.subr.mxu0 0.0
        %4645 = vmatpush1.msra.mxu0 0.0
        %4646 = vmatprep.subr.mxu0 0.0
        %4647 = vmatpush1.msra.mxu0 0.0
        %4648 = vmatprep.subr.mxu0 0.0
        %4649 = vmatpush1.msra.mxu0 0.0
        %4650 = vmatprep.subr.mxu0 0.0
        %4651 = vmatpush1.msra.mxu0 0.0
        %4652 = vmatprep.subr.mxu0 0.0
        %4653 = vmatpush1.msra.mxu0 0.0
        %4654 = vmatprep.subr.mxu0 0.0
        %4655 = vmatpush1.msra.mxu0 0.0
        %4656 = vmatprep.subr.mxu0 0.0
        %4657 = vmatpush1.msra.mxu0 0.0
        %4658 = vmatprep.subr.mxu0 0.0
        %4659 = vmatpush1.msra.mxu0 0.0
        %4660 = vmatprep.subr.mxu0 0.0
        %4661 = vmatpush1.msra.mxu0 0.0
        %4662 = vmatprep.subr.mxu0 0.0
        %4663 = vmatpush1.msra.mxu0 0.0
        %4664 = vmatprep.subr.mxu0 0.0
        %4665 = vmatpush1.msra.mxu0 0.0
        %4666 = vmatprep.subr.mxu0 0.0
        %4667 = vmatpush1.msra.mxu0 0.0
        %4668 = vmatprep.subr.mxu0 0.0
        %4669 = vmatpush1.msra.mxu0 0.0
        %4670 = vmatprep.subr.mxu0 0.0
        %4671 = vmatpush1.msra.mxu0 0.0
        %4672 = vmatprep.subr.mxu0 0.0
        %4673 = vmatpush1.msra.mxu0 0.0
        %4674 = vmatprep.subr.mxu0 0.0
        %4675 = vmatpush1.msra.mxu0 0.0
        %4676 = vmatprep.subr.mxu0 0.0
        %4677 = vmatpush1.msra.mxu0 0.0
        %4678 = vmatprep.subr.mxu0 0.0
        %4679 = vmatpush1.msra.mxu0 0.0
        %4680 = vmatprep.subr.mxu0 0.0
        %4681 = vmatpush1.msra.mxu0 0.0
        %4682 = vmatprep.subr.mxu0 0.0
        %4683 = vmatpush1.msra.mxu0 0.0
        %4684 = vmatprep.subr.mxu0 0.0
        %4685 = vmatpush1.msra.mxu0 0.0
        %4686 = vmatprep.mubr.f32.mxu0 0.0
        %4687 = vmatmul.mubr.f32.gmra.mrb[0].mxu0 %v4620
        %v4688 = vpop.f32.mrb[0].mxu0
        %v4689 = vadd.f32 0.0, %v4688
        %v4690 = vpop.f32.mrb[0].mxu0
        %4691 = vdwg.mxu0
        %v4693 = vrot.slane %v4689, 6
        %v4695 = vadd.f32 %v4505, %v4693
        %v4696 = vxor.u32 %v4695, 2147483648
        %v4697 = vmul.f32 %v4696, 1.442695
        %v4698 = vpow.pop %v4697
        %v4699 = vadd.f32 %v4698, 1.0
        %v4700 = vrcp.pop %v4699
        %v4701 = vmul.f32 1.0, %v4700
        %v4702 = vadd.f32 %v4689, %v4592
        %v4704 = vrot.slane %v4702, 6
        %4705 = vrot.lane.b32.xlu0 %v4704, 96
        %v4706 = vpop.permute.xlu0 %4705
        %v4708 = vmul.f32 %v4701, %v4706
        %4710 = vrot.lane.b32.xlu0 %v4708, 32
        %v4711 = vpop.permute.xlu0 %4710
        %v4713 = vadd.f32 %v4505, %v4711
        %v4714 = vtanh.pop %v4713
        %v4716 = vrot.slane %v4714, 2
        %v4718 = vsub.f32 %v4616, %v4716
        %v4720 = vrot.slane %v4718, 6
        %4721 = vrot.lane.b32.xlu0 %v4720, 112
        %v4722 = vpop.permute.xlu0 %4721
        %v4724 = vmul.f32 %v4701, %v4722
        %4726 = vrot.lane.b32.xlu0 %v4724, 16
        %v4727 = vpop.permute.xlu0 %4726
        %v4729 = vadd.f32 %v4714, %v4727
        %v4731 = vrot.slane %v4729, 2
        %4732 = vrot.lane.b32.xlu0 %v4731, 96
        %v4733 = vpop.permute.xlu0 %4732
        %v4734 = vsel %vm392, %v4733, 0
        %4736 = vmatprep.subr.mxu0 0.0
        %4737 = vmatpush1.msra.mxu0 %v4421
        %4738 = vmatprep.subr.mxu0 0.0
        %4739 = vmatpush1.msra.mxu0 %v4422
        %4740 = vmatprep.subr.mxu0 0.0
        %4741 = vmatpush1.msra.mxu0 0.0
        %4742 = vmatprep.subr.mxu0 0.0
        %4743 = vmatpush1.msra.mxu0 0.0
        %4744 = vmatprep.subr.mxu0 0.0
        %4745 = vmatpush1.msra.mxu0 0.0
        %4746 = vmatprep.subr.mxu0 0.0
        %4747 = vmatpush1.msra.mxu0 0.0
        %4748 = vmatprep.subr.mxu0 0.0
        %4749 = vmatpush1.msra.mxu0 0.0
        %4750 = vmatprep.subr.mxu0 0.0
        %4751 = vmatpush1.msra.mxu0 0.0
        %4752 = vmatprep.subr.mxu0 0.0
        %4753 = vmatpush1.msra.mxu0 0.0
        %4754 = vmatprep.subr.mxu0 0.0
        %4755 = vmatpush1.msra.mxu0 0.0
        %4756 = vmatprep.subr.mxu0 0.0
        %4757 = vmatpush1.msra.mxu0 0.0
        %4758 = vmatprep.subr.mxu0 0.0
        %4759 = vmatpush1.msra.mxu0 0.0
        %4760 = vmatprep.subr.mxu0 0.0
        %4761 = vmatpush1.msra.mxu0 0.0
        %4762 = vmatprep.subr.mxu0 0.0
        %4763 = vmatpush1.msra.mxu0 0.0
        %4764 = vmatprep.subr.mxu0 0.0
        %4765 = vmatpush1.msra.mxu0 0.0
        %4766 = vmatprep.subr.mxu0 0.0
        %4767 = vmatpush1.msra.mxu0 0.0
        %4768 = vmatprep.subr.mxu0 0.0
        %4769 = vmatpush1.msra.mxu0 0.0
        %4770 = vmatprep.subr.mxu0 0.0
        %4771 = vmatpush1.msra.mxu0 0.0
        %4772 = vmatprep.subr.mxu0 0.0
        %4773 = vmatpush1.msra.mxu0 0.0
        %4774 = vmatprep.subr.mxu0 0.0
        %4775 = vmatpush1.msra.mxu0 0.0
        %4776 = vmatprep.subr.mxu0 0.0
        %4777 = vmatpush1.msra.mxu0 0.0
        %4778 = vmatprep.subr.mxu0 0.0
        %4779 = vmatpush1.msra.mxu0 0.0
        %4780 = vmatprep.subr.mxu0 0.0
        %4781 = vmatpush1.msra.mxu0 0.0
        %4782 = vmatprep.subr.mxu0 0.0
        %4783 = vmatpush1.msra.mxu0 0.0
        %4784 = vmatprep.subr.mxu0 0.0
        %4785 = vmatpush1.msra.mxu0 0.0
        %4786 = vmatprep.subr.mxu0 0.0
        %4787 = vmatpush1.msra.mxu0 0.0
        %4788 = vmatprep.subr.mxu0 0.0
        %4789 = vmatpush1.msra.mxu0 0.0
        %4790 = vmatprep.subr.mxu0 0.0
        %4791 = vmatpush1.msra.mxu0 0.0
        %4792 = vmatprep.subr.mxu0 0.0
        %4793 = vmatpush1.msra.mxu0 0.0
        %4794 = vmatprep.subr.mxu0 0.0
        %4795 = vmatpush1.msra.mxu0 0.0
        %4796 = vmatprep.subr.mxu0 0.0
        %4797 = vmatpush1.msra.mxu0 0.0
        %4798 = vmatprep.subr.mxu0 0.0
        %4799 = vmatpush1.msra.mxu0 0.0
        %4800 = vmatprep.mubr.f32.mxu0 0.0
        %4801 = vmatmul.mubr.f32.gmra.mrb[0].mxu0 %v4734
        %v4802 = vpop.f32.mrb[0].mxu0
        %v4803 = vadd.f32 0.0, %v4802
        %v4804 = vpop.f32.mrb[0].mxu0
        %4805 = vdwg.mxu0
        %v4807 = vrot.slane %v4803, 4
        %v4809 = vadd.f32 %v4505, %v4807
        %v4810 = vxor.u32 %v4809, 2147483648
        %v4811 = vmul.f32 %v4810, 1.442695
        %v4812 = vpow.pop %v4811
        %v4813 = vadd.f32 %v4812, 1.0
        %v4814 = vrcp.pop %v4813
        %v4815 = vmul.f32 1.0, %v4814
        %v4816 = vadd.f32 %v4803, %v4592
        %v4818 = vrot.slane %v4816, 4
        %4819 = vrot.lane.b32.xlu0 %v4818, 96
        %v4820 = vpop.permute.xlu0 %4819
        %v4822 = vmul.f32 %v4815, %v4820
        %4824 = vrot.lane.b32.xlu0 %v4822, 32
        %v4825 = vpop.permute.xlu0 %4824
        %v4827 = vadd.f32 %v4505, %v4825
        %v4828 = vtanh.pop %v4827
        %v4830 = vrot.slane %v4828, 2
        %v4832 = vsub.f32 %v4729, %v4830
        %v4834 = vrot.slane %v4832, 6
        %4835 = vrot.lane.b32.xlu0 %v4834, 112
        %v4836 = vpop.permute.xlu0 %4835
        %v4838 = vmul.f32 %v4815, %v4836
        %4840 = vrot.lane.b32.xlu0 %v4838, 16
        %v4841 = vpop.permute.xlu0 %4840
        %v4843 = vadd.f32 %v4828, %v4841
        %v4845 = vrot.slane %v4843, 4
        %4846 = vrot.lane.b32.xlu0 %v4845, 96
        %v4847 = vpop.permute.xlu0 %4846
        %v4848 = vsel %vm392, %v4847, 0
        %4850 = vmatprep.subr.mxu0 0.0
        %4851 = vmatpush1.msra.mxu0 %v4421
        %4852 = vmatprep.subr.mxu0 0.0
        %4853 = vmatpush1.msra.mxu0 %v4422
        %4854 = vmatprep.subr.mxu0 0.0
        %4855 = vmatpush1.msra.mxu0 0.0
        %4856 = vmatprep.subr.mxu0 0.0
        %4857 = vmatpush1.msra.mxu0 0.0
        %4858 = vmatprep.subr.mxu0 0.0
        %4859 = vmatpush1.msra.mxu0 0.0
        %4860 = vmatprep.subr.mxu0 0.0
        %4861 = vmatpush1.msra.mxu0 0.0
        %4862 = vmatprep.subr.mxu0 0.0
        %4863 = vmatpush1.msra.mxu0 0.0
        %4864 = vmatprep.subr.mxu0 0.0
        %4865 = vmatpush1.msra.mxu0 0.0
        %4866 = vmatprep.subr.mxu0 0.0
        %4867 = vmatpush1.msra.mxu0 0.0
        %4868 = vmatprep.subr.mxu0 0.0
        %4869 = vmatpush1.msra.mxu0 0.0
        %4870 = vmatprep.subr.mxu0 0.0
        %4871 = vmatpush1.msra.mxu0 0.0
        %4872 = vmatprep.subr.mxu0 0.0
        %4873 = vmatpush1.msra.mxu0 0.0
        %4874 = vmatprep.subr.mxu0 0.0
        %4875 = vmatpush1.msra.mxu0 0.0
        %4876 = vmatprep.subr.mxu0 0.0
        %4877 = vmatpush1.msra.mxu0 0.0
        %4878 = vmatprep.subr.mxu0 0.0
        %4879 = vmatpush1.msra.mxu0 0.0
        %4880 = vmatprep.subr.mxu0 0.0
        %4881 = vmatpush1.msra.mxu0 0.0
        %4882 = vmatprep.subr.mxu0 0.0
        %4883 = vmatpush1.msra.mxu0 0.0
        %4884 = vmatprep.subr.mxu0 0.0
        %4885 = vmatpush1.msra.mxu0 0.0
        %4886 = vmatprep.subr.mxu0 0.0
        %4887 = vmatpush1.msra.mxu0 0.0
        %4888 = vmatprep.subr.mxu0 0.0
        %4889 = vmatpush1.msra.mxu0 0.0
        %4890 = vmatprep.subr.mxu0 0.0
        %4891 = vmatpush1.msra.mxu0 0.0
        %4892 = vmatprep.subr.mxu0 0.0
        %4893 = vmatpush1.msra.mxu0 0.0
        %4894 = vmatprep.subr.mxu0 0.0
        %4895 = vmatpush1.msra.mxu0 0.0
        %4896 = vmatprep.subr.mxu0 0.0
        %4897 = vmatpush1.msra.mxu0 0.0
        %4898 = vmatprep.subr.mxu0 0.0
        %4899 = vmatpush1.msra.mxu0 0.0
        %4900 = vmatprep.subr.mxu0 0.0
        %4901 = vmatpush1.msra.mxu0 0.0
        %4902 = vmatprep.subr.mxu0 0.0
        %4903 = vmatpush1.msra.mxu0 0.0
        %4904 = vmatprep.subr.mxu0 0.0
        %4905 = vmatpush1.msra.mxu0 0.0
        %4906 = vmatprep.subr.mxu0 0.0
        %4907 = vmatpush1.msra.mxu0 0.0
        %4908 = vmatprep.subr.mxu0 0.0
        %4909 = vmatpush1.msra.mxu0 0.0
        %4910 = vmatprep.subr.mxu0 0.0
        %4911 = vmatpush1.msra.mxu0 0.0
        %4912 = vmatprep.subr.mxu0 0.0
        %4913 = vmatpush1.msra.mxu0 0.0
        %4914 = vmatprep.mubr.f32.mxu0 0.0
        %4915 = vmatmul.mubr.f32.gmra.mrb[0].mxu0 %v4848
        %v4916 = vpop.f32.mrb[0].mxu0
        %v4917 = vadd.f32 0.0, %v4916
        %v4918 = vpop.f32.mrb[0].mxu0
        %4919 = vdwg.mxu0
        %v4921 = vrot.slane %v4917, 2
        %v4923 = vadd.f32 %v4505, %v4921
        %v4924 = vxor.u32 %v4923, 2147483648
        %v4925 = vmul.f32 %v4924, 1.442695
        %v4926 = vpow.pop %v4925
        %v4927 = vadd.f32 %v4926, 1.0
        %v4928 = vrcp.pop %v4927
        %v4929 = vmul.f32 1.0, %v4928
        %v4930 = vadd.f32 %v4917, %v4592
        %v4932 = vrot.slane %v4930, 2
        %4933 = vrot.lane.b32.xlu0 %v4932, 96
        %v4934 = vpop.permute.xlu0 %4933
        %v4936 = vmul.f32 %v4929, %v4934
        %4938 = vrot.lane.b32.xlu0 %v4936, 32
        %v4939 = vpop.permute.xlu0 %4938
        %v4941 = vadd.f32 %v4505, %v4939
        %v4942 = vtanh.pop %v4941
        %v4944 = vrot.slane %v4942, 2
        %v4946 = vsub.f32 %v4843, %v4944
        %v4948 = vrot.slane %v4946, 6
        %4949 = vrot.lane.b32.xlu0 %v4948, 112
        %v4950 = vpop.permute.xlu0 %4949
        %v4952 = vmul.f32 %v4929, %v4950
        %4954 = vrot.lane.b32.xlu0 %v4952, 16
        %v4955 = vpop.permute.xlu0 %4954
        %v4957 = vadd.f32 %v4942, %v4955
        %v4959 = vrot.slane %v4957, 6
        %4960 = vrot.lane.b32.xlu0 %v4959, 96
        %v4961 = vpop.permute.xlu0 %4960
        %v4962 = vsel %vm392, %v4961, 0
        %4964 = vmatprep.subr.mxu0 0.0
        %4965 = vmatpush1.msra.mxu0 %v4421
        %4966 = vmatprep.subr.mxu0 0.0
        %4967 = vmatpush1.msra.mxu0 %v4422
        %4968 = vmatprep.subr.mxu0 0.0
        %4969 = vmatpush1.msra.mxu0 0.0
        %4970 = vmatprep.subr.mxu0 0.0
        %4971 = vmatpush1.msra.mxu0 0.0
        %4972 = vmatprep.subr.mxu0 0.0
        %4973 = vmatpush1.msra.mxu0 0.0
        %4974 = vmatprep.subr.mxu0 0.0
        %4975 = vmatpush1.msra.mxu0 0.0
        %4976 = vmatprep.subr.mxu0 0.0
        %4977 = vmatpush1.msra.mxu0 0.0
        %4978 = vmatprep.subr.mxu0 0.0
        %4979 = vmatpush1.msra.mxu0 0.0
        %4980 = vmatprep.subr.mxu0 0.0
        %4981 = vmatpush1.msra.mxu0 0.0
        %4982 = vmatprep.subr.mxu0 0.0
        %4983 = vmatpush1.msra.mxu0 0.0
        %4984 = vmatprep.subr.mxu0 0.0
        %4985 = vmatpush1.msra.mxu0 0.0
        %4986 = vmatprep.subr.mxu0 0.0
        %4987 = vmatpush1.msra.mxu0 0.0
        %4988 = vmatprep.subr.mxu0 0.0
        %4989 = vmatpush1.msra.mxu0 0.0
        %4990 = vmatprep.subr.mxu0 0.0
        %4991 = vmatpush1.msra.mxu0 0.0
        %4992 = vmatprep.subr.mxu0 0.0
        %4993 = vmatpush1.msra.mxu0 0.0
        %4994 = vmatprep.subr.mxu0 0.0
        %4995 = vmatpush1.msra.mxu0 0.0
        %4996 = vmatprep.subr.mxu0 0.0
        %4997 = vmatpush1.msra.mxu0 0.0
        %4998 = vmatprep.subr.mxu0 0.0
        %4999 = vmatpush1.msra.mxu0 0.0
        %5000 = vmatprep.subr.mxu0 0.0
        %5001 = vmatpush1.msra.mxu0 0.0
        %5002 = vmatprep.subr.mxu0 0.0
        %5003 = vmatpush1.msra.mxu0 0.0
        %5004 = vmatprep.subr.mxu0 0.0
        %5005 = vmatpush1.msra.mxu0 0.0
        %5006 = vmatprep.subr.mxu0 0.0
        %5007 = vmatpush1.msra.mxu0 0.0
        %5008 = vmatprep.subr.mxu0 0.0
        %5009 = vmatpush1.msra.mxu0 0.0
        %5010 = vmatprep.subr.mxu0 0.0
        %5011 = vmatpush1.msra.mxu0 0.0
        %5012 = vmatprep.subr.mxu0 0.0
        %5013 = vmatpush1.msra.mxu0 0.0
        %5014 = vmatprep.subr.mxu0 0.0
        %5015 = vmatpush1.msra.mxu0 0.0
        %5016 = vmatprep.subr.mxu0 0.0
        %5017 = vmatpush1.msra.mxu0 0.0
        %5018 = vmatprep.subr.mxu0 0.0
        %5019 = vmatpush1.msra.mxu0 0.0
        %5020 = vmatprep.subr.mxu0 0.0
        %5021 = vmatpush1.msra.mxu0 0.0
        %5022 = vmatprep.subr.mxu0 0.0
        %5023 = vmatpush1.msra.mxu0 0.0
        %5024 = vmatprep.subr.mxu0 0.0
        %5025 = vmatpush1.msra.mxu0 0.0
        %5026 = vmatprep.subr.mxu0 0.0
        %5027 = vmatpush1.msra.mxu0 0.0
        %5028 = vmatprep.mubr.f32.mxu0 0.0
        %5029 = vmatmul.mubr.f32.gmra.mrb[0].mxu0 %v4962
        %v5030 = vpop.f32.mrb[0].mxu0
        %v5031 = vadd.f32 0.0, %v5030
        %v5032 = vpop.f32.mrb[0].mxu0
        %5033 = vdwg.mxu0
        %v5034 = vadd.f32 %v4510, %v5031
        %v5035 = vxor.u32 %v5034, 2147483648
        %v5036 = vmul.f32 %v5035, 1.442695
        %v5037 = vpow.pop %v5036
        %v5038 = vadd.f32 %v5037, 1.0
        %v5039 = vrcp.pop %v5038
        %v5040 = vmul.f32 1.0, %v5039
        %v5041 = vadd.f32 %v5031, %v4592
        %5043 = vrot.lane.b32.xlu0 %v5041, 96
        %v5044 = vpop.permute.xlu0 %5043
        %v5046 = vmul.f32 %v5040, %v5044
        %5048 = vrot.lane.b32.xlu0 %v5046, 32
        %v5049 = vpop.permute.xlu0 %5048
        %v5051 = vadd.f32 %v4510, %v5049
        %v5052 = vtanh.pop %v5051
        %v5054 = vrot.slane %v5052, 2
        %v5056 = vsub.f32 %v4957, %v5054
        %v5058 = vrot.slane %v5056, 6
        %5059 = vrot.lane.b32.xlu0 %v5058, 112
        %v5060 = vpop.permute.xlu0 %5059
        %v5062 = vmul.f32 %v5040, %v5060
        %5064 = vrot.lane.b32.xlu0 %v5062, 16
        %v5065 = vpop.permute.xlu0 %5064
        %v5067 = vadd.f32 %v5052, %v5065
        %5069 = vrot.lane.b32.xlu0 %v5067, 96
        %v5070 = vpop.permute.xlu0 %5069
        %v5071 = vsel %vm392, %v5070, 0
        %5073 = vmatprep.subr.mxu0 0.0
        %5074 = vmatpush1.msra.mxu0 %v4421
        %5075 = vmatprep.subr.mxu0 0.0
        %5076 = vmatpush1.msra.mxu0 %v4422
        %5077 = vmatprep.subr.mxu0 0.0
        %5078 = vmatpush1.msra.mxu0 0.0
        %5079 = vmatprep.subr.mxu0 0.0
        %5080 = vmatpush1.msra.mxu0 0.0
        %5081 = vmatprep.subr.mxu0 0.0
        %5082 = vmatpush1.msra.mxu0 0.0
        %5083 = vmatprep.subr.mxu0 0.0
        %5084 = vmatpush1.msra.mxu0 0.0
        %5085 = vmatprep.subr.mxu0 0.0
        %5086 = vmatpush1.msra.mxu0 0.0
        %5087 = vmatprep.subr.mxu0 0.0
        %5088 = vmatpush1.msra.mxu0 0.0
        %5089 = vmatprep.subr.mxu0 0.0
        %5090 = vmatpush1.msra.mxu0 0.0
        %5091 = vmatprep.subr.mxu0 0.0
        %5092 = vmatpush1.msra.mxu0 0.0
        %5093 = vmatprep.subr.mxu0 0.0
        %5094 = vmatpush1.msra.mxu0 0.0
        %5095 = vmatprep.subr.mxu0 0.0
        %5096 = vmatpush1.msra.mxu0 0.0
        %5097 = vmatprep.subr.mxu0 0.0
        %5098 = vmatpush1.msra.mxu0 0.0
        %5099 = vmatprep.subr.mxu0 0.0
        %5100 = vmatpush1.msra.mxu0 0.0
        %5101 = vmatprep.subr.mxu0 0.0
        %5102 = vmatpush1.msra.mxu0 0.0
        %5103 = vmatprep.subr.mxu0 0.0
        %5104 = vmatpush1.msra.mxu0 0.0
        %5105 = vmatprep.subr.mxu0 0.0
        %5106 = vmatpush1.msra.mxu0 0.0
        %5107 = vmatprep.subr.mxu0 0.0
        %5108 = vmatpush1.msra.mxu0 0.0
        %5109 = vmatprep.subr.mxu0 0.0
        %5110 = vmatpush1.msra.mxu0 0.0
        %5111 = vmatprep.subr.mxu0 0.0
        %5112 = vmatpush1.msra.mxu0 0.0
        %5113 = vmatprep.subr.mxu0 0.0
        %5114 = vmatpush1.msra.mxu0 0.0
        %5115 = vmatprep.subr.mxu0 0.0
        %5116 = vmatpush1.msra.mxu0 0.0
        %5117 = vmatprep.subr.mxu0 0.0
        %5118 = vmatpush1.msra.mxu0 0.0
        %5119 = vmatprep.subr.mxu0 0.0
        %5120 = vmatpush1.msra.mxu0 0.0
        %5121 = vmatprep.subr.mxu0 0.0
        %5122 = vmatpush1.msra.mxu0 0.0
        %5123 = vmatprep.subr.mxu0 0.0
        %5124 = vmatpush1.msra.mxu0 0.0
        %5125 = vmatprep.subr.mxu0 0.0
        %5126 = vmatpush1.msra.mxu0 0.0
        %5127 = vmatprep.subr.mxu0 0.0
        %5128 = vmatpush1.msra.mxu0 0.0
        %5129 = vmatprep.subr.mxu0 0.0
        %5130 = vmatpush1.msra.mxu0 0.0
        %5131 = vmatprep.subr.mxu0 0.0
        %5132 = vmatpush1.msra.mxu0 0.0
        %5133 = vmatprep.subr.mxu0 0.0
        %5134 = vmatpush1.msra.mxu0 0.0
        %5135 = vmatprep.subr.mxu0 0.0
        %5136 = vmatpush1.msra.mxu0 0.0
        %5137 = vmatprep.mubr.f32.mxu0 0.0
        %5138 = vmatmul.mubr.f32.gmra.mrb[0].mxu0 %v5071
        %v5139 = vpop.f32.mrb[0].mxu0
        %v5140 = vadd.f32 0.0, %v5139
        %v5141 = vpop.f32.mrb[0].mxu0
        %5142 = vdwg.mxu0
        %v5144 = vrot.slane %v5140, 6
        %v5146 = vadd.f32 %v4510, %v5144
        %v5147 = vxor.u32 %v5146, 2147483648
        %v5148 = vmul.f32 %v5147, 1.442695
        %v5149 = vpow.pop %v5148
        %v5150 = vadd.f32 %v5149, 1.0
        %v5151 = vrcp.pop %v5150
        %v5152 = vmul.f32 1.0, %v5151
        %v5153 = vadd.f32 %v5140, %v4592
        %v5155 = vrot.slane %v5153, 6
        %5156 = vrot.lane.b32.xlu0 %v5155, 96
        %v5157 = vpop.permute.xlu0 %5156
        %v5159 = vmul.f32 %v5152, %v5157
        %5161 = vrot.lane.b32.xlu0 %v5159, 32
        %v5162 = vpop.permute.xlu0 %5161
        %v5164 = vadd.f32 %v4510, %v5162
        %v5165 = vtanh.pop %v5164
        %v5167 = vrot.slane %v5165, 2
        %v5169 = vsub.f32 %v5067, %v5167
        %v5171 = vrot.slane %v5169, 6
        %5172 = vrot.lane.b32.xlu0 %v5171, 112
        %v5173 = vpop.permute.xlu0 %5172
        %v5175 = vmul.f32 %v5152, %v5173
        %5177 = vrot.lane.b32.xlu0 %v5175, 16
        %v5178 = vpop.permute.xlu0 %5177
        %v5180 = vadd.f32 %v5165, %v5178
        %v5182 = vrot.slane %v5180, 2
        %5183 = vrot.lane.b32.xlu0 %v5182, 96
        %v5184 = vpop.permute.xlu0 %5183
        %v5185 = vsel %vm392, %v5184, 0
        %5187 = vmatprep.subr.mxu0 0.0
        %5188 = vmatpush1.msra.mxu0 %v4421
        %5189 = vmatprep.subr.mxu0 0.0
        %5190 = vmatpush1.msra.mxu0 %v4422
        %5191 = vmatprep.subr.mxu0 0.0
        %5192 = vmatpush1.msra.mxu0 0.0
        %5193 = vmatprep.subr.mxu0 0.0
        %5194 = vmatpush1.msra.mxu0 0.0
        %5195 = vmatprep.subr.mxu0 0.0
        %5196 = vmatpush1.msra.mxu0 0.0
        %5197 = vmatprep.subr.mxu0 0.0
        %5198 = vmatpush1.msra.mxu0 0.0
        %5199 = vmatprep.subr.mxu0 0.0
        %5200 = vmatpush1.msra.mxu0 0.0
        %5201 = vmatprep.subr.mxu0 0.0
        %5202 = vmatpush1.msra.mxu0 0.0
        %5203 = vmatprep.subr.mxu0 0.0
        %5204 = vmatpush1.msra.mxu0 0.0
        %5205 = vmatprep.subr.mxu0 0.0
        %5206 = vmatpush1.msra.mxu0 0.0
        %5207 = vmatprep.subr.mxu0 0.0
        %5208 = vmatpush1.msra.mxu0 0.0
        %5209 = vmatprep.subr.mxu0 0.0
        %5210 = vmatpush1.msra.mxu0 0.0
        %5211 = vmatprep.subr.mxu0 0.0
        %5212 = vmatpush1.msra.mxu0 0.0
        %5213 = vmatprep.subr.mxu0 0.0
        %5214 = vmatpush1.msra.mxu0 0.0
        %5215 = vmatprep.subr.mxu0 0.0
        %5216 = vmatpush1.msra.mxu0 0.0
        %5217 = vmatprep.subr.mxu0 0.0
        %5218 = vmatpush1.msra.mxu0 0.0
        %5219 = vmatprep.subr.mxu0 0.0
        %5220 = vmatpush1.msra.mxu0 0.0
        %5221 = vmatprep.subr.mxu0 0.0
        %5222 = vmatpush1.msra.mxu0 0.0
        %5223 = vmatprep.subr.mxu0 0.0
        %5224 = vmatpush1.msra.mxu0 0.0
        %5225 = vmatprep.subr.mxu0 0.0
        %5226 = vmatpush1.msra.mxu0 0.0
        %5227 = vmatprep.subr.mxu0 0.0
        %5228 = vmatpush1.msra.mxu0 0.0
        %5229 = vmatprep.subr.mxu0 0.0
        %5230 = vmatpush1.msra.mxu0 0.0
        %5231 = vmatprep.subr.mxu0 0.0
        %5232 = vmatpush1.msra.mxu0 0.0
        %5233 = vmatprep.subr.mxu0 0.0
        %5234 = vmatpush1.msra.mxu0 0.0
        %5235 = vmatprep.subr.mxu0 0.0
        %5236 = vmatpush1.msra.mxu0 0.0
        %5237 = vmatprep.subr.mxu0 0.0
        %5238 = vmatpush1.msra.mxu0 0.0
        %5239 = vmatprep.subr.mxu0 0.0
        %5240 = vmatpush1.msra.mxu0 0.0
        %5241 = vmatprep.subr.mxu0 0.0
        %5242 = vmatpush1.msra.mxu0 0.0
        %5243 = vmatprep.subr.mxu0 0.0
        %5244 = vmatpush1.msra.mxu0 0.0
        %5245 = vmatprep.subr.mxu0 0.0
        %5246 = vmatpush1.msra.mxu0 0.0
        %5247 = vmatprep.subr.mxu0 0.0
        %5248 = vmatpush1.msra.mxu0 0.0
        %5249 = vmatprep.subr.mxu0 0.0
        %5250 = vmatpush1.msra.mxu0 0.0
        %5251 = vmatprep.mubr.f32.mxu0 0.0
        %5252 = vmatmul.mubr.f32.gmra.mrb[0].mxu0 %v5185
        %v5253 = vpop.f32.mrb[0].mxu0
        %v5254 = vadd.f32 0.0, %v5253
        %v5255 = vpop.f32.mrb[0].mxu0
        %5256 = vdwg.mxu0
        %v5258 = vrot.slane %v5254, 4
        %v5260 = vadd.f32 %v4510, %v5258
        %v5261 = vxor.u32 %v5260, 2147483648
        %v5262 = vmul.f32 %v5261, 1.442695
        %v5263 = vpow.pop %v5262
        %v5264 = vadd.f32 %v5263, 1.0
        %v5265 = vrcp.pop %v5264
        %v5266 = vmul.f32 1.0, %v5265
        %v5267 = vadd.f32 %v5254, %v4592
        %v5269 = vrot.slane %v5267, 4
        %5270 = vrot.lane.b32.xlu0 %v5269, 96
        %v5271 = vpop.permute.xlu0 %5270
        %v5273 = vmul.f32 %v5266, %v5271
        %5275 = vrot.lane.b32.xlu0 %v5273, 32
        %v5276 = vpop.permute.xlu0 %5275
        %v5278 = vadd.f32 %v4510, %v5276
        %v5279 = vtanh.pop %v5278
        %v5281 = vrot.slane %v5279, 2
        %v5283 = vsub.f32 %v5180, %v5281
        %v5285 = vrot.slane %v5283, 6
        %5286 = vrot.lane.b32.xlu0 %v5285, 112
        %v5287 = vpop.permute.xlu0 %5286
        %v5289 = vmul.f32 %v5266, %v5287
        %5291 = vrot.lane.b32.xlu0 %v5289, 16
        %v5292 = vpop.permute.xlu0 %5291
        %v5294 = vadd.f32 %v5279, %v5292
        %v5296 = vrot.slane %v5294, 4
        %5297 = vrot.lane.b32.xlu0 %v5296, 96
        %v5298 = vpop.permute.xlu0 %5297
        %v5299 = vsel %vm392, %v5298, 0
        %5301 = vmatprep.subr.mxu0 0.0
        %5302 = vmatpush1.msra.mxu0 %v4421
        %5303 = vmatprep.subr.mxu0 0.0
        %5304 = vmatpush1.msra.mxu0 %v4422
        %5305 = vmatprep.subr.mxu0 0.0
        %5306 = vmatpush1.msra.mxu0 0.0
        %5307 = vmatprep.subr.mxu0 0.0
        %5308 = vmatpush1.msra.mxu0 0.0
        %5309 = vmatprep.subr.mxu0 0.0
        %5310 = vmatpush1.msra.mxu0 0.0
        %5311 = vmatprep.subr.mxu0 0.0
        %5312 = vmatpush1.msra.mxu0 0.0
        %5313 = vmatprep.subr.mxu0 0.0
        %5314 = vmatpush1.msra.mxu0 0.0
        %5315 = vmatprep.subr.mxu0 0.0
        %5316 = vmatpush1.msra.mxu0 0.0
        %5317 = vmatprep.subr.mxu0 0.0
        %5318 = vmatpush1.msra.mxu0 0.0
        %5319 = vmatprep.subr.mxu0 0.0
        %5320 = vmatpush1.msra.mxu0 0.0
        %5321 = vmatprep.subr.mxu0 0.0
        %5322 = vmatpush1.msra.mxu0 0.0
        %5323 = vmatprep.subr.mxu0 0.0
        %5324 = vmatpush1.msra.mxu0 0.0
        %5325 = vmatprep.subr.mxu0 0.0
        %5326 = vmatpush1.msra.mxu0 0.0
        %5327 = vmatprep.subr.mxu0 0.0
        %5328 = vmatpush1.msra.mxu0 0.0
        %5329 = vmatprep.subr.mxu0 0.0
        %5330 = vmatpush1.msra.mxu0 0.0
        %5331 = vmatprep.subr.mxu0 0.0
        %5332 = vmatpush1.msra.mxu0 0.0
        %5333 = vmatprep.subr.mxu0 0.0
        %5334 = vmatpush1.msra.mxu0 0.0
        %5335 = vmatprep.subr.mxu0 0.0
        %5336 = vmatpush1.msra.mxu0 0.0
        %5337 = vmatprep.subr.mxu0 0.0
        %5338 = vmatpush1.msra.mxu0 0.0
        %5339 = vmatprep.subr.mxu0 0.0
        %5340 = vmatpush1.msra.mxu0 0.0
        %5341 = vmatprep.subr.mxu0 0.0
        %5342 = vmatpush1.msra.mxu0 0.0
        %5343 = vmatprep.subr.mxu0 0.0
        %5344 = vmatpush1.msra.mxu0 0.0
        %5345 = vmatprep.subr.mxu0 0.0
        %5346 = vmatpush1.msra.mxu0 0.0
        %5347 = vmatprep.subr.mxu0 0.0
        %5348 = vmatpush1.msra.mxu0 0.0
        %5349 = vmatprep.subr.mxu0 0.0
        %5350 = vmatpush1.msra.mxu0 0.0
        %5351 = vmatprep.subr.mxu0 0.0
        %5352 = vmatpush1.msra.mxu0 0.0
        %5353 = vmatprep.subr.mxu0 0.0
        %5354 = vmatpush1.msra.mxu0 0.0
        %5355 = vmatprep.subr.mxu0 0.0
        %5356 = vmatpush1.msra.mxu0 0.0
        %5357 = vmatprep.subr.mxu0 0.0
        %5358 = vmatpush1.msra.mxu0 0.0
        %5359 = vmatprep.subr.mxu0 0.0
        %5360 = vmatpush1.msra.mxu0 0.0
        %5361 = vmatprep.subr.mxu0 0.0
        %5362 = vmatpush1.msra.mxu0 0.0
        %5363 = vmatprep.subr.mxu0 0.0
        %5364 = vmatpush1.msra.mxu0 0.0
        %5365 = vmatprep.mubr.f32.mxu0 0.0
        %5366 = vmatmul.mubr.f32.gmra.mrb[0].mxu0 %v5299
        %v5367 = vpop.f32.mrb[0].mxu0
        %v5368 = vadd.f32 0.0, %v5367
        %v5369 = vpop.f32.mrb[0].mxu0
        %5370 = vdwg.mxu0
        %v5372 = vrot.slane %v5368, 2
        %v5374 = vadd.f32 %v4510, %v5372
        %v5375 = vxor.u32 %v5374, 2147483648
        %v5376 = vmul.f32 %v5375, 1.442695
        %v5377 = vpow.pop %v5376
        %v5378 = vadd.f32 %v5377, 1.0
        %v5379 = vrcp.pop %v5378
        %v5380 = vmul.f32 1.0, %v5379
        %v5381 = vadd.f32 %v5368, %v4592
        %v5383 = vrot.slane %v5381, 2
        %5384 = vrot.lane.b32.xlu0 %v5383, 96
        %v5385 = vpop.permute.xlu0 %5384
        %v5387 = vmul.f32 %v5380, %v5385
        %5389 = vrot.lane.b32.xlu0 %v5387, 32
        %v5390 = vpop.permute.xlu0 %5389
        %v5392 = vadd.f32 %v4510, %v5390
        %v5393 = vtanh.pop %v5392
        %v5395 = vrot.slane %v5393, 2
        %v5397 = vsub.f32 %v5294, %v5395
        %v5399 = vrot.slane %v5397, 6
        %5400 = vrot.lane.b32.xlu0 %v5399, 112
        %v5401 = vpop.permute.xlu0 %5400
        %v5403 = vmul.f32 %v5380, %v5401
        %5405 = vrot.lane.b32.xlu0 %v5403, 16
        %v5406 = vpop.permute.xlu0 %5405
        %v5408 = vadd.f32 %v5393, %v5406
        %v5409 = vsel %vm1414, %v4616, %v4729
        %v5410 = vsel %vm1416, %v5409, %v4843
        %v5411 = vsel %vm1418, %v5410, %v4957
        %v5412 = vsel %vm1414, %v5067, %v5180
        %v5413 = vsel %vm1416, %v5412, %v5294
        %v5414 = vsel %vm1418, %v5413, %v5408
        %s5415 = scalar_lea.vmem [#allocation2], 160
        %v5416 = vld [vmem:[%s5415] sm:$0xff]
        %v5417 = vld [vmem:[%s5415 + $0x8] sm:$0xff]
        %s5418 = scalar_lea.vmem [#allocation2], 176
        %v5419 = vld [vmem:[%s5418] sm:$0xff]
        %v5420 = vld [vmem:[%s5418 + $0x8] sm:$0xff]
        %v5421 = vld [vmem:[%s3 + $0x5] sm:$0x1]
        %v5422 = vlaneseq
        %v5423 = vshrl.u32 %v5422, 7
        %v5424 = vsub.s32 0, %v5423
        %v5425 = vrot.slane %v5421, %v5424
        %5428 = vrot.lane.b32.xlu0 %v5411, 96
        %v5429 = vpop.permute.xlu0 %5428
        %5430 = vrot.lane.b32.xlu0 %v5414, 96
        %v5431 = vpop.permute.xlu0 %5430
        %v5432 = vsel %vm392, %v5429, 0
        %v5434 = vsel %vm392, %v5431, 0
        %5436 = vmatprep.subr.mxu0 0.0
        %5437 = vmatpush1.msra.mxu0 %v5416
        %5438 = vmatprep.subr.mxu0 0.0
        %5439 = vmatpush1.msra.mxu0 %v5417
        %5440 = vmatprep.subr.mxu0 0.0
        %5441 = vmatpush1.msra.mxu0 0.0
        %5442 = vmatprep.subr.mxu0 0.0
        %5443 = vmatpush1.msra.mxu0 0.0
        %5444 = vmatprep.subr.mxu0 0.0
        %5445 = vmatpush1.msra.mxu0 0.0
        %5446 = vmatprep.subr.mxu0 0.0
        %5447 = vmatpush1.msra.mxu0 0.0
        %5448 = vmatprep.subr.mxu0 0.0
        %5449 = vmatpush1.msra.mxu0 0.0
        %5450 = vmatprep.subr.mxu0 0.0
        %5451 = vmatpush1.msra.mxu0 0.0
        %5452 = vmatprep.subr.mxu0 0.0
        %5453 = vmatpush1.msra.mxu0 0.0
        %5454 = vmatprep.subr.mxu0 0.0
        %5455 = vmatpush1.msra.mxu0 0.0
        %5456 = vmatprep.subr.mxu0 0.0
        %5457 = vmatpush1.msra.mxu0 0.0
        %5458 = vmatprep.subr.mxu0 0.0
        %5459 = vmatpush1.msra.mxu0 0.0
        %5460 = vmatprep.subr.mxu0 0.0
        %5461 = vmatpush1.msra.mxu0 0.0
        %5462 = vmatprep.subr.mxu0 0.0
        %5463 = vmatpush1.msra.mxu0 0.0
        %5464 = vmatprep.subr.mxu0 0.0
        %5465 = vmatpush1.msra.mxu0 0.0
        %5466 = vmatprep.subr.mxu0 0.0
        %5467 = vmatpush1.msra.mxu0 0.0
        %5468 = vmatprep.subr.mxu0 0.0
        %5469 = vmatpush1.msra.mxu0 0.0
        %5470 = vmatprep.subr.mxu0 0.0
        %5471 = vmatpush1.msra.mxu0 0.0
        %5472 = vmatprep.subr.mxu0 0.0
        %5473 = vmatpush1.msra.mxu0 0.0
        %5474 = vmatprep.subr.mxu0 0.0
        %5475 = vmatpush1.msra.mxu0 0.0
        %5476 = vmatprep.subr.mxu0 0.0
        %5477 = vmatpush1.msra.mxu0 0.0
        %5478 = vmatprep.subr.mxu0 0.0
        %5479 = vmatpush1.msra.mxu0 0.0
        %5480 = vmatprep.subr.mxu0 0.0
        %5481 = vmatpush1.msra.mxu0 0.0
        %5482 = vmatprep.subr.mxu0 0.0
        %5483 = vmatpush1.msra.mxu0 0.0
        %5484 = vmatprep.subr.mxu0 0.0
        %5485 = vmatpush1.msra.mxu0 0.0
        %5486 = vmatprep.subr.mxu0 0.0
        %5487 = vmatpush1.msra.mxu0 0.0
        %5488 = vmatprep.subr.mxu0 0.0
        %5489 = vmatpush1.msra.mxu0 0.0
        %5490 = vmatprep.subr.mxu0 0.0
        %5491 = vmatpush1.msra.mxu0 0.0
        %5492 = vmatprep.subr.mxu0 0.0
        %5493 = vmatpush1.msra.mxu0 0.0
        %5494 = vmatprep.subr.mxu0 0.0
        %5495 = vmatpush1.msra.mxu0 0.0
        %5496 = vmatprep.subr.mxu0 0.0
        %5497 = vmatpush1.msra.mxu0 0.0
        %5498 = vmatprep.subr.mxu0 0.0
        %5499 = vmatpush1.msra.mxu0 0.0
        %5500 = vmatprep.mubr.f32.mxu0 0.0
        %5501 = vmatmul.mubr.f32.gmra.mrb[0].mxu0 %v5432
        %v5502 = vpop.f32.mrb[0].mxu0
        %v5503 = vadd.f32 %v5425, %v5502
        %v5504 = vpop.f32.mrb[0].mxu0
        %5505 = vmatprep.mubr.f32.mxu0 0.0
        %5506 = vmatmul.mubr.f32.gmra.mrb[0].mxu0 %v5434
        %v5507 = vpop.f32.mrb[0].mxu0
        %v5508 = vadd.f32 %v5425, %v5507
        %v5509 = vpop.f32.mrb[0].mxu0
        %5510 = vdwg.mxu0
        %5511 = vmatprep.subr.mxu0 0.0
        %5512 = vmatpush1.msra.mxu0 %v5419
        %5513 = vmatprep.subr.mxu0 0.0
        %5514 = vmatpush1.msra.mxu0 %v5420
        %5515 = vmatprep.subr.mxu0 0.0
        %5516 = vmatpush1.msra.mxu0 0.0
        %5517 = vmatprep.subr.mxu0 0.0
        %5518 = vmatpush1.msra.mxu0 0.0
        %5519 = vmatprep.subr.mxu0 0.0
        %5520 = vmatpush1.msra.mxu0 0.0
        %5521 = vmatprep.subr.mxu0 0.0
        %5522 = vmatpush1.msra.mxu0 0.0
        %5523 = vmatprep.subr.mxu0 0.0
        %5524 = vmatpush1.msra.mxu0 0.0
        %5525 = vmatprep.subr.mxu0 0.0
        %5526 = vmatpush1.msra.mxu0 0.0
        %5527 = vmatprep.subr.mxu0 0.0
        %5528 = vmatpush1.msra.mxu0 0.0
        %5529 = vmatprep.subr.mxu0 0.0
        %5530 = vmatpush1.msra.mxu0 0.0
        %5531 = vmatprep.subr.mxu0 0.0
        %5532 = vmatpush1.msra.mxu0 0.0
        %5533 = vmatprep.subr.mxu0 0.0
        %5534 = vmatpush1.msra.mxu0 0.0
        %5535 = vmatprep.subr.mxu0 0.0
        %5536 = vmatpush1.msra.mxu0 0.0
        %5537 = vmatprep.subr.mxu0 0.0
        %5538 = vmatpush1.msra.mxu0 0.0
        %5539 = vmatprep.subr.mxu0 0.0
        %5540 = vmatpush1.msra.mxu0 0.0
        %5541 = vmatprep.subr.mxu0 0.0
        %5542 = vmatpush1.msra.mxu0 0.0
        %5543 = vmatprep.subr.mxu0 0.0
        %5544 = vmatpush1.msra.mxu0 0.0
        %5545 = vmatprep.subr.mxu0 0.0
        %5546 = vmatpush1.msra.mxu0 0.0
        %5547 = vmatprep.subr.mxu0 0.0
        %5548 = vmatpush1.msra.mxu0 0.0
        %5549 = vmatprep.subr.mxu0 0.0
        %5550 = vmatpush1.msra.mxu0 0.0
        %5551 = vmatprep.subr.mxu0 0.0
        %5552 = vmatpush1.msra.mxu0 0.0
        %5553 = vmatprep.subr.mxu0 0.0
        %5554 = vmatpush1.msra.mxu0 0.0
        %5555 = vmatprep.subr.mxu0 0.0
        %5556 = vmatpush1.msra.mxu0 0.0
        %5557 = vmatprep.subr.mxu0 0.0
        %5558 = vmatpush1.msra.mxu0 0.0
        %5559 = vmatprep.subr.mxu0 0.0
        %5560 = vmatpush1.msra.mxu0 0.0
        %5561 = vmatprep.subr.mxu0 0.0
        %5562 = vmatpush1.msra.mxu0 0.0
        %5563 = vmatprep.subr.mxu0 0.0
        %5564 = vmatpush1.msra.mxu0 0.0
        %5565 = vmatprep.subr.mxu0 0.0
        %5566 = vmatpush1.msra.mxu0 0.0
        %5567 = vmatprep.subr.mxu0 0.0
        %5568 = vmatpush1.msra.mxu0 0.0
        %5569 = vmatprep.subr.mxu0 0.0
        %5570 = vmatpush1.msra.mxu0 0.0
        %5571 = vmatprep.subr.mxu0 0.0
        %5572 = vmatpush1.msra.mxu0 0.0
        %5573 = vmatprep.subr.mxu0 0.0
        %5574 = vmatpush1.msra.mxu0 0.0
        %5575 = vmatprep.mubr.f32.mxu0 0.0
        %5576 = vmatmul.mubr.f32.gmra.mrb[0].mxu0 %v516
        %v5577 = vpop.f32.mrb[0].mxu0
        %v5578 = vadd.f32 0.0, %v5577
        %v5579 = vpop.f32.mrb[0].mxu0
        %5580 = vdwg.mxu0
        %v5581 = vadd.f32 %v5503, %v5578
        %v5582 = vxor.u32 %v5581, 2147483648
        %v5583 = vmul.f32 %v5582, 1.442695
        %v5584 = vpow.pop %v5583
        %v5585 = vadd.f32 %v5584, 1.0
        %v5586 = vrcp.pop %v5585
        %v5587 = vmul.f32 1.0, %v5586
        %5589 = vrot.lane.b32.xlu0 %v5425, 112
        %v5590 = vpop.permute.xlu0 %5589
        %v5592 = vadd.f32 %v5578, %v5590
        %5594 = vrot.lane.b32.xlu0 %v5592, 96
        %v5595 = vpop.permute.xlu0 %5594
        %v5597 = vmul.f32 %v5587, %v5595
        %5599 = vrot.lane.b32.xlu0 %v5597, 32
        %v5600 = vpop.permute.xlu0 %5599
        %v5602 = vadd.f32 %v5503, %v5600
        %v5603 = vtanh.pop %v5602
        %v5604 = vsub.f32 0.0, %v5603
        %5606 = vrot.lane.b32.xlu0 %v5604, 112
        %v5607 = vpop.permute.xlu0 %5606
        %v5609 = vmul.f32 %v5587, %v5607
        %5611 = vrot.lane.b32.xlu0 %v5609, 16
        %v5612 = vpop.permute.xlu0 %5611
        %v5614 = vadd.f32 %v5603, %v5612
        %5616 = vrot.lane.b32.xlu0 %v5614, 96
        %v5617 = vpop.permute.xlu0 %5616
        %v5618 = vsel %vm392, %v5617, 0
        %5620 = vmatprep.subr.mxu0 0.0
        %5621 = vmatpush1.msra.mxu0 %v5419
        %5622 = vmatprep.subr.mxu0 0.0
        %5623 = vmatpush1.msra.mxu0 %v5420
        %5624 = vmatprep.subr.mxu0 0.0
        %5625 = vmatpush1.msra.mxu0 0.0
        %5626 = vmatprep.subr.mxu0 0.0
        %5627 = vmatpush1.msra.mxu0 0.0
        %5628 = vmatprep.subr.mxu0 0.0
        %5629 = vmatpush1.msra.mxu0 0.0
        %5630 = vmatprep.subr.mxu0 0.0
        %5631 = vmatpush1.msra.mxu0 0.0
        %5632 = vmatprep.subr.mxu0 0.0
        %5633 = vmatpush1.msra.mxu0 0.0
        %5634 = vmatprep.subr.mxu0 0.0
        %5635 = vmatpush1.msra.mxu0 0.0
        %5636 = vmatprep.subr.mxu0 0.0
        %5637 = vmatpush1.msra.mxu0 0.0
        %5638 = vmatprep.subr.mxu0 0.0
        %5639 = vmatpush1.msra.mxu0 0.0
        %5640 = vmatprep.subr.mxu0 0.0
        %5641 = vmatpush1.msra.mxu0 0.0
        %5642 = vmatprep.subr.mxu0 0.0
        %5643 = vmatpush1.msra.mxu0 0.0
        %5644 = vmatprep.subr.mxu0 0.0
        %5645 = vmatpush1.msra.mxu0 0.0
        %5646 = vmatprep.subr.mxu0 0.0
        %5647 = vmatpush1.msra.mxu0 0.0
        %5648 = vmatprep.subr.mxu0 0.0
        %5649 = vmatpush1.msra.mxu0 0.0
        %5650 = vmatprep.subr.mxu0 0.0
        %5651 = vmatpush1.msra.mxu0 0.0
        %5652 = vmatprep.subr.mxu0 0.0
        %5653 = vmatpush1.msra.mxu0 0.0
        %5654 = vmatprep.subr.mxu0 0.0
        %5655 = vmatpush1.msra.mxu0 0.0
        %5656 = vmatprep.subr.mxu0 0.0
        %5657 = vmatpush1.msra.mxu0 0.0
        %5658 = vmatprep.subr.mxu0 0.0
        %5659 = vmatpush1.msra.mxu0 0.0
        %5660 = vmatprep.subr.mxu0 0.0
        %5661 = vmatpush1.msra.mxu0 0.0
        %5662 = vmatprep.subr.mxu0 0.0
        %5663 = vmatpush1.msra.mxu0 0.0
        %5664 = vmatprep.subr.mxu0 0.0
        %5665 = vmatpush1.msra.mxu0 0.0
        %5666 = vmatprep.subr.mxu0 0.0
        %5667 = vmatpush1.msra.mxu0 0.0
        %5668 = vmatprep.subr.mxu0 0.0
        %5669 = vmatpush1.msra.mxu0 0.0
        %5670 = vmatprep.subr.mxu0 0.0
        %5671 = vmatpush1.msra.mxu0 0.0
        %5672 = vmatprep.subr.mxu0 0.0
        %5673 = vmatpush1.msra.mxu0 0.0
        %5674 = vmatprep.subr.mxu0 0.0
        %5675 = vmatpush1.msra.mxu0 0.0
        %5676 = vmatprep.subr.mxu0 0.0
        %5677 = vmatpush1.msra.mxu0 0.0
        %5678 = vmatprep.subr.mxu0 0.0
        %5679 = vmatpush1.msra.mxu0 0.0
        %5680 = vmatprep.subr.mxu0 0.0
        %5681 = vmatpush1.msra.mxu0 0.0
        %5682 = vmatprep.subr.mxu0 0.0
        %5683 = vmatpush1.msra.mxu0 0.0
        %5684 = vmatprep.mubr.f32.mxu0 0.0
        %5685 = vmatmul.mubr.f32.gmra.mrb[0].mxu0 %v5618
        %v5686 = vpop.f32.mrb[0].mxu0
        %v5687 = vadd.f32 0.0, %v5686
        %v5688 = vpop.f32.mrb[0].mxu0
        %5689 = vdwg.mxu0
        %v5691 = vrot.slane %v5687, 6
        %v5693 = vadd.f32 %v5503, %v5691
        %v5694 = vxor.u32 %v5693, 2147483648
        %v5695 = vmul.f32 %v5694, 1.442695
        %v5696 = vpow.pop %v5695
        %v5697 = vadd.f32 %v5696, 1.0
        %v5698 = vrcp.pop %v5697
        %v5699 = vmul.f32 1.0, %v5698
        %v5700 = vadd.f32 %v5687, %v5590
        %v5702 = vrot.slane %v5700, 6
        %5703 = vrot.lane.b32.xlu0 %v5702, 96
        %v5704 = vpop.permute.xlu0 %5703
        %v5706 = vmul.f32 %v5699, %v5704
        %5708 = vrot.lane.b32.xlu0 %v5706, 32
        %v5709 = vpop.permute.xlu0 %5708
        %v5711 = vadd.f32 %v5503, %v5709
        %v5712 = vtanh.pop %v5711
        %v5714 = vrot.slane %v5712, 2
        %v5716 = vsub.f32 %v5614, %v5714
        %v5718 = vrot.slane %v5716, 6
        %5719 = vrot.lane.b32.xlu0 %v5718, 112
        %v5720 = vpop.permute.xlu0 %5719
        %v5722 = vmul.f32 %v5699, %v5720
        %5724 = vrot.lane.b32.xlu0 %v5722, 16
        %v5725 = vpop.permute.xlu0 %5724
        %v5727 = vadd.f32 %v5712, %v5725
        %v5729 = vrot.slane %v5727, 2
        %5730 = vrot.lane.b32.xlu0 %v5729, 96
        %v5731 = vpop.permute.xlu0 %5730
        %v5732 = vsel %vm392, %v5731, 0
        %5734 = vmatprep.subr.mxu0 0.0
        %5735 = vmatpush1.msra.mxu0 %v5419
        %5736 = vmatprep.subr.mxu0 0.0
        %5737 = vmatpush1.msra.mxu0 %v5420
        %5738 = vmatprep.subr.mxu0 0.0
        %5739 = vmatpush1.msra.mxu0 0.0
        %5740 = vmatprep.subr.mxu0 0.0
        %5741 = vmatpush1.msra.mxu0 0.0
        %5742 = vmatprep.subr.mxu0 0.0
        %5743 = vmatpush1.msra.mxu0 0.0
        %5744 = vmatprep.subr.mxu0 0.0
        %5745 = vmatpush1.msra.mxu0 0.0
        %5746 = vmatprep.subr.mxu0 0.0
        %5747 = vmatpush1.msra.mxu0 0.0
        %5748 = vmatprep.subr.mxu0 0.0
        %5749 = vmatpush1.msra.mxu0 0.0
        %5750 = vmatprep.subr.mxu0 0.0
        %5751 = vmatpush1.msra.mxu0 0.0
        %5752 = vmatprep.subr.mxu0 0.0
        %5753 = vmatpush1.msra.mxu0 0.0
        %5754 = vmatprep.subr.mxu0 0.0
        %5755 = vmatpush1.msra.mxu0 0.0
        %5756 = vmatprep.subr.mxu0 0.0
        %5757 = vmatpush1.msra.mxu0 0.0
        %5758 = vmatprep.subr.mxu0 0.0
        %5759 = vmatpush1.msra.mxu0 0.0
        %5760 = vmatprep.subr.mxu0 0.0
        %5761 = vmatpush1.msra.mxu0 0.0
        %5762 = vmatprep.subr.mxu0 0.0
        %5763 = vmatpush1.msra.mxu0 0.0
        %5764 = vmatprep.subr.mxu0 0.0
        %5765 = vmatpush1.msra.mxu0 0.0
        %5766 = vmatprep.subr.mxu0 0.0
        %5767 = vmatpush1.msra.mxu0 0.0
        %5768 = vmatprep.subr.mxu0 0.0
        %5769 = vmatpush1.msra.mxu0 0.0
        %5770 = vmatprep.subr.mxu0 0.0
        %5771 = vmatpush1.msra.mxu0 0.0
        %5772 = vmatprep.subr.mxu0 0.0
        %5773 = vmatpush1.msra.mxu0 0.0
        %5774 = vmatprep.subr.mxu0 0.0
        %5775 = vmatpush1.msra.mxu0 0.0
        %5776 = vmatprep.subr.mxu0 0.0
        %5777 = vmatpush1.msra.mxu0 0.0
        %5778 = vmatprep.subr.mxu0 0.0
        %5779 = vmatpush1.msra.mxu0 0.0
        %5780 = vmatprep.subr.mxu0 0.0
        %5781 = vmatpush1.msra.mxu0 0.0
        %5782 = vmatprep.subr.mxu0 0.0
        %5783 = vmatpush1.msra.mxu0 0.0
        %5784 = vmatprep.subr.mxu0 0.0
        %5785 = vmatpush1.msra.mxu0 0.0
        %5786 = vmatprep.subr.mxu0 0.0
        %5787 = vmatpush1.msra.mxu0 0.0
        %5788 = vmatprep.subr.mxu0 0.0
        %5789 = vmatpush1.msra.mxu0 0.0
        %5790 = vmatprep.subr.mxu0 0.0
        %5791 = vmatpush1.msra.mxu0 0.0
        %5792 = vmatprep.subr.mxu0 0.0
        %5793 = vmatpush1.msra.mxu0 0.0
        %5794 = vmatprep.subr.mxu0 0.0
        %5795 = vmatpush1.msra.mxu0 0.0
        %5796 = vmatprep.subr.mxu0 0.0
        %5797 = vmatpush1.msra.mxu0 0.0
        %5798 = vmatprep.mubr.f32.mxu0 0.0
        %5799 = vmatmul.mubr.f32.gmra.mrb[0].mxu0 %v5732
        %v5800 = vpop.f32.mrb[0].mxu0
        %v5801 = vadd.f32 0.0, %v5800
        %v5802 = vpop.f32.mrb[0].mxu0
        %5803 = vdwg.mxu0
        %v5805 = vrot.slane %v5801, 4
        %v5807 = vadd.f32 %v5503, %v5805
        %v5808 = vxor.u32 %v5807, 2147483648
        %v5809 = vmul.f32 %v5808, 1.442695
        %v5810 = vpow.pop %v5809
        %v5811 = vadd.f32 %v5810, 1.0
        %v5812 = vrcp.pop %v5811
        %v5813 = vmul.f32 1.0, %v5812
        %v5814 = vadd.f32 %v5801, %v5590
        %v5816 = vrot.slane %v5814, 4
        %5817 = vrot.lane.b32.xlu0 %v5816, 96
        %v5818 = vpop.permute.xlu0 %5817
        %v5820 = vmul.f32 %v5813, %v5818
        %5822 = vrot.lane.b32.xlu0 %v5820, 32
        %v5823 = vpop.permute.xlu0 %5822
        %v5825 = vadd.f32 %v5503, %v5823
        %v5826 = vtanh.pop %v5825
        %v5828 = vrot.slane %v5826, 2
        %v5830 = vsub.f32 %v5727, %v5828
        %v5832 = vrot.slane %v5830, 6
        %5833 = vrot.lane.b32.xlu0 %v5832, 112
        %v5834 = vpop.permute.xlu0 %5833
        %v5836 = vmul.f32 %v5813, %v5834
        %5838 = vrot.lane.b32.xlu0 %v5836, 16
        %v5839 = vpop.permute.xlu0 %5838
        %v5841 = vadd.f32 %v5826, %v5839
        %v5843 = vrot.slane %v5841, 4
        %5844 = vrot.lane.b32.xlu0 %v5843, 96
        %v5845 = vpop.permute.xlu0 %5844
        %v5846 = vsel %vm392, %v5845, 0
        %5848 = vmatprep.subr.mxu0 0.0
        %5849 = vmatpush1.msra.mxu0 %v5419
        %5850 = vmatprep.subr.mxu0 0.0
        %5851 = vmatpush1.msra.mxu0 %v5420
        %5852 = vmatprep.subr.mxu0 0.0
        %5853 = vmatpush1.msra.mxu0 0.0
        %5854 = vmatprep.subr.mxu0 0.0
        %5855 = vmatpush1.msra.mxu0 0.0
        %5856 = vmatprep.subr.mxu0 0.0
        %5857 = vmatpush1.msra.mxu0 0.0
        %5858 = vmatprep.subr.mxu0 0.0
        %5859 = vmatpush1.msra.mxu0 0.0
        %5860 = vmatprep.subr.mxu0 0.0
        %5861 = vmatpush1.msra.mxu0 0.0
        %5862 = vmatprep.subr.mxu0 0.0
        %5863 = vmatpush1.msra.mxu0 0.0
        %5864 = vmatprep.subr.mxu0 0.0
        %5865 = vmatpush1.msra.mxu0 0.0
        %5866 = vmatprep.subr.mxu0 0.0
        %5867 = vmatpush1.msra.mxu0 0.0
        %5868 = vmatprep.subr.mxu0 0.0
        %5869 = vmatpush1.msra.mxu0 0.0
        %5870 = vmatprep.subr.mxu0 0.0
        %5871 = vmatpush1.msra.mxu0 0.0
        %5872 = vmatprep.subr.mxu0 0.0
        %5873 = vmatpush1.msra.mxu0 0.0
        %5874 = vmatprep.subr.mxu0 0.0
        %5875 = vmatpush1.msra.mxu0 0.0
        %5876 = vmatprep.subr.mxu0 0.0
        %5877 = vmatpush1.msra.mxu0 0.0
        %5878 = vmatprep.subr.mxu0 0.0
        %5879 = vmatpush1.msra.mxu0 0.0
        %5880 = vmatprep.subr.mxu0 0.0
        %5881 = vmatpush1.msra.mxu0 0.0
        %5882 = vmatprep.subr.mxu0 0.0
        %5883 = vmatpush1.msra.mxu0 0.0
        %5884 = vmatprep.subr.mxu0 0.0
        %5885 = vmatpush1.msra.mxu0 0.0
        %5886 = vmatprep.subr.mxu0 0.0
        %5887 = vmatpush1.msra.mxu0 0.0
        %5888 = vmatprep.subr.mxu0 0.0
        %5889 = vmatpush1.msra.mxu0 0.0
        %5890 = vmatprep.subr.mxu0 0.0
        %5891 = vmatpush1.msra.mxu0 0.0
        %5892 = vmatprep.subr.mxu0 0.0
        %5893 = vmatpush1.msra.mxu0 0.0
        %5894 = vmatprep.subr.mxu0 0.0
        %5895 = vmatpush1.msra.mxu0 0.0
        %5896 = vmatprep.subr.mxu0 0.0
        %5897 = vmatpush1.msra.mxu0 0.0
        %5898 = vmatprep.subr.mxu0 0.0
        %5899 = vmatpush1.msra.mxu0 0.0
        %5900 = vmatprep.subr.mxu0 0.0
        %5901 = vmatpush1.msra.mxu0 0.0
        %5902 = vmatprep.subr.mxu0 0.0
        %5903 = vmatpush1.msra.mxu0 0.0
        %5904 = vmatprep.subr.mxu0 0.0
        %5905 = vmatpush1.msra.mxu0 0.0
        %5906 = vmatprep.subr.mxu0 0.0
        %5907 = vmatpush1.msra.mxu0 0.0
        %5908 = vmatprep.subr.mxu0 0.0
        %5909 = vmatpush1.msra.mxu0 0.0
        %5910 = vmatprep.subr.mxu0 0.0
        %5911 = vmatpush1.msra.mxu0 0.0
        %5912 = vmatprep.mubr.f32.mxu0 0.0
        %5913 = vmatmul.mubr.f32.gmra.mrb[0].mxu0 %v5846
        %v5914 = vpop.f32.mrb[0].mxu0
        %v5915 = vadd.f32 0.0, %v5914
        %v5916 = vpop.f32.mrb[0].mxu0
        %5917 = vdwg.mxu0
        %v5919 = vrot.slane %v5915, 2
        %v5921 = vadd.f32 %v5503, %v5919
        %v5922 = vxor.u32 %v5921, 2147483648
        %v5923 = vmul.f32 %v5922, 1.442695
        %v5924 = vpow.pop %v5923
        %v5925 = vadd.f32 %v5924, 1.0
        %v5926 = vrcp.pop %v5925
        %v5927 = vmul.f32 1.0, %v5926
        %v5928 = vadd.f32 %v5915, %v5590
        %v5930 = vrot.slane %v5928, 2
        %5931 = vrot.lane.b32.xlu0 %v5930, 96
        %v5932 = vpop.permute.xlu0 %5931
        %v5934 = vmul.f32 %v5927, %v5932
        %5936 = vrot.lane.b32.xlu0 %v5934, 32
        %v5937 = vpop.permute.xlu0 %5936
        %v5939 = vadd.f32 %v5503, %v5937
        %v5940 = vtanh.pop %v5939
        %v5942 = vrot.slane %v5940, 2
        %v5944 = vsub.f32 %v5841, %v5942
        %v5946 = vrot.slane %v5944, 6
        %5947 = vrot.lane.b32.xlu0 %v5946, 112
        %v5948 = vpop.permute.xlu0 %5947
        %v5950 = vmul.f32 %v5927, %v5948
        %5952 = vrot.lane.b32.xlu0 %v5950, 16
        %v5953 = vpop.permute.xlu0 %5952
        %v5955 = vadd.f32 %v5940, %v5953
        %v5957 = vrot.slane %v5955, 6
        %5958 = vrot.lane.b32.xlu0 %v5957, 96
        %v5959 = vpop.permute.xlu0 %5958
        %v5960 = vsel %vm392, %v5959, 0
        %5962 = vmatprep.subr.mxu0 0.0
        %5963 = vmatpush1.msra.mxu0 %v5419
        %5964 = vmatprep.subr.mxu0 0.0
        %5965 = vmatpush1.msra.mxu0 %v5420
        %5966 = vmatprep.subr.mxu0 0.0
        %5967 = vmatpush1.msra.mxu0 0.0
        %5968 = vmatprep.subr.mxu0 0.0
        %5969 = vmatpush1.msra.mxu0 0.0
        %5970 = vmatprep.subr.mxu0 0.0
        %5971 = vmatpush1.msra.mxu0 0.0
        %5972 = vmatprep.subr.mxu0 0.0
        %5973 = vmatpush1.msra.mxu0 0.0
        %5974 = vmatprep.subr.mxu0 0.0
        %5975 = vmatpush1.msra.mxu0 0.0
        %5976 = vmatprep.subr.mxu0 0.0
        %5977 = vmatpush1.msra.mxu0 0.0
        %5978 = vmatprep.subr.mxu0 0.0
        %5979 = vmatpush1.msra.mxu0 0.0
        %5980 = vmatprep.subr.mxu0 0.0
        %5981 = vmatpush1.msra.mxu0 0.0
        %5982 = vmatprep.subr.mxu0 0.0
        %5983 = vmatpush1.msra.mxu0 0.0
        %5984 = vmatprep.subr.mxu0 0.0
        %5985 = vmatpush1.msra.mxu0 0.0
        %5986 = vmatprep.subr.mxu0 0.0
        %5987 = vmatpush1.msra.mxu0 0.0
        %5988 = vmatprep.subr.mxu0 0.0
        %5989 = vmatpush1.msra.mxu0 0.0
        %5990 = vmatprep.subr.mxu0 0.0
        %5991 = vmatpush1.msra.mxu0 0.0
        %5992 = vmatprep.subr.mxu0 0.0
        %5993 = vmatpush1.msra.mxu0 0.0
        %5994 = vmatprep.subr.mxu0 0.0
        %5995 = vmatpush1.msra.mxu0 0.0
        %5996 = vmatprep.subr.mxu0 0.0
        %5997 = vmatpush1.msra.mxu0 0.0
        %5998 = vmatprep.subr.mxu0 0.0
        %5999 = vmatpush1.msra.mxu0 0.0
        %6000 = vmatprep.subr.mxu0 0.0
        %6001 = vmatpush1.msra.mxu0 0.0
        %6002 = vmatprep.subr.mxu0 0.0
        %6003 = vmatpush1.msra.mxu0 0.0
        %6004 = vmatprep.subr.mxu0 0.0
        %6005 = vmatpush1.msra.mxu0 0.0
        %6006 = vmatprep.subr.mxu0 0.0
        %6007 = vmatpush1.msra.mxu0 0.0
        %6008 = vmatprep.subr.mxu0 0.0
        %6009 = vmatpush1.msra.mxu0 0.0
        %6010 = vmatprep.subr.mxu0 0.0
        %6011 = vmatpush1.msra.mxu0 0.0
        %6012 = vmatprep.subr.mxu0 0.0
        %6013 = vmatpush1.msra.mxu0 0.0
        %6014 = vmatprep.subr.mxu0 0.0
        %6015 = vmatpush1.msra.mxu0 0.0
        %6016 = vmatprep.subr.mxu0 0.0
        %6017 = vmatpush1.msra.mxu0 0.0
        %6018 = vmatprep.subr.mxu0 0.0
        %6019 = vmatpush1.msra.mxu0 0.0
        %6020 = vmatprep.subr.mxu0 0.0
        %6021 = vmatpush1.msra.mxu0 0.0
        %6022 = vmatprep.subr.mxu0 0.0
        %6023 = vmatpush1.msra.mxu0 0.0
        %6024 = vmatprep.subr.mxu0 0.0
        %6025 = vmatpush1.msra.mxu0 0.0
        %6026 = vmatprep.mubr.f32.mxu0 0.0
        %6027 = vmatmul.mubr.f32.gmra.mrb[0].mxu0 %v5960
        %v6028 = vpop.f32.mrb[0].mxu0
        %v6029 = vadd.f32 0.0, %v6028
        %v6030 = vpop.f32.mrb[0].mxu0
        %6031 = vdwg.mxu0
        %v6032 = vadd.f32 %v5508, %v6029
        %v6033 = vxor.u32 %v6032, 2147483648
        %v6034 = vmul.f32 %v6033, 1.442695
        %v6035 = vpow.pop %v6034
        %v6036 = vadd.f32 %v6035, 1.0
        %v6037 = vrcp.pop %v6036
        %v6038 = vmul.f32 1.0, %v6037
        %v6039 = vadd.f32 %v6029, %v5590
        %6041 = vrot.lane.b32.xlu0 %v6039, 96
        %v6042 = vpop.permute.xlu0 %6041
        %v6044 = vmul.f32 %v6038, %v6042
        %6046 = vrot.lane.b32.xlu0 %v6044, 32
        %v6047 = vpop.permute.xlu0 %6046
        %v6049 = vadd.f32 %v5508, %v6047
        %v6050 = vtanh.pop %v6049
        %v6052 = vrot.slane %v6050, 2
        %v6054 = vsub.f32 %v5955, %v6052
        %v6056 = vrot.slane %v6054, 6
        %6057 = vrot.lane.b32.xlu0 %v6056, 112
        %v6058 = vpop.permute.xlu0 %6057
        %v6060 = vmul.f32 %v6038, %v6058
        %6062 = vrot.lane.b32.xlu0 %v6060, 16
        %v6063 = vpop.permute.xlu0 %6062
        %v6065 = vadd.f32 %v6050, %v6063
        %6067 = vrot.lane.b32.xlu0 %v6065, 96
        %v6068 = vpop.permute.xlu0 %6067
        %v6069 = vsel %vm392, %v6068, 0
        %6071 = vmatprep.subr.mxu0 0.0
        %6072 = vmatpush1.msra.mxu0 %v5419
        %6073 = vmatprep.subr.mxu0 0.0
        %6074 = vmatpush1.msra.mxu0 %v5420
        %6075 = vmatprep.subr.mxu0 0.0
        %6076 = vmatpush1.msra.mxu0 0.0
        %6077 = vmatprep.subr.mxu0 0.0
        %6078 = vmatpush1.msra.mxu0 0.0
        %6079 = vmatprep.subr.mxu0 0.0
        %6080 = vmatpush1.msra.mxu0 0.0
        %6081 = vmatprep.subr.mxu0 0.0
        %6082 = vmatpush1.msra.mxu0 0.0
        %6083 = vmatprep.subr.mxu0 0.0
        %6084 = vmatpush1.msra.mxu0 0.0
        %6085 = vmatprep.subr.mxu0 0.0
        %6086 = vmatpush1.msra.mxu0 0.0
        %6087 = vmatprep.subr.mxu0 0.0
        %6088 = vmatpush1.msra.mxu0 0.0
        %6089 = vmatprep.subr.mxu0 0.0
        %6090 = vmatpush1.msra.mxu0 0.0
        %6091 = vmatprep.subr.mxu0 0.0
        %6092 = vmatpush1.msra.mxu0 0.0
        %6093 = vmatprep.subr.mxu0 0.0
        %6094 = vmatpush1.msra.mxu0 0.0
        %6095 = vmatprep.subr.mxu0 0.0
        %6096 = vmatpush1.msra.mxu0 0.0
        %6097 = vmatprep.subr.mxu0 0.0
        %6098 = vmatpush1.msra.mxu0 0.0
        %6099 = vmatprep.subr.mxu0 0.0
        %6100 = vmatpush1.msra.mxu0 0.0
        %6101 = vmatprep.subr.mxu0 0.0
        %6102 = vmatpush1.msra.mxu0 0.0
        %6103 = vmatprep.subr.mxu0 0.0
        %6104 = vmatpush1.msra.mxu0 0.0
        %6105 = vmatprep.subr.mxu0 0.0
        %6106 = vmatpush1.msra.mxu0 0.0
        %6107 = vmatprep.subr.mxu0 0.0
        %6108 = vmatpush1.msra.mxu0 0.0
        %6109 = vmatprep.subr.mxu0 0.0
        %6110 = vmatpush1.msra.mxu0 0.0
        %6111 = vmatprep.subr.mxu0 0.0
        %6112 = vmatpush1.msra.mxu0 0.0
        %6113 = vmatprep.subr.mxu0 0.0
        %6114 = vmatpush1.msra.mxu0 0.0
        %6115 = vmatprep.subr.mxu0 0.0
        %6116 = vmatpush1.msra.mxu0 0.0
        %6117 = vmatprep.subr.mxu0 0.0
        %6118 = vmatpush1.msra.mxu0 0.0
        %6119 = vmatprep.subr.mxu0 0.0
        %6120 = vmatpush1.msra.mxu0 0.0
        %6121 = vmatprep.subr.mxu0 0.0
        %6122 = vmatpush1.msra.mxu0 0.0
        %6123 = vmatprep.subr.mxu0 0.0
        %6124 = vmatpush1.msra.mxu0 0.0
        %6125 = vmatprep.subr.mxu0 0.0
        %6126 = vmatpush1.msra.mxu0 0.0
        %6127 = vmatprep.subr.mxu0 0.0
        %6128 = vmatpush1.msra.mxu0 0.0
        %6129 = vmatprep.subr.mxu0 0.0
        %6130 = vmatpush1.msra.mxu0 0.0
        %6131 = vmatprep.subr.mxu0 0.0
        %6132 = vmatpush1.msra.mxu0 0.0
        %6133 = vmatprep.subr.mxu0 0.0
        %6134 = vmatpush1.msra.mxu0 0.0
        %6135 = vmatprep.mubr.f32.mxu0 0.0
        %6136 = vmatmul.mubr.f32.gmra.mrb[0].mxu0 %v6069
        %v6137 = vpop.f32.mrb[0].mxu0
        %v6138 = vadd.f32 0.0, %v6137
        %v6139 = vpop.f32.mrb[0].mxu0
        %6140 = vdwg.mxu0
        %v6142 = vrot.slane %v6138, 6
        %v6144 = vadd.f32 %v5508, %v6142
        %v6145 = vxor.u32 %v6144, 2147483648
        %v6146 = vmul.f32 %v6145, 1.442695
        %v6147 = vpow.pop %v6146
        %v6148 = vadd.f32 %v6147, 1.0
        %v6149 = vrcp.pop %v6148
        %v6150 = vmul.f32 1.0, %v6149
        %v6151 = vadd.f32 %v6138, %v5590
        %v6153 = vrot.slane %v6151, 6
        %6154 = vrot.lane.b32.xlu0 %v6153, 96
        %v6155 = vpop.permute.xlu0 %6154
        %v6157 = vmul.f32 %v6150, %v6155
        %6159 = vrot.lane.b32.xlu0 %v6157, 32
        %v6160 = vpop.permute.xlu0 %6159
        %v6162 = vadd.f32 %v5508, %v6160
        %v6163 = vtanh.pop %v6162
        %v6165 = vrot.slane %v6163, 2
        %v6167 = vsub.f32 %v6065, %v6165
        %v6169 = vrot.slane %v6167, 6
        %6170 = vrot.lane.b32.xlu0 %v6169, 112
        %v6171 = vpop.permute.xlu0 %6170
        %v6173 = vmul.f32 %v6150, %v6171
        %6175 = vrot.lane.b32.xlu0 %v6173, 16
        %v6176 = vpop.permute.xlu0 %6175
        %v6178 = vadd.f32 %v6163, %v6176
        %v6180 = vrot.slane %v6178, 2
        %6181 = vrot.lane.b32.xlu0 %v6180, 96
        %v6182 = vpop.permute.xlu0 %6181
        %v6183 = vsel %vm392, %v6182, 0
        %6185 = vmatprep.subr.mxu0 0.0
        %6186 = vmatpush1.msra.mxu0 %v5419
        %6187 = vmatprep.subr.mxu0 0.0
        %6188 = vmatpush1.msra.mxu0 %v5420
        %6189 = vmatprep.subr.mxu0 0.0
        %6190 = vmatpush1.msra.mxu0 0.0
        %6191 = vmatprep.subr.mxu0 0.0
        %6192 = vmatpush1.msra.mxu0 0.0
        %6193 = vmatprep.subr.mxu0 0.0
        %6194 = vmatpush1.msra.mxu0 0.0
        %6195 = vmatprep.subr.mxu0 0.0
        %6196 = vmatpush1.msra.mxu0 0.0
        %6197 = vmatprep.subr.mxu0 0.0
        %6198 = vmatpush1.msra.mxu0 0.0
        %6199 = vmatprep.subr.mxu0 0.0
        %6200 = vmatpush1.msra.mxu0 0.0
        %6201 = vmatprep.subr.mxu0 0.0
        %6202 = vmatpush1.msra.mxu0 0.0
        %6203 = vmatprep.subr.mxu0 0.0
        %6204 = vmatpush1.msra.mxu0 0.0
        %6205 = vmatprep.subr.mxu0 0.0
        %6206 = vmatpush1.msra.mxu0 0.0
        %6207 = vmatprep.subr.mxu0 0.0
        %6208 = vmatpush1.msra.mxu0 0.0
        %6209 = vmatprep.subr.mxu0 0.0
        %6210 = vmatpush1.msra.mxu0 0.0
        %6211 = vmatprep.subr.mxu0 0.0
        %6212 = vmatpush1.msra.mxu0 0.0
        %6213 = vmatprep.subr.mxu0 0.0
        %6214 = vmatpush1.msra.mxu0 0.0
        %6215 = vmatprep.subr.mxu0 0.0
        %6216 = vmatpush1.msra.mxu0 0.0
        %6217 = vmatprep.subr.mxu0 0.0
        %6218 = vmatpush1.msra.mxu0 0.0
        %6219 = vmatprep.subr.mxu0 0.0
        %6220 = vmatpush1.msra.mxu0 0.0
        %6221 = vmatprep.subr.mxu0 0.0
        %6222 = vmatpush1.msra.mxu0 0.0
        %6223 = vmatprep.subr.mxu0 0.0
        %6224 = vmatpush1.msra.mxu0 0.0
        %6225 = vmatprep.subr.mxu0 0.0
        %6226 = vmatpush1.msra.mxu0 0.0
        %6227 = vmatprep.subr.mxu0 0.0
        %6228 = vmatpush1.msra.mxu0 0.0
        %6229 = vmatprep.subr.mxu0 0.0
        %6230 = vmatpush1.msra.mxu0 0.0
        %6231 = vmatprep.subr.mxu0 0.0
        %6232 = vmatpush1.msra.mxu0 0.0
        %6233 = vmatprep.subr.mxu0 0.0
        %6234 = vmatpush1.msra.mxu0 0.0
        %6235 = vmatprep.subr.mxu0 0.0
        %6236 = vmatpush1.msra.mxu0 0.0
        %6237 = vmatprep.subr.mxu0 0.0
        %6238 = vmatpush1.msra.mxu0 0.0
        %6239 = vmatprep.subr.mxu0 0.0
        %6240 = vmatpush1.msra.mxu0 0.0
        %6241 = vmatprep.subr.mxu0 0.0
        %6242 = vmatpush1.msra.mxu0 0.0
        %6243 = vmatprep.subr.mxu0 0.0
        %6244 = vmatpush1.msra.mxu0 0.0
        %6245 = vmatprep.subr.mxu0 0.0
        %6246 = vmatpush1.msra.mxu0 0.0
        %6247 = vmatprep.subr.mxu0 0.0
        %6248 = vmatpush1.msra.mxu0 0.0
        %6249 = vmatprep.mubr.f32.mxu0 0.0
        %6250 = vmatmul.mubr.f32.gmra.mrb[0].mxu0 %v6183
        %v6251 = vpop.f32.mrb[0].mxu0
        %v6252 = vadd.f32 0.0, %v6251
        %v6253 = vpop.f32.mrb[0].mxu0
        %6254 = vdwg.mxu0
        %v6256 = vrot.slane %v6252, 4
        %v6258 = vadd.f32 %v5508, %v6256
        %v6259 = vxor.u32 %v6258, 2147483648
        %v6260 = vmul.f32 %v6259, 1.442695
        %v6261 = vpow.pop %v6260
        %v6262 = vadd.f32 %v6261, 1.0
        %v6263 = vrcp.pop %v6262
        %v6264 = vmul.f32 1.0, %v6263
        %v6265 = vadd.f32 %v6252, %v5590
        %v6267 = vrot.slane %v6265, 4
        %6268 = vrot.lane.b32.xlu0 %v6267, 96
        %v6269 = vpop.permute.xlu0 %6268
        %v6271 = vmul.f32 %v6264, %v6269
        %6273 = vrot.lane.b32.xlu0 %v6271, 32
        %v6274 = vpop.permute.xlu0 %6273
        %v6276 = vadd.f32 %v5508, %v6274
        %v6277 = vtanh.pop %v6276
        %v6279 = vrot.slane %v6277, 2
        %v6281 = vsub.f32 %v6178, %v6279
        %v6283 = vrot.slane %v6281, 6
        %6284 = vrot.lane.b32.xlu0 %v6283, 112
        %v6285 = vpop.permute.xlu0 %6284
        %v6287 = vmul.f32 %v6264, %v6285
        %6289 = vrot.lane.b32.xlu0 %v6287, 16
        %v6290 = vpop.permute.xlu0 %6289
        %v6292 = vadd.f32 %v6277, %v6290
        %v6294 = vrot.slane %v6292, 4
        %6295 = vrot.lane.b32.xlu0 %v6294, 96
        %v6296 = vpop.permute.xlu0 %6295
        %v6297 = vsel %vm392, %v6296, 0
        %6299 = vmatprep.subr.mxu0 0.0
        %6300 = vmatpush1.msra.mxu0 %v5419
        %6301 = vmatprep.subr.mxu0 0.0
        %6302 = vmatpush1.msra.mxu0 %v5420
        %6303 = vmatprep.subr.mxu0 0.0
        %6304 = vmatpush1.msra.mxu0 0.0
        %6305 = vmatprep.subr.mxu0 0.0
        %6306 = vmatpush1.msra.mxu0 0.0
        %6307 = vmatprep.subr.mxu0 0.0
        %6308 = vmatpush1.msra.mxu0 0.0
        %6309 = vmatprep.subr.mxu0 0.0
        %6310 = vmatpush1.msra.mxu0 0.0
        %6311 = vmatprep.subr.mxu0 0.0
        %6312 = vmatpush1.msra.mxu0 0.0
        %6313 = vmatprep.subr.mxu0 0.0
        %6314 = vmatpush1.msra.mxu0 0.0
        %6315 = vmatprep.subr.mxu0 0.0
        %6316 = vmatpush1.msra.mxu0 0.0
        %6317 = vmatprep.subr.mxu0 0.0
        %6318 = vmatpush1.msra.mxu0 0.0
        %6319 = vmatprep.subr.mxu0 0.0
        %6320 = vmatpush1.msra.mxu0 0.0
        %6321 = vmatprep.subr.mxu0 0.0
        %6322 = vmatpush1.msra.mxu0 0.0
        %6323 = vmatprep.subr.mxu0 0.0
        %6324 = vmatpush1.msra.mxu0 0.0
        %6325 = vmatprep.subr.mxu0 0.0
        %6326 = vmatpush1.msra.mxu0 0.0
        %6327 = vmatprep.subr.mxu0 0.0
        %6328 = vmatpush1.msra.mxu0 0.0
        %6329 = vmatprep.subr.mxu0 0.0
        %6330 = vmatpush1.msra.mxu0 0.0
        %6331 = vmatprep.subr.mxu0 0.0
        %6332 = vmatpush1.msra.mxu0 0.0
        %6333 = vmatprep.subr.mxu0 0.0
        %6334 = vmatpush1.msra.mxu0 0.0
        %6335 = vmatprep.subr.mxu0 0.0
        %6336 = vmatpush1.msra.mxu0 0.0
        %6337 = vmatprep.subr.mxu0 0.0
        %6338 = vmatpush1.msra.mxu0 0.0
        %6339 = vmatprep.subr.mxu0 0.0
        %6340 = vmatpush1.msra.mxu0 0.0
        %6341 = vmatprep.subr.mxu0 0.0
        %6342 = vmatpush1.msra.mxu0 0.0
        %6343 = vmatprep.subr.mxu0 0.0
        %6344 = vmatpush1.msra.mxu0 0.0
        %6345 = vmatprep.subr.mxu0 0.0
        %6346 = vmatpush1.msra.mxu0 0.0
        %6347 = vmatprep.subr.mxu0 0.0
        %6348 = vmatpush1.msra.mxu0 0.0
        %6349 = vmatprep.subr.mxu0 0.0
        %6350 = vmatpush1.msra.mxu0 0.0
        %6351 = vmatprep.subr.mxu0 0.0
        %6352 = vmatpush1.msra.mxu0 0.0
        %6353 = vmatprep.subr.mxu0 0.0
        %6354 = vmatpush1.msra.mxu0 0.0
        %6355 = vmatprep.subr.mxu0 0.0
        %6356 = vmatpush1.msra.mxu0 0.0
        %6357 = vmatprep.subr.mxu0 0.0
        %6358 = vmatpush1.msra.mxu0 0.0
        %6359 = vmatprep.subr.mxu0 0.0
        %6360 = vmatpush1.msra.mxu0 0.0
        %6361 = vmatprep.subr.mxu0 0.0
        %6362 = vmatpush1.msra.mxu0 0.0
        %6363 = vmatprep.mubr.f32.mxu0 0.0
        %6364 = vmatmul.mubr.f32.gmra.mrb[0].mxu0 %v6297
        %v6365 = vpop.f32.mrb[0].mxu0
        %v6366 = vadd.f32 0.0, %v6365
        %v6367 = vpop.f32.mrb[0].mxu0
        %6368 = vdwg.mxu0
        %v6370 = vrot.slane %v6366, 2
        %v6372 = vadd.f32 %v5508, %v6370
        %v6373 = vxor.u32 %v6372, 2147483648
        %v6374 = vmul.f32 %v6373, 1.442695
        %v6375 = vpow.pop %v6374
        %v6376 = vadd.f32 %v6375, 1.0
        %v6377 = vrcp.pop %v6376
        %v6378 = vmul.f32 1.0, %v6377
        %v6379 = vadd.f32 %v6366, %v5590
        %v6381 = vrot.slane %v6379, 2
        %6382 = vrot.lane.b32.xlu0 %v6381, 96
        %v6383 = vpop.permute.xlu0 %6382
        %v6385 = vmul.f32 %v6378, %v6383
        %6387 = vrot.lane.b32.xlu0 %v6385, 32
        %v6388 = vpop.permute.xlu0 %6387
        %v6390 = vadd.f32 %v5508, %v6388
        %v6391 = vtanh.pop %v6390
        %v6393 = vrot.slane %v6391, 2
        %v6395 = vsub.f32 %v6292, %v6393
        %v6397 = vrot.slane %v6395, 6
        %6398 = vrot.lane.b32.xlu0 %v6397, 112
        %v6399 = vpop.permute.xlu0 %6398
        %v6401 = vmul.f32 %v6378, %v6399
        %6403 = vrot.lane.b32.xlu0 %v6401, 16
        %v6404 = vpop.permute.xlu0 %6403
        %v6406 = vadd.f32 %v6391, %v6404
        %v6407 = vsel %vm1414, %v5614, %v5727
        %v6408 = vsel %vm1416, %v6407, %v5841
        %v6409 = vsel %vm1418, %v6408, %v5955
        %v6410 = vsel %vm1414, %v6065, %v6178
        %v6411 = vsel %vm1416, %v6410, %v6292
        %v6412 = vsel %vm1418, %v6411, %v6406
        %s6413 = scalar_lea.vmem [#allocation2], 192
        %v6414 = vld [vmem:[%s6413] sm:$0xff]
        %v6415 = vld [vmem:[%s6413 + $0x8] sm:$0xff]
        %s6416 = scalar_lea.vmem [#allocation2], 208
        %v6417 = vld [vmem:[%s6416] sm:$0xff]
        %v6418 = vld [vmem:[%s6416 + $0x8] sm:$0xff]
        %v6419 = vld [vmem:[%s3 + $0x6] sm:$0x1]
        %v6420 = vlaneseq
        %v6421 = vshrl.u32 %v6420, 7
        %v6422 = vsub.s32 0, %v6421
        %v6423 = vrot.slane %v6419, %v6422
        %6426 = vrot.lane.b32.xlu0 %v6409, 96
        %v6427 = vpop.permute.xlu0 %6426
        %6428 = vrot.lane.b32.xlu0 %v6412, 96
        %v6429 = vpop.permute.xlu0 %6428
        %v6430 = vsel %vm392, %v6427, 0
        %v6432 = vsel %vm392, %v6429, 0
        %6434 = vmatprep.subr.mxu0 0.0
        %6435 = vmatpush1.msra.mxu0 %v6414
        %6436 = vmatprep.subr.mxu0 0.0
        %6437 = vmatpush1.msra.mxu0 %v6415
        %6438 = vmatprep.subr.mxu0 0.0
        %6439 = vmatpush1.msra.mxu0 0.0
        %6440 = vmatprep.subr.mxu0 0.0
        %6441 = vmatpush1.msra.mxu0 0.0
        %6442 = vmatprep.subr.mxu0 0.0
        %6443 = vmatpush1.msra.mxu0 0.0
        %6444 = vmatprep.subr.mxu0 0.0
        %6445 = vmatpush1.msra.mxu0 0.0
        %6446 = vmatprep.subr.mxu0 0.0
        %6447 = vmatpush1.msra.mxu0 0.0
        %6448 = vmatprep.subr.mxu0 0.0
        %6449 = vmatpush1.msra.mxu0 0.0
        %6450 = vmatprep.subr.mxu0 0.0
        %6451 = vmatpush1.msra.mxu0 0.0
        %6452 = vmatprep.subr.mxu0 0.0
        %6453 = vmatpush1.msra.mxu0 0.0
        %6454 = vmatprep.subr.mxu0 0.0
        %6455 = vmatpush1.msra.mxu0 0.0
        %6456 = vmatprep.subr.mxu0 0.0
        %6457 = vmatpush1.msra.mxu0 0.0
        %6458 = vmatprep.subr.mxu0 0.0
        %6459 = vmatpush1.msra.mxu0 0.0
        %6460 = vmatprep.subr.mxu0 0.0
        %6461 = vmatpush1.msra.mxu0 0.0
        %6462 = vmatprep.subr.mxu0 0.0
        %6463 = vmatpush1.msra.mxu0 0.0
        %6464 = vmatprep.subr.mxu0 0.0
        %6465 = vmatpush1.msra.mxu0 0.0
        %6466 = vmatprep.subr.mxu0 0.0
        %6467 = vmatpush1.msra.mxu0 0.0
        %6468 = vmatprep.subr.mxu0 0.0
        %6469 = vmatpush1.msra.mxu0 0.0
        %6470 = vmatprep.subr.mxu0 0.0
        %6471 = vmatpush1.msra.mxu0 0.0
        %6472 = vmatprep.subr.mxu0 0.0
        %6473 = vmatpush1.msra.mxu0 0.0
        %6474 = vmatprep.subr.mxu0 0.0
        %6475 = vmatpush1.msra.mxu0 0.0
        %6476 = vmatprep.subr.mxu0 0.0
        %6477 = vmatpush1.msra.mxu0 0.0
        %6478 = vmatprep.subr.mxu0 0.0
        %6479 = vmatpush1.msra.mxu0 0.0
        %6480 = vmatprep.subr.mxu0 0.0
        %6481 = vmatpush1.msra.mxu0 0.0
        %6482 = vmatprep.subr.mxu0 0.0
        %6483 = vmatpush1.msra.mxu0 0.0
        %6484 = vmatprep.subr.mxu0 0.0
        %6485 = vmatpush1.msra.mxu0 0.0
        %6486 = vmatprep.subr.mxu0 0.0
        %6487 = vmatpush1.msra.mxu0 0.0
        %6488 = vmatprep.subr.mxu0 0.0
        %6489 = vmatpush1.msra.mxu0 0.0
        %6490 = vmatprep.subr.mxu0 0.0
        %6491 = vmatpush1.msra.mxu0 0.0
        %6492 = vmatprep.subr.mxu0 0.0
        %6493 = vmatpush1.msra.mxu0 0.0
        %6494 = vmatprep.subr.mxu0 0.0
        %6495 = vmatpush1.msra.mxu0 0.0
        %6496 = vmatprep.subr.mxu0 0.0
        %6497 = vmatpush1.msra.mxu0 0.0
        %6498 = vmatprep.mubr.f32.mxu0 0.0
        %6499 = vmatmul.mubr.f32.gmra.mrb[0].mxu0 %v6430
        %v6500 = vpop.f32.mrb[0].mxu0
        %v6501 = vadd.f32 %v6423, %v6500
        %v6502 = vpop.f32.mrb[0].mxu0
        %6503 = vmatprep.mubr.f32.mxu0 0.0
        %6504 = vmatmul.mubr.f32.gmra.mrb[0].mxu0 %v6432
        %v6505 = vpop.f32.mrb[0].mxu0
        %v6506 = vadd.f32 %v6423, %v6505
        %v6507 = vpop.f32.mrb[0].mxu0
        %6508 = vdwg.mxu0
        %6509 = vmatprep.subr.mxu0 0.0
        %6510 = vmatpush1.msra.mxu0 %v6417
        %6511 = vmatprep.subr.mxu0 0.0
        %6512 = vmatpush1.msra.mxu0 %v6418
        %6513 = vmatprep.subr.mxu0 0.0
        %6514 = vmatpush1.msra.mxu0 0.0
        %6515 = vmatprep.subr.mxu0 0.0
        %6516 = vmatpush1.msra.mxu0 0.0
        %6517 = vmatprep.subr.mxu0 0.0
        %6518 = vmatpush1.msra.mxu0 0.0
        %6519 = vmatprep.subr.mxu0 0.0
        %6520 = vmatpush1.msra.mxu0 0.0
        %6521 = vmatprep.subr.mxu0 0.0
        %6522 = vmatpush1.msra.mxu0 0.0
        %6523 = vmatprep.subr.mxu0 0.0
        %6524 = vmatpush1.msra.mxu0 0.0
        %6525 = vmatprep.subr.mxu0 0.0
        %6526 = vmatpush1.msra.mxu0 0.0
        %6527 = vmatprep.subr.mxu0 0.0
        %6528 = vmatpush1.msra.mxu0 0.0
        %6529 = vmatprep.subr.mxu0 0.0
        %6530 = vmatpush1.msra.mxu0 0.0
        %6531 = vmatprep.subr.mxu0 0.0
        %6532 = vmatpush1.msra.mxu0 0.0
        %6533 = vmatprep.subr.mxu0 0.0
        %6534 = vmatpush1.msra.mxu0 0.0
        %6535 = vmatprep.subr.mxu0 0.0
        %6536 = vmatpush1.msra.mxu0 0.0
        %6537 = vmatprep.subr.mxu0 0.0
        %6538 = vmatpush1.msra.mxu0 0.0
        %6539 = vmatprep.subr.mxu0 0.0
        %6540 = vmatpush1.msra.mxu0 0.0
        %6541 = vmatprep.subr.mxu0 0.0
        %6542 = vmatpush1.msra.mxu0 0.0
        %6543 = vmatprep.subr.mxu0 0.0
        %6544 = vmatpush1.msra.mxu0 0.0
        %6545 = vmatprep.subr.mxu0 0.0
        %6546 = vmatpush1.msra.mxu0 0.0
        %6547 = vmatprep.subr.mxu0 0.0
        %6548 = vmatpush1.msra.mxu0 0.0
        %6549 = vmatprep.subr.mxu0 0.0
        %6550 = vmatpush1.msra.mxu0 0.0
        %6551 = vmatprep.subr.mxu0 0.0
        %6552 = vmatpush1.msra.mxu0 0.0
        %6553 = vmatprep.subr.mxu0 0.0
        %6554 = vmatpush1.msra.mxu0 0.0
        %6555 = vmatprep.subr.mxu0 0.0
        %6556 = vmatpush1.msra.mxu0 0.0
        %6557 = vmatprep.subr.mxu0 0.0
        %6558 = vmatpush1.msra.mxu0 0.0
        %6559 = vmatprep.subr.mxu0 0.0
        %6560 = vmatpush1.msra.mxu0 0.0
        %6561 = vmatprep.subr.mxu0 0.0
        %6562 = vmatpush1.msra.mxu0 0.0
        %6563 = vmatprep.subr.mxu0 0.0
        %6564 = vmatpush1.msra.mxu0 0.0
        %6565 = vmatprep.subr.mxu0 0.0
        %6566 = vmatpush1.msra.mxu0 0.0
        %6567 = vmatprep.subr.mxu0 0.0
        %6568 = vmatpush1.msra.mxu0 0.0
        %6569 = vmatprep.subr.mxu0 0.0
        %6570 = vmatpush1.msra.mxu0 0.0
        %6571 = vmatprep.subr.mxu0 0.0
        %6572 = vmatpush1.msra.mxu0 0.0
        %6573 = vmatprep.mubr.f32.mxu0 0.0
        %6574 = vmatmul.mubr.f32.gmra.mrb[0].mxu0 %v516
        %v6575 = vpop.f32.mrb[0].mxu0
        %v6576 = vadd.f32 0.0, %v6575
        %v6577 = vpop.f32.mrb[0].mxu0
        %6578 = vdwg.mxu0
        %v6579 = vadd.f32 %v6501, %v6576
        %v6580 = vxor.u32 %v6579, 2147483648
        %v6581 = vmul.f32 %v6580, 1.442695
        %v6582 = vpow.pop %v6581
        %v6583 = vadd.f32 %v6582, 1.0
        %v6584 = vrcp.pop %v6583
        %v6585 = vmul.f32 1.0, %v6584
        %6587 = vrot.lane.b32.xlu0 %v6423, 112
        %v6588 = vpop.permute.xlu0 %6587
        %v6590 = vadd.f32 %v6576, %v6588
        %6592 = vrot.lane.b32.xlu0 %v6590, 96
        %v6593 = vpop.permute.xlu0 %6592
        %v6595 = vmul.f32 %v6585, %v6593
        %6597 = vrot.lane.b32.xlu0 %v6595, 32
        %v6598 = vpop.permute.xlu0 %6597
        %v6600 = vadd.f32 %v6501, %v6598
        %v6601 = vtanh.pop %v6600
        %v6602 = vsub.f32 0.0, %v6601
        %6604 = vrot.lane.b32.xlu0 %v6602, 112
        %v6605 = vpop.permute.xlu0 %6604
        %v6607 = vmul.f32 %v6585, %v6605
        %6609 = vrot.lane.b32.xlu0 %v6607, 16
        %v6610 = vpop.permute.xlu0 %6609
        %v6612 = vadd.f32 %v6601, %v6610
        %6614 = vrot.lane.b32.xlu0 %v6612, 96
        %v6615 = vpop.permute.xlu0 %6614
        %v6616 = vsel %vm392, %v6615, 0
        %6618 = vmatprep.subr.mxu0 0.0
        %6619 = vmatpush1.msra.mxu0 %v6417
        %6620 = vmatprep.subr.mxu0 0.0
        %6621 = vmatpush1.msra.mxu0 %v6418
        %6622 = vmatprep.subr.mxu0 0.0
        %6623 = vmatpush1.msra.mxu0 0.0
        %6624 = vmatprep.subr.mxu0 0.0
        %6625 = vmatpush1.msra.mxu0 0.0
        %6626 = vmatprep.subr.mxu0 0.0
        %6627 = vmatpush1.msra.mxu0 0.0
        %6628 = vmatprep.subr.mxu0 0.0
        %6629 = vmatpush1.msra.mxu0 0.0
        %6630 = vmatprep.subr.mxu0 0.0
        %6631 = vmatpush1.msra.mxu0 0.0
        %6632 = vmatprep.subr.mxu0 0.0
        %6633 = vmatpush1.msra.mxu0 0.0
        %6634 = vmatprep.subr.mxu0 0.0
        %6635 = vmatpush1.msra.mxu0 0.0
        %6636 = vmatprep.subr.mxu0 0.0
        %6637 = vmatpush1.msra.mxu0 0.0
        %6638 = vmatprep.subr.mxu0 0.0
        %6639 = vmatpush1.msra.mxu0 0.0
        %6640 = vmatprep.subr.mxu0 0.0
        %6641 = vmatpush1.msra.mxu0 0.0
        %6642 = vmatprep.subr.mxu0 0.0
        %6643 = vmatpush1.msra.mxu0 0.0
        %6644 = vmatprep.subr.mxu0 0.0
        %6645 = vmatpush1.msra.mxu0 0.0
        %6646 = vmatprep.subr.mxu0 0.0
        %6647 = vmatpush1.msra.mxu0 0.0
        %6648 = vmatprep.subr.mxu0 0.0
        %6649 = vmatpush1.msra.mxu0 0.0
        %6650 = vmatprep.subr.mxu0 0.0
        %6651 = vmatpush1.msra.mxu0 0.0
        %6652 = vmatprep.subr.mxu0 0.0
        %6653 = vmatpush1.msra.mxu0 0.0
        %6654 = vmatprep.subr.mxu0 0.0
        %6655 = vmatpush1.msra.mxu0 0.0
        %6656 = vmatprep.subr.mxu0 0.0
        %6657 = vmatpush1.msra.mxu0 0.0
        %6658 = vmatprep.subr.mxu0 0.0
        %6659 = vmatpush1.msra.mxu0 0.0
        %6660 = vmatprep.subr.mxu0 0.0
        %6661 = vmatpush1.msra.mxu0 0.0
        %6662 = vmatprep.subr.mxu0 0.0
        %6663 = vmatpush1.msra.mxu0 0.0
        %6664 = vmatprep.subr.mxu0 0.0
        %6665 = vmatpush1.msra.mxu0 0.0
        %6666 = vmatprep.subr.mxu0 0.0
        %6667 = vmatpush1.msra.mxu0 0.0
        %6668 = vmatprep.subr.mxu0 0.0
        %6669 = vmatpush1.msra.mxu0 0.0
        %6670 = vmatprep.subr.mxu0 0.0
        %6671 = vmatpush1.msra.mxu0 0.0
        %6672 = vmatprep.subr.mxu0 0.0
        %6673 = vmatpush1.msra.mxu0 0.0
        %6674 = vmatprep.subr.mxu0 0.0
        %6675 = vmatpush1.msra.mxu0 0.0
        %6676 = vmatprep.subr.mxu0 0.0
        %6677 = vmatpush1.msra.mxu0 0.0
        %6678 = vmatprep.subr.mxu0 0.0
        %6679 = vmatpush1.msra.mxu0 0.0
        %6680 = vmatprep.subr.mxu0 0.0
        %6681 = vmatpush1.msra.mxu0 0.0
        %6682 = vmatprep.mubr.f32.mxu0 0.0
        %6683 = vmatmul.mubr.f32.gmra.mrb[0].mxu0 %v6616
        %v6684 = vpop.f32.mrb[0].mxu0
        %v6685 = vadd.f32 0.0, %v6684
        %v6686 = vpop.f32.mrb[0].mxu0
        %6687 = vdwg.mxu0
        %v6689 = vrot.slane %v6685, 6
        %v6691 = vadd.f32 %v6501, %v6689
        %v6692 = vxor.u32 %v6691, 2147483648
        %v6693 = vmul.f32 %v6692, 1.442695
        %v6694 = vpow.pop %v6693
        %v6695 = vadd.f32 %v6694, 1.0
        %v6696 = vrcp.pop %v6695
        %v6697 = vmul.f32 1.0, %v6696
        %v6698 = vadd.f32 %v6685, %v6588
        %v6700 = vrot.slane %v6698, 6
        %6701 = vrot.lane.b32.xlu0 %v6700, 96
        %v6702 = vpop.permute.xlu0 %6701
        %v6704 = vmul.f32 %v6697, %v6702
        %6706 = vrot.lane.b32.xlu0 %v6704, 32
        %v6707 = vpop.permute.xlu0 %6706
        %v6709 = vadd.f32 %v6501, %v6707
        %v6710 = vtanh.pop %v6709
        %v6712 = vrot.slane %v6710, 2
        %v6714 = vsub.f32 %v6612, %v6712
        %v6716 = vrot.slane %v6714, 6
        %6717 = vrot.lane.b32.xlu0 %v6716, 112
        %v6718 = vpop.permute.xlu0 %6717
        %v6720 = vmul.f32 %v6697, %v6718
        %6722 = vrot.lane.b32.xlu0 %v6720, 16
        %v6723 = vpop.permute.xlu0 %6722
        %v6725 = vadd.f32 %v6710, %v6723
        %v6727 = vrot.slane %v6725, 2
        %6728 = vrot.lane.b32.xlu0 %v6727, 96
        %v6729 = vpop.permute.xlu0 %6728
        %v6730 = vsel %vm392, %v6729, 0
        %6732 = vmatprep.subr.mxu0 0.0
        %6733 = vmatpush1.msra.mxu0 %v6417
        %6734 = vmatprep.subr.mxu0 0.0
        %6735 = vmatpush1.msra.mxu0 %v6418
        %6736 = vmatprep.subr.mxu0 0.0
        %6737 = vmatpush1.msra.mxu0 0.0
        %6738 = vmatprep.subr.mxu0 0.0
        %6739 = vmatpush1.msra.mxu0 0.0
        %6740 = vmatprep.subr.mxu0 0.0
        %6741 = vmatpush1.msra.mxu0 0.0
        %6742 = vmatprep.subr.mxu0 0.0
        %6743 = vmatpush1.msra.mxu0 0.0
        %6744 = vmatprep.subr.mxu0 0.0
        %6745 = vmatpush1.msra.mxu0 0.0
        %6746 = vmatprep.subr.mxu0 0.0
        %6747 = vmatpush1.msra.mxu0 0.0
        %6748 = vmatprep.subr.mxu0 0.0
        %6749 = vmatpush1.msra.mxu0 0.0
        %6750 = vmatprep.subr.mxu0 0.0
        %6751 = vmatpush1.msra.mxu0 0.0
        %6752 = vmatprep.subr.mxu0 0.0
        %6753 = vmatpush1.msra.mxu0 0.0
        %6754 = vmatprep.subr.mxu0 0.0
        %6755 = vmatpush1.msra.mxu0 0.0
        %6756 = vmatprep.subr.mxu0 0.0
        %6757 = vmatpush1.msra.mxu0 0.0
        %6758 = vmatprep.subr.mxu0 0.0
        %6759 = vmatpush1.msra.mxu0 0.0
        %6760 = vmatprep.subr.mxu0 0.0
        %6761 = vmatpush1.msra.mxu0 0.0
        %6762 = vmatprep.subr.mxu0 0.0
        %6763 = vmatpush1.msra.mxu0 0.0
        %6764 = vmatprep.subr.mxu0 0.0
        %6765 = vmatpush1.msra.mxu0 0.0
        %6766 = vmatprep.subr.mxu0 0.0
        %6767 = vmatpush1.msra.mxu0 0.0
        %6768 = vmatprep.subr.mxu0 0.0
        %6769 = vmatpush1.msra.mxu0 0.0
        %6770 = vmatprep.subr.mxu0 0.0
        %6771 = vmatpush1.msra.mxu0 0.0
        %6772 = vmatprep.subr.mxu0 0.0
        %6773 = vmatpush1.msra.mxu0 0.0
        %6774 = vmatprep.subr.mxu0 0.0
        %6775 = vmatpush1.msra.mxu0 0.0
        %6776 = vmatprep.subr.mxu0 0.0
        %6777 = vmatpush1.msra.mxu0 0.0
        %6778 = vmatprep.subr.mxu0 0.0
        %6779 = vmatpush1.msra.mxu0 0.0
        %6780 = vmatprep.subr.mxu0 0.0
        %6781 = vmatpush1.msra.mxu0 0.0
        %6782 = vmatprep.subr.mxu0 0.0
        %6783 = vmatpush1.msra.mxu0 0.0
        %6784 = vmatprep.subr.mxu0 0.0
        %6785 = vmatpush1.msra.mxu0 0.0
        %6786 = vmatprep.subr.mxu0 0.0
        %6787 = vmatpush1.msra.mxu0 0.0
        %6788 = vmatprep.subr.mxu0 0.0
        %6789 = vmatpush1.msra.mxu0 0.0
        %6790 = vmatprep.subr.mxu0 0.0
        %6791 = vmatpush1.msra.mxu0 0.0
        %6792 = vmatprep.subr.mxu0 0.0
        %6793 = vmatpush1.msra.mxu0 0.0
        %6794 = vmatprep.subr.mxu0 0.0
        %6795 = vmatpush1.msra.mxu0 0.0
        %6796 = vmatprep.mubr.f32.mxu0 0.0
        %6797 = vmatmul.mubr.f32.gmra.mrb[0].mxu0 %v6730
        %v6798 = vpop.f32.mrb[0].mxu0
        %v6799 = vadd.f32 0.0, %v6798
        %v6800 = vpop.f32.mrb[0].mxu0
        %6801 = vdwg.mxu0
        %v6803 = vrot.slane %v6799, 4
        %v6805 = vadd.f32 %v6501, %v6803
        %v6806 = vxor.u32 %v6805, 2147483648
        %v6807 = vmul.f32 %v6806, 1.442695
        %v6808 = vpow.pop %v6807
        %v6809 = vadd.f32 %v6808, 1.0
        %v6810 = vrcp.pop %v6809
        %v6811 = vmul.f32 1.0, %v6810
        %v6812 = vadd.f32 %v6799, %v6588
        %v6814 = vrot.slane %v6812, 4
        %6815 = vrot.lane.b32.xlu0 %v6814, 96
        %v6816 = vpop.permute.xlu0 %6815
        %v6818 = vmul.f32 %v6811, %v6816
        %6820 = vrot.lane.b32.xlu0 %v6818, 32
        %v6821 = vpop.permute.xlu0 %6820
        %v6823 = vadd.f32 %v6501, %v6821
        %v6824 = vtanh.pop %v6823
        %v6826 = vrot.slane %v6824, 2
        %v6828 = vsub.f32 %v6725, %v6826
        %v6830 = vrot.slane %v6828, 6
        %6831 = vrot.lane.b32.xlu0 %v6830, 112
        %v6832 = vpop.permute.xlu0 %6831
        %v6834 = vmul.f32 %v6811, %v6832
        %6836 = vrot.lane.b32.xlu0 %v6834, 16
        %v6837 = vpop.permute.xlu0 %6836
        %v6839 = vadd.f32 %v6824, %v6837
        %v6841 = vrot.slane %v6839, 4
        %6842 = vrot.lane.b32.xlu0 %v6841, 96
        %v6843 = vpop.permute.xlu0 %6842
        %v6844 = vsel %vm392, %v6843, 0
        %6846 = vmatprep.subr.mxu0 0.0
        %6847 = vmatpush1.msra.mxu0 %v6417
        %6848 = vmatprep.subr.mxu0 0.0
        %6849 = vmatpush1.msra.mxu0 %v6418
        %6850 = vmatprep.subr.mxu0 0.0
        %6851 = vmatpush1.msra.mxu0 0.0
        %6852 = vmatprep.subr.mxu0 0.0
        %6853 = vmatpush1.msra.mxu0 0.0
        %6854 = vmatprep.subr.mxu0 0.0
        %6855 = vmatpush1.msra.mxu0 0.0
        %6856 = vmatprep.subr.mxu0 0.0
        %6857 = vmatpush1.msra.mxu0 0.0
        %6858 = vmatprep.subr.mxu0 0.0
        %6859 = vmatpush1.msra.mxu0 0.0
        %6860 = vmatprep.subr.mxu0 0.0
        %6861 = vmatpush1.msra.mxu0 0.0
        %6862 = vmatprep.subr.mxu0 0.0
        %6863 = vmatpush1.msra.mxu0 0.0
        %6864 = vmatprep.subr.mxu0 0.0
        %6865 = vmatpush1.msra.mxu0 0.0
        %6866 = vmatprep.subr.mxu0 0.0
        %6867 = vmatpush1.msra.mxu0 0.0
        %6868 = vmatprep.subr.mxu0 0.0
        %6869 = vmatpush1.msra.mxu0 0.0
        %6870 = vmatprep.subr.mxu0 0.0
        %6871 = vmatpush1.msra.mxu0 0.0
        %6872 = vmatprep.subr.mxu0 0.0
        %6873 = vmatpush1.msra.mxu0 0.0
        %6874 = vmatprep.subr.mxu0 0.0
        %6875 = vmatpush1.msra.mxu0 0.0
        %6876 = vmatprep.subr.mxu0 0.0
        %6877 = vmatpush1.msra.mxu0 0.0
        %6878 = vmatprep.subr.mxu0 0.0
        %6879 = vmatpush1.msra.mxu0 0.0
        %6880 = vmatprep.subr.mxu0 0.0
        %6881 = vmatpush1.msra.mxu0 0.0
        %6882 = vmatprep.subr.mxu0 0.0
        %6883 = vmatpush1.msra.mxu0 0.0
        %6884 = vmatprep.subr.mxu0 0.0
        %6885 = vmatpush1.msra.mxu0 0.0
        %6886 = vmatprep.subr.mxu0 0.0
        %6887 = vmatpush1.msra.mxu0 0.0
        %6888 = vmatprep.subr.mxu0 0.0
        %6889 = vmatpush1.msra.mxu0 0.0
        %6890 = vmatprep.subr.mxu0 0.0
        %6891 = vmatpush1.msra.mxu0 0.0
        %6892 = vmatprep.subr.mxu0 0.0
        %6893 = vmatpush1.msra.mxu0 0.0
        %6894 = vmatprep.subr.mxu0 0.0
        %6895 = vmatpush1.msra.mxu0 0.0
        %6896 = vmatprep.subr.mxu0 0.0
        %6897 = vmatpush1.msra.mxu0 0.0
        %6898 = vmatprep.subr.mxu0 0.0
        %6899 = vmatpush1.msra.mxu0 0.0
        %6900 = vmatprep.subr.mxu0 0.0
        %6901 = vmatpush1.msra.mxu0 0.0
        %6902 = vmatprep.subr.mxu0 0.0
        %6903 = vmatpush1.msra.mxu0 0.0
        %6904 = vmatprep.subr.mxu0 0.0
        %6905 = vmatpush1.msra.mxu0 0.0
        %6906 = vmatprep.subr.mxu0 0.0
        %6907 = vmatpush1.msra.mxu0 0.0
        %6908 = vmatprep.subr.mxu0 0.0
        %6909 = vmatpush1.msra.mxu0 0.0
        %6910 = vmatprep.mubr.f32.mxu0 0.0
        %6911 = vmatmul.mubr.f32.gmra.mrb[0].mxu0 %v6844
        %v6912 = vpop.f32.mrb[0].mxu0
        %v6913 = vadd.f32 0.0, %v6912
        %v6914 = vpop.f32.mrb[0].mxu0
        %6915 = vdwg.mxu0
        %v6917 = vrot.slane %v6913, 2
        %v6919 = vadd.f32 %v6501, %v6917
        %v6920 = vxor.u32 %v6919, 2147483648
        %v6921 = vmul.f32 %v6920, 1.442695
        %v6922 = vpow.pop %v6921
        %v6923 = vadd.f32 %v6922, 1.0
        %v6924 = vrcp.pop %v6923
        %v6925 = vmul.f32 1.0, %v6924
        %v6926 = vadd.f32 %v6913, %v6588
        %v6928 = vrot.slane %v6926, 2
        %6929 = vrot.lane.b32.xlu0 %v6928, 96
        %v6930 = vpop.permute.xlu0 %6929
        %v6932 = vmul.f32 %v6925, %v6930
        %6934 = vrot.lane.b32.xlu0 %v6932, 32
        %v6935 = vpop.permute.xlu0 %6934
        %v6937 = vadd.f32 %v6501, %v6935
        %v6938 = vtanh.pop %v6937
        %v6940 = vrot.slane %v6938, 2
        %v6942 = vsub.f32 %v6839, %v6940
        %v6944 = vrot.slane %v6942, 6
        %6945 = vrot.lane.b32.xlu0 %v6944, 112
        %v6946 = vpop.permute.xlu0 %6945
        %v6948 = vmul.f32 %v6925, %v6946
        %6950 = vrot.lane.b32.xlu0 %v6948, 16
        %v6951 = vpop.permute.xlu0 %6950
        %v6953 = vadd.f32 %v6938, %v6951
        %v6955 = vrot.slane %v6953, 6
        %6956 = vrot.lane.b32.xlu0 %v6955, 96
        %v6957 = vpop.permute.xlu0 %6956
        %v6958 = vsel %vm392, %v6957, 0
        %6960 = vmatprep.subr.mxu0 0.0
        %6961 = vmatpush1.msra.mxu0 %v6417
        %6962 = vmatprep.subr.mxu0 0.0
        %6963 = vmatpush1.msra.mxu0 %v6418
        %6964 = vmatprep.subr.mxu0 0.0
        %6965 = vmatpush1.msra.mxu0 0.0
        %6966 = vmatprep.subr.mxu0 0.0
        %6967 = vmatpush1.msra.mxu0 0.0
        %6968 = vmatprep.subr.mxu0 0.0
        %6969 = vmatpush1.msra.mxu0 0.0
        %6970 = vmatprep.subr.mxu0 0.0
        %6971 = vmatpush1.msra.mxu0 0.0
        %6972 = vmatprep.subr.mxu0 0.0
        %6973 = vmatpush1.msra.mxu0 0.0
        %6974 = vmatprep.subr.mxu0 0.0
        %6975 = vmatpush1.msra.mxu0 0.0
        %6976 = vmatprep.subr.mxu0 0.0
        %6977 = vmatpush1.msra.mxu0 0.0
        %6978 = vmatprep.subr.mxu0 0.0
        %6979 = vmatpush1.msra.mxu0 0.0
        %6980 = vmatprep.subr.mxu0 0.0
        %6981 = vmatpush1.msra.mxu0 0.0
        %6982 = vmatprep.subr.mxu0 0.0
        %6983 = vmatpush1.msra.mxu0 0.0
        %6984 = vmatprep.subr.mxu0 0.0
        %6985 = vmatpush1.msra.mxu0 0.0
        %6986 = vmatprep.subr.mxu0 0.0
        %6987 = vmatpush1.msra.mxu0 0.0
        %6988 = vmatprep.subr.mxu0 0.0
        %6989 = vmatpush1.msra.mxu0 0.0
        %6990 = vmatprep.subr.mxu0 0.0
        %6991 = vmatpush1.msra.mxu0 0.0
        %6992 = vmatprep.subr.mxu0 0.0
        %6993 = vmatpush1.msra.mxu0 0.0
        %6994 = vmatprep.subr.mxu0 0.0
        %6995 = vmatpush1.msra.mxu0 0.0
        %6996 = vmatprep.subr.mxu0 0.0
        %6997 = vmatpush1.msra.mxu0 0.0
        %6998 = vmatprep.subr.mxu0 0.0
        %6999 = vmatpush1.msra.mxu0 0.0
        %7000 = vmatprep.subr.mxu0 0.0
        %7001 = vmatpush1.msra.mxu0 0.0
        %7002 = vmatprep.subr.mxu0 0.0
        %7003 = vmatpush1.msra.mxu0 0.0
        %7004 = vmatprep.subr.mxu0 0.0
        %7005 = vmatpush1.msra.mxu0 0.0
        %7006 = vmatprep.subr.mxu0 0.0
        %7007 = vmatpush1.msra.mxu0 0.0
        %7008 = vmatprep.subr.mxu0 0.0
        %7009 = vmatpush1.msra.mxu0 0.0
        %7010 = vmatprep.subr.mxu0 0.0
        %7011 = vmatpush1.msra.mxu0 0.0
        %7012 = vmatprep.subr.mxu0 0.0
        %7013 = vmatpush1.msra.mxu0 0.0
        %7014 = vmatprep.subr.mxu0 0.0
        %7015 = vmatpush1.msra.mxu0 0.0
        %7016 = vmatprep.subr.mxu0 0.0
        %7017 = vmatpush1.msra.mxu0 0.0
        %7018 = vmatprep.subr.mxu0 0.0
        %7019 = vmatpush1.msra.mxu0 0.0
        %7020 = vmatprep.subr.mxu0 0.0
        %7021 = vmatpush1.msra.mxu0 0.0
        %7022 = vmatprep.subr.mxu0 0.0
        %7023 = vmatpush1.msra.mxu0 0.0
        %7024 = vmatprep.mubr.f32.mxu0 0.0
        %7025 = vmatmul.mubr.f32.gmra.mrb[0].mxu0 %v6958
        %v7026 = vpop.f32.mrb[0].mxu0
        %v7027 = vadd.f32 0.0, %v7026
        %v7028 = vpop.f32.mrb[0].mxu0
        %7029 = vdwg.mxu0
        %v7030 = vadd.f32 %v6506, %v7027
        %v7031 = vxor.u32 %v7030, 2147483648
        %v7032 = vmul.f32 %v7031, 1.442695
        %v7033 = vpow.pop %v7032
        %v7034 = vadd.f32 %v7033, 1.0
        %v7035 = vrcp.pop %v7034
        %v7036 = vmul.f32 1.0, %v7035
        %v7037 = vadd.f32 %v7027, %v6588
        %7039 = vrot.lane.b32.xlu0 %v7037, 96
        %v7040 = vpop.permute.xlu0 %7039
        %v7042 = vmul.f32 %v7036, %v7040
        %7044 = vrot.lane.b32.xlu0 %v7042, 32
        %v7045 = vpop.permute.xlu0 %7044
        %v7047 = vadd.f32 %v6506, %v7045
        %v7048 = vtanh.pop %v7047
        %v7050 = vrot.slane %v7048, 2
        %v7052 = vsub.f32 %v6953, %v7050
        %v7054 = vrot.slane %v7052, 6
        %7055 = vrot.lane.b32.xlu0 %v7054, 112
        %v7056 = vpop.permute.xlu0 %7055
        %v7058 = vmul.f32 %v7036, %v7056
        %7060 = vrot.lane.b32.xlu0 %v7058, 16
        %v7061 = vpop.permute.xlu0 %7060
        %v7063 = vadd.f32 %v7048, %v7061
        %7065 = vrot.lane.b32.xlu0 %v7063, 96
        %v7066 = vpop.permute.xlu0 %7065
        %v7067 = vsel %vm392, %v7066, 0
        %7069 = vmatprep.subr.mxu0 0.0
        %7070 = vmatpush1.msra.mxu0 %v6417
        %7071 = vmatprep.subr.mxu0 0.0
        %7072 = vmatpush1.msra.mxu0 %v6418
        %7073 = vmatprep.subr.mxu0 0.0
        %7074 = vmatpush1.msra.mxu0 0.0
        %7075 = vmatprep.subr.mxu0 0.0
        %7076 = vmatpush1.msra.mxu0 0.0
        %7077 = vmatprep.subr.mxu0 0.0
        %7078 = vmatpush1.msra.mxu0 0.0
        %7079 = vmatprep.subr.mxu0 0.0
        %7080 = vmatpush1.msra.mxu0 0.0
        %7081 = vmatprep.subr.mxu0 0.0
        %7082 = vmatpush1.msra.mxu0 0.0
        %7083 = vmatprep.subr.mxu0 0.0
        %7084 = vmatpush1.msra.mxu0 0.0
        %7085 = vmatprep.subr.mxu0 0.0
        %7086 = vmatpush1.msra.mxu0 0.0
        %7087 = vmatprep.subr.mxu0 0.0
        %7088 = vmatpush1.msra.mxu0 0.0
        %7089 = vmatprep.subr.mxu0 0.0
        %7090 = vmatpush1.msra.mxu0 0.0
        %7091 = vmatprep.subr.mxu0 0.0
        %7092 = vmatpush1.msra.mxu0 0.0
        %7093 = vmatprep.subr.mxu0 0.0
        %7094 = vmatpush1.msra.mxu0 0.0
        %7095 = vmatprep.subr.mxu0 0.0
        %7096 = vmatpush1.msra.mxu0 0.0
        %7097 = vmatprep.subr.mxu0 0.0
        %7098 = vmatpush1.msra.mxu0 0.0
        %7099 = vmatprep.subr.mxu0 0.0
        %7100 = vmatpush1.msra.mxu0 0.0
        %7101 = vmatprep.subr.mxu0 0.0
        %7102 = vmatpush1.msra.mxu0 0.0
        %7103 = vmatprep.subr.mxu0 0.0
        %7104 = vmatpush1.msra.mxu0 0.0
        %7105 = vmatprep.subr.mxu0 0.0
        %7106 = vmatpush1.msra.mxu0 0.0
        %7107 = vmatprep.subr.mxu0 0.0
        %7108 = vmatpush1.msra.mxu0 0.0
        %7109 = vmatprep.subr.mxu0 0.0
        %7110 = vmatpush1.msra.mxu0 0.0
        %7111 = vmatprep.subr.mxu0 0.0
        %7112 = vmatpush1.msra.mxu0 0.0
        %7113 = vmatprep.subr.mxu0 0.0
        %7114 = vmatpush1.msra.mxu0 0.0
        %7115 = vmatprep.subr.mxu0 0.0
        %7116 = vmatpush1.msra.mxu0 0.0
        %7117 = vmatprep.subr.mxu0 0.0
        %7118 = vmatpush1.msra.mxu0 0.0
        %7119 = vmatprep.subr.mxu0 0.0
        %7120 = vmatpush1.msra.mxu0 0.0
        %7121 = vmatprep.subr.mxu0 0.0
        %7122 = vmatpush1.msra.mxu0 0.0
        %7123 = vmatprep.subr.mxu0 0.0
        %7124 = vmatpush1.msra.mxu0 0.0
        %7125 = vmatprep.subr.mxu0 0.0
        %7126 = vmatpush1.msra.mxu0 0.0
        %7127 = vmatprep.subr.mxu0 0.0
        %7128 = vmatpush1.msra.mxu0 0.0
        %7129 = vmatprep.subr.mxu0 0.0
        %7130 = vmatpush1.msra.mxu0 0.0
        %7131 = vmatprep.subr.mxu0 0.0
        %7132 = vmatpush1.msra.mxu0 0.0
        %7133 = vmatprep.mubr.f32.mxu0 0.0
        %7134 = vmatmul.mubr.f32.gmra.mrb[0].mxu0 %v7067
        %v7135 = vpop.f32.mrb[0].mxu0
        %v7136 = vadd.f32 0.0, %v7135
        %v7137 = vpop.f32.mrb[0].mxu0
        %7138 = vdwg.mxu0
        %v7140 = vrot.slane %v7136, 6
        %v7142 = vadd.f32 %v6506, %v7140
        %v7143 = vxor.u32 %v7142, 2147483648
        %v7144 = vmul.f32 %v7143, 1.442695
        %v7145 = vpow.pop %v7144
        %v7146 = vadd.f32 %v7145, 1.0
        %v7147 = vrcp.pop %v7146
        %v7148 = vmul.f32 1.0, %v7147
        %v7149 = vadd.f32 %v7136, %v6588
        %v7151 = vrot.slane %v7149, 6
        %7152 = vrot.lane.b32.xlu0 %v7151, 96
        %v7153 = vpop.permute.xlu0 %7152
        %v7155 = vmul.f32 %v7148, %v7153
        %7157 = vrot.lane.b32.xlu0 %v7155, 32
        %v7158 = vpop.permute.xlu0 %7157
        %v7160 = vadd.f32 %v6506, %v7158
        %v7161 = vtanh.pop %v7160
        %v7163 = vrot.slane %v7161, 2
        %v7165 = vsub.f32 %v7063, %v7163
        %v7167 = vrot.slane %v7165, 6
        %7168 = vrot.lane.b32.xlu0 %v7167, 112
        %v7169 = vpop.permute.xlu0 %7168
        %v7171 = vmul.f32 %v7148, %v7169
        %7173 = vrot.lane.b32.xlu0 %v7171, 16
        %v7174 = vpop.permute.xlu0 %7173
        %v7176 = vadd.f32 %v7161, %v7174
        %v7178 = vrot.slane %v7176, 2
        %7179 = vrot.lane.b32.xlu0 %v7178, 96
        %v7180 = vpop.permute.xlu0 %7179
        %v7181 = vsel %vm392, %v7180, 0
        %7183 = vmatprep.subr.mxu0 0.0
        %7184 = vmatpush1.msra.mxu0 %v6417
        %7185 = vmatprep.subr.mxu0 0.0
        %7186 = vmatpush1.msra.mxu0 %v6418
        %7187 = vmatprep.subr.mxu0 0.0
        %7188 = vmatpush1.msra.mxu0 0.0
        %7189 = vmatprep.subr.mxu0 0.0
        %7190 = vmatpush1.msra.mxu0 0.0
        %7191 = vmatprep.subr.mxu0 0.0
        %7192 = vmatpush1.msra.mxu0 0.0
        %7193 = vmatprep.subr.mxu0 0.0
        %7194 = vmatpush1.msra.mxu0 0.0
        %7195 = vmatprep.subr.mxu0 0.0
        %7196 = vmatpush1.msra.mxu0 0.0
        %7197 = vmatprep.subr.mxu0 0.0
        %7198 = vmatpush1.msra.mxu0 0.0
        %7199 = vmatprep.subr.mxu0 0.0
        %7200 = vmatpush1.msra.mxu0 0.0
        %7201 = vmatprep.subr.mxu0 0.0
        %7202 = vmatpush1.msra.mxu0 0.0
        %7203 = vmatprep.subr.mxu0 0.0
        %7204 = vmatpush1.msra.mxu0 0.0
        %7205 = vmatprep.subr.mxu0 0.0
        %7206 = vmatpush1.msra.mxu0 0.0
        %7207 = vmatprep.subr.mxu0 0.0
        %7208 = vmatpush1.msra.mxu0 0.0
        %7209 = vmatprep.subr.mxu0 0.0
        %7210 = vmatpush1.msra.mxu0 0.0
        %7211 = vmatprep.subr.mxu0 0.0
        %7212 = vmatpush1.msra.mxu0 0.0
        %7213 = vmatprep.subr.mxu0 0.0
        %7214 = vmatpush1.msra.mxu0 0.0
        %7215 = vmatprep.subr.mxu0 0.0
        %7216 = vmatpush1.msra.mxu0 0.0
        %7217 = vmatprep.subr.mxu0 0.0
        %7218 = vmatpush1.msra.mxu0 0.0
        %7219 = vmatprep.subr.mxu0 0.0
        %7220 = vmatpush1.msra.mxu0 0.0
        %7221 = vmatprep.subr.mxu0 0.0
        %7222 = vmatpush1.msra.mxu0 0.0
        %7223 = vmatprep.subr.mxu0 0.0
        %7224 = vmatpush1.msra.mxu0 0.0
        %7225 = vmatprep.subr.mxu0 0.0
        %7226 = vmatpush1.msra.mxu0 0.0
        %7227 = vmatprep.subr.mxu0 0.0
        %7228 = vmatpush1.msra.mxu0 0.0
        %7229 = vmatprep.subr.mxu0 0.0
        %7230 = vmatpush1.msra.mxu0 0.0
        %7231 = vmatprep.subr.mxu0 0.0
        %7232 = vmatpush1.msra.mxu0 0.0
        %7233 = vmatprep.subr.mxu0 0.0
        %7234 = vmatpush1.msra.mxu0 0.0
        %7235 = vmatprep.subr.mxu0 0.0
        %7236 = vmatpush1.msra.mxu0 0.0
        %7237 = vmatprep.subr.mxu0 0.0
        %7238 = vmatpush1.msra.mxu0 0.0
        %7239 = vmatprep.subr.mxu0 0.0
        %7240 = vmatpush1.msra.mxu0 0.0
        %7241 = vmatprep.subr.mxu0 0.0
        %7242 = vmatpush1.msra.mxu0 0.0
        %7243 = vmatprep.subr.mxu0 0.0
        %7244 = vmatpush1.msra.mxu0 0.0
        %7245 = vmatprep.subr.mxu0 0.0
        %7246 = vmatpush1.msra.mxu0 0.0
        %7247 = vmatprep.mubr.f32.mxu0 0.0
        %7248 = vmatmul.mubr.f32.gmra.mrb[0].mxu0 %v7181
        %v7249 = vpop.f32.mrb[0].mxu0
        %v7250 = vadd.f32 0.0, %v7249
        %v7251 = vpop.f32.mrb[0].mxu0
        %7252 = vdwg.mxu0
        %v7254 = vrot.slane %v7250, 4
        %v7256 = vadd.f32 %v6506, %v7254
        %v7257 = vxor.u32 %v7256, 2147483648
        %v7258 = vmul.f32 %v7257, 1.442695
        %v7259 = vpow.pop %v7258
        %v7260 = vadd.f32 %v7259, 1.0
        %v7261 = vrcp.pop %v7260
        %v7262 = vmul.f32 1.0, %v7261
        %v7263 = vadd.f32 %v7250, %v6588
        %v7265 = vrot.slane %v7263, 4
        %7266 = vrot.lane.b32.xlu0 %v7265, 96
        %v7267 = vpop.permute.xlu0 %7266
        %v7269 = vmul.f32 %v7262, %v7267
        %7271 = vrot.lane.b32.xlu0 %v7269, 32
        %v7272 = vpop.permute.xlu0 %7271
        %v7274 = vadd.f32 %v6506, %v7272
        %v7275 = vtanh.pop %v7274
        %v7277 = vrot.slane %v7275, 2
        %v7279 = vsub.f32 %v7176, %v7277
        %v7281 = vrot.slane %v7279, 6
        %7282 = vrot.lane.b32.xlu0 %v7281, 112
        %v7283 = vpop.permute.xlu0 %7282
        %v7285 = vmul.f32 %v7262, %v7283
        %7287 = vrot.lane.b32.xlu0 %v7285, 16
        %v7288 = vpop.permute.xlu0 %7287
        %v7290 = vadd.f32 %v7275, %v7288
        %v7292 = vrot.slane %v7290, 4
        %7293 = vrot.lane.b32.xlu0 %v7292, 96
        %v7294 = vpop.permute.xlu0 %7293
        %v7295 = vsel %vm392, %v7294, 0
        %7297 = vmatprep.subr.mxu0 0.0
        %7298 = vmatpush1.msra.mxu0 %v6417
        %7299 = vmatprep.subr.mxu0 0.0
        %7300 = vmatpush1.msra.mxu0 %v6418
        %7301 = vmatprep.subr.mxu0 0.0
        %7302 = vmatpush1.msra.mxu0 0.0
        %7303 = vmatprep.subr.mxu0 0.0
        %7304 = vmatpush1.msra.mxu0 0.0
        %7305 = vmatprep.subr.mxu0 0.0
        %7306 = vmatpush1.msra.mxu0 0.0
        %7307 = vmatprep.subr.mxu0 0.0
        %7308 = vmatpush1.msra.mxu0 0.0
        %7309 = vmatprep.subr.mxu0 0.0
        %7310 = vmatpush1.msra.mxu0 0.0
        %7311 = vmatprep.subr.mxu0 0.0
        %7312 = vmatpush1.msra.mxu0 0.0
        %7313 = vmatprep.subr.mxu0 0.0
        %7314 = vmatpush1.msra.mxu0 0.0
        %7315 = vmatprep.subr.mxu0 0.0
        %7316 = vmatpush1.msra.mxu0 0.0
        %7317 = vmatprep.subr.mxu0 0.0
        %7318 = vmatpush1.msra.mxu0 0.0
        %7319 = vmatprep.subr.mxu0 0.0
        %7320 = vmatpush1.msra.mxu0 0.0
        %7321 = vmatprep.subr.mxu0 0.0
        %7322 = vmatpush1.msra.mxu0 0.0
        %7323 = vmatprep.subr.mxu0 0.0
        %7324 = vmatpush1.msra.mxu0 0.0
        %7325 = vmatprep.subr.mxu0 0.0
        %7326 = vmatpush1.msra.mxu0 0.0
        %7327 = vmatprep.subr.mxu0 0.0
        %7328 = vmatpush1.msra.mxu0 0.0
        %7329 = vmatprep.subr.mxu0 0.0
        %7330 = vmatpush1.msra.mxu0 0.0
        %7331 = vmatprep.subr.mxu0 0.0
        %7332 = vmatpush1.msra.mxu0 0.0
        %7333 = vmatprep.subr.mxu0 0.0
        %7334 = vmatpush1.msra.mxu0 0.0
        %7335 = vmatprep.subr.mxu0 0.0
        %7336 = vmatpush1.msra.mxu0 0.0
        %7337 = vmatprep.subr.mxu0 0.0
        %7338 = vmatpush1.msra.mxu0 0.0
        %7339 = vmatprep.subr.mxu0 0.0
        %7340 = vmatpush1.msra.mxu0 0.0
        %7341 = vmatprep.subr.mxu0 0.0
        %7342 = vmatpush1.msra.mxu0 0.0
        %7343 = vmatprep.subr.mxu0 0.0
        %7344 = vmatpush1.msra.mxu0 0.0
        %7345 = vmatprep.subr.mxu0 0.0
        %7346 = vmatpush1.msra.mxu0 0.0
        %7347 = vmatprep.subr.mxu0 0.0
        %7348 = vmatpush1.msra.mxu0 0.0
        %7349 = vmatprep.subr.mxu0 0.0
        %7350 = vmatpush1.msra.mxu0 0.0
        %7351 = vmatprep.subr.mxu0 0.0
        %7352 = vmatpush1.msra.mxu0 0.0
        %7353 = vmatprep.subr.mxu0 0.0
        %7354 = vmatpush1.msra.mxu0 0.0
        %7355 = vmatprep.subr.mxu0 0.0
        %7356 = vmatpush1.msra.mxu0 0.0
        %7357 = vmatprep.subr.mxu0 0.0
        %7358 = vmatpush1.msra.mxu0 0.0
        %7359 = vmatprep.subr.mxu0 0.0
        %7360 = vmatpush1.msra.mxu0 0.0
        %7361 = vmatprep.mubr.f32.mxu0 0.0
        %7362 = vmatmul.mubr.f32.gmra.mrb[0].mxu0 %v7295
        %v7363 = vpop.f32.mrb[0].mxu0
        %v7364 = vadd.f32 0.0, %v7363
        %v7365 = vpop.f32.mrb[0].mxu0
        %7366 = vdwg.mxu0
        %v7368 = vrot.slane %v7364, 2
        %v7370 = vadd.f32 %v6506, %v7368
        %v7371 = vxor.u32 %v7370, 2147483648
        %v7372 = vmul.f32 %v7371, 1.442695
        %v7373 = vpow.pop %v7372
        %v7374 = vadd.f32 %v7373, 1.0
        %v7375 = vrcp.pop %v7374
        %v7376 = vmul.f32 1.0, %v7375
        %v7377 = vadd.f32 %v7364, %v6588
        %v7379 = vrot.slane %v7377, 2
        %7380 = vrot.lane.b32.xlu0 %v7379, 96
        %v7381 = vpop.permute.xlu0 %7380
        %v7383 = vmul.f32 %v7376, %v7381
        %7385 = vrot.lane.b32.xlu0 %v7383, 32
        %v7386 = vpop.permute.xlu0 %7385
        %v7388 = vadd.f32 %v6506, %v7386
        %v7389 = vtanh.pop %v7388
        %v7391 = vrot.slane %v7389, 2
        %v7393 = vsub.f32 %v7290, %v7391
        %v7395 = vrot.slane %v7393, 6
        %7396 = vrot.lane.b32.xlu0 %v7395, 112
        %v7397 = vpop.permute.xlu0 %7396
        %v7399 = vmul.f32 %v7376, %v7397
        %7401 = vrot.lane.b32.xlu0 %v7399, 16
        %v7402 = vpop.permute.xlu0 %7401
        %v7404 = vadd.f32 %v7389, %v7402
        %v7405 = vsel %vm1414, %v6612, %v6725
        %v7406 = vsel %vm1416, %v7405, %v6839
        %v7407 = vsel %vm1418, %v7406, %v6953
        %v7408 = vsel %vm1414, %v7063, %v7176
        %v7409 = vsel %vm1416, %v7408, %v7290
        %v7410 = vsel %vm1418, %v7409, %v7404
        %s7411 = scalar_lea.vmem [#allocation2], 224
        %v7412 = vld [vmem:[%s7411] sm:$0xff]
        %v7413 = vld [vmem:[%s7411 + $0x8] sm:$0xff]
        %s7414 = scalar_lea.vmem [#allocation2], 240
        %v7415 = vld [vmem:[%s7414] sm:$0xff]
        %v7416 = vld [vmem:[%s7414 + $0x8] sm:$0xff]
        %v7417 = vld [vmem:[%s3 + $0x7] sm:$0x1]
        %v7418 = vlaneseq
        %v7419 = vshrl.u32 %v7418, 7
        %v7420 = vsub.s32 0, %v7419
        %v7421 = vrot.slane %v7417, %v7420
        %7424 = vrot.lane.b32.xlu0 %v7407, 96
        %v7425 = vpop.permute.xlu0 %7424
        %7426 = vrot.lane.b32.xlu0 %v7410, 96
        %v7427 = vpop.permute.xlu0 %7426
        %v7428 = vsel %vm392, %v7425, 0
        %v7430 = vsel %vm392, %v7427, 0
        %7432 = vmatprep.subr.mxu0 0.0
        %7433 = vmatpush1.msra.mxu0 %v7412
        %7434 = vmatprep.subr.mxu0 0.0
        %7435 = vmatpush1.msra.mxu0 %v7413
        %7436 = vmatprep.subr.mxu0 0.0
        %7437 = vmatpush1.msra.mxu0 0.0
        %7438 = vmatprep.subr.mxu0 0.0
        %7439 = vmatpush1.msra.mxu0 0.0
        %7440 = vmatprep.subr.mxu0 0.0
        %7441 = vmatpush1.msra.mxu0 0.0
        %7442 = vmatprep.subr.mxu0 0.0
        %7443 = vmatpush1.msra.mxu0 0.0
        %7444 = vmatprep.subr.mxu0 0.0
        %7445 = vmatpush1.msra.mxu0 0.0
        %7446 = vmatprep.subr.mxu0 0.0
        %7447 = vmatpush1.msra.mxu0 0.0
        %7448 = vmatprep.subr.mxu0 0.0
        %7449 = vmatpush1.msra.mxu0 0.0
        %7450 = vmatprep.subr.mxu0 0.0
        %7451 = vmatpush1.msra.mxu0 0.0
        %7452 = vmatprep.subr.mxu0 0.0
        %7453 = vmatpush1.msra.mxu0 0.0
        %7454 = vmatprep.subr.mxu0 0.0
        %7455 = vmatpush1.msra.mxu0 0.0
        %7456 = vmatprep.subr.mxu0 0.0
        %7457 = vmatpush1.msra.mxu0 0.0
        %7458 = vmatprep.subr.mxu0 0.0
        %7459 = vmatpush1.msra.mxu0 0.0
        %7460 = vmatprep.subr.mxu0 0.0
        %7461 = vmatpush1.msra.mxu0 0.0
        %7462 = vmatprep.subr.mxu0 0.0
        %7463 = vmatpush1.msra.mxu0 0.0
        %7464 = vmatprep.subr.mxu0 0.0
        %7465 = vmatpush1.msra.mxu0 0.0
        %7466 = vmatprep.subr.mxu0 0.0
        %7467 = vmatpush1.msra.mxu0 0.0
        %7468 = vmatprep.subr.mxu0 0.0
        %7469 = vmatpush1.msra.mxu0 0.0
        %7470 = vmatprep.subr.mxu0 0.0
        %7471 = vmatpush1.msra.mxu0 0.0
        %7472 = vmatprep.subr.mxu0 0.0
        %7473 = vmatpush1.msra.mxu0 0.0
        %7474 = vmatprep.subr.mxu0 0.0
        %7475 = vmatpush1.msra.mxu0 0.0
        %7476 = vmatprep.subr.mxu0 0.0
        %7477 = vmatpush1.msra.mxu0 0.0
        %7478 = vmatprep.subr.mxu0 0.0
        %7479 = vmatpush1.msra.mxu0 0.0
        %7480 = vmatprep.subr.mxu0 0.0
        %7481 = vmatpush1.msra.mxu0 0.0
        %7482 = vmatprep.subr.mxu0 0.0
        %7483 = vmatpush1.msra.mxu0 0.0
        %7484 = vmatprep.subr.mxu0 0.0
        %7485 = vmatpush1.msra.mxu0 0.0
        %7486 = vmatprep.subr.mxu0 0.0
        %7487 = vmatpush1.msra.mxu0 0.0
        %7488 = vmatprep.subr.mxu0 0.0
        %7489 = vmatpush1.msra.mxu0 0.0
        %7490 = vmatprep.subr.mxu0 0.0
        %7491 = vmatpush1.msra.mxu0 0.0
        %7492 = vmatprep.subr.mxu0 0.0
        %7493 = vmatpush1.msra.mxu0 0.0
        %7494 = vmatprep.subr.mxu0 0.0
        %7495 = vmatpush1.msra.mxu0 0.0
        %7496 = vmatprep.mubr.f32.mxu0 0.0
        %7497 = vmatmul.mubr.f32.gmra.mrb[0].mxu0 %v7428
        %v7498 = vpop.f32.mrb[0].mxu0
        %v7499 = vadd.f32 %v7421, %v7498
        %v7500 = vpop.f32.mrb[0].mxu0
        %7501 = vmatprep.mubr.f32.mxu0 0.0
        %7502 = vmatmul.mubr.f32.gmra.mrb[0].mxu0 %v7430
        %v7503 = vpop.f32.mrb[0].mxu0
        %v7504 = vadd.f32 %v7421, %v7503
        %v7505 = vpop.f32.mrb[0].mxu0
        %7506 = vdwg.mxu0
        %7507 = vmatprep.subr.mxu0 0.0
        %7508 = vmatpush1.msra.mxu0 %v7415
        %7509 = vmatprep.subr.mxu0 0.0
        %7510 = vmatpush1.msra.mxu0 %v7416
        %7511 = vmatprep.subr.mxu0 0.0
        %7512 = vmatpush1.msra.mxu0 0.0
        %7513 = vmatprep.subr.mxu0 0.0
        %7514 = vmatpush1.msra.mxu0 0.0
        %7515 = vmatprep.subr.mxu0 0.0
        %7516 = vmatpush1.msra.mxu0 0.0
        %7517 = vmatprep.subr.mxu0 0.0
        %7518 = vmatpush1.msra.mxu0 0.0
        %7519 = vmatprep.subr.mxu0 0.0
        %7520 = vmatpush1.msra.mxu0 0.0
        %7521 = vmatprep.subr.mxu0 0.0
        %7522 = vmatpush1.msra.mxu0 0.0
        %7523 = vmatprep.subr.mxu0 0.0
        %7524 = vmatpush1.msra.mxu0 0.0
        %7525 = vmatprep.subr.mxu0 0.0
        %7526 = vmatpush1.msra.mxu0 0.0
        %7527 = vmatprep.subr.mxu0 0.0
        %7528 = vmatpush1.msra.mxu0 0.0
        %7529 = vmatprep.subr.mxu0 0.0
        %7530 = vmatpush1.msra.mxu0 0.0
        %7531 = vmatprep.subr.mxu0 0.0
        %7532 = vmatpush1.msra.mxu0 0.0
        %7533 = vmatprep.subr.mxu0 0.0
        %7534 = vmatpush1.msra.mxu0 0.0
        %7535 = vmatprep.subr.mxu0 0.0
        %7536 = vmatpush1.msra.mxu0 0.0
        %7537 = vmatprep.subr.mxu0 0.0
        %7538 = vmatpush1.msra.mxu0 0.0
        %7539 = vmatprep.subr.mxu0 0.0
        %7540 = vmatpush1.msra.mxu0 0.0
        %7541 = vmatprep.subr.mxu0 0.0
        %7542 = vmatpush1.msra.mxu0 0.0
        %7543 = vmatprep.subr.mxu0 0.0
        %7544 = vmatpush1.msra.mxu0 0.0
        %7545 = vmatprep.subr.mxu0 0.0
        %7546 = vmatpush1.msra.mxu0 0.0
        %7547 = vmatprep.subr.mxu0 0.0
        %7548 = vmatpush1.msra.mxu0 0.0
        %7549 = vmatprep.subr.mxu0 0.0
        %7550 = vmatpush1.msra.mxu0 0.0
        %7551 = vmatprep.subr.mxu0 0.0
        %7552 = vmatpush1.msra.mxu0 0.0
        %7553 = vmatprep.subr.mxu0 0.0
        %7554 = vmatpush1.msra.mxu0 0.0
        %7555 = vmatprep.subr.mxu0 0.0
        %7556 = vmatpush1.msra.mxu0 0.0
        %7557 = vmatprep.subr.mxu0 0.0
        %7558 = vmatpush1.msra.mxu0 0.0
        %7559 = vmatprep.subr.mxu0 0.0
        %7560 = vmatpush1.msra.mxu0 0.0
        %7561 = vmatprep.subr.mxu0 0.0
        %7562 = vmatpush1.msra.mxu0 0.0
        %7563 = vmatprep.subr.mxu0 0.0
        %7564 = vmatpush1.msra.mxu0 0.0
        %7565 = vmatprep.subr.mxu0 0.0
        %7566 = vmatpush1.msra.mxu0 0.0
        %7567 = vmatprep.subr.mxu0 0.0
        %7568 = vmatpush1.msra.mxu0 0.0
        %7569 = vmatprep.subr.mxu0 0.0
        %7570 = vmatpush1.msra.mxu0 0.0
        %7571 = vmatprep.mubr.f32.mxu0 0.0
        %7572 = vmatmul.mubr.f32.gmra.mrb[0].mxu0 %v516
        %v7573 = vpop.f32.mrb[0].mxu0
        %v7574 = vadd.f32 0.0, %v7573
        %v7575 = vpop.f32.mrb[0].mxu0
        %7576 = vdwg.mxu0
        %v7577 = vadd.f32 %v7499, %v7574
        %v7578 = vxor.u32 %v7577, 2147483648
        %v7579 = vmul.f32 %v7578, 1.442695
        %v7580 = vpow.pop %v7579
        %v7581 = vadd.f32 %v7580, 1.0
        %v7582 = vrcp.pop %v7581
        %v7583 = vmul.f32 1.0, %v7582
        %7585 = vrot.lane.b32.xlu0 %v7421, 112
        %v7586 = vpop.permute.xlu0 %7585
        %v7588 = vadd.f32 %v7574, %v7586
        %7590 = vrot.lane.b32.xlu0 %v7588, 96
        %v7591 = vpop.permute.xlu0 %7590
        %v7593 = vmul.f32 %v7583, %v7591
        %7595 = vrot.lane.b32.xlu0 %v7593, 32
        %v7596 = vpop.permute.xlu0 %7595
        %v7598 = vadd.f32 %v7499, %v7596
        %v7599 = vtanh.pop %v7598
        %v7600 = vsub.f32 0.0, %v7599
        %7602 = vrot.lane.b32.xlu0 %v7600, 112
        %v7603 = vpop.permute.xlu0 %7602
        %v7605 = vmul.f32 %v7583, %v7603
        %7607 = vrot.lane.b32.xlu0 %v7605, 16
        %v7608 = vpop.permute.xlu0 %7607
        %v7610 = vadd.f32 %v7599, %v7608
        %7612 = vrot.lane.b32.xlu0 %v7610, 96
        %v7613 = vpop.permute.xlu0 %7612
        %v7614 = vsel %vm392, %v7613, 0
        %7616 = vmatprep.subr.mxu0 0.0
        %7617 = vmatpush1.msra.mxu0 %v7415
        %7618 = vmatprep.subr.mxu0 0.0
        %7619 = vmatpush1.msra.mxu0 %v7416
        %7620 = vmatprep.subr.mxu0 0.0
        %7621 = vmatpush1.msra.mxu0 0.0
        %7622 = vmatprep.subr.mxu0 0.0
        %7623 = vmatpush1.msra.mxu0 0.0
        %7624 = vmatprep.subr.mxu0 0.0
        %7625 = vmatpush1.msra.mxu0 0.0
        %7626 = vmatprep.subr.mxu0 0.0
        %7627 = vmatpush1.msra.mxu0 0.0
        %7628 = vmatprep.subr.mxu0 0.0
        %7629 = vmatpush1.msra.mxu0 0.0
        %7630 = vmatprep.subr.mxu0 0.0
        %7631 = vmatpush1.msra.mxu0 0.0
        %7632 = vmatprep.subr.mxu0 0.0
        %7633 = vmatpush1.msra.mxu0 0.0
        %7634 = vmatprep.subr.mxu0 0.0
        %7635 = vmatpush1.msra.mxu0 0.0
        %7636 = vmatprep.subr.mxu0 0.0
        %7637 = vmatpush1.msra.mxu0 0.0
        %7638 = vmatprep.subr.mxu0 0.0
        %7639 = vmatpush1.msra.mxu0 0.0
        %7640 = vmatprep.subr.mxu0 0.0
        %7641 = vmatpush1.msra.mxu0 0.0
        %7642 = vmatprep.subr.mxu0 0.0
        %7643 = vmatpush1.msra.mxu0 0.0
        %7644 = vmatprep.subr.mxu0 0.0
        %7645 = vmatpush1.msra.mxu0 0.0
        %7646 = vmatprep.subr.mxu0 0.0
        %7647 = vmatpush1.msra.mxu0 0.0
        %7648 = vmatprep.subr.mxu0 0.0
        %7649 = vmatpush1.msra.mxu0 0.0
        %7650 = vmatprep.subr.mxu0 0.0
        %7651 = vmatpush1.msra.mxu0 0.0
        %7652 = vmatprep.subr.mxu0 0.0
        %7653 = vmatpush1.msra.mxu0 0.0
        %7654 = vmatprep.subr.mxu0 0.0
        %7655 = vmatpush1.msra.mxu0 0.0
        %7656 = vmatprep.subr.mxu0 0.0
        %7657 = vmatpush1.msra.mxu0 0.0
        %7658 = vmatprep.subr.mxu0 0.0
        %7659 = vmatpush1.msra.mxu0 0.0
        %7660 = vmatprep.subr.mxu0 0.0
        %7661 = vmatpush1.msra.mxu0 0.0
        %7662 = vmatprep.subr.mxu0 0.0
        %7663 = vmatpush1.msra.mxu0 0.0
        %7664 = vmatprep.subr.mxu0 0.0
        %7665 = vmatpush1.msra.mxu0 0.0
        %7666 = vmatprep.subr.mxu0 0.0
        %7667 = vmatpush1.msra.mxu0 0.0
        %7668 = vmatprep.subr.mxu0 0.0
        %7669 = vmatpush1.msra.mxu0 0.0
        %7670 = vmatprep.subr.mxu0 0.0
        %7671 = vmatpush1.msra.mxu0 0.0
        %7672 = vmatprep.subr.mxu0 0.0
        %7673 = vmatpush1.msra.mxu0 0.0
        %7674 = vmatprep.subr.mxu0 0.0
        %7675 = vmatpush1.msra.mxu0 0.0
        %7676 = vmatprep.subr.mxu0 0.0
        %7677 = vmatpush1.msra.mxu0 0.0
        %7678 = vmatprep.subr.mxu0 0.0
        %7679 = vmatpush1.msra.mxu0 0.0
        %7680 = vmatprep.mubr.f32.mxu0 0.0
        %7681 = vmatmul.mubr.f32.gmra.mrb[0].mxu0 %v7614
        %v7682 = vpop.f32.mrb[0].mxu0
        %v7683 = vadd.f32 0.0, %v7682
        %v7684 = vpop.f32.mrb[0].mxu0
        %7685 = vdwg.mxu0
        %v7687 = vrot.slane %v7683, 6
        %v7689 = vadd.f32 %v7499, %v7687
        %v7690 = vxor.u32 %v7689, 2147483648
        %v7691 = vmul.f32 %v7690, 1.442695
        %v7692 = vpow.pop %v7691
        %v7693 = vadd.f32 %v7692, 1.0
        %v7694 = vrcp.pop %v7693
        %v7695 = vmul.f32 1.0, %v7694
        %v7696 = vadd.f32 %v7683, %v7586
        %v7698 = vrot.slane %v7696, 6
        %7699 = vrot.lane.b32.xlu0 %v7698, 96
        %v7700 = vpop.permute.xlu0 %7699
        %v7702 = vmul.f32 %v7695, %v7700
        %7704 = vrot.lane.b32.xlu0 %v7702, 32
        %v7705 = vpop.permute.xlu0 %7704
        %v7707 = vadd.f32 %v7499, %v7705
        %v7708 = vtanh.pop %v7707
        %v7710 = vrot.slane %v7708, 2
        %v7712 = vsub.f32 %v7610, %v7710
        %v7714 = vrot.slane %v7712, 6
        %7715 = vrot.lane.b32.xlu0 %v7714, 112
        %v7716 = vpop.permute.xlu0 %7715
        %v7718 = vmul.f32 %v7695, %v7716
        %7720 = vrot.lane.b32.xlu0 %v7718, 16
        %v7721 = vpop.permute.xlu0 %7720
        %v7723 = vadd.f32 %v7708, %v7721
        %v7725 = vrot.slane %v7723, 2
        %7726 = vrot.lane.b32.xlu0 %v7725, 96
        %v7727 = vpop.permute.xlu0 %7726
        %v7728 = vsel %vm392, %v7727, 0
        %7730 = vmatprep.subr.mxu0 0.0
        %7731 = vmatpush1.msra.mxu0 %v7415
        %7732 = vmatprep.subr.mxu0 0.0
        %7733 = vmatpush1.msra.mxu0 %v7416
        %7734 = vmatprep.subr.mxu0 0.0
        %7735 = vmatpush1.msra.mxu0 0.0
        %7736 = vmatprep.subr.mxu0 0.0
        %7737 = vmatpush1.msra.mxu0 0.0
        %7738 = vmatprep.subr.mxu0 0.0
        %7739 = vmatpush1.msra.mxu0 0.0
        %7740 = vmatprep.subr.mxu0 0.0
        %7741 = vmatpush1.msra.mxu0 0.0
        %7742 = vmatprep.subr.mxu0 0.0
        %7743 = vmatpush1.msra.mxu0 0.0
        %7744 = vmatprep.subr.mxu0 0.0
        %7745 = vmatpush1.msra.mxu0 0.0
        %7746 = vmatprep.subr.mxu0 0.0
        %7747 = vmatpush1.msra.mxu0 0.0
        %7748 = vmatprep.subr.mxu0 0.0
        %7749 = vmatpush1.msra.mxu0 0.0
        %7750 = vmatprep.subr.mxu0 0.0
        %7751 = vmatpush1.msra.mxu0 0.0
        %7752 = vmatprep.subr.mxu0 0.0
        %7753 = vmatpush1.msra.mxu0 0.0
        %7754 = vmatprep.subr.mxu0 0.0
        %7755 = vmatpush1.msra.mxu0 0.0
        %7756 = vmatprep.subr.mxu0 0.0
        %7757 = vmatpush1.msra.mxu0 0.0
        %7758 = vmatprep.subr.mxu0 0.0
        %7759 = vmatpush1.msra.mxu0 0.0
        %7760 = vmatprep.subr.mxu0 0.0
        %7761 = vmatpush1.msra.mxu0 0.0
        %7762 = vmatprep.subr.mxu0 0.0
        %7763 = vmatpush1.msra.mxu0 0.0
        %7764 = vmatprep.subr.mxu0 0.0
        %7765 = vmatpush1.msra.mxu0 0.0
        %7766 = vmatprep.subr.mxu0 0.0
        %7767 = vmatpush1.msra.mxu0 0.0
        %7768 = vmatprep.subr.mxu0 0.0
        %7769 = vmatpush1.msra.mxu0 0.0
        %7770 = vmatprep.subr.mxu0 0.0
        %7771 = vmatpush1.msra.mxu0 0.0
        %7772 = vmatprep.subr.mxu0 0.0
        %7773 = vmatpush1.msra.mxu0 0.0
        %7774 = vmatprep.subr.mxu0 0.0
        %7775 = vmatpush1.msra.mxu0 0.0
        %7776 = vmatprep.subr.mxu0 0.0
        %7777 = vmatpush1.msra.mxu0 0.0
        %7778 = vmatprep.subr.mxu0 0.0
        %7779 = vmatpush1.msra.mxu0 0.0
        %7780 = vmatprep.subr.mxu0 0.0
        %7781 = vmatpush1.msra.mxu0 0.0
        %7782 = vmatprep.subr.mxu0 0.0
        %7783 = vmatpush1.msra.mxu0 0.0
        %7784 = vmatprep.subr.mxu0 0.0
        %7785 = vmatpush1.msra.mxu0 0.0
        %7786 = vmatprep.subr.mxu0 0.0
        %7787 = vmatpush1.msra.mxu0 0.0
        %7788 = vmatprep.subr.mxu0 0.0
        %7789 = vmatpush1.msra.mxu0 0.0
        %7790 = vmatprep.subr.mxu0 0.0
        %7791 = vmatpush1.msra.mxu0 0.0
        %7792 = vmatprep.subr.mxu0 0.0
        %7793 = vmatpush1.msra.mxu0 0.0
        %7794 = vmatprep.mubr.f32.mxu0 0.0
        %7795 = vmatmul.mubr.f32.gmra.mrb[0].mxu0 %v7728
        %v7796 = vpop.f32.mrb[0].mxu0
        %v7797 = vadd.f32 0.0, %v7796
        %v7798 = vpop.f32.mrb[0].mxu0
        %7799 = vdwg.mxu0
        %v7801 = vrot.slane %v7797, 4
        %v7803 = vadd.f32 %v7499, %v7801
        %v7804 = vxor.u32 %v7803, 2147483648
        %v7805 = vmul.f32 %v7804, 1.442695
        %v7806 = vpow.pop %v7805
        %v7807 = vadd.f32 %v7806, 1.0
        %v7808 = vrcp.pop %v7807
        %v7809 = vmul.f32 1.0, %v7808
        %v7810 = vadd.f32 %v7797, %v7586
        %v7812 = vrot.slane %v7810, 4
        %7813 = vrot.lane.b32.xlu0 %v7812, 96
        %v7814 = vpop.permute.xlu0 %7813
        %v7816 = vmul.f32 %v7809, %v7814
        %7818 = vrot.lane.b32.xlu0 %v7816, 32
        %v7819 = vpop.permute.xlu0 %7818
        %v7821 = vadd.f32 %v7499, %v7819
        %v7822 = vtanh.pop %v7821
        %v7824 = vrot.slane %v7822, 2
        %v7826 = vsub.f32 %v7723, %v7824
        %v7828 = vrot.slane %v7826, 6
        %7829 = vrot.lane.b32.xlu0 %v7828, 112
        %v7830 = vpop.permute.xlu0 %7829
        %v7832 = vmul.f32 %v7809, %v7830
        %7834 = vrot.lane.b32.xlu0 %v7832, 16
        %v7835 = vpop.permute.xlu0 %7834
        %v7837 = vadd.f32 %v7822, %v7835
        %v7839 = vrot.slane %v7837, 4
        %7840 = vrot.lane.b32.xlu0 %v7839, 96
        %v7841 = vpop.permute.xlu0 %7840
        %v7842 = vsel %vm392, %v7841, 0
        %7844 = vmatprep.subr.mxu0 0.0
        %7845 = vmatpush1.msra.mxu0 %v7415
        %7846 = vmatprep.subr.mxu0 0.0
        %7847 = vmatpush1.msra.mxu0 %v7416
        %7848 = vmatprep.subr.mxu0 0.0
        %7849 = vmatpush1.msra.mxu0 0.0
        %7850 = vmatprep.subr.mxu0 0.0
        %7851 = vmatpush1.msra.mxu0 0.0
        %7852 = vmatprep.subr.mxu0 0.0
        %7853 = vmatpush1.msra.mxu0 0.0
        %7854 = vmatprep.subr.mxu0 0.0
        %7855 = vmatpush1.msra.mxu0 0.0
        %7856 = vmatprep.subr.mxu0 0.0
        %7857 = vmatpush1.msra.mxu0 0.0
        %7858 = vmatprep.subr.mxu0 0.0
        %7859 = vmatpush1.msra.mxu0 0.0
        %7860 = vmatprep.subr.mxu0 0.0
        %7861 = vmatpush1.msra.mxu0 0.0
        %7862 = vmatprep.subr.mxu0 0.0
        %7863 = vmatpush1.msra.mxu0 0.0
        %7864 = vmatprep.subr.mxu0 0.0
        %7865 = vmatpush1.msra.mxu0 0.0
        %7866 = vmatprep.subr.mxu0 0.0
        %7867 = vmatpush1.msra.mxu0 0.0
        %7868 = vmatprep.subr.mxu0 0.0
        %7869 = vmatpush1.msra.mxu0 0.0
        %7870 = vmatprep.subr.mxu0 0.0
        %7871 = vmatpush1.msra.mxu0 0.0
        %7872 = vmatprep.subr.mxu0 0.0
        %7873 = vmatpush1.msra.mxu0 0.0
        %7874 = vmatprep.subr.mxu0 0.0
        %7875 = vmatpush1.msra.mxu0 0.0
        %7876 = vmatprep.subr.mxu0 0.0
        %7877 = vmatpush1.msra.mxu0 0.0
        %7878 = vmatprep.subr.mxu0 0.0
        %7879 = vmatpush1.msra.mxu0 0.0
        %7880 = vmatprep.subr.mxu0 0.0
        %7881 = vmatpush1.msra.mxu0 0.0
        %7882 = vmatprep.subr.mxu0 0.0
        %7883 = vmatpush1.msra.mxu0 0.0
        %7884 = vmatprep.subr.mxu0 0.0
        %7885 = vmatpush1.msra.mxu0 0.0
        %7886 = vmatprep.subr.mxu0 0.0
        %7887 = vmatpush1.msra.mxu0 0.0
        %7888 = vmatprep.subr.mxu0 0.0
        %7889 = vmatpush1.msra.mxu0 0.0
        %7890 = vmatprep.subr.mxu0 0.0
        %7891 = vmatpush1.msra.mxu0 0.0
        %7892 = vmatprep.subr.mxu0 0.0
        %7893 = vmatpush1.msra.mxu0 0.0
        %7894 = vmatprep.subr.mxu0 0.0
        %7895 = vmatpush1.msra.mxu0 0.0
        %7896 = vmatprep.subr.mxu0 0.0
        %7897 = vmatpush1.msra.mxu0 0.0
        %7898 = vmatprep.subr.mxu0 0.0
        %7899 = vmatpush1.msra.mxu0 0.0
        %7900 = vmatprep.subr.mxu0 0.0
        %7901 = vmatpush1.msra.mxu0 0.0
        %7902 = vmatprep.subr.mxu0 0.0
        %7903 = vmatpush1.msra.mxu0 0.0
        %7904 = vmatprep.subr.mxu0 0.0
        %7905 = vmatpush1.msra.mxu0 0.0
        %7906 = vmatprep.subr.mxu0 0.0
        %7907 = vmatpush1.msra.mxu0 0.0
        %7908 = vmatprep.mubr.f32.mxu0 0.0
        %7909 = vmatmul.mubr.f32.gmra.mrb[0].mxu0 %v7842
        %v7910 = vpop.f32.mrb[0].mxu0
        %v7911 = vadd.f32 0.0, %v7910
        %v7912 = vpop.f32.mrb[0].mxu0
        %7913 = vdwg.mxu0
        %v7915 = vrot.slane %v7911, 2
        %v7917 = vadd.f32 %v7499, %v7915
        %v7918 = vxor.u32 %v7917, 2147483648
        %v7919 = vmul.f32 %v7918, 1.442695
        %v7920 = vpow.pop %v7919
        %v7921 = vadd.f32 %v7920, 1.0
        %v7922 = vrcp.pop %v7921
        %v7923 = vmul.f32 1.0, %v7922
        %v7924 = vadd.f32 %v7911, %v7586
        %v7926 = vrot.slane %v7924, 2
        %7927 = vrot.lane.b32.xlu0 %v7926, 96
        %v7928 = vpop.permute.xlu0 %7927
        %v7930 = vmul.f32 %v7923, %v7928
        %7932 = vrot.lane.b32.xlu0 %v7930, 32
        %v7933 = vpop.permute.xlu0 %7932
        %v7935 = vadd.f32 %v7499, %v7933
        %v7936 = vtanh.pop %v7935
        %v7938 = vrot.slane %v7936, 2
        %v7940 = vsub.f32 %v7837, %v7938
        %v7942 = vrot.slane %v7940, 6
        %7943 = vrot.lane.b32.xlu0 %v7942, 112
        %v7944 = vpop.permute.xlu0 %7943
        %v7946 = vmul.f32 %v7923, %v7944
        %7948 = vrot.lane.b32.xlu0 %v7946, 16
        %v7949 = vpop.permute.xlu0 %7948
        %v7951 = vadd.f32 %v7936, %v7949
        %v7953 = vrot.slane %v7951, 6
        %7954 = vrot.lane.b32.xlu0 %v7953, 96
        %v7955 = vpop.permute.xlu0 %7954
        %v7956 = vsel %vm392, %v7955, 0
        %7958 = vmatprep.subr.mxu0 0.0
        %7959 = vmatpush1.msra.mxu0 %v7415
        %7960 = vmatprep.subr.mxu0 0.0
        %7961 = vmatpush1.msra.mxu0 %v7416
        %7962 = vmatprep.subr.mxu0 0.0
        %7963 = vmatpush1.msra.mxu0 0.0
        %7964 = vmatprep.subr.mxu0 0.0
        %7965 = vmatpush1.msra.mxu0 0.0
        %7966 = vmatprep.subr.mxu0 0.0
        %7967 = vmatpush1.msra.mxu0 0.0
        %7968 = vmatprep.subr.mxu0 0.0
        %7969 = vmatpush1.msra.mxu0 0.0
        %7970 = vmatprep.subr.mxu0 0.0
        %7971 = vmatpush1.msra.mxu0 0.0
        %7972 = vmatprep.subr.mxu0 0.0
        %7973 = vmatpush1.msra.mxu0 0.0
        %7974 = vmatprep.subr.mxu0 0.0
        %7975 = vmatpush1.msra.mxu0 0.0
        %7976 = vmatprep.subr.mxu0 0.0
        %7977 = vmatpush1.msra.mxu0 0.0
        %7978 = vmatprep.subr.mxu0 0.0
        %7979 = vmatpush1.msra.mxu0 0.0
        %7980 = vmatprep.subr.mxu0 0.0
        %7981 = vmatpush1.msra.mxu0 0.0
        %7982 = vmatprep.subr.mxu0 0.0
        %7983 = vmatpush1.msra.mxu0 0.0
        %7984 = vmatprep.subr.mxu0 0.0
        %7985 = vmatpush1.msra.mxu0 0.0
        %7986 = vmatprep.subr.mxu0 0.0
        %7987 = vmatpush1.msra.mxu0 0.0
        %7988 = vmatprep.subr.mxu0 0.0
        %7989 = vmatpush1.msra.mxu0 0.0
        %7990 = vmatprep.subr.mxu0 0.0
        %7991 = vmatpush1.msra.mxu0 0.0
        %7992 = vmatprep.subr.mxu0 0.0
        %7993 = vmatpush1.msra.mxu0 0.0
        %7994 = vmatprep.subr.mxu0 0.0
        %7995 = vmatpush1.msra.mxu0 0.0
        %7996 = vmatprep.subr.mxu0 0.0
        %7997 = vmatpush1.msra.mxu0 0.0
        %7998 = vmatprep.subr.mxu0 0.0
        %7999 = vmatpush1.msra.mxu0 0.0
        %8000 = vmatprep.subr.mxu0 0.0
        %8001 = vmatpush1.msra.mxu0 0.0
        %8002 = vmatprep.subr.mxu0 0.0
        %8003 = vmatpush1.msra.mxu0 0.0
        %8004 = vmatprep.subr.mxu0 0.0
        %8005 = vmatpush1.msra.mxu0 0.0
        %8006 = vmatprep.subr.mxu0 0.0
        %8007 = vmatpush1.msra.mxu0 0.0
        %8008 = vmatprep.subr.mxu0 0.0
        %8009 = vmatpush1.msra.mxu0 0.0
        %8010 = vmatprep.subr.mxu0 0.0
        %8011 = vmatpush1.msra.mxu0 0.0
        %8012 = vmatprep.subr.mxu0 0.0
        %8013 = vmatpush1.msra.mxu0 0.0
        %8014 = vmatprep.subr.mxu0 0.0
        %8015 = vmatpush1.msra.mxu0 0.0
        %8016 = vmatprep.subr.mxu0 0.0
        %8017 = vmatpush1.msra.mxu0 0.0
        %8018 = vmatprep.subr.mxu0 0.0
        %8019 = vmatpush1.msra.mxu0 0.0
        %8020 = vmatprep.subr.mxu0 0.0
        %8021 = vmatpush1.msra.mxu0 0.0
        %8022 = vmatprep.mubr.f32.mxu0 0.0
        %8023 = vmatmul.mubr.f32.gmra.mrb[0].mxu0 %v7956
        %v8024 = vpop.f32.mrb[0].mxu0
        %v8025 = vadd.f32 0.0, %v8024
        %v8026 = vpop.f32.mrb[0].mxu0
        %8027 = vdwg.mxu0
        %v8028 = vadd.f32 %v7504, %v8025
        %v8029 = vxor.u32 %v8028, 2147483648
        %v8030 = vmul.f32 %v8029, 1.442695
        %v8031 = vpow.pop %v8030
        %v8032 = vadd.f32 %v8031, 1.0
        %v8033 = vrcp.pop %v8032
        %v8034 = vmul.f32 1.0, %v8033
        %v8035 = vadd.f32 %v8025, %v7586
        %8037 = vrot.lane.b32.xlu0 %v8035, 96
        %v8038 = vpop.permute.xlu0 %8037
        %v8040 = vmul.f32 %v8034, %v8038
        %8042 = vrot.lane.b32.xlu0 %v8040, 32
        %v8043 = vpop.permute.xlu0 %8042
        %v8045 = vadd.f32 %v7504, %v8043
        %v8046 = vtanh.pop %v8045
        %v8048 = vrot.slane %v8046, 2
        %v8050 = vsub.f32 %v7951, %v8048
        %v8052 = vrot.slane %v8050, 6
        %8053 = vrot.lane.b32.xlu0 %v8052, 112
        %v8054 = vpop.permute.xlu0 %8053
        %v8056 = vmul.f32 %v8034, %v8054
        %8058 = vrot.lane.b32.xlu0 %v8056, 16
        %v8059 = vpop.permute.xlu0 %8058
        %v8061 = vadd.f32 %v8046, %v8059
        %8063 = vrot.lane.b32.xlu0 %v8061, 96
        %v8064 = vpop.permute.xlu0 %8063
        %v8065 = vsel %vm392, %v8064, 0
        %8067 = vmatprep.subr.mxu0 0.0
        %8068 = vmatpush1.msra.mxu0 %v7415
        %8069 = vmatprep.subr.mxu0 0.0
        %8070 = vmatpush1.msra.mxu0 %v7416
        %8071 = vmatprep.subr.mxu0 0.0
        %8072 = vmatpush1.msra.mxu0 0.0
        %8073 = vmatprep.subr.mxu0 0.0
        %8074 = vmatpush1.msra.mxu0 0.0
        %8075 = vmatprep.subr.mxu0 0.0
        %8076 = vmatpush1.msra.mxu0 0.0
        %8077 = vmatprep.subr.mxu0 0.0
        %8078 = vmatpush1.msra.mxu0 0.0
        %8079 = vmatprep.subr.mxu0 0.0
        %8080 = vmatpush1.msra.mxu0 0.0
        %8081 = vmatprep.subr.mxu0 0.0
        %8082 = vmatpush1.msra.mxu0 0.0
        %8083 = vmatprep.subr.mxu0 0.0
        %8084 = vmatpush1.msra.mxu0 0.0
        %8085 = vmatprep.subr.mxu0 0.0
        %8086 = vmatpush1.msra.mxu0 0.0
        %8087 = vmatprep.subr.mxu0 0.0
        %8088 = vmatpush1.msra.mxu0 0.0
        %8089 = vmatprep.subr.mxu0 0.0
        %8090 = vmatpush1.msra.mxu0 0.0
        %8091 = vmatprep.subr.mxu0 0.0
        %8092 = vmatpush1.msra.mxu0 0.0
        %8093 = vmatprep.subr.mxu0 0.0
        %8094 = vmatpush1.msra.mxu0 0.0
        %8095 = vmatprep.subr.mxu0 0.0
        %8096 = vmatpush1.msra.mxu0 0.0
        %8097 = vmatprep.subr.mxu0 0.0
        %8098 = vmatpush1.msra.mxu0 0.0
        %8099 = vmatprep.subr.mxu0 0.0
        %8100 = vmatpush1.msra.mxu0 0.0
        %8101 = vmatprep.subr.mxu0 0.0
        %8102 = vmatpush1.msra.mxu0 0.0
        %8103 = vmatprep.subr.mxu0 0.0
        %8104 = vmatpush1.msra.mxu0 0.0
        %8105 = vmatprep.subr.mxu0 0.0
        %8106 = vmatpush1.msra.mxu0 0.0
        %8107 = vmatprep.subr.mxu0 0.0
        %8108 = vmatpush1.msra.mxu0 0.0
        %8109 = vmatprep.subr.mxu0 0.0
        %8110 = vmatpush1.msra.mxu0 0.0
        %8111 = vmatprep.subr.mxu0 0.0
        %8112 = vmatpush1.msra.mxu0 0.0
        %8113 = vmatprep.subr.mxu0 0.0
        %8114 = vmatpush1.msra.mxu0 0.0
        %8115 = vmatprep.subr.mxu0 0.0
        %8116 = vmatpush1.msra.mxu0 0.0
        %8117 = vmatprep.subr.mxu0 0.0
        %8118 = vmatpush1.msra.mxu0 0.0
        %8119 = vmatprep.subr.mxu0 0.0
        %8120 = vmatpush1.msra.mxu0 0.0
        %8121 = vmatprep.subr.mxu0 0.0
        %8122 = vmatpush1.msra.mxu0 0.0
        %8123 = vmatprep.subr.mxu0 0.0
        %8124 = vmatpush1.msra.mxu0 0.0
        %8125 = vmatprep.subr.mxu0 0.0
        %8126 = vmatpush1.msra.mxu0 0.0
        %8127 = vmatprep.subr.mxu0 0.0
        %8128 = vmatpush1.msra.mxu0 0.0
        %8129 = vmatprep.subr.mxu0 0.0
        %8130 = vmatpush1.msra.mxu0 0.0
        %8131 = vmatprep.mubr.f32.mxu0 0.0
        %8132 = vmatmul.mubr.f32.gmra.mrb[0].mxu0 %v8065
        %v8133 = vpop.f32.mrb[0].mxu0
        %v8134 = vadd.f32 0.0, %v8133
        %v8135 = vpop.f32.mrb[0].mxu0
        %8136 = vdwg.mxu0
        %v8138 = vrot.slane %v8134, 6
        %v8140 = vadd.f32 %v7504, %v8138
        %v8141 = vxor.u32 %v8140, 2147483648
        %v8142 = vmul.f32 %v8141, 1.442695
        %v8143 = vpow.pop %v8142
        %v8144 = vadd.f32 %v8143, 1.0
        %v8145 = vrcp.pop %v8144
        %v8146 = vmul.f32 1.0, %v8145
        %v8147 = vadd.f32 %v8134, %v7586
        %v8149 = vrot.slane %v8147, 6
        %8150 = vrot.lane.b32.xlu0 %v8149, 96
        %v8151 = vpop.permute.xlu0 %8150
        %v8153 = vmul.f32 %v8146, %v8151
        %8155 = vrot.lane.b32.xlu0 %v8153, 32
        %v8156 = vpop.permute.xlu0 %8155
        %v8158 = vadd.f32 %v7504, %v8156
        %v8159 = vtanh.pop %v8158
        %v8161 = vrot.slane %v8159, 2
        %v8163 = vsub.f32 %v8061, %v8161
        %v8165 = vrot.slane %v8163, 6
        %8166 = vrot.lane.b32.xlu0 %v8165, 112
        %v8167 = vpop.permute.xlu0 %8166
        %v8169 = vmul.f32 %v8146, %v8167
        %8171 = vrot.lane.b32.xlu0 %v8169, 16
        %v8172 = vpop.permute.xlu0 %8171
        %v8174 = vadd.f32 %v8159, %v8172
        %v8176 = vrot.slane %v8174, 2
        %8177 = vrot.lane.b32.xlu0 %v8176, 96
        %v8178 = vpop.permute.xlu0 %8177
        %v8179 = vsel %vm392, %v8178, 0
        %8181 = vmatprep.subr.mxu0 0.0
        %8182 = vmatpush1.msra.mxu0 %v7415
        %8183 = vmatprep.subr.mxu0 0.0
        %8184 = vmatpush1.msra.mxu0 %v7416
        %8185 = vmatprep.subr.mxu0 0.0
        %8186 = vmatpush1.msra.mxu0 0.0
        %8187 = vmatprep.subr.mxu0 0.0
        %8188 = vmatpush1.msra.mxu0 0.0
        %8189 = vmatprep.subr.mxu0 0.0
        %8190 = vmatpush1.msra.mxu0 0.0
        %8191 = vmatprep.subr.mxu0 0.0
        %8192 = vmatpush1.msra.mxu0 0.0
        %8193 = vmatprep.subr.mxu0 0.0
        %8194 = vmatpush1.msra.mxu0 0.0
        %8195 = vmatprep.subr.mxu0 0.0
        %8196 = vmatpush1.msra.mxu0 0.0
        %8197 = vmatprep.subr.mxu0 0.0
        %8198 = vmatpush1.msra.mxu0 0.0
        %8199 = vmatprep.subr.mxu0 0.0
        %8200 = vmatpush1.msra.mxu0 0.0
        %8201 = vmatprep.subr.mxu0 0.0
        %8202 = vmatpush1.msra.mxu0 0.0
        %8203 = vmatprep.subr.mxu0 0.0
        %8204 = vmatpush1.msra.mxu0 0.0
        %8205 = vmatprep.subr.mxu0 0.0
        %8206 = vmatpush1.msra.mxu0 0.0
        %8207 = vmatprep.subr.mxu0 0.0
        %8208 = vmatpush1.msra.mxu0 0.0
        %8209 = vmatprep.subr.mxu0 0.0
        %8210 = vmatpush1.msra.mxu0 0.0
        %8211 = vmatprep.subr.mxu0 0.0
        %8212 = vmatpush1.msra.mxu0 0.0
        %8213 = vmatprep.subr.mxu0 0.0
        %8214 = vmatpush1.msra.mxu0 0.0
        %8215 = vmatprep.subr.mxu0 0.0
        %8216 = vmatpush1.msra.mxu0 0.0
        %8217 = vmatprep.subr.mxu0 0.0
        %8218 = vmatpush1.msra.mxu0 0.0
        %8219 = vmatprep.subr.mxu0 0.0
        %8220 = vmatpush1.msra.mxu0 0.0
        %8221 = vmatprep.subr.mxu0 0.0
        %8222 = vmatpush1.msra.mxu0 0.0
        %8223 = vmatprep.subr.mxu0 0.0
        %8224 = vmatpush1.msra.mxu0 0.0
        %8225 = vmatprep.subr.mxu0 0.0
        %8226 = vmatpush1.msra.mxu0 0.0
        %8227 = vmatprep.subr.mxu0 0.0
        %8228 = vmatpush1.msra.mxu0 0.0
        %8229 = vmatprep.subr.mxu0 0.0
        %8230 = vmatpush1.msra.mxu0 0.0
        %8231 = vmatprep.subr.mxu0 0.0
        %8232 = vmatpush1.msra.mxu0 0.0
        %8233 = vmatprep.subr.mxu0 0.0
        %8234 = vmatpush1.msra.mxu0 0.0
        %8235 = vmatprep.subr.mxu0 0.0
        %8236 = vmatpush1.msra.mxu0 0.0
        %8237 = vmatprep.subr.mxu0 0.0
        %8238 = vmatpush1.msra.mxu0 0.0
        %8239 = vmatprep.subr.mxu0 0.0
        %8240 = vmatpush1.msra.mxu0 0.0
        %8241 = vmatprep.subr.mxu0 0.0
        %8242 = vmatpush1.msra.mxu0 0.0
        %8243 = vmatprep.subr.mxu0 0.0
        %8244 = vmatpush1.msra.mxu0 0.0
        %8245 = vmatprep.mubr.f32.mxu0 0.0
        %8246 = vmatmul.mubr.f32.gmra.mrb[0].mxu0 %v8179
        %v8247 = vpop.f32.mrb[0].mxu0
        %v8248 = vadd.f32 0.0, %v8247
        %v8249 = vpop.f32.mrb[0].mxu0
        %8250 = vdwg.mxu0
        %v8252 = vrot.slane %v8248, 4
        %v8254 = vadd.f32 %v7504, %v8252
        %v8255 = vxor.u32 %v8254, 2147483648
        %v8256 = vmul.f32 %v8255, 1.442695
        %v8257 = vpow.pop %v8256
        %v8258 = vadd.f32 %v8257, 1.0
        %v8259 = vrcp.pop %v8258
        %v8260 = vmul.f32 1.0, %v8259
        %v8261 = vadd.f32 %v8248, %v7586
        %v8263 = vrot.slane %v8261, 4
        %8264 = vrot.lane.b32.xlu0 %v8263, 96
        %v8265 = vpop.permute.xlu0 %8264
        %v8267 = vmul.f32 %v8260, %v8265
        %8269 = vrot.lane.b32.xlu0 %v8267, 32
        %v8270 = vpop.permute.xlu0 %8269
        %v8272 = vadd.f32 %v7504, %v8270
        %v8273 = vtanh.pop %v8272
        %v8275 = vrot.slane %v8273, 2
        %v8277 = vsub.f32 %v8174, %v8275
        %v8279 = vrot.slane %v8277, 6
        %8280 = vrot.lane.b32.xlu0 %v8279, 112
        %v8281 = vpop.permute.xlu0 %8280
        %v8283 = vmul.f32 %v8260, %v8281
        %8285 = vrot.lane.b32.xlu0 %v8283, 16
        %v8286 = vpop.permute.xlu0 %8285
        %v8288 = vadd.f32 %v8273, %v8286
        %v8290 = vrot.slane %v8288, 4
        %8291 = vrot.lane.b32.xlu0 %v8290, 96
        %v8292 = vpop.permute.xlu0 %8291
        %v8293 = vsel %vm392, %v8292, 0
        %8295 = vmatprep.subr.mxu0 0.0
        %8296 = vmatpush1.msra.mxu0 %v7415
        %8297 = vmatprep.subr.mxu0 0.0
        %8298 = vmatpush1.msra.mxu0 %v7416
        %8299 = vmatprep.subr.mxu0 0.0
        %8300 = vmatpush1.msra.mxu0 0.0
        %8301 = vmatprep.subr.mxu0 0.0
        %8302 = vmatpush1.msra.mxu0 0.0
        %8303 = vmatprep.subr.mxu0 0.0
        %8304 = vmatpush1.msra.mxu0 0.0
        %8305 = vmatprep.subr.mxu0 0.0
        %8306 = vmatpush1.msra.mxu0 0.0
        %8307 = vmatprep.subr.mxu0 0.0
        %8308 = vmatpush1.msra.mxu0 0.0
        %8309 = vmatprep.subr.mxu0 0.0
        %8310 = vmatpush1.msra.mxu0 0.0
        %8311 = vmatprep.subr.mxu0 0.0
        %8312 = vmatpush1.msra.mxu0 0.0
        %8313 = vmatprep.subr.mxu0 0.0
        %8314 = vmatpush1.msra.mxu0 0.0
        %8315 = vmatprep.subr.mxu0 0.0
        %8316 = vmatpush1.msra.mxu0 0.0
        %8317 = vmatprep.subr.mxu0 0.0
        %8318 = vmatpush1.msra.mxu0 0.0
        %8319 = vmatprep.subr.mxu0 0.0
        %8320 = vmatpush1.msra.mxu0 0.0
        %8321 = vmatprep.subr.mxu0 0.0
        %8322 = vmatpush1.msra.mxu0 0.0
        %8323 = vmatprep.subr.mxu0 0.0
        %8324 = vmatpush1.msra.mxu0 0.0
        %8325 = vmatprep.subr.mxu0 0.0
        %8326 = vmatpush1.msra.mxu0 0.0
        %8327 = vmatprep.subr.mxu0 0.0
        %8328 = vmatpush1.msra.mxu0 0.0
        %8329 = vmatprep.subr.mxu0 0.0
        %8330 = vmatpush1.msra.mxu0 0.0
        %8331 = vmatprep.subr.mxu0 0.0
        %8332 = vmatpush1.msra.mxu0 0.0
        %8333 = vmatprep.subr.mxu0 0.0
        %8334 = vmatpush1.msra.mxu0 0.0
        %8335 = vmatprep.subr.mxu0 0.0
        %8336 = vmatpush1.msra.mxu0 0.0
        %8337 = vmatprep.subr.mxu0 0.0
        %8338 = vmatpush1.msra.mxu0 0.0
        %8339 = vmatprep.subr.mxu0 0.0
        %8340 = vmatpush1.msra.mxu0 0.0
        %8341 = vmatprep.subr.mxu0 0.0
        %8342 = vmatpush1.msra.mxu0 0.0
        %8343 = vmatprep.subr.mxu0 0.0
        %8344 = vmatpush1.msra.mxu0 0.0
        %8345 = vmatprep.subr.mxu0 0.0
        %8346 = vmatpush1.msra.mxu0 0.0
        %8347 = vmatprep.subr.mxu0 0.0
        %8348 = vmatpush1.msra.mxu0 0.0
        %8349 = vmatprep.subr.mxu0 0.0
        %8350 = vmatpush1.msra.mxu0 0.0
        %8351 = vmatprep.subr.mxu0 0.0
        %8352 = vmatpush1.msra.mxu0 0.0
        %8353 = vmatprep.subr.mxu0 0.0
        %8354 = vmatpush1.msra.mxu0 0.0
        %8355 = vmatprep.subr.mxu0 0.0
        %8356 = vmatpush1.msra.mxu0 0.0
        %8357 = vmatprep.subr.mxu0 0.0
        %8358 = vmatpush1.msra.mxu0 0.0
        %8359 = vmatprep.mubr.f32.mxu0 0.0
        %8360 = vmatmul.mubr.f32.gmra.mrb[0].mxu0 %v8293
        %v8361 = vpop.f32.mrb[0].mxu0
        %v8362 = vadd.f32 0.0, %v8361
        %v8363 = vpop.f32.mrb[0].mxu0
        %8364 = vdwg.mxu0
        %v8366 = vrot.slane %v8362, 2
        %v8368 = vadd.f32 %v7504, %v8366
        %v8369 = vxor.u32 %v8368, 2147483648
        %v8370 = vmul.f32 %v8369, 1.442695
        %v8371 = vpow.pop %v8370
        %v8372 = vadd.f32 %v8371, 1.0
        %v8373 = vrcp.pop %v8372
        %v8374 = vmul.f32 1.0, %v8373
        %v8375 = vadd.f32 %v8362, %v7586
        %v8377 = vrot.slane %v8375, 2
        %8378 = vrot.lane.b32.xlu0 %v8377, 96
        %v8379 = vpop.permute.xlu0 %8378
        %v8381 = vmul.f32 %v8374, %v8379
        %8383 = vrot.lane.b32.xlu0 %v8381, 32
        %v8384 = vpop.permute.xlu0 %8383
        %v8386 = vadd.f32 %v7504, %v8384
        %v8387 = vtanh.pop %v8386
        %v8389 = vrot.slane %v8387, 2
        %v8391 = vsub.f32 %v8288, %v8389
        %v8393 = vrot.slane %v8391, 6
        %8394 = vrot.lane.b32.xlu0 %v8393, 112
        %v8395 = vpop.permute.xlu0 %8394
        %v8397 = vmul.f32 %v8374, %v8395
        %8399 = vrot.lane.b32.xlu0 %v8397, 16
        %v8400 = vpop.permute.xlu0 %8399
        %v8402 = vadd.f32 %v8387, %v8400
        %v8403 = vsel %vm1414, %v7610, %v7723
        %v8404 = vsel %vm1416, %v8403, %v7837
        %v8405 = vsel %vm1418, %v8404, %v7951
        %v8406 = vsel %vm1414, %v8061, %v8174
        %v8407 = vsel %vm1416, %v8406, %v8288
        %v8408 = vsel %vm1418, %v8407, %v8402
        %v8409 = vxor.u32 %v8405, 2147483648
        %v8410 = vxor.u32 %v8408, 2147483648
        %v8411 = vmul.f32 %v8409, 1.442695
        %v8412 = vpow.pop %v8411
        %v8413 = vmul.f32 %v8410, 1.442695
        %v8414 = vpow.pop %v8413
        %v8415 = vadd.f32 %v8412, 1.0
        %v8416 = vadd.f32 %v8414, 1.0
        %v8417 = vrcp.pop %v8415
        %v8418 = vmul.f32 1.0, %v8417
        %v8419 = vrcp.pop %v8416
        %v8420 = vmul.f32 1.0, %v8419
        %v8421 = vxor.u32 %v422, 2147483648
        %v8422 = vxor.u32 %v423, 2147483648
        %v8423 = vmul.f32 %v8421, 1.442695
        %v8424 = vpow.pop %v8423
        %v8425 = vmul.f32 %v8422, 1.442695
        %v8426 = vpow.pop %v8425
        %v8427 = vadd.f32 %v8424, 1.0
        %v8428 = vadd.f32 %v8426, 1.0
        %v8429 = vrcp.pop %v8427
        %v8430 = vmul.f32 1.0, %v8429
        %v8431 = vrcp.pop %v8428
        %v8432 = vmul.f32 1.0, %v8431
        %8435 = vrot.lane.b32.xlu0 %v8430, 32
        %v8436 = vpop.permute.xlu0 %8435
        %8437 = vrot.lane.b32.xlu0 %v8432, 32
        %v8438 = vpop.permute.xlu0 %8437
        %v8441 = vadd.f32 %v8418, %v8436
        %v8442 = vadd.f32 %v8420, %v8438
        %8445 = vrot.lane.b32.xlu0 %v8441, 96
        %v8446 = vpop.permute.xlu0 %8445
        %8447 = vrot.lane.b32.xlu0 %v8442, 96
        %v8448 = vpop.permute.xlu0 %8447
        %v8451 = vmul.f32 %v422, %v8446
        %v8452 = vmul.f32 %v423, %v8448
        %v8453 = vld [vmem:[%s4] sm:$0xff]
        %v8454 = vld [vmem:[%s4 + $0x8] sm:$0xff]
        %v8455 = vlaneseq
        %v8456 = vshrl.u32 %v8455, 7
        %v8457 = vsub.s32 0, %v8456
        %v8458 = vrot.slane %v297, %v8457
        %v8460 = vsel %vm392, %v8451, 0
        %v8463 = vsel %vm392, %v8452, 0
        %8465 = vmatprep.subr.mxu0 0.0
        %8466 = vmatpush1.msra.mxu0 %v8453
        %8467 = vmatprep.subr.mxu0 0.0
        %8468 = vmatpush1.msra.mxu0 %v8454
        %8469 = vmatprep.subr.mxu0 0.0
        %8470 = vmatpush1.msra.mxu0 0.0
        %8471 = vmatprep.subr.mxu0 0.0
        %8472 = vmatpush1.msra.mxu0 0.0
        %8473 = vmatprep.subr.mxu0 0.0
        %8474 = vmatpush1.msra.mxu0 0.0
        %8475 = vmatprep.subr.mxu0 0.0
        %8476 = vmatpush1.msra.mxu0 0.0
        %8477 = vmatprep.subr.mxu0 0.0
        %8478 = vmatpush1.msra.mxu0 0.0
        %8479 = vmatprep.subr.mxu0 0.0
        %8480 = vmatpush1.msra.mxu0 0.0
        %8481 = vmatprep.subr.mxu0 0.0
        %8482 = vmatpush1.msra.mxu0 0.0
        %8483 = vmatprep.subr.mxu0 0.0
        %8484 = vmatpush1.msra.mxu0 0.0
        %8485 = vmatprep.subr.mxu0 0.0
        %8486 = vmatpush1.msra.mxu0 0.0
        %8487 = vmatprep.subr.mxu0 0.0
        %8488 = vmatpush1.msra.mxu0 0.0
        %8489 = vmatprep.subr.mxu0 0.0
        %8490 = vmatpush1.msra.mxu0 0.0
        %8491 = vmatprep.subr.mxu0 0.0
        %8492 = vmatpush1.msra.mxu0 0.0
        %8493 = vmatprep.subr.mxu0 0.0
        %8494 = vmatpush1.msra.mxu0 0.0
        %8495 = vmatprep.subr.mxu0 0.0
        %8496 = vmatpush1.msra.mxu0 0.0
        %8497 = vmatprep.subr.mxu0 0.0
        %8498 = vmatpush1.msra.mxu0 0.0
        %8499 = vmatprep.subr.mxu0 0.0
        %8500 = vmatpush1.msra.mxu0 0.0
        %8501 = vmatprep.subr.mxu0 0.0
        %8502 = vmatpush1.msra.mxu0 0.0
        %8503 = vmatprep.subr.mxu0 0.0
        %8504 = vmatpush1.msra.mxu0 0.0
        %8505 = vmatprep.subr.mxu0 0.0
        %8506 = vmatpush1.msra.mxu0 0.0
        %8507 = vmatprep.subr.mxu0 0.0
        %8508 = vmatpush1.msra.mxu0 0.0
        %8509 = vmatprep.subr.mxu0 0.0
        %8510 = vmatpush1.msra.mxu0 0.0
        %8511 = vmatprep.subr.mxu0 0.0
        %8512 = vmatpush1.msra.mxu0 0.0
        %8513 = vmatprep.subr.mxu0 0.0
        %8514 = vmatpush1.msra.mxu0 0.0
        %8515 = vmatprep.subr.mxu0 0.0
        %8516 = vmatpush1.msra.mxu0 0.0
        %8517 = vmatprep.subr.mxu0 0.0
        %8518 = vmatpush1.msra.mxu0 0.0
        %8519 = vmatprep.subr.mxu0 0.0
        %8520 = vmatpush1.msra.mxu0 0.0
        %8521 = vmatprep.subr.mxu0 0.0
        %8522 = vmatpush1.msra.mxu0 0.0
        %8523 = vmatprep.subr.mxu0 0.0
        %8524 = vmatpush1.msra.mxu0 0.0
        %8525 = vmatprep.subr.mxu0 0.0
        %8526 = vmatpush1.msra.mxu0 0.0
        %8527 = vmatprep.subr.mxu0 0.0
        %8528 = vmatpush1.msra.mxu0 0.0
        %8529 = vmatprep.mubr.f32.mxu0 0.0
        %8530 = vmatmul.mubr.f32.gmra.mrb[0].mxu0 %v8460
        %v8531 = vpop.f32.mrb[0].mxu0
        %v8532 = vadd.f32 %v8458, %v8531
        %v8533 = vpop.f32.mrb[0].mxu0
        %8534 = vmatprep.mubr.f32.mxu0 0.0
        %8535 = vmatmul.mubr.f32.gmra.mrb[0].mxu0 %v8463
        %v8536 = vpop.f32.mrb[0].mxu0
        %v8537 = vadd.f32 %v8458, %v8536
        %v8538 = vpop.f32.mrb[0].mxu0
        %8539 = vdwg.mxu0
        %v8540 = vmul.f32 %v8532, %v8532
        %v8541 = vmul.f32 %v8537, %v8537
        %v8542 = vsel %vm308, %v8540, 0.0
        %8543 = vadd.xlane.f32.xlu0 %v8542
        %v8544 = vpop.xlane.xlu0 %8543
        %v8545 = vsel %vm308, %v8541, 0.0
        %8546 = vadd.xlane.f32.xlu0 %v8545
        %v8547 = vpop.xlane.xlu0 %8546
        %v8548 = vrcp.pop 32.0
        %v8549 = vmul.f32 %v8544, %v8548
        %v8550 = vmul.f32 %v8547, %v8548
        %v8551 = vadd.f32 %v8549, 1e-06
        %v8552 = vadd.f32 %v8550, 1e-06
        %v8553 = vrsqrt.pop %v8551
        %v8554 = vrsqrt.pop %v8552
        %v8555 = vmul.f32 %v8532, %v8553
        %v8556 = vmul.f32 %v8537, %v8554
        %v8557 = vlaneseq
        %v8558 = vshrl.u32 %v8557, 7
        %v8559 = vsub.s32 0, %v8558
        %v8560 = vrot.slane %v298, %v8559
        %v8561 = vmul.f32 %v8555, %v8560
        %v8562 = vmul.f32 %v8556, %v8560
        %vm8563 = vcmp.ge.f32.partialorder %v8561, 0.0
        %vm8564 = vcmp.ge.f32.partialorder %v8562, 0.0
        %v8565 = vlaneseq
        %v8566 = vshrl.u32 %v8565, 7
        %v8567 = vsub.s32 0, %v8566
        %v8568 = vrot.slane %v299, %v8567
        %v8569 = vmul.f32 %v8568, %v8561
        %v8570 = vmul.f32 %v8568, %v8562
        %v8571 = vsel %vm8563, %v8561, %v8569
        %v8572 = vsel %vm8564, %v8562, %v8570
        %v8573 = vadd.f32 %v8571, %v292
        %v8574 = vadd.f32 %v8572, %v293
        %8575 = vst.msk [vmem:[%s286] sm:$0xff] %vm308, %v8573
        %8576 = vst.msk [vmem:[%s286 + $0x8] sm:$0xff] %vm308, %v8574
        %s8577 = sand.u32 %s182, 1
        %s8578 = scalar_lea.sflag [#allocation4], %s8577
        %s8579 = sand.u32 %s182, 1
        %s8580 = smul.addr %s8579, 16
        %s8581 = scalar_lea.vmem [#allocation5], %s8580
        // Predicated region
        $region53: #{tpu_custom_call.1} parent=47 // pred_check
          %p8582 = pneg %p192
        $region54: #{tpu_custom_call.1} parent=47 // pred_check_branch
          %8584 = sbr.rel (%p8582) target = $region56
        $region55: #{tpu_custom_call.1} parent=47 // pred_region
          %s8586 = ssub.s32 256, 256
          %8587 = vsyncadd %s8578, %s8586
          %s8588 = smul.addr %s22, 2
          %s8589 = smul.addr %s8588, 128
          %s8590 = scalar_lea.hbm %s7, %s8589
          %s8591 = sshll.u32 %s8581, 4
          %s8592 = int_to_ptr.vmem [resolvable:$true] %s8591
          %8597 = dma.vmem_to_hbm [thread:$0]  %s8592, 256, %s8590, %s8578, 128, 128, 8
        $region56: #{tpu_custom_call.1} parent=47 // pred_fallthru
          _
      $region48: #{tpu_custom_call.1} parent=5 // pred_fallthru
        _
      %p8598 = scmp.le.s32.totalorder 2, %s17
      // Predicated region
      $region57: #{tpu_custom_call.1} parent=5 // pred_check
        %p8599 = pneg %p8598
      $region58: #{tpu_custom_call.1} parent=5 // pred_check_branch
        %8601 = sbr.rel (%p8599) target = $region60
      $region59: #{tpu_custom_call.1} parent=5 // pred_region
        %s8602 = ssub.s32 %s17, 2
        // Predicated region
        $region61: #{tpu_custom_call.1} parent=59 // pred_check
          %p8603 = pneg %p198
        $region62: #{tpu_custom_call.1} parent=59 // pred_check_branch
          %8605 = sbr.rel (%p8603) target = $region64
        $region63: #{tpu_custom_call.1} parent=59 // pred_region
          %s8606 = sand.u32 %s183, 1
          %s8607 = scalar_lea.sflag [#allocation4], %s8606
          %s8608 = sand.u32 %s183, 1
          %s8609 = smul.addr %s8608, 16
          %s8610 = scalar_lea.vmem [#allocation5], %s8609
          %8611 = dma.done %s8607, 256
        $region64: #{tpu_custom_call.1} parent=59 // pred_fallthru
          _
      $region60: #{tpu_custom_call.1} parent=5 // pred_fallthru
        _
    $region6: #{tpu_custom_call.1} parent=1 // loop_footer
      %s21 = sadd.s32 1, %s17
    $region7: #{tpu_custom_call.1} parent=1 // loop_footer_branch
      %16 = sbr.rel target = $region3
    $region8: #{tpu_custom_call.1} parent=1 // loop_exit
      _
    %8612 = vsyncpa [#allocation3], 1
    %s8613 = scalar_lea.sflag [#allocation3], 1
    %8614 = vsyncpa %s8613, 1
    %8615 = vsyncpa [#allocation4], 1
    %s8616 = scalar_lea.sflag [#allocation4], 1
    %8617 = vsyncpa %s8616, 1

</llo_original>
